<compile_context>
chip_gen: v7x
topology: tpu7x:2x2x1
jax: 0.10.0
libtpu: 0.0.40
codegen_flags: <defaults>
</compile_context>

<pallas_src>
import jax
import jax.numpy as jnp
from jax.experimental import pallas as pl
from jax.experimental.pallas import tpu as pltpu

NEG_SLOPE = 0.01  # PyTorch LeakyReLU default
HIDDEN = 2048


def _leaky_relu(v):
    return jnp.where(v >= 0, v, NEG_SLOPE * v)


def _round_up(x, m):
    return ((x + m - 1) // m) * m


def _fused_mlp_kernel(x_ref, w1_ref, b1_ref, w2_ref, b2_ref, w3_ref, b3_ref,
                      o_ref, h1_ref):
    """Fused 3-layer MLP.

    Grid: (m, j) — m tiles the batch (parallel), j streams the 2048-wide hidden
    axis of layer 2 / contraction axis of layer 3 (arbitrary / reduction).
    """
    j = pl.program_id(1)

    @pl.when(j == 0)
    def _():
        # Layer 1 (x and W1 fully resident): h1 = lrelu(x @ W1 + b1).
        h1 = jnp.dot(x_ref[...], w1_ref[...], preferred_element_type=jnp.float32)
        h1 = _leaky_relu(h1 + b1_ref[...])
        h1_ref[...] = h1.astype(h1_ref.dtype)
        # Initialise the VMEM-resident output block with the final-layer bias.
        o_ref[...] = jnp.zeros(o_ref.shape, o_ref.dtype) + b3_ref[...]

    # Layer 2, one hidden tile: h2_j = lrelu(h1 @ W2[:, jt] + b2[jt]).
    h2 = jnp.dot(h1_ref[...], w2_ref[...], preferred_element_type=jnp.float32)
    h2 = _leaky_relu(h2 + b2_ref[...])

    # Layer 3 partial product accumulated directly into the output block
    # (its block index is invariant over j, so it stays resident in VMEM).
    o_ref[...] += jnp.dot(h2.astype(w3_ref.dtype), w3_ref[...],
                          preferred_element_type=jnp.float32)


def larger_mlp_forward(x, params):
    """x: (batch, input_dim) f32; params = ((w1,b1),(w2,b2),(w3,b3)),
    weights stored as (in_features, out_features)."""
    (w1, b1), (w2, b2), (w3, b3) = params
    M, K1 = x.shape
    H = w1.shape[1]
    N3 = w3.shape[1]
    assert w2.shape == (H, H) and w3.shape[0] == H

    # ---- lane-dense output: pad n_langs up to a multiple of 128 -------------
    N3p = _round_up(N3, 128)
    if N3p != N3:
        w3 = jnp.pad(w3, ((0, 0), (0, N3p - N3)))
        b3 = jnp.pad(b3, (0, N3p - N3))

    # ---- batch tiling (pad if a big batch doesn't divide the tile) ----------
    if M <= 512:
        tm, Mp = M, M            # whole (small) batch in one block
    else:
        tm = 256                 # feeds the 2x256 MXU on v6e/v7x
        Mp = _round_up(M, tm)
    if Mp != M:
        x = jnp.pad(x, ((0, Mp - M), (0, 0)))

    # ---- hidden streaming tile: largest divisor of H (H = 2048 -> 1024) -----
    tn = next((c for c in (1024, 512, 256, 128) if H % c == 0), H)

    b1_2 = b1.reshape(1, H)
    b2_2 = b2.reshape(1, H)
    b3_2 = b3.reshape(1, N3p)

    grid = (Mp // tm, H // tn)

    flops = 2 * Mp * (K1 * H + H * H + H * N3p)
    bytes_accessed = 4 * (Mp * K1 + K1 * H + H * H + H * N3p
                          + 2 * H + N3p + Mp * N3p)

    out = pl.pallas_call(
        _fused_mlp_kernel,
        out_shape=jax.ShapeDtypeStruct((Mp, N3p), jnp.float32),
        grid_spec=pltpu.PrefetchScalarGridSpec(
            num_scalar_prefetch=0,
            grid=grid,
            in_specs=[
                pl.BlockSpec((tm, K1), lambda m, j: (m, 0)),    # x (per batch tile)
                pl.BlockSpec((K1, H), lambda m, j: (0, 0)),     # W1 (resident)
                pl.BlockSpec((1, H), lambda m, j: (0, 0)),      # b1
                pl.BlockSpec((H, tn), lambda m, j: (0, j)),     # W2 tile (streamed)
                pl.BlockSpec((1, tn), lambda m, j: (0, j)),     # b2 tile
                pl.BlockSpec((tn, N3p), lambda m, j: (j, 0)),   # W3 tile (streamed)
                pl.BlockSpec((1, N3p), lambda m, j: (0, 0)),    # b3
            ],
            out_specs=pl.BlockSpec((tm, N3p), lambda m, j: (m, 0)),
            scratch_shapes=[pltpu.VMEM((tm, H), w2.dtype)],     # h1 stays in VMEM
        ),
        compiler_params=pltpu.CompilerParams(
            dimension_semantics=("parallel", "arbitrary"),
            vmem_limit_bytes=32 * 1024 * 1024,
        ),
        cost_estimate=pl.CostEstimate(
            flops=flops, transcendentals=0, bytes_accessed=bytes_accessed),
    )(x, w1, b1_2, w2, b2_2, w3, b3_2)

    return out[:M, :N3]


def init_params(key, input_dim, n_langs, hidden=HIDDEN, dtype=jnp.float32):
    """Deterministic init mimicking nn.Linear's U(-1/sqrt(fan_in), 1/sqrt(fan_in))."""
    dims = [(input_dim, hidden), (hidden, hidden), (hidden, n_langs)]
    params = []
    for (fan_in, fan_out) in dims:
        key, kw, kb = jax.random.split(key, 3)
        bound = 1.0 / jnp.sqrt(fan_in)
        w = jax.random.uniform(kw, (fan_in, fan_out), dtype, -bound, bound)
        b = jax.random.uniform(kb, (fan_out,), dtype, -bound, bound)
        params.append((w, b))
    return params


def reference_forward(x, params):
    (w1, b1), (w2, b2), (w3, b3) = params
    h1 = _leaky_relu(x @ w1 + b1)
    h2 = _leaky_relu(h1 @ w2 + b2)
    return h2 @ w3 + b3


if __name__ == "__main__":
    batch, input_dim, n_langs = 8, 32, 16

    key = jax.random.PRNGKey(0)
    key, kx = jax.random.split(key)
    x = jax.random.normal(kx, (batch, input_dim), jnp.float32)
    params = init_params(key, input_dim, n_langs)

    fwd = jax.jit(larger_mlp_forward)
    out = fwd(x, params)
    out = jax.block_until_ready(out)

    ref = reference_forward(x, params)
    assert out.shape == (batch, n_langs)
    assert jnp.allclose(out, ref, atol=1e-3, rtol=1e-3)

    print("KERNEL_OK")
</pallas_src>

<mosaic_0001>
module attributes {stable_mosaic.version = 11 : i64} {
  func.func @_fused_mlp_kernel(%arg0: i32, %arg1: i32, %arg2: memref<8x32xf32, #tpu.memory_space<vmem>>, %arg3: memref<32x2048xf32, #tpu.memory_space<vmem>>, %arg4: memref<1x2048xf32, #tpu.memory_space<vmem>>, %arg5: memref<2048x1024xf32, #tpu.memory_space<vmem>>, %arg6: memref<1x1024xf32, #tpu.memory_space<vmem>>, %arg7: memref<1024x128xf32, #tpu.memory_space<vmem>>, %arg8: memref<1x128xf32, #tpu.memory_space<vmem>>, %arg9: memref<8x128xf32, #tpu.memory_space<vmem>>, %arg10: memref<8x2048xf32, #tpu.memory_space<vmem>>) attributes {dimension_semantics = [#tpu.dimension_semantics<parallel>, #tpu.dimension_semantics<arbitrary>], iteration_bounds = array<i64: 1, 2>, scalar_prefetch = 0 : i64, scratch_operands = 1 : i64, tpu.core_type = #tpu.core_type<tc>, window_params = [{transform_indices = @transform_0, window_bounds = array<i64: 8, 32>}, {pipeline_mode = #tpu.pipeline_mode<synchronous>, transform_indices = @transform_1, window_bounds = array<i64: 32, 2048>}, {pipeline_mode = #tpu.pipeline_mode<synchronous>, transform_indices = @transform_2, window_bounds = array<i64: 1, 2048>}, {transform_indices = @transform_3, window_bounds = array<i64: 2048, 1024>}, {transform_indices = @transform_4, window_bounds = array<i64: 1, 1024>}, {transform_indices = @transform_5, window_bounds = array<i64: 1024, 128>}, {pipeline_mode = #tpu.pipeline_mode<synchronous>, transform_indices = @transform_6, window_bounds = array<i64: 1, 128>}, {transform_indices = @transform_7, window_bounds = array<i64: 8, 128>}]} {
    %c0_i32 = arith.constant 0 : i32
    %0 = arith.cmpi eq, %arg1, %c0_i32 : i32
    %1 = arith.extui %0 : i1 to i32
    %c0_i32_0 = arith.constant 0 : i32
    %2 = arith.cmpi ne, %1, %c0_i32_0 : i32
    scf.if %2 {
      %c0_15 = arith.constant 0 : index
      %c0_16 = arith.constant 0 : index
      %19 = vector.load %arg2[%c0_15, %c0_16] : memref<8x32xf32, #tpu.memory_space<vmem>>, vector<8x32xf32>
      %c0_17 = arith.constant 0 : index
      %c0_18 = arith.constant 0 : index
      %20 = vector.load %arg3[%c0_17, %c0_18] : memref<32x2048xf32, #tpu.memory_space<vmem>>, vector<32x2048xf32>
      %cst_19 = arith.constant dense<0.000000e+00> : vector<8x2048xf32>
      %21 = tpu.matmul %19, %20, %cst_19 {dimension_numbers = #tpu.dot_dimension_numbers<[1], [0], [0], [1], [0, 0, 1, 1], [], []>} : vector<8x32xf32>, vector<32x2048xf32>, vector<8x2048xf32> -> vector<8x2048xf32>
      %c0_20 = arith.constant 0 : index
      %c0_21 = arith.constant 0 : index
      %22 = vector.load %arg4[%c0_20, %c0_21] : memref<1x2048xf32, #tpu.memory_space<vmem>>, vector<1x2048xf32>
      %23 = vector.broadcast %22 : vector<1x2048xf32> to vector<8x2048xf32>
      %24 = arith.addf %21, %23 : vector<8x2048xf32>
      %cst_22 = arith.constant 0.000000e+00 : f32
      %25 = vector.broadcast %cst_22 : f32 to vector<8x2048xf32>
      %26 = arith.cmpf oge, %24, %25 : vector<8x2048xf32>
      %cst_23 = arith.constant 0.00999999977 : f32
      %27 = vector.broadcast %cst_23 : f32 to vector<8x2048xf32>
      %28 = arith.mulf %27, %24 : vector<8x2048xf32>
      %29 = arith.select %26, %24, %28 : vector<8x2048xi1>, vector<8x2048xf32>
      %c0_24 = arith.constant 0 : index
      %c0_25 = arith.constant 0 : index
      %30 = vector.load %arg10[%c0_24, %c0_25] : memref<8x2048xf32, #tpu.memory_space<vmem>>, vector<8x2048xf32>
      tpu.vector_store %arg10[%c0_24, %c0_25], %29 {strides = array<i32>} : memref<8x2048xf32, #tpu.memory_space<vmem>>, vector<8x2048xf32>,
      %cst_26 = arith.constant 0.000000e+00 : f32
      %31 = vector.broadcast %cst_26 : f32 to vector<8x128xf32>
      %c0_27 = arith.constant 0 : index
      %c0_28 = arith.constant 0 : index
      %32 = vector.load %arg8[%c0_27, %c0_28] : memref<1x128xf32, #tpu.memory_space<vmem>>, vector<1x128xf32>
      %33 = vector.broadcast %32 : vector<1x128xf32> to vector<8x128xf32>
      %34 = arith.addf %31, %33 : vector<8x128xf32>
      %c0_29 = arith.constant 0 : index
      %c0_30 = arith.constant 0 : index
      %35 = vector.load %arg9[%c0_29, %c0_30] : memref<8x128xf32, #tpu.memory_space<vmem>>, vector<8x128xf32>
      tpu.vector_store %arg9[%c0_29, %c0_30], %34 {strides = array<i32>} : memref<8x128xf32, #tpu.memory_space<vmem>>, vector<8x128xf32>,
    } else {
    }
    %c0 = arith.constant 0 : index
    %c0_1 = arith.constant 0 : index
    %3 = vector.load %arg10[%c0, %c0_1] : memref<8x2048xf32, #tpu.memory_space<vmem>>, vector<8x2048xf32>
    %c0_2 = arith.constant 0 : index
    %c0_3 = arith.constant 0 : index
    %4 = vector.load %arg5[%c0_2, %c0_3] : memref<2048x1024xf32, #tpu.memory_space<vmem>>, vector<2048x1024xf32>
    %cst = arith.constant dense<0.000000e+00> : vector<8x1024xf32>
    %5 = tpu.matmul %3, %4, %cst {dimension_numbers = #tpu.dot_dimension_numbers<[1], [0], [0], [1], [0, 0, 1, 1], [], []>} : vector<8x2048xf32>, vector<2048x1024xf32>, vector<8x1024xf32> -> vector<8x1024xf32>
    %c0_4 = arith.constant 0 : index
    %c0_5 = arith.constant 0 : index
    %6 = vector.load %arg6[%c0_4, %c0_5] : memref<1x1024xf32, #tpu.memory_space<vmem>>, vector<1x1024xf32>
    %7 = vector.broadcast %6 : vector<1x1024xf32> to vector<8x1024xf32>
    %8 = arith.addf %5, %7 : vector<8x1024xf32>
    %cst_6 = arith.constant 0.000000e+00 : f32
    %9 = vector.broadcast %cst_6 : f32 to vector<8x1024xf32>
    %10 = arith.cmpf oge, %8, %9 : vector<8x1024xf32>
    %cst_7 = arith.constant 0.00999999977 : f32
    %11 = vector.broadcast %cst_7 : f32 to vector<8x1024xf32>
    %12 = arith.mulf %11, %8 : vector<8x1024xf32>
    %13 = arith.select %10, %8, %12 : vector<8x1024xi1>, vector<8x1024xf32>
    %c0_8 = arith.constant 0 : index
    %c0_9 = arith.constant 0 : index
    %14 = vector.load %arg9[%c0_8, %c0_9] : memref<8x128xf32, #tpu.memory_space<vmem>>, vector<8x128xf32>
    %c0_10 = arith.constant 0 : index
    %c0_11 = arith.constant 0 : index
    %15 = vector.load %arg7[%c0_10, %c0_11] : memref<1024x128xf32, #tpu.memory_space<vmem>>, vector<1024x128xf32>
    %cst_12 = arith.constant dense<0.000000e+00> : vector<8x128xf32>
    %16 = tpu.matmul %13, %15, %cst_12 {dimension_numbers = #tpu.dot_dimension_numbers<[1], [0], [0], [1], [0, 0, 1, 1], [], []>} : vector<8x1024xf32>, vector<1024x128xf32>, vector<8x128xf32> -> vector<8x128xf32>
    %17 = arith.addf %14, %16 : vector<8x128xf32>
    %c0_13 = arith.constant 0 : index
    %c0_14 = arith.constant 0 : index
    %18 = vector.load %arg9[%c0_13, %c0_14] : memref<8x128xf32, #tpu.memory_space<vmem>>, vector<8x128xf32>
    tpu.vector_store %arg9[%c0_13, %c0_14], %17 {strides = array<i32>} : memref<8x128xf32, #tpu.memory_space<vmem>>, vector<8x128xf32>,
    return
  }
  func.func @transform_0(%arg0: i32, %arg1: i32) -> (i32, i32) {
    %c0_i32 = arith.constant 0 : i32
    %c0_i32_0 = arith.constant 0 : i32
    return %arg0, %c0_i32 : i32, i32
  }
  func.func @transform_1(%arg0: i32, %arg1: i32) -> (i32, i32) {
    %c0_i32 = arith.constant 0 : i32
    %c0_i32_0 = arith.constant 0 : i32
    %c0_i32_1 = arith.constant 0 : i32
    return %c0_i32, %c0_i32_0 : i32, i32
  }
  func.func @transform_2(%arg0: i32, %arg1: i32) -> (i32, i32) {
    %c0_i32 = arith.constant 0 : i32
    %c0_i32_0 = arith.constant 0 : i32
    %c0_i32_1 = arith.constant 0 : i32
    return %c0_i32, %c0_i32_0 : i32, i32
  }
  func.func @transform_3(%arg0: i32, %arg1: i32) -> (i32, i32) {
    %c0_i32 = arith.constant 0 : i32
    %c0_i32_0 = arith.constant 0 : i32
    return %c0_i32, %arg1 : i32, i32
  }
  func.func @transform_4(%arg0: i32, %arg1: i32) -> (i32, i32) {
    %c0_i32 = arith.constant 0 : i32
    %c0_i32_0 = arith.constant 0 : i32
    return %c0_i32, %arg1 : i32, i32
  }
  func.func @transform_5(%arg0: i32, %arg1: i32) -> (i32, i32) {
    %c0_i32 = arith.constant 0 : i32
    %c0_i32_0 = arith.constant 0 : i32
    return %arg1, %c0_i32 : i32, i32
  }
  func.func @transform_6(%arg0: i32, %arg1: i32) -> (i32, i32) {
    %c0_i32 = arith.constant 0 : i32
    %c0_i32_0 = arith.constant 0 : i32
    %c0_i32_1 = arith.constant 0 : i32
    return %c0_i32, %c0_i32_0 : i32, i32
  }
  func.func @transform_7(%arg0: i32, %arg1: i32) -> (i32, i32) {
    %c0_i32 = arith.constant 0 : i32
    %c0_i32_0 = arith.constant 0 : i32
    return %arg0, %c0_i32 : i32, i32
  }
}

</mosaic_0001>

<llo_original>
// kernel: larger_mlp_forward.1
$region0: #{larger_mlp_forward.1}
  #allocation0 [shape = 'u32[]', space=smem, size = 0x4, offset = 0x4, fixed_abs, tag = 'smem constant byte address 0x4 - core index']
  #allocation1 [shape = 'u32[144,128]{1,0:T(1,128)}', space=vmem, size = 0x12000, scoped, tag = 'internal scratch']
  #allocation2 [shape = 'f32[8,2048]{1,0:T(8,128)}', space=vmem, size = 0x10000, scoped, tag = 'scratch operand']
  %s0 = inlined_call_operand.hbm [shape: f32[8,32], index: 0, kind: input, shape index: {}]
  %s1 = inlined_call_operand.hbm [shape: f32[32,2048], index: 1, kind: input, shape index: {}]
  %s2 = inlined_call_operand.hbm [shape: f32[1,2048], index: 2, kind: input, shape index: {}]
  %s3 = inlined_call_operand.hbm [shape: f32[2048,2048], index: 3, kind: input, shape index: {}]
  %s4 = inlined_call_operand.hbm [shape: f32[1,2048], index: 4, kind: input, shape index: {}]
  %s5 = inlined_call_operand.vmem [shape: f32[2048,128], index: 5, kind: input, shape index: {}]
  %s6 = inlined_call_operand.vmem [shape: f32[1,128], index: 6, kind: input, shape index: {}]
  %s7 = inlined_call_operand.hbm [shape: f32[8,128], index: 7, kind: output, shape index: {}]
  %s8 = sld [smem:[#allocation0]]
  $region85: #{larger_mlp_forward.1} parent=0
    _
  %s10 = ssub.s32 1, %s8
  %s11 = scalar_select 0, %s10, %s8
  $region1: #{larger_mlp_forward.1} parent=0
    #allocation3 [shape = 'u8[4096]{0}', space=vmem, size = 0x1000, scoped, tag = 'input window, operand 0, single buffered']
    #allocation4 [shape = 's32[2]{0}', space=sflag, size = 0x8, scoped, tag = 'scoped memory for larger_mlp_forward.1']
    #allocation5 [shape = 's32[2]{0}', space=sflag, size = 0x8, scoped, tag = 'scoped memory for larger_mlp_forward.1']
    #allocation6 [shape = 'u8[262144]{0}', space=vmem, size = 0x40000, scoped, tag = 'input window, operand 1, single buffered']
    #allocation7 [shape = 's32[1]{0}', space=sflag, size = 0x4, scoped, tag = 'scoped memory for larger_mlp_forward.1']
    #allocation8 [shape = 'u8[8192]{0}', space=vmem, size = 0x2000, scoped, tag = 'input window, operand 2, single buffered']
    #allocation9 [shape = 'u8[16777216]{0}', space=vmem, size = 0x1000000, scoped, tag = 'input window, operand 3']
    #allocation10 [shape = 's32[2]{0}', space=sflag, size = 0x8, scoped, tag = 'scoped memory for larger_mlp_forward.1']
    #allocation11 [shape = 'u8[8192]{0}', space=vmem, size = 0x2000, scoped, tag = 'input window, operand 4']
    #allocation12 [shape = 'u8[4096]{0}', space=vmem, size = 0x1000, scoped, tag = 'output window, operand 0, single buffered']
    %12 = vsyncpa [#allocation4], 0
    %13 = vsyncpa [#allocation7], 0
    %14 = vsyncpa [#allocation10], 0
    %s15 = scalar_lea.sflag [#allocation10], 1
    %16 = vsyncpa %s15, 0
    %17 = vsyncpa [#allocation5], 0
    loop: start=0, step=1, limit=4
    $region2: #{larger_mlp_forward.1} parent=1 // loop_pre_header
      _
    $region3: #{larger_mlp_forward.1} parent=1 // loop_header
      %s19 = sphi 0, %s23
      %p20 = scmp.ge.s32.totalorder %s19, 4
      %s26 = sphi 0, %s38
      %s27 = sphi 0, %s34
      %s28 = sphi 0, %s26
      %s29 = sphi 0, %s27
      %s30 = sphi 0, %s28
      %s31 = sphi 0, %s29
      %s41 = sphi 0, %s43
      %s44 = sphi 0, %s41
      %s45 = sphi 0, %s44
      %s61 = sphi 0, %s45
      %s65 = sphi 0, %s65
      %s67 = sphi 0, %s65
      %s68 = sphi 0, %s67
      %s82 = sphi 0, %s68
      %s86 = sphi 0, %s86
      %s88 = sphi 0, %s86
      %s89 = sphi 0, %s88
      %s103 = sphi 0, %s89
      %s109 = sphi 0, %s111
      %s112 = sphi 0, %s109
      %s113 = sphi 0, %s112
      %s129 = sphi 0, %s113
      %s135 = sphi 0, %s137
      %s138 = sphi 0, %s135
      %s139 = sphi 0, %s138
      %s155 = sphi 0, %s139
      %s161 = sphi 0, %s163
      %s164 = sphi 0, %s161
      %s165 = sphi 0, %s164
      %s181 = sphi 0, %s165
      %s185 = sphi 0, %s185
      %s187 = sphi 0, %s185
      %s188 = sphi 0, %s187
      %s202 = sphi 0, %s188
      %s208 = sphi 0, %s210
      %s211 = sphi 0, %s208
      %s212 = sphi 0, %s211
      %s228 = sphi 0, %s212
    $region4: #{larger_mlp_forward.1} parent=1 // loop_header_branch
      %22 = sbr.rel (%p20) target = $region8
    $region5: #{larger_mlp_forward.1} parent=1 // loop_body
      %s24 = ssub.s32 %s19, 1
      %s25 = ssub.s32 %s19, 2
      %s32 = sadd.s32 1, %s27
      %p33 = scmp.ge.s32.totalorder %s32, 2
      %s34 = scalar_select %p33, 0, %s32
      %s35 = sadd.s32 1, %s26
      %s36 = scalar_select %p33, %s35, %s26
      %p37 = scmp.ge.s32.totalorder %s36, 1
      %s38 = scalar_select %p37, 0, %s36
      %s39 = ssub.s32 %s26, %s38
      %p40 = scmp.eq.s32.totalorder %s39, 0
      %s42 = sadd.s32 %s41, 1
      %s43 = scalar_select %p40, %s41, %s42
      %p46 = pneg %p40
      %p47 = scmp.eq.s32.totalorder %s19, 1
      %p48 = por %p46, %p47
      %p49 = scmp.ne.s32.totalorder %s41, %s44
      %p50 = scmp.eq.s32.totalorder %s19, 0
      %p51 = por %p49, %p50
      %p52 = scmp.ne.s32.totalorder %s41, %s44
      %p53 = scmp.eq.s32.totalorder %s24, 1
      %p54 = por %p52, %p53
      %p55 = scmp.ne.s32.totalorder %s44, %s45
      %p56 = scmp.eq.s32.totalorder %s24, 0
      %p57 = por %p55, %p56
      %p58 = scmp.ne.s32.totalorder %s44, %s45
      %p59 = scmp.eq.s32.totalorder %s25, 1
      %p60 = por %p58, %p59
      %p62 = scmp.ne.s32.totalorder %s45, %s61
      %p63 = scmp.eq.s32.totalorder %s25, 0
      %p64 = por %p62, %p63
      %s66 = sadd.s32 %s65, 1
      %p69 = scmp.eq.s32.totalorder %s19, 1
      %p70 = scmp.ne.s32.totalorder %s65, %s67
      %p71 = scmp.eq.s32.totalorder %s19, 0
      %p72 = por %p70, %p71
      %p73 = scmp.ne.s32.totalorder %s65, %s67
      %p74 = scmp.eq.s32.totalorder %s24, 1
      %p75 = por %p73, %p74
      %p76 = scmp.ne.s32.totalorder %s67, %s68
      %p77 = scmp.eq.s32.totalorder %s24, 0
      %p78 = por %p76, %p77
      %p79 = scmp.ne.s32.totalorder %s67, %s68
      %p80 = scmp.eq.s32.totalorder %s25, 1
      %p81 = por %p79, %p80
      %p83 = scmp.ne.s32.totalorder %s68, %s82
      %p84 = scmp.eq.s32.totalorder %s25, 0
      %p85 = por %p83, %p84
      %s87 = sadd.s32 %s86, 1
      %p90 = scmp.eq.s32.totalorder %s19, 1
      %p91 = scmp.ne.s32.totalorder %s86, %s88
      %p92 = scmp.eq.s32.totalorder %s19, 0
      %p93 = por %p91, %p92
      %p94 = scmp.ne.s32.totalorder %s86, %s88
      %p95 = scmp.eq.s32.totalorder %s24, 1
      %p96 = por %p94, %p95
      %p97 = scmp.ne.s32.totalorder %s88, %s89
      %p98 = scmp.eq.s32.totalorder %s24, 0
      %p99 = por %p97, %p98
      %p100 = scmp.ne.s32.totalorder %s88, %s89
      %p101 = scmp.eq.s32.totalorder %s25, 1
      %p102 = por %p100, %p101
      %p104 = scmp.ne.s32.totalorder %s89, %s103
      %p105 = scmp.eq.s32.totalorder %s25, 0
      %p106 = por %p104, %p105
      %s107 = ssub.s32 %s27, %s34
      %p108 = scmp.eq.s32.totalorder %s107, 0
      %s110 = sadd.s32 %s109, 1
      %s111 = scalar_select %p108, %s109, %s110
      %p114 = pneg %p108
      %p115 = scmp.eq.s32.totalorder %s19, 1
      %p116 = por %p114, %p115
      %p117 = scmp.ne.s32.totalorder %s109, %s112
      %p118 = scmp.eq.s32.totalorder %s19, 0
      %p119 = por %p117, %p118
      %p120 = scmp.ne.s32.totalorder %s109, %s112
      %p121 = scmp.eq.s32.totalorder %s24, 1
      %p122 = por %p120, %p121
      %p123 = scmp.ne.s32.totalorder %s112, %s113
      %p124 = scmp.eq.s32.totalorder %s24, 0
      %p125 = por %p123, %p124
      %p126 = scmp.ne.s32.totalorder %s112, %s113
      %p127 = scmp.eq.s32.totalorder %s25, 1
      %p128 = por %p126, %p127
      %p130 = scmp.ne.s32.totalorder %s113, %s129
      %p131 = scmp.eq.s32.totalorder %s25, 0
      %p132 = por %p130, %p131
      %s133 = ssub.s32 %s27, %s34
      %p134 = scmp.eq.s32.totalorder %s133, 0
      %s136 = sadd.s32 %s135, 1
      %s137 = scalar_select %p134, %s135, %s136
      %p140 = pneg %p134
      %p141 = scmp.eq.s32.totalorder %s19, 1
      %p142 = por %p140, %p141
      %p143 = scmp.ne.s32.totalorder %s135, %s138
      %p144 = scmp.eq.s32.totalorder %s19, 0
      %p145 = por %p143, %p144
      %p146 = scmp.ne.s32.totalorder %s135, %s138
      %p147 = scmp.eq.s32.totalorder %s24, 1
      %p148 = por %p146, %p147
      %p149 = scmp.ne.s32.totalorder %s138, %s139
      %p150 = scmp.eq.s32.totalorder %s24, 0
      %p151 = por %p149, %p150
      %p152 = scmp.ne.s32.totalorder %s138, %s139
      %p153 = scmp.eq.s32.totalorder %s25, 1
      %p154 = por %p152, %p153
      %p156 = scmp.ne.s32.totalorder %s139, %s155
      %p157 = scmp.eq.s32.totalorder %s25, 0
      %p158 = por %p156, %p157
      %s159 = ssub.s32 %s27, %s34
      %p160 = scmp.eq.s32.totalorder %s159, 0
      %s162 = sadd.s32 %s161, 1
      %s163 = scalar_select %p160, %s161, %s162
      %p166 = pneg %p160
      %p167 = scmp.eq.s32.totalorder %s19, 1
      %p168 = por %p166, %p167
      %p169 = scmp.ne.s32.totalorder %s161, %s164
      %p170 = scmp.eq.s32.totalorder %s19, 0
      %p171 = por %p169, %p170
      %p172 = scmp.ne.s32.totalorder %s161, %s164
      %p173 = scmp.eq.s32.totalorder %s24, 1
      %p174 = por %p172, %p173
      %p175 = scmp.ne.s32.totalorder %s164, %s165
      %p176 = scmp.eq.s32.totalorder %s24, 0
      %p177 = por %p175, %p176
      %p178 = scmp.ne.s32.totalorder %s164, %s165
      %p179 = scmp.eq.s32.totalorder %s25, 1
      %p180 = por %p178, %p179
      %p182 = scmp.ne.s32.totalorder %s165, %s181
      %p183 = scmp.eq.s32.totalorder %s25, 0
      %p184 = por %p182, %p183
      %s186 = sadd.s32 %s185, 1
      %p189 = scmp.eq.s32.totalorder %s19, 1
      %p190 = scmp.ne.s32.totalorder %s185, %s187
      %p191 = scmp.eq.s32.totalorder %s19, 0
      %p192 = por %p190, %p191
      %p193 = scmp.ne.s32.totalorder %s185, %s187
      %p194 = scmp.eq.s32.totalorder %s24, 1
      %p195 = por %p193, %p194
      %p196 = scmp.ne.s32.totalorder %s187, %s188
      %p197 = scmp.eq.s32.totalorder %s24, 0
      %p198 = por %p196, %p197
      %p199 = scmp.ne.s32.totalorder %s187, %s188
      %p200 = scmp.eq.s32.totalorder %s25, 1
      %p201 = por %p199, %p200
      %p203 = scmp.ne.s32.totalorder %s188, %s202
      %p204 = scmp.eq.s32.totalorder %s25, 0
      %p205 = por %p203, %p204
      %s206 = ssub.s32 %s26, %s38
      %p207 = scmp.eq.s32.totalorder %s206, 0
      %s209 = sadd.s32 %s208, 1
      %s210 = scalar_select %p207, %s208, %s209
      %p213 = pneg %p207
      %p214 = scmp.eq.s32.totalorder %s19, 1
      %p215 = por %p213, %p214
      %p216 = scmp.ne.s32.totalorder %s208, %s211
      %p217 = scmp.eq.s32.totalorder %s19, 0
      %p218 = por %p216, %p217
      %p219 = scmp.ne.s32.totalorder %s208, %s211
      %p220 = scmp.eq.s32.totalorder %s24, 1
      %p221 = por %p219, %p220
      %p222 = scmp.ne.s32.totalorder %s211, %s212
      %p223 = scmp.eq.s32.totalorder %s24, 0
      %p224 = por %p222, %p223
      %p225 = scmp.ne.s32.totalorder %s211, %s212
      %p226 = scmp.eq.s32.totalorder %s25, 1
      %p227 = por %p225, %p226
      %p229 = scmp.ne.s32.totalorder %s212, %s228
      %p230 = scmp.eq.s32.totalorder %s25, 0
      %p231 = por %p229, %p230
      %p232 = scmp.le.s32.totalorder 1, %s19
      %p233 = scmp.lt.s32.totalorder %s19, 3
      %p234 = pnand %p232, %p233
      %p235 = pneg %p234
      // Predicated region
      $region9: #{larger_mlp_forward.1} parent=5 // pred_check
        _
      $region10: #{larger_mlp_forward.1} parent=5 // pred_check_branch
        %237 = sbr.rel (%p234) target = $region12
      $region11: #{larger_mlp_forward.1} parent=5 // pred_region
        %s238 = ssub.s32 %s19, 1
        // Predicated region
        $region13: #{larger_mlp_forward.1} parent=11 // pred_check
          %p239 = pneg %p57
        $region14: #{larger_mlp_forward.1} parent=11 // pred_check_branch
          %241 = sbr.rel (%p239) target = $region16
        $region15: #{larger_mlp_forward.1} parent=11 // pred_region
          %s243 = ssub.s32 128, 128
          %244 = vsyncadd [#allocation4], %s243
          %s245 = smul.addr %s28, 128
          %s246 = scalar_lea.hbm %s0, %s245
          %s248 = sshll.u32 [#allocation3], 4
          %s249 = int_to_ptr.vmem [resolvable:$true] %s248
          %251 = dma.hbm_to_vmem [thread:$0]  %s246, 128, %s249, [#allocation4]
        $region16: #{larger_mlp_forward.1} parent=11 // pred_fallthru
          _
        // Predicated region
        $region17: #{larger_mlp_forward.1} parent=11 // pred_check
          %p252 = pneg %p78
        $region18: #{larger_mlp_forward.1} parent=11 // pred_check_branch
          %254 = sbr.rel (%p252) target = $region20
        $region19: #{larger_mlp_forward.1} parent=11 // pred_region
          %s256 = ssub.s32 8192, 8192
          %257 = vsyncadd [#allocation7], %s256
          %s258 = sshll.u32 [#allocation6], 4
          %s259 = int_to_ptr.vmem [resolvable:$true] %s258
          %264 = dma.hbm_to_vmem [thread:$0]  %s1, 8192, %s259, [#allocation7], 2048, 2048, 128
        $region20: #{larger_mlp_forward.1} parent=11 // pred_fallthru
          _
        // Predicated region
        $region21: #{larger_mlp_forward.1} parent=11 // pred_check
          %p265 = pneg %p99
        $region22: #{larger_mlp_forward.1} parent=11 // pred_check_branch
          %267 = sbr.rel (%p265) target = $region24
        $region23: #{larger_mlp_forward.1} parent=11 // pred_region
          %s269 = ssub.s32 256, 256
          %270 = vsyncadd [#allocation7], %s269
          %s272 = sshll.u32 [#allocation8], 4
          %s273 = int_to_ptr.vmem [resolvable:$true] %s272
          %275 = dma.hbm_to_vmem [thread:$0]  %s2, 256, %s273, [#allocation7]
        $region24: #{larger_mlp_forward.1} parent=11 // pred_fallthru
          _
        // Predicated region
        $region25: #{larger_mlp_forward.1} parent=11 // pred_check
          %p276 = pneg %p198
        $region26: #{larger_mlp_forward.1} parent=11 // pred_check_branch
          %278 = sbr.rel (%p276) target = $region28
        $region27: #{larger_mlp_forward.1} parent=11 // pred_region
          _
        $region28: #{larger_mlp_forward.1} parent=11 // pred_fallthru
          _
      $region12: #{larger_mlp_forward.1} parent=5 // pred_fallthru
        _
      %p279 = scmp.lt.s32.totalorder %s19, 2
      // Predicated region
      $region29: #{larger_mlp_forward.1} parent=5 // pred_check
        %p280 = pneg %p279
      $region30: #{larger_mlp_forward.1} parent=5 // pred_check_branch
        %282 = sbr.rel (%p280) target = $region32
      $region31: #{larger_mlp_forward.1} parent=5 // pred_region
        // Predicated region
        $region33: #{larger_mlp_forward.1} parent=31 // pred_check
          %p283 = pneg %p119
        $region34: #{larger_mlp_forward.1} parent=31 // pred_check_branch
          %285 = sbr.rel (%p283) target = $region36
        $region35: #{larger_mlp_forward.1} parent=31 // pred_region
          %s286 = sand.u32 %s19, 1
          %s287 = scalar_lea.sflag [#allocation10], %s286
          %s288 = sand.u32 %s109, 1
          %s289 = smul.addr %s288, 16384
          %s290 = scalar_lea.vmem [#allocation9], %s289
          %s291 = smul.u32 8, %s27
          %s293 = ssub.s32 262144, 262144
          %294 = vsyncadd %s287, %s293
          %s295 = smul.addr %s291, 128
          %s296 = scalar_lea.hbm %s3, %s295
          %s297 = sshll.u32 %s290, 4
          %s298 = int_to_ptr.vmem [resolvable:$true] %s297
          %303 = dma.hbm_to_vmem [thread:$0]  %s296, 262144, %s298, %s287, 2048, 1024, 64
        $region36: #{larger_mlp_forward.1} parent=31 // pred_fallthru
          _
        // Predicated region
        $region37: #{larger_mlp_forward.1} parent=31 // pred_check
          %p304 = pneg %p145
        $region38: #{larger_mlp_forward.1} parent=31 // pred_check_branch
          %306 = sbr.rel (%p304) target = $region40
        $region39: #{larger_mlp_forward.1} parent=31 // pred_region
          %s307 = sand.u32 %s19, 1
          %s308 = scalar_lea.sflag [#allocation10], %s307
          %s309 = sand.u32 %s135, 1
          %s310 = smul.addr %s309, 8
          %s311 = scalar_lea.vmem [#allocation11], %s310
          %s312 = smul.u32 8, %s27
          %s314 = ssub.s32 128, 128
          %315 = vsyncadd %s308, %s314
          %s316 = smul.addr %s312, 16
          %s317 = scalar_lea.hbm %s4, %s316
          %s319 = sshll.u32 %s311, 4
          %s320 = int_to_ptr.vmem [resolvable:$true] %s319
          %322 = dma.hbm_to_vmem [thread:$0]  %s317, 128, %s320, %s308
        $region40: #{larger_mlp_forward.1} parent=31 // pred_fallthru
          _
        // Predicated region
        $region41: #{larger_mlp_forward.1} parent=31 // pred_check
          %p323 = pneg %p171
        $region42: #{larger_mlp_forward.1} parent=31 // pred_check_branch
          %325 = sbr.rel (%p323) target = $region44
        $region43: #{larger_mlp_forward.1} parent=31 // pred_region
          %s326 = smul.u32 128, %s27
          %p327 = scmp.lt.s32.totalorder %s326, 255
          %s328 = scalar_select %p327, %s326, 255
          %s329 = smul.addr %s328, 8
          %s330 = scalar_lea.vmem %s5, %s329
          %s331 = smul.u32 128, %s27
        $region44: #{larger_mlp_forward.1} parent=31 // pred_fallthru
          _
      $region32: #{larger_mlp_forward.1} parent=5 // pred_fallthru
        _
      %p332 = scmp.le.s32.totalorder 1, %s19
      %p333 = scmp.lt.s32.totalorder %s19, 3
      %p334 = pnand %p332, %p333
      %p335 = pneg %p334
      // Predicated region
      $region45: #{larger_mlp_forward.1} parent=5 // pred_check
        _
      $region46: #{larger_mlp_forward.1} parent=5 // pred_check_branch
        %337 = sbr.rel (%p334) target = $region48
      $region47: #{larger_mlp_forward.1} parent=5 // pred_region
        %s338 = ssub.s32 %s19, 1
        // Predicated region
        $region49: #{larger_mlp_forward.1} parent=47 // pred_check
          %p339 = pneg %p57
        $region50: #{larger_mlp_forward.1} parent=47 // pred_check_branch
          %341 = sbr.rel (%p339) target = $region52
        $region51: #{larger_mlp_forward.1} parent=47 // pred_region
          %342 = dma.done [#allocation4], 128
        $region52: #{larger_mlp_forward.1} parent=47 // pred_fallthru
          _
        // Predicated region
        $region53: #{larger_mlp_forward.1} parent=47 // pred_check
          %p343 = pneg %p78
        $region54: #{larger_mlp_forward.1} parent=47 // pred_check_branch
          %345 = sbr.rel (%p343) target = $region56
        $region55: #{larger_mlp_forward.1} parent=47 // pred_region
          %346 = dma.done [#allocation7], 8192
        $region56: #{larger_mlp_forward.1} parent=47 // pred_fallthru
          _
        // Predicated region
        $region57: #{larger_mlp_forward.1} parent=47 // pred_check
          %p347 = pneg %p99
        $region58: #{larger_mlp_forward.1} parent=47 // pred_check_branch
          %349 = sbr.rel (%p347) target = $region60
        $region59: #{larger_mlp_forward.1} parent=47 // pred_region
          %350 = dma.done [#allocation7], 256
        $region60: #{larger_mlp_forward.1} parent=47 // pred_fallthru
          _
        %s351 = sand.u32 %s24, 1
        %s352 = scalar_lea.sflag [#allocation10], %s351
        %s353 = sand.u32 %s112, 1
        %s354 = smul.addr %s353, 16384
        %s355 = scalar_lea.vmem [#allocation9], %s354
        // Predicated region
        $region61: #{larger_mlp_forward.1} parent=47 // pred_check
          %p356 = pneg %p125
        $region62: #{larger_mlp_forward.1} parent=47 // pred_check_branch
          %358 = sbr.rel (%p356) target = $region64
        $region63: #{larger_mlp_forward.1} parent=47 // pred_region
          %359 = dma.done %s352, 262144
        $region64: #{larger_mlp_forward.1} parent=47 // pred_fallthru
          _
        %s360 = sand.u32 %s24, 1
        %s361 = scalar_lea.sflag [#allocation10], %s360
        %s362 = sand.u32 %s138, 1
        %s363 = smul.addr %s362, 8
        %s364 = scalar_lea.vmem [#allocation11], %s363
        // Predicated region
        $region65: #{larger_mlp_forward.1} parent=47 // pred_check
          %p365 = pneg %p151
        $region66: #{larger_mlp_forward.1} parent=47 // pred_check_branch
          %367 = sbr.rel (%p365) target = $region68
        $region67: #{larger_mlp_forward.1} parent=47 // pred_region
          %368 = dma.done %s361, 128
        $region68: #{larger_mlp_forward.1} parent=47 // pred_fallthru
          _
        %p369 = pneg %p57
        %p370 = pneg %p54
        %p371 = pneg %p78
        %p372 = pneg %p75
        %p373 = pneg %p99
        %p374 = pneg %p96
        %s375 = sand.u32 %s24, 1
        %s376 = scalar_lea.sflag [#allocation10], %s375
        %s377 = sand.u32 %s112, 1
        %s378 = smul.addr %s377, 16384
        %s379 = scalar_lea.vmem [#allocation9], %s378
        %p380 = pneg %p125
        %p381 = pneg %p122
        %s382 = sand.u32 %s24, 1
        %s383 = scalar_lea.sflag [#allocation10], %s382
        %s384 = sand.u32 %s138, 1
        %s385 = smul.addr %s384, 8
        %s386 = scalar_lea.vmem [#allocation11], %s385
        %p387 = pneg %p151
        %p388 = pneg %p148
        %s389 = smul.u32 128, %s29
        %p390 = scmp.lt.s32.totalorder %s389, 255
        %s391 = scalar_select %p390, %s389, 255
        %s392 = smul.addr %s391, 8
        %s393 = scalar_lea.vmem %s5, %s392
        %p394 = pneg %p177
        %p395 = pneg %p174
        %p396 = pneg %p198
        %p397 = pneg %p195
        %p398 = pneg %p224
        %p399 = pneg %p221
        %s400 = smul.u32 8, %s29
        %s401 = smul.u32 8, %s29
        %s402 = smul.u32 128, %s29
        %p403 = scmp.lt.s32.totalorder %s402, 255
        %s404 = scalar_select %p403, %s402, 255
        %s405 = smul.addr %s404, 8
        %s406 = scalar_lea.vmem %s5, %s405
        %s407 = smul.u32 128, %s29
        %p408 = scmp.eq.s32.totalorder %s29, 0
        // Predicated region
        $region69: #{larger_mlp_forward.1} parent=47 // pred_check
          %p409 = pneg %p408
        $region70: #{larger_mlp_forward.1} parent=47 // pred_check_branch
          %411 = sbr.rel (%p409) target = $region72
        $region71: #{larger_mlp_forward.1} parent=47 // pred_region
          %v412 = vld [vmem:[#allocation3] sm:$0xff]
          %v413 = vld [vmem:[#allocation6] sm:$0xff]
          %v414 = vld [vmem:[#allocation6 + $0x8] sm:$0xff]
          %v415 = vld [vmem:[#allocation6 + $0x10] sm:$0xff]
          %v416 = vld [vmem:[#allocation6 + $0x18] sm:$0xff]
          %v417 = vld [vmem:[#allocation6 + $0x20] sm:$0xff]
          %v418 = vld [vmem:[#allocation6 + $0x28] sm:$0xff]
          %v419 = vld [vmem:[#allocation6 + $0x30] sm:$0xff]
          %v420 = vld [vmem:[#allocation6 + $0x38] sm:$0xff]
          %v421 = vld [vmem:[#allocation6 + $0x40] sm:$0xff]
          %v422 = vld [vmem:[#allocation6 + $0x48] sm:$0xff]
          %v423 = vld [vmem:[#allocation6 + $0x50] sm:$0xff]
          %v424 = vld [vmem:[#allocation6 + $0x58] sm:$0xff]
          %v425 = vld [vmem:[#allocation6 + $0x60] sm:$0xff]
          %v426 = vld [vmem:[#allocation6 + $0x68] sm:$0xff]
          %v427 = vld [vmem:[#allocation6 + $0x70] sm:$0xff]
          %v428 = vld [vmem:[#allocation6 + $0x78] sm:$0xff]
          %v429 = vld [vmem:[#allocation6 + $0x80] sm:$0xff]
          %v430 = vld [vmem:[#allocation6 + $0x88] sm:$0xff]
          %v431 = vld [vmem:[#allocation6 + $0x90] sm:$0xff]
          %v432 = vld [vmem:[#allocation6 + $0x98] sm:$0xff]
          %v433 = vld [vmem:[#allocation6 + $0xa0] sm:$0xff]
          %v434 = vld [vmem:[#allocation6 + $0xa8] sm:$0xff]
          %v435 = vld [vmem:[#allocation6 + $0xb0] sm:$0xff]
          %v436 = vld [vmem:[#allocation6 + $0xb8] sm:$0xff]
          %v437 = vld [vmem:[#allocation6 + $0xc0] sm:$0xff]
          %v438 = vld [vmem:[#allocation6 + $0xc8] sm:$0xff]
          %v439 = vld [vmem:[#allocation6 + $0xd0] sm:$0xff]
          %v440 = vld [vmem:[#allocation6 + $0xd8] sm:$0xff]
          %v441 = vld [vmem:[#allocation6 + $0xe0] sm:$0xff]
          %v442 = vld [vmem:[#allocation6 + $0xe8] sm:$0xff]
          %v443 = vld [vmem:[#allocation6 + $0xf0] sm:$0xff]
          %v444 = vld [vmem:[#allocation6 + $0xf8] sm:$0xff]
          %v445 = vld [vmem:[#allocation6 + $0x100] sm:$0xff]
          %v446 = vld [vmem:[#allocation6 + $0x108] sm:$0xff]
          %v447 = vld [vmem:[#allocation6 + $0x110] sm:$0xff]
          %v448 = vld [vmem:[#allocation6 + $0x118] sm:$0xff]
          %v449 = vld [vmem:[#allocation6 + $0x120] sm:$0xff]
          %v450 = vld [vmem:[#allocation6 + $0x128] sm:$0xff]
          %v451 = vld [vmem:[#allocation6 + $0x130] sm:$0xff]
          %v452 = vld [vmem:[#allocation6 + $0x138] sm:$0xff]
          %v453 = vld [vmem:[#allocation6 + $0x140] sm:$0xff]
          %v454 = vld [vmem:[#allocation6 + $0x148] sm:$0xff]
          %v455 = vld [vmem:[#allocation6 + $0x150] sm:$0xff]
          %v456 = vld [vmem:[#allocation6 + $0x158] sm:$0xff]
          %v457 = vld [vmem:[#allocation6 + $0x160] sm:$0xff]
          %v458 = vld [vmem:[#allocation6 + $0x168] sm:$0xff]
          %v459 = vld [vmem:[#allocation6 + $0x170] sm:$0xff]
          %v460 = vld [vmem:[#allocation6 + $0x178] sm:$0xff]
          %v461 = vld [vmem:[#allocation6 + $0x180] sm:$0xff]
          %v462 = vld [vmem:[#allocation6 + $0x188] sm:$0xff]
          %v463 = vld [vmem:[#allocation6 + $0x190] sm:$0xff]
          %v464 = vld [vmem:[#allocation6 + $0x198] sm:$0xff]
          %v465 = vld [vmem:[#allocation6 + $0x1a0] sm:$0xff]
          %v466 = vld [vmem:[#allocation6 + $0x1a8] sm:$0xff]
          %v467 = vld [vmem:[#allocation6 + $0x1b0] sm:$0xff]
          %v468 = vld [vmem:[#allocation6 + $0x1b8] sm:$0xff]
          %v469 = vld [vmem:[#allocation6 + $0x1c0] sm:$0xff]
          %v470 = vld [vmem:[#allocation6 + $0x1c8] sm:$0xff]
          %v471 = vld [vmem:[#allocation6 + $0x1d0] sm:$0xff]
          %v472 = vld [vmem:[#allocation6 + $0x1d8] sm:$0xff]
          %v473 = vld [vmem:[#allocation6 + $0x1e0] sm:$0xff]
          %v474 = vld [vmem:[#allocation6 + $0x1e8] sm:$0xff]
          %v475 = vld [vmem:[#allocation6 + $0x1f0] sm:$0xff]
          %v476 = vld [vmem:[#allocation6 + $0x1f8] sm:$0xff]
          %v477 = vld [vmem:[#allocation8] sm:$0xff]
          %v478 = vld [vmem:[#allocation8 + $0x8] sm:$0xff]
          %v481 = vlaneseq
          %v482 = vshrl.u32 %v481, 7
          %v483 = vsub.s32 0, %v482
          %v484 = vrot.slane %v477, %v483
          %v485 = vlaneseq
          %v486 = vshrl.u32 %v485, 7
          %v487 = vsub.s32 1, %v486
          %v488 = vrot.slane %v477, %v487
          %v489 = vlaneseq
          %v490 = vshrl.u32 %v489, 7
          %v491 = vsub.s32 2, %v490
          %v492 = vrot.slane %v477, %v491
          %v493 = vlaneseq
          %v494 = vshrl.u32 %v493, 7
          %v495 = vsub.s32 3, %v494
          %v496 = vrot.slane %v477, %v495
          %v497 = vlaneseq
          %v498 = vshrl.u32 %v497, 7
          %v499 = vsub.s32 4, %v498
          %v500 = vrot.slane %v477, %v499
          %v501 = vlaneseq
          %v502 = vshrl.u32 %v501, 7
          %v503 = vsub.s32 5, %v502
          %v504 = vrot.slane %v477, %v503
          %v505 = vlaneseq
          %v506 = vshrl.u32 %v505, 7
          %v507 = vsub.s32 6, %v506
          %v508 = vrot.slane %v477, %v507
          %v509 = vlaneseq
          %v510 = vshrl.u32 %v509, 7
          %v511 = vsub.s32 7, %v510
          %v512 = vrot.slane %v477, %v511
          %v513 = vlaneseq
          %v514 = vshrl.u32 %v513, 7
          %v515 = vsub.s32 0, %v514
          %v516 = vrot.slane %v478, %v515
          %v517 = vlaneseq
          %v518 = vshrl.u32 %v517, 7
          %v519 = vsub.s32 1, %v518
          %v520 = vrot.slane %v478, %v519
          %v521 = vlaneseq
          %v522 = vshrl.u32 %v521, 7
          %v523 = vsub.s32 2, %v522
          %v524 = vrot.slane %v478, %v523
          %v525 = vlaneseq
          %v526 = vshrl.u32 %v525, 7
          %v527 = vsub.s32 3, %v526
          %v528 = vrot.slane %v478, %v527
          %v529 = vlaneseq
          %v530 = vshrl.u32 %v529, 7
          %v531 = vsub.s32 4, %v530
          %v532 = vrot.slane %v478, %v531
          %v533 = vlaneseq
          %v534 = vshrl.u32 %v533, 7
          %v535 = vsub.s32 5, %v534
          %v536 = vrot.slane %v478, %v535
          %v537 = vlaneseq
          %v538 = vshrl.u32 %v537, 7
          %v539 = vsub.s32 6, %v538
          %v540 = vrot.slane %v478, %v539
          %v541 = vlaneseq
          %v542 = vshrl.u32 %v541, 7
          %v543 = vsub.s32 7, %v542
          %v544 = vrot.slane %v478, %v543
          %vm561 = vcmask 261120
          %v563 = vsel %vm561, %v412, 0
          %565 = vmatprep.subr.mxu0 %v414
          %566 = vmatpush1.msra.mxu0 %v413
          %567 = vmatprep.subr.mxu0 %v430
          %568 = vmatpush1.msra.mxu0 %v429
          %569 = vmatprep.subr.mxu0 %v446
          %570 = vmatpush1.msra.mxu0 %v445
          %571 = vmatprep.subr.mxu0 %v462
          %572 = vmatpush1.msra.mxu0 %v461
          %573 = vmatprep.subr.mxu0 0.0
          %574 = vmatpush1.msra.mxu0 0.0
          %575 = vmatprep.subr.mxu0 0.0
          %576 = vmatpush1.msra.mxu0 0.0
          %577 = vmatprep.subr.mxu0 0.0
          %578 = vmatpush1.msra.mxu0 0.0
          %579 = vmatprep.subr.mxu0 0.0
          %580 = vmatpush1.msra.mxu0 0.0
          %581 = vmatprep.subr.mxu0 0.0
          %582 = vmatpush1.msra.mxu0 0.0
          %583 = vmatprep.subr.mxu0 0.0
          %584 = vmatpush1.msra.mxu0 0.0
          %585 = vmatprep.subr.mxu0 0.0
          %586 = vmatpush1.msra.mxu0 0.0
          %587 = vmatprep.subr.mxu0 0.0
          %588 = vmatpush1.msra.mxu0 0.0
          %589 = vmatprep.subr.mxu0 0.0
          %590 = vmatpush1.msra.mxu0 0.0
          %591 = vmatprep.subr.mxu0 0.0
          %592 = vmatpush1.msra.mxu0 0.0
          %593 = vmatprep.subr.mxu0 0.0
          %594 = vmatpush1.msra.mxu0 0.0
          %595 = vmatprep.subr.mxu0 0.0
          %596 = vmatpush1.msra.mxu0 0.0
          %597 = vmatprep.subr.mxu0 0.0
          %598 = vmatpush1.msra.mxu0 0.0
          %599 = vmatprep.subr.mxu0 0.0
          %600 = vmatpush1.msra.mxu0 0.0
          %601 = vmatprep.subr.mxu0 0.0
          %602 = vmatpush1.msra.mxu0 0.0
          %603 = vmatprep.subr.mxu0 0.0
          %604 = vmatpush1.msra.mxu0 0.0
          %605 = vmatprep.subr.mxu0 0.0
          %606 = vmatpush1.msra.mxu0 0.0
          %607 = vmatprep.subr.mxu0 0.0
          %608 = vmatpush1.msra.mxu0 0.0
          %609 = vmatprep.subr.mxu0 0.0
          %610 = vmatpush1.msra.mxu0 0.0
          %611 = vmatprep.subr.mxu0 0.0
          %612 = vmatpush1.msra.mxu0 0.0
          %613 = vmatprep.subr.mxu0 0.0
          %614 = vmatpush1.msra.mxu0 0.0
          %615 = vmatprep.subr.mxu0 0.0
          %616 = vmatpush1.msra.mxu0 0.0
          %617 = vmatprep.subr.mxu0 0.0
          %618 = vmatpush1.msra.mxu0 0.0
          %619 = vmatprep.subr.mxu0 0.0
          %620 = vmatpush1.msra.mxu0 0.0
          %621 = vmatprep.subr.mxu0 0.0
          %622 = vmatpush1.msra.mxu0 0.0
          %623 = vmatprep.subr.mxu0 0.0
          %624 = vmatpush1.msra.mxu0 0.0
          %625 = vmatprep.subr.mxu0 0.0
          %626 = vmatpush1.msra.mxu0 0.0
          %627 = vmatprep.subr.mxu0 0.0
          %628 = vmatpush1.msra.mxu0 0.0
          %629 = vmatprep.mubr.f32.mxu0 0.0
          %630 = vmatmul.mubr.f32.gmra.mrb[0].mxu0 %v563
          %v631 = vpop.f32.mrb[0].mxu0
          %v632 = vadd.f32 %v484, %v631
          %v633 = vpop.f32.mrb[0].mxu0
          %v634 = vadd.f32 %v488, %v633
          %635 = vdwg.mxu0
          %636 = vmatprep.subr.mxu0 %v416
          %637 = vmatpush1.msra.mxu0 %v415
          %638 = vmatprep.subr.mxu0 %v432
          %639 = vmatpush1.msra.mxu0 %v431
          %640 = vmatprep.subr.mxu0 %v448
          %641 = vmatpush1.msra.mxu0 %v447
          %642 = vmatprep.subr.mxu0 %v464
          %643 = vmatpush1.msra.mxu0 %v463
          %644 = vmatprep.subr.mxu0 0.0
          %645 = vmatpush1.msra.mxu0 0.0
          %646 = vmatprep.subr.mxu0 0.0
          %647 = vmatpush1.msra.mxu0 0.0
          %648 = vmatprep.subr.mxu0 0.0
          %649 = vmatpush1.msra.mxu0 0.0
          %650 = vmatprep.subr.mxu0 0.0
          %651 = vmatpush1.msra.mxu0 0.0
          %652 = vmatprep.subr.mxu0 0.0
          %653 = vmatpush1.msra.mxu0 0.0
          %654 = vmatprep.subr.mxu0 0.0
          %655 = vmatpush1.msra.mxu0 0.0
          %656 = vmatprep.subr.mxu0 0.0
          %657 = vmatpush1.msra.mxu0 0.0
          %658 = vmatprep.subr.mxu0 0.0
          %659 = vmatpush1.msra.mxu0 0.0
          %660 = vmatprep.subr.mxu0 0.0
          %661 = vmatpush1.msra.mxu0 0.0
          %662 = vmatprep.subr.mxu0 0.0
          %663 = vmatpush1.msra.mxu0 0.0
          %664 = vmatprep.subr.mxu0 0.0
          %665 = vmatpush1.msra.mxu0 0.0
          %666 = vmatprep.subr.mxu0 0.0
          %667 = vmatpush1.msra.mxu0 0.0
          %668 = vmatprep.subr.mxu0 0.0
          %669 = vmatpush1.msra.mxu0 0.0
          %670 = vmatprep.subr.mxu0 0.0
          %671 = vmatpush1.msra.mxu0 0.0
          %672 = vmatprep.subr.mxu0 0.0
          %673 = vmatpush1.msra.mxu0 0.0
          %674 = vmatprep.subr.mxu0 0.0
          %675 = vmatpush1.msra.mxu0 0.0
          %676 = vmatprep.subr.mxu0 0.0
          %677 = vmatpush1.msra.mxu0 0.0
          %678 = vmatprep.subr.mxu0 0.0
          %679 = vmatpush1.msra.mxu0 0.0
          %680 = vmatprep.subr.mxu0 0.0
          %681 = vmatpush1.msra.mxu0 0.0
          %682 = vmatprep.subr.mxu0 0.0
          %683 = vmatpush1.msra.mxu0 0.0
          %684 = vmatprep.subr.mxu0 0.0
          %685 = vmatpush1.msra.mxu0 0.0
          %686 = vmatprep.subr.mxu0 0.0
          %687 = vmatpush1.msra.mxu0 0.0
          %688 = vmatprep.subr.mxu0 0.0
          %689 = vmatpush1.msra.mxu0 0.0
          %690 = vmatprep.subr.mxu0 0.0
          %691 = vmatpush1.msra.mxu0 0.0
          %692 = vmatprep.subr.mxu0 0.0
          %693 = vmatpush1.msra.mxu0 0.0
          %694 = vmatprep.subr.mxu0 0.0
          %695 = vmatpush1.msra.mxu0 0.0
          %696 = vmatprep.subr.mxu0 0.0
          %697 = vmatpush1.msra.mxu0 0.0
          %698 = vmatprep.subr.mxu0 0.0
          %699 = vmatpush1.msra.mxu0 0.0
          %700 = vmatprep.mubr.f32.mxu0 0.0
          %701 = vmatmul.mubr.f32.gmra.mrb[0].mxu0 %v563
          %v702 = vpop.f32.mrb[0].mxu0
          %v703 = vadd.f32 %v492, %v702
          %v704 = vpop.f32.mrb[0].mxu0
          %v705 = vadd.f32 %v496, %v704
          %706 = vdwg.mxu0
          %707 = vmatprep.subr.mxu0 %v418
          %708 = vmatpush1.msra.mxu0 %v417
          %709 = vmatprep.subr.mxu0 %v434
          %710 = vmatpush1.msra.mxu0 %v433
          %711 = vmatprep.subr.mxu0 %v450
          %712 = vmatpush1.msra.mxu0 %v449
          %713 = vmatprep.subr.mxu0 %v466
          %714 = vmatpush1.msra.mxu0 %v465
          %715 = vmatprep.subr.mxu0 0.0
          %716 = vmatpush1.msra.mxu0 0.0
          %717 = vmatprep.subr.mxu0 0.0
          %718 = vmatpush1.msra.mxu0 0.0
          %719 = vmatprep.subr.mxu0 0.0
          %720 = vmatpush1.msra.mxu0 0.0
          %721 = vmatprep.subr.mxu0 0.0
          %722 = vmatpush1.msra.mxu0 0.0
          %723 = vmatprep.subr.mxu0 0.0
          %724 = vmatpush1.msra.mxu0 0.0
          %725 = vmatprep.subr.mxu0 0.0
          %726 = vmatpush1.msra.mxu0 0.0
          %727 = vmatprep.subr.mxu0 0.0
          %728 = vmatpush1.msra.mxu0 0.0
          %729 = vmatprep.subr.mxu0 0.0
          %730 = vmatpush1.msra.mxu0 0.0
          %731 = vmatprep.subr.mxu0 0.0
          %732 = vmatpush1.msra.mxu0 0.0
          %733 = vmatprep.subr.mxu0 0.0
          %734 = vmatpush1.msra.mxu0 0.0
          %735 = vmatprep.subr.mxu0 0.0
          %736 = vmatpush1.msra.mxu0 0.0
          %737 = vmatprep.subr.mxu0 0.0
          %738 = vmatpush1.msra.mxu0 0.0
          %739 = vmatprep.subr.mxu0 0.0
          %740 = vmatpush1.msra.mxu0 0.0
          %741 = vmatprep.subr.mxu0 0.0
          %742 = vmatpush1.msra.mxu0 0.0
          %743 = vmatprep.subr.mxu0 0.0
          %744 = vmatpush1.msra.mxu0 0.0
          %745 = vmatprep.subr.mxu0 0.0
          %746 = vmatpush1.msra.mxu0 0.0
          %747 = vmatprep.subr.mxu0 0.0
          %748 = vmatpush1.msra.mxu0 0.0
          %749 = vmatprep.subr.mxu0 0.0
          %750 = vmatpush1.msra.mxu0 0.0
          %751 = vmatprep.subr.mxu0 0.0
          %752 = vmatpush1.msra.mxu0 0.0
          %753 = vmatprep.subr.mxu0 0.0
          %754 = vmatpush1.msra.mxu0 0.0
          %755 = vmatprep.subr.mxu0 0.0
          %756 = vmatpush1.msra.mxu0 0.0
          %757 = vmatprep.subr.mxu0 0.0
          %758 = vmatpush1.msra.mxu0 0.0
          %759 = vmatprep.subr.mxu0 0.0
          %760 = vmatpush1.msra.mxu0 0.0
          %761 = vmatprep.subr.mxu0 0.0
          %762 = vmatpush1.msra.mxu0 0.0
          %763 = vmatprep.subr.mxu0 0.0
          %764 = vmatpush1.msra.mxu0 0.0
          %765 = vmatprep.subr.mxu0 0.0
          %766 = vmatpush1.msra.mxu0 0.0
          %767 = vmatprep.subr.mxu0 0.0
          %768 = vmatpush1.msra.mxu0 0.0
          %769 = vmatprep.subr.mxu0 0.0
          %770 = vmatpush1.msra.mxu0 0.0
          %771 = vmatprep.mubr.f32.mxu0 0.0
          %772 = vmatmul.mubr.f32.gmra.mrb[0].mxu0 %v563
          %v773 = vpop.f32.mrb[0].mxu0
          %v774 = vadd.f32 %v500, %v773
          %v775 = vpop.f32.mrb[0].mxu0
          %v776 = vadd.f32 %v504, %v775
          %777 = vdwg.mxu0
          %778 = vmatprep.subr.mxu0 %v420
          %779 = vmatpush1.msra.mxu0 %v419
          %780 = vmatprep.subr.mxu0 %v436
          %781 = vmatpush1.msra.mxu0 %v435
          %782 = vmatprep.subr.mxu0 %v452
          %783 = vmatpush1.msra.mxu0 %v451
          %784 = vmatprep.subr.mxu0 %v468
          %785 = vmatpush1.msra.mxu0 %v467
          %786 = vmatprep.subr.mxu0 0.0
          %787 = vmatpush1.msra.mxu0 0.0
          %788 = vmatprep.subr.mxu0 0.0
          %789 = vmatpush1.msra.mxu0 0.0
          %790 = vmatprep.subr.mxu0 0.0
          %791 = vmatpush1.msra.mxu0 0.0
          %792 = vmatprep.subr.mxu0 0.0
          %793 = vmatpush1.msra.mxu0 0.0
          %794 = vmatprep.subr.mxu0 0.0
          %795 = vmatpush1.msra.mxu0 0.0
          %796 = vmatprep.subr.mxu0 0.0
          %797 = vmatpush1.msra.mxu0 0.0
          %798 = vmatprep.subr.mxu0 0.0
          %799 = vmatpush1.msra.mxu0 0.0
          %800 = vmatprep.subr.mxu0 0.0
          %801 = vmatpush1.msra.mxu0 0.0
          %802 = vmatprep.subr.mxu0 0.0
          %803 = vmatpush1.msra.mxu0 0.0
          %804 = vmatprep.subr.mxu0 0.0
          %805 = vmatpush1.msra.mxu0 0.0
          %806 = vmatprep.subr.mxu0 0.0
          %807 = vmatpush1.msra.mxu0 0.0
          %808 = vmatprep.subr.mxu0 0.0
          %809 = vmatpush1.msra.mxu0 0.0
          %810 = vmatprep.subr.mxu0 0.0
          %811 = vmatpush1.msra.mxu0 0.0
          %812 = vmatprep.subr.mxu0 0.0
          %813 = vmatpush1.msra.mxu0 0.0
          %814 = vmatprep.subr.mxu0 0.0
          %815 = vmatpush1.msra.mxu0 0.0
          %816 = vmatprep.subr.mxu0 0.0
          %817 = vmatpush1.msra.mxu0 0.0
          %818 = vmatprep.subr.mxu0 0.0
          %819 = vmatpush1.msra.mxu0 0.0
          %820 = vmatprep.subr.mxu0 0.0
          %821 = vmatpush1.msra.mxu0 0.0
          %822 = vmatprep.subr.mxu0 0.0
          %823 = vmatpush1.msra.mxu0 0.0
          %824 = vmatprep.subr.mxu0 0.0
          %825 = vmatpush1.msra.mxu0 0.0
          %826 = vmatprep.subr.mxu0 0.0
          %827 = vmatpush1.msra.mxu0 0.0
          %828 = vmatprep.subr.mxu0 0.0
          %829 = vmatpush1.msra.mxu0 0.0
          %830 = vmatprep.subr.mxu0 0.0
          %831 = vmatpush1.msra.mxu0 0.0
          %832 = vmatprep.subr.mxu0 0.0
          %833 = vmatpush1.msra.mxu0 0.0
          %834 = vmatprep.subr.mxu0 0.0
          %835 = vmatpush1.msra.mxu0 0.0
          %836 = vmatprep.subr.mxu0 0.0
          %837 = vmatpush1.msra.mxu0 0.0
          %838 = vmatprep.subr.mxu0 0.0
          %839 = vmatpush1.msra.mxu0 0.0
          %840 = vmatprep.subr.mxu0 0.0
          %841 = vmatpush1.msra.mxu0 0.0
          %842 = vmatprep.mubr.f32.mxu0 0.0
          %843 = vmatmul.mubr.f32.gmra.mrb[0].mxu0 %v563
          %v844 = vpop.f32.mrb[0].mxu0
          %v845 = vadd.f32 %v508, %v844
          %v846 = vpop.f32.mrb[0].mxu0
          %v847 = vadd.f32 %v512, %v846
          %848 = vdwg.mxu0
          %849 = vmatprep.subr.mxu0 %v422
          %850 = vmatpush1.msra.mxu0 %v421
          %851 = vmatprep.subr.mxu0 %v438
          %852 = vmatpush1.msra.mxu0 %v437
          %853 = vmatprep.subr.mxu0 %v454
          %854 = vmatpush1.msra.mxu0 %v453
          %855 = vmatprep.subr.mxu0 %v470
          %856 = vmatpush1.msra.mxu0 %v469
          %857 = vmatprep.subr.mxu0 0.0
          %858 = vmatpush1.msra.mxu0 0.0
          %859 = vmatprep.subr.mxu0 0.0
          %860 = vmatpush1.msra.mxu0 0.0
          %861 = vmatprep.subr.mxu0 0.0
          %862 = vmatpush1.msra.mxu0 0.0
          %863 = vmatprep.subr.mxu0 0.0
          %864 = vmatpush1.msra.mxu0 0.0
          %865 = vmatprep.subr.mxu0 0.0
          %866 = vmatpush1.msra.mxu0 0.0
          %867 = vmatprep.subr.mxu0 0.0
          %868 = vmatpush1.msra.mxu0 0.0
          %869 = vmatprep.subr.mxu0 0.0
          %870 = vmatpush1.msra.mxu0 0.0
          %871 = vmatprep.subr.mxu0 0.0
          %872 = vmatpush1.msra.mxu0 0.0
          %873 = vmatprep.subr.mxu0 0.0
          %874 = vmatpush1.msra.mxu0 0.0
          %875 = vmatprep.subr.mxu0 0.0
          %876 = vmatpush1.msra.mxu0 0.0
          %877 = vmatprep.subr.mxu0 0.0
          %878 = vmatpush1.msra.mxu0 0.0
          %879 = vmatprep.subr.mxu0 0.0
          %880 = vmatpush1.msra.mxu0 0.0
          %881 = vmatprep.subr.mxu0 0.0
          %882 = vmatpush1.msra.mxu0 0.0
          %883 = vmatprep.subr.mxu0 0.0
          %884 = vmatpush1.msra.mxu0 0.0
          %885 = vmatprep.subr.mxu0 0.0
          %886 = vmatpush1.msra.mxu0 0.0
          %887 = vmatprep.subr.mxu0 0.0
          %888 = vmatpush1.msra.mxu0 0.0
          %889 = vmatprep.subr.mxu0 0.0
          %890 = vmatpush1.msra.mxu0 0.0
          %891 = vmatprep.subr.mxu0 0.0
          %892 = vmatpush1.msra.mxu0 0.0
          %893 = vmatprep.subr.mxu0 0.0
          %894 = vmatpush1.msra.mxu0 0.0
          %895 = vmatprep.subr.mxu0 0.0
          %896 = vmatpush1.msra.mxu0 0.0
          %897 = vmatprep.subr.mxu0 0.0
          %898 = vmatpush1.msra.mxu0 0.0
          %899 = vmatprep.subr.mxu0 0.0
          %900 = vmatpush1.msra.mxu0 0.0
          %901 = vmatprep.subr.mxu0 0.0
          %902 = vmatpush1.msra.mxu0 0.0
          %903 = vmatprep.subr.mxu0 0.0
          %904 = vmatpush1.msra.mxu0 0.0
          %905 = vmatprep.subr.mxu0 0.0
          %906 = vmatpush1.msra.mxu0 0.0
          %907 = vmatprep.subr.mxu0 0.0
          %908 = vmatpush1.msra.mxu0 0.0
          %909 = vmatprep.subr.mxu0 0.0
          %910 = vmatpush1.msra.mxu0 0.0
          %911 = vmatprep.subr.mxu0 0.0
          %912 = vmatpush1.msra.mxu0 0.0
          %913 = vmatprep.mubr.f32.mxu0 0.0
          %914 = vmatmul.mubr.f32.gmra.mrb[0].mxu0 %v563
          %v915 = vpop.f32.mrb[0].mxu0
          %v916 = vadd.f32 %v516, %v915
          %v917 = vpop.f32.mrb[0].mxu0
          %v918 = vadd.f32 %v520, %v917
          %919 = vdwg.mxu0
          %920 = vmatprep.subr.mxu0 %v424
          %921 = vmatpush1.msra.mxu0 %v423
          %922 = vmatprep.subr.mxu0 %v440
          %923 = vmatpush1.msra.mxu0 %v439
          %924 = vmatprep.subr.mxu0 %v456
          %925 = vmatpush1.msra.mxu0 %v455
          %926 = vmatprep.subr.mxu0 %v472
          %927 = vmatpush1.msra.mxu0 %v471
          %928 = vmatprep.subr.mxu0 0.0
          %929 = vmatpush1.msra.mxu0 0.0
          %930 = vmatprep.subr.mxu0 0.0
          %931 = vmatpush1.msra.mxu0 0.0
          %932 = vmatprep.subr.mxu0 0.0
          %933 = vmatpush1.msra.mxu0 0.0
          %934 = vmatprep.subr.mxu0 0.0
          %935 = vmatpush1.msra.mxu0 0.0
          %936 = vmatprep.subr.mxu0 0.0
          %937 = vmatpush1.msra.mxu0 0.0
          %938 = vmatprep.subr.mxu0 0.0
          %939 = vmatpush1.msra.mxu0 0.0
          %940 = vmatprep.subr.mxu0 0.0
          %941 = vmatpush1.msra.mxu0 0.0
          %942 = vmatprep.subr.mxu0 0.0
          %943 = vmatpush1.msra.mxu0 0.0
          %944 = vmatprep.subr.mxu0 0.0
          %945 = vmatpush1.msra.mxu0 0.0
          %946 = vmatprep.subr.mxu0 0.0
          %947 = vmatpush1.msra.mxu0 0.0
          %948 = vmatprep.subr.mxu0 0.0
          %949 = vmatpush1.msra.mxu0 0.0
          %950 = vmatprep.subr.mxu0 0.0
          %951 = vmatpush1.msra.mxu0 0.0
          %952 = vmatprep.subr.mxu0 0.0
          %953 = vmatpush1.msra.mxu0 0.0
          %954 = vmatprep.subr.mxu0 0.0
          %955 = vmatpush1.msra.mxu0 0.0
          %956 = vmatprep.subr.mxu0 0.0
          %957 = vmatpush1.msra.mxu0 0.0
          %958 = vmatprep.subr.mxu0 0.0
          %959 = vmatpush1.msra.mxu0 0.0
          %960 = vmatprep.subr.mxu0 0.0
          %961 = vmatpush1.msra.mxu0 0.0
          %962 = vmatprep.subr.mxu0 0.0
          %963 = vmatpush1.msra.mxu0 0.0
          %964 = vmatprep.subr.mxu0 0.0
          %965 = vmatpush1.msra.mxu0 0.0
          %966 = vmatprep.subr.mxu0 0.0
          %967 = vmatpush1.msra.mxu0 0.0
          %968 = vmatprep.subr.mxu0 0.0
          %969 = vmatpush1.msra.mxu0 0.0
          %970 = vmatprep.subr.mxu0 0.0
          %971 = vmatpush1.msra.mxu0 0.0
          %972 = vmatprep.subr.mxu0 0.0
          %973 = vmatpush1.msra.mxu0 0.0
          %974 = vmatprep.subr.mxu0 0.0
          %975 = vmatpush1.msra.mxu0 0.0
          %976 = vmatprep.subr.mxu0 0.0
          %977 = vmatpush1.msra.mxu0 0.0
          %978 = vmatprep.subr.mxu0 0.0
          %979 = vmatpush1.msra.mxu0 0.0
          %980 = vmatprep.subr.mxu0 0.0
          %981 = vmatpush1.msra.mxu0 0.0
          %982 = vmatprep.subr.mxu0 0.0
          %983 = vmatpush1.msra.mxu0 0.0
          %984 = vmatprep.mubr.f32.mxu0 0.0
          %985 = vmatmul.mubr.f32.gmra.mrb[0].mxu0 %v563
          %v986 = vpop.f32.mrb[0].mxu0
          %v987 = vadd.f32 %v524, %v986
          %v988 = vpop.f32.mrb[0].mxu0
          %v989 = vadd.f32 %v528, %v988
          %990 = vdwg.mxu0
          %991 = vmatprep.subr.mxu0 %v426
          %992 = vmatpush1.msra.mxu0 %v425
          %993 = vmatprep.subr.mxu0 %v442
          %994 = vmatpush1.msra.mxu0 %v441
          %995 = vmatprep.subr.mxu0 %v458
          %996 = vmatpush1.msra.mxu0 %v457
          %997 = vmatprep.subr.mxu0 %v474
          %998 = vmatpush1.msra.mxu0 %v473
          %999 = vmatprep.subr.mxu0 0.0
          %1000 = vmatpush1.msra.mxu0 0.0
          %1001 = vmatprep.subr.mxu0 0.0
          %1002 = vmatpush1.msra.mxu0 0.0
          %1003 = vmatprep.subr.mxu0 0.0
          %1004 = vmatpush1.msra.mxu0 0.0
          %1005 = vmatprep.subr.mxu0 0.0
          %1006 = vmatpush1.msra.mxu0 0.0
          %1007 = vmatprep.subr.mxu0 0.0
          %1008 = vmatpush1.msra.mxu0 0.0
          %1009 = vmatprep.subr.mxu0 0.0
          %1010 = vmatpush1.msra.mxu0 0.0
          %1011 = vmatprep.subr.mxu0 0.0
          %1012 = vmatpush1.msra.mxu0 0.0
          %1013 = vmatprep.subr.mxu0 0.0
          %1014 = vmatpush1.msra.mxu0 0.0
          %1015 = vmatprep.subr.mxu0 0.0
          %1016 = vmatpush1.msra.mxu0 0.0
          %1017 = vmatprep.subr.mxu0 0.0
          %1018 = vmatpush1.msra.mxu0 0.0
          %1019 = vmatprep.subr.mxu0 0.0
          %1020 = vmatpush1.msra.mxu0 0.0
          %1021 = vmatprep.subr.mxu0 0.0
          %1022 = vmatpush1.msra.mxu0 0.0
          %1023 = vmatprep.subr.mxu0 0.0
          %1024 = vmatpush1.msra.mxu0 0.0
          %1025 = vmatprep.subr.mxu0 0.0
          %1026 = vmatpush1.msra.mxu0 0.0
          %1027 = vmatprep.subr.mxu0 0.0
          %1028 = vmatpush1.msra.mxu0 0.0
          %1029 = vmatprep.subr.mxu0 0.0
          %1030 = vmatpush1.msra.mxu0 0.0
          %1031 = vmatprep.subr.mxu0 0.0
          %1032 = vmatpush1.msra.mxu0 0.0
          %1033 = vmatprep.subr.mxu0 0.0
          %1034 = vmatpush1.msra.mxu0 0.0
          %1035 = vmatprep.subr.mxu0 0.0
          %1036 = vmatpush1.msra.mxu0 0.0
          %1037 = vmatprep.subr.mxu0 0.0
          %1038 = vmatpush1.msra.mxu0 0.0
          %1039 = vmatprep.subr.mxu0 0.0
          %1040 = vmatpush1.msra.mxu0 0.0
          %1041 = vmatprep.subr.mxu0 0.0
          %1042 = vmatpush1.msra.mxu0 0.0
          %1043 = vmatprep.subr.mxu0 0.0
          %1044 = vmatpush1.msra.mxu0 0.0
          %1045 = vmatprep.subr.mxu0 0.0
          %1046 = vmatpush1.msra.mxu0 0.0
          %1047 = vmatprep.subr.mxu0 0.0
          %1048 = vmatpush1.msra.mxu0 0.0
          %1049 = vmatprep.subr.mxu0 0.0
          %1050 = vmatpush1.msra.mxu0 0.0
          %1051 = vmatprep.subr.mxu0 0.0
          %1052 = vmatpush1.msra.mxu0 0.0
          %1053 = vmatprep.subr.mxu0 0.0
          %1054 = vmatpush1.msra.mxu0 0.0
          %1055 = vmatprep.mubr.f32.mxu0 0.0
          %1056 = vmatmul.mubr.f32.gmra.mrb[0].mxu0 %v563
          %v1057 = vpop.f32.mrb[0].mxu0
          %v1058 = vadd.f32 %v532, %v1057
          %v1059 = vpop.f32.mrb[0].mxu0
          %v1060 = vadd.f32 %v536, %v1059
          %1061 = vdwg.mxu0
          %1062 = vmatprep.subr.mxu0 %v428
          %1063 = vmatpush1.msra.mxu0 %v427
          %1064 = vmatprep.subr.mxu0 %v444
          %1065 = vmatpush1.msra.mxu0 %v443
          %1066 = vmatprep.subr.mxu0 %v460
          %1067 = vmatpush1.msra.mxu0 %v459
          %1068 = vmatprep.subr.mxu0 %v476
          %1069 = vmatpush1.msra.mxu0 %v475
          %1070 = vmatprep.subr.mxu0 0.0
          %1071 = vmatpush1.msra.mxu0 0.0
          %1072 = vmatprep.subr.mxu0 0.0
          %1073 = vmatpush1.msra.mxu0 0.0
          %1074 = vmatprep.subr.mxu0 0.0
          %1075 = vmatpush1.msra.mxu0 0.0
          %1076 = vmatprep.subr.mxu0 0.0
          %1077 = vmatpush1.msra.mxu0 0.0
          %1078 = vmatprep.subr.mxu0 0.0
          %1079 = vmatpush1.msra.mxu0 0.0
          %1080 = vmatprep.subr.mxu0 0.0
          %1081 = vmatpush1.msra.mxu0 0.0
          %1082 = vmatprep.subr.mxu0 0.0
          %1083 = vmatpush1.msra.mxu0 0.0
          %1084 = vmatprep.subr.mxu0 0.0
          %1085 = vmatpush1.msra.mxu0 0.0
          %1086 = vmatprep.subr.mxu0 0.0
          %1087 = vmatpush1.msra.mxu0 0.0
          %1088 = vmatprep.subr.mxu0 0.0
          %1089 = vmatpush1.msra.mxu0 0.0
          %1090 = vmatprep.subr.mxu0 0.0
          %1091 = vmatpush1.msra.mxu0 0.0
          %1092 = vmatprep.subr.mxu0 0.0
          %1093 = vmatpush1.msra.mxu0 0.0
          %1094 = vmatprep.subr.mxu0 0.0
          %1095 = vmatpush1.msra.mxu0 0.0
          %1096 = vmatprep.subr.mxu0 0.0
          %1097 = vmatpush1.msra.mxu0 0.0
          %1098 = vmatprep.subr.mxu0 0.0
          %1099 = vmatpush1.msra.mxu0 0.0
          %1100 = vmatprep.subr.mxu0 0.0
          %1101 = vmatpush1.msra.mxu0 0.0
          %1102 = vmatprep.subr.mxu0 0.0
          %1103 = vmatpush1.msra.mxu0 0.0
          %1104 = vmatprep.subr.mxu0 0.0
          %1105 = vmatpush1.msra.mxu0 0.0
          %1106 = vmatprep.subr.mxu0 0.0
          %1107 = vmatpush1.msra.mxu0 0.0
          %1108 = vmatprep.subr.mxu0 0.0
          %1109 = vmatpush1.msra.mxu0 0.0
          %1110 = vmatprep.subr.mxu0 0.0
          %1111 = vmatpush1.msra.mxu0 0.0
          %1112 = vmatprep.subr.mxu0 0.0
          %1113 = vmatpush1.msra.mxu0 0.0
          %1114 = vmatprep.subr.mxu0 0.0
          %1115 = vmatpush1.msra.mxu0 0.0
          %1116 = vmatprep.subr.mxu0 0.0
          %1117 = vmatpush1.msra.mxu0 0.0
          %1118 = vmatprep.subr.mxu0 0.0
          %1119 = vmatpush1.msra.mxu0 0.0
          %1120 = vmatprep.subr.mxu0 0.0
          %1121 = vmatpush1.msra.mxu0 0.0
          %1122 = vmatprep.subr.mxu0 0.0
          %1123 = vmatpush1.msra.mxu0 0.0
          %1124 = vmatprep.subr.mxu0 0.0
          %1125 = vmatpush1.msra.mxu0 0.0
          %1126 = vmatprep.mubr.f32.mxu0 0.0
          %1127 = vmatmul.mubr.f32.gmra.mrb[0].mxu0 %v563
          %v1128 = vpop.f32.mrb[0].mxu0
          %v1129 = vadd.f32 %v540, %v1128
          %v1130 = vpop.f32.mrb[0].mxu0
          %v1131 = vadd.f32 %v544, %v1130
          %1132 = vdwg.mxu0
          %vm1133 = vcmp.ge.f32.partialorder %v632, 0.0
          %vm1134 = vcmp.ge.f32.partialorder %v634, 0.0
          %vm1135 = vcmp.ge.f32.partialorder %v703, 0.0
          %vm1136 = vcmp.ge.f32.partialorder %v705, 0.0
          %vm1137 = vcmp.ge.f32.partialorder %v774, 0.0
          %vm1138 = vcmp.ge.f32.partialorder %v776, 0.0
          %vm1139 = vcmp.ge.f32.partialorder %v845, 0.0
          %vm1140 = vcmp.ge.f32.partialorder %v847, 0.0
          %vm1141 = vcmp.ge.f32.partialorder %v916, 0.0
          %vm1142 = vcmp.ge.f32.partialorder %v918, 0.0
          %vm1143 = vcmp.ge.f32.partialorder %v987, 0.0
          %vm1144 = vcmp.ge.f32.partialorder %v989, 0.0
          %vm1145 = vcmp.ge.f32.partialorder %v1058, 0.0
          %vm1146 = vcmp.ge.f32.partialorder %v1060, 0.0
          %vm1147 = vcmp.ge.f32.partialorder %v1129, 0.0
          %vm1148 = vcmp.ge.f32.partialorder %v1131, 0.0
          %v1149 = vmul.f32 %v632, 0.01
          %v1150 = vmul.f32 %v634, 0.01
          %v1151 = vmul.f32 %v703, 0.01
          %v1152 = vmul.f32 %v705, 0.01
          %v1153 = vmul.f32 %v774, 0.01
          %v1154 = vmul.f32 %v776, 0.01
          %v1155 = vmul.f32 %v845, 0.01
          %v1156 = vmul.f32 %v847, 0.01
          %v1157 = vmul.f32 %v916, 0.01
          %v1158 = vmul.f32 %v918, 0.01
          %v1159 = vmul.f32 %v987, 0.01
          %v1160 = vmul.f32 %v989, 0.01
          %v1161 = vmul.f32 %v1058, 0.01
          %v1162 = vmul.f32 %v1060, 0.01
          %v1163 = vmul.f32 %v1129, 0.01
          %v1164 = vmul.f32 %v1131, 0.01
          %v1165 = vsel %vm1133, %v632, %v1149
          %v1166 = vsel %vm1134, %v634, %v1150
          %v1167 = vsel %vm1135, %v703, %v1151
          %v1168 = vsel %vm1136, %v705, %v1152
          %v1169 = vsel %vm1137, %v774, %v1153
          %v1170 = vsel %vm1138, %v776, %v1154
          %v1171 = vsel %vm1139, %v845, %v1155
          %v1172 = vsel %vm1140, %v847, %v1156
          %v1173 = vsel %vm1141, %v916, %v1157
          %v1174 = vsel %vm1142, %v918, %v1158
          %v1175 = vsel %vm1143, %v987, %v1159
          %v1176 = vsel %vm1144, %v989, %v1160
          %v1177 = vsel %vm1145, %v1058, %v1161
          %v1178 = vsel %vm1146, %v1060, %v1162
          %v1179 = vsel %vm1147, %v1129, %v1163
          %v1180 = vsel %vm1148, %v1131, %v1164
          %1181 = vst [vmem:[#allocation2] sm:$0xff] %v1165
          %1182 = vst [vmem:[#allocation2 + $0x8] sm:$0xff] %v1166
          %1183 = vst [vmem:[#allocation2 + $0x10] sm:$0xff] %v1167
          %1184 = vst [vmem:[#allocation2 + $0x18] sm:$0xff] %v1168
          %1185 = vst [vmem:[#allocation2 + $0x20] sm:$0xff] %v1169
          %1186 = vst [vmem:[#allocation2 + $0x28] sm:$0xff] %v1170
          %1187 = vst [vmem:[#allocation2 + $0x30] sm:$0xff] %v1171
          %1188 = vst [vmem:[#allocation2 + $0x38] sm:$0xff] %v1172
          %1189 = vst [vmem:[#allocation2 + $0x40] sm:$0xff] %v1173
          %1190 = vst [vmem:[#allocation2 + $0x48] sm:$0xff] %v1174
          %1191 = vst [vmem:[#allocation2 + $0x50] sm:$0xff] %v1175
          %1192 = vst [vmem:[#allocation2 + $0x58] sm:$0xff] %v1176
          %1193 = vst [vmem:[#allocation2 + $0x60] sm:$0xff] %v1177
          %1194 = vst [vmem:[#allocation2 + $0x68] sm:$0xff] %v1178
          %1195 = vst [vmem:[#allocation2 + $0x70] sm:$0xff] %v1179
          %1196 = vst [vmem:[#allocation2 + $0x78] sm:$0xff] %v1180
          %v1197 = vld [vmem:[%s6] sm:$0x1]
          %v1199 = vlaneseq
          %v1200 = vshrl.u32 %v1199, 7
          %v1201 = vsub.s32 0, %v1200
          %v1202 = vrot.slane %v1197, %v1201
          %v1204 = vadd.f32 %v1202, 0.0
          %1205 = vst [vmem:[#allocation12] sm:$0xff] %v1204
        $region72: #{larger_mlp_forward.1} parent=47 // pred_fallthru
          _
        %v1206 = vld [vmem:[#allocation2] sm:$0xff]
        %v1207 = vld [vmem:[#allocation2 + $0x8] sm:$0xff]
        %v1208 = vld [vmem:[#allocation2 + $0x10] sm:$0xff]
        %v1209 = vld [vmem:[#allocation2 + $0x18] sm:$0xff]
        %v1210 = vld [vmem:[#allocation2 + $0x20] sm:$0xff]
        %v1211 = vld [vmem:[#allocation2 + $0x28] sm:$0xff]
        %v1212 = vld [vmem:[#allocation2 + $0x30] sm:$0xff]
        %v1213 = vld [vmem:[#allocation2 + $0x38] sm:$0xff]
        %v1214 = vld [vmem:[#allocation2 + $0x40] sm:$0xff]
        %v1215 = vld [vmem:[#allocation2 + $0x48] sm:$0xff]
        %v1216 = vld [vmem:[#allocation2 + $0x50] sm:$0xff]
        %v1217 = vld [vmem:[#allocation2 + $0x58] sm:$0xff]
        %v1218 = vld [vmem:[#allocation2 + $0x60] sm:$0xff]
        %v1219 = vld [vmem:[#allocation2 + $0x68] sm:$0xff]
        %v1220 = vld [vmem:[#allocation2 + $0x70] sm:$0xff]
        %v1221 = vld [vmem:[#allocation2 + $0x78] sm:$0xff]
        %v1222 = vld [vmem:[%s355] sm:$0xff]
        %v1223 = vld [vmem:[%s355 + $0x8] sm:$0xff]
        %v1224 = vld [vmem:[%s355 + $0x10] sm:$0xff]
        %v1225 = vld [vmem:[%s355 + $0x18] sm:$0xff]
        %v1226 = vld [vmem:[%s355 + $0x20] sm:$0xff]
        %v1227 = vld [vmem:[%s355 + $0x28] sm:$0xff]
        %v1228 = vld [vmem:[%s355 + $0x30] sm:$0xff]
        %v1229 = vld [vmem:[%s355 + $0x38] sm:$0xff]
        %v1230 = vld [vmem:[%s355 + $0x40] sm:$0xff]
        %v1231 = vld [vmem:[%s355 + $0x48] sm:$0xff]
        %v1232 = vld [vmem:[%s355 + $0x50] sm:$0xff]
        %v1233 = vld [vmem:[%s355 + $0x58] sm:$0xff]
        %v1234 = vld [vmem:[%s355 + $0x60] sm:$0xff]
        %v1235 = vld [vmem:[%s355 + $0x68] sm:$0xff]
        %v1236 = vld [vmem:[%s355 + $0x70] sm:$0xff]
        %v1237 = vld [vmem:[%s355 + $0x78] sm:$0xff]
        %v1238 = vld [vmem:[%s355 + $0x80] sm:$0xff]
        %v1239 = vld [vmem:[%s355 + $0x88] sm:$0xff]
        %v1240 = vld [vmem:[%s355 + $0x90] sm:$0xff]
        %v1241 = vld [vmem:[%s355 + $0x98] sm:$0xff]
        %v1242 = vld [vmem:[%s355 + $0xa0] sm:$0xff]
        %v1243 = vld [vmem:[%s355 + $0xa8] sm:$0xff]
        %v1244 = vld [vmem:[%s355 + $0xb0] sm:$0xff]
        %v1245 = vld [vmem:[%s355 + $0xb8] sm:$0xff]
        %v1246 = vld [vmem:[%s355 + $0xc0] sm:$0xff]
        %v1247 = vld [vmem:[%s355 + $0xc8] sm:$0xff]
        %v1248 = vld [vmem:[%s355 + $0xd0] sm:$0xff]
        %v1249 = vld [vmem:[%s355 + $0xd8] sm:$0xff]
        %v1250 = vld [vmem:[%s355 + $0xe0] sm:$0xff]
        %v1251 = vld [vmem:[%s355 + $0xe8] sm:$0xff]
        %v1252 = vld [vmem:[%s355 + $0xf0] sm:$0xff]
        %v1253 = vld [vmem:[%s355 + $0xf8] sm:$0xff]
        %v1254 = vld [vmem:[%s355 + $0x100] sm:$0xff]
        %v1255 = vld [vmem:[%s355 + $0x108] sm:$0xff]
        %v1256 = vld [vmem:[%s355 + $0x110] sm:$0xff]
        %v1257 = vld [vmem:[%s355 + $0x118] sm:$0xff]
        %v1258 = vld [vmem:[%s355 + $0x120] sm:$0xff]
        %v1259 = vld [vmem:[%s355 + $0x128] sm:$0xff]
        %v1260 = vld [vmem:[%s355 + $0x130] sm:$0xff]
        %v1261 = vld [vmem:[%s355 + $0x138] sm:$0xff]
        %v1262 = vld [vmem:[%s355 + $0x140] sm:$0xff]
        %v1263 = vld [vmem:[%s355 + $0x148] sm:$0xff]
        %v1264 = vld [vmem:[%s355 + $0x150] sm:$0xff]
        %v1265 = vld [vmem:[%s355 + $0x158] sm:$0xff]
        %v1266 = vld [vmem:[%s355 + $0x160] sm:$0xff]
        %v1267 = vld [vmem:[%s355 + $0x168] sm:$0xff]
        %v1268 = vld [vmem:[%s355 + $0x170] sm:$0xff]
        %v1269 = vld [vmem:[%s355 + $0x178] sm:$0xff]
        %v1270 = vld [vmem:[%s355 + $0x180] sm:$0xff]
        %v1271 = vld [vmem:[%s355 + $0x188] sm:$0xff]
        %v1272 = vld [vmem:[%s355 + $0x190] sm:$0xff]
        %v1273 = vld [vmem:[%s355 + $0x198] sm:$0xff]
        %v1274 = vld [vmem:[%s355 + $0x1a0] sm:$0xff]
        %v1275 = vld [vmem:[%s355 + $0x1a8] sm:$0xff]
        %v1276 = vld [vmem:[%s355 + $0x1b0] sm:$0xff]
        %v1277 = vld [vmem:[%s355 + $0x1b8] sm:$0xff]
        %v1278 = vld [vmem:[%s355 + $0x1c0] sm:$0xff]
        %v1279 = vld [vmem:[%s355 + $0x1c8] sm:$0xff]
        %v1280 = vld [vmem:[%s355 + $0x1d0] sm:$0xff]
        %v1281 = vld [vmem:[%s355 + $0x1d8] sm:$0xff]
        %v1282 = vld [vmem:[%s355 + $0x1e0] sm:$0xff]
        %v1283 = vld [vmem:[%s355 + $0x1e8] sm:$0xff]
        %v1284 = vld [vmem:[%s355 + $0x1f0] sm:$0xff]
        %v1285 = vld [vmem:[%s355 + $0x1f8] sm:$0xff]
        %v1286 = vld [vmem:[%s355 + $0x200] sm:$0xff]
        %v1287 = vld [vmem:[%s355 + $0x208] sm:$0xff]
        %v1288 = vld [vmem:[%s355 + $0x210] sm:$0xff]
        %v1289 = vld [vmem:[%s355 + $0x218] sm:$0xff]
        %v1290 = vld [vmem:[%s355 + $0x220] sm:$0xff]
        %v1291 = vld [vmem:[%s355 + $0x228] sm:$0xff]
        %v1292 = vld [vmem:[%s355 + $0x230] sm:$0xff]
        %v1293 = vld [vmem:[%s355 + $0x238] sm:$0xff]
        %v1294 = vld [vmem:[%s355 + $0x240] sm:$0xff]
        %v1295 = vld [vmem:[%s355 + $0x248] sm:$0xff]
        %v1296 = vld [vmem:[%s355 + $0x250] sm:$0xff]
        %v1297 = vld [vmem:[%s355 + $0x258] sm:$0xff]
        %v1298 = vld [vmem:[%s355 + $0x260] sm:$0xff]
        %v1299 = vld [vmem:[%s355 + $0x268] sm:$0xff]
        %v1300 = vld [vmem:[%s355 + $0x270] sm:$0xff]
        %v1301 = vld [vmem:[%s355 + $0x278] sm:$0xff]
        %v1302 = vld [vmem:[%s355 + $0x280] sm:$0xff]
        %v1303 = vld [vmem:[%s355 + $0x288] sm:$0xff]
        %v1304 = vld [vmem:[%s355 + $0x290] sm:$0xff]
        %v1305 = vld [vmem:[%s355 + $0x298] sm:$0xff]
        %v1306 = vld [vmem:[%s355 + $0x2a0] sm:$0xff]
        %v1307 = vld [vmem:[%s355 + $0x2a8] sm:$0xff]
        %v1308 = vld [vmem:[%s355 + $0x2b0] sm:$0xff]
        %v1309 = vld [vmem:[%s355 + $0x2b8] sm:$0xff]
        %v1310 = vld [vmem:[%s355 + $0x2c0] sm:$0xff]
        %v1311 = vld [vmem:[%s355 + $0x2c8] sm:$0xff]
        %v1312 = vld [vmem:[%s355 + $0x2d0] sm:$0xff]
        %v1313 = vld [vmem:[%s355 + $0x2d8] sm:$0xff]
        %v1314 = vld [vmem:[%s355 + $0x2e0] sm:$0xff]
        %v1315 = vld [vmem:[%s355 + $0x2e8] sm:$0xff]
        %v1316 = vld [vmem:[%s355 + $0x2f0] sm:$0xff]
        %v1317 = vld [vmem:[%s355 + $0x2f8] sm:$0xff]
        %v1318 = vld [vmem:[%s355 + $0x300] sm:$0xff]
        %v1319 = vld [vmem:[%s355 + $0x308] sm:$0xff]
        %v1320 = vld [vmem:[%s355 + $0x310] sm:$0xff]
        %v1321 = vld [vmem:[%s355 + $0x318] sm:$0xff]
        %v1322 = vld [vmem:[%s355 + $0x320] sm:$0xff]
        %v1323 = vld [vmem:[%s355 + $0x328] sm:$0xff]
        %v1324 = vld [vmem:[%s355 + $0x330] sm:$0xff]
        %v1325 = vld [vmem:[%s355 + $0x338] sm:$0xff]
        %v1326 = vld [vmem:[%s355 + $0x340] sm:$0xff]
        %v1327 = vld [vmem:[%s355 + $0x348] sm:$0xff]
        %v1328 = vld [vmem:[%s355 + $0x350] sm:$0xff]
        %v1329 = vld [vmem:[%s355 + $0x358] sm:$0xff]
        %v1330 = vld [vmem:[%s355 + $0x360] sm:$0xff]
        %v1331 = vld [vmem:[%s355 + $0x368] sm:$0xff]
        %v1332 = vld [vmem:[%s355 + $0x370] sm:$0xff]
        %v1333 = vld [vmem:[%s355 + $0x378] sm:$0xff]
        %v1334 = vld [vmem:[%s355 + $0x380] sm:$0xff]
        %v1335 = vld [vmem:[%s355 + $0x388] sm:$0xff]
        %v1336 = vld [vmem:[%s355 + $0x390] sm:$0xff]
        %v1337 = vld [vmem:[%s355 + $0x398] sm:$0xff]
        %v1338 = vld [vmem:[%s355 + $0x3a0] sm:$0xff]
        %v1339 = vld [vmem:[%s355 + $0x3a8] sm:$0xff]
        %v1340 = vld [vmem:[%s355 + $0x3b0] sm:$0xff]
        %v1341 = vld [vmem:[%s355 + $0x3b8] sm:$0xff]
        %v1342 = vld [vmem:[%s355 + $0x3c0] sm:$0xff]
        %v1343 = vld [vmem:[%s355 + $0x3c8] sm:$0xff]
        %v1344 = vld [vmem:[%s355 + $0x3d0] sm:$0xff]
        %v1345 = vld [vmem:[%s355 + $0x3d8] sm:$0xff]
        %v1346 = vld [vmem:[%s355 + $0x3e0] sm:$0xff]
        %v1347 = vld [vmem:[%s355 + $0x3e8] sm:$0xff]
        %v1348 = vld [vmem:[%s355 + $0x3f0] sm:$0xff]
        %v1349 = vld [vmem:[%s355 + $0x3f8] sm:$0xff]
        %v1350 = vld [vmem:[%s355 + $0x400] sm:$0xff]
        %v1351 = vld [vmem:[%s355 + $0x408] sm:$0xff]
        %v1352 = vld [vmem:[%s355 + $0x410] sm:$0xff]
        %v1353 = vld [vmem:[%s355 + $0x418] sm:$0xff]
        %v1354 = vld [vmem:[%s355 + $0x420] sm:$0xff]
        %v1355 = vld [vmem:[%s355 + $0x428] sm:$0xff]
        %v1356 = vld [vmem:[%s355 + $0x430] sm:$0xff]
        %v1357 = vld [vmem:[%s355 + $0x438] sm:$0xff]
        %v1358 = vld [vmem:[%s355 + $0x440] sm:$0xff]
        %v1359 = vld [vmem:[%s355 + $0x448] sm:$0xff]
        %v1360 = vld [vmem:[%s355 + $0x450] sm:$0xff]
        %v1361 = vld [vmem:[%s355 + $0x458] sm:$0xff]
        %v1362 = vld [vmem:[%s355 + $0x460] sm:$0xff]
        %v1363 = vld [vmem:[%s355 + $0x468] sm:$0xff]
        %v1364 = vld [vmem:[%s355 + $0x470] sm:$0xff]
        %v1365 = vld [vmem:[%s355 + $0x478] sm:$0xff]
        %v1366 = vld [vmem:[%s355 + $0x480] sm:$0xff]
        %v1367 = vld [vmem:[%s355 + $0x488] sm:$0xff]
        %v1368 = vld [vmem:[%s355 + $0x490] sm:$0xff]
        %v1369 = vld [vmem:[%s355 + $0x498] sm:$0xff]
        %v1370 = vld [vmem:[%s355 + $0x4a0] sm:$0xff]
        %v1371 = vld [vmem:[%s355 + $0x4a8] sm:$0xff]
        %v1372 = vld [vmem:[%s355 + $0x4b0] sm:$0xff]
        %v1373 = vld [vmem:[%s355 + $0x4b8] sm:$0xff]
        %v1374 = vld [vmem:[%s355 + $0x4c0] sm:$0xff]
        %v1375 = vld [vmem:[%s355 + $0x4c8] sm:$0xff]
        %v1376 = vld [vmem:[%s355 + $0x4d0] sm:$0xff]
        %v1377 = vld [vmem:[%s355 + $0x4d8] sm:$0xff]
        %v1378 = vld [vmem:[%s355 + $0x4e0] sm:$0xff]
        %v1379 = vld [vmem:[%s355 + $0x4e8] sm:$0xff]
        %v1380 = vld [vmem:[%s355 + $0x4f0] sm:$0xff]
        %v1381 = vld [vmem:[%s355 + $0x4f8] sm:$0xff]
        %v1382 = vld [vmem:[%s355 + $0x500] sm:$0xff]
        %v1383 = vld [vmem:[%s355 + $0x508] sm:$0xff]
        %v1384 = vld [vmem:[%s355 + $0x510] sm:$0xff]
        %v1385 = vld [vmem:[%s355 + $0x518] sm:$0xff]
        %v1386 = vld [vmem:[%s355 + $0x520] sm:$0xff]
        %v1387 = vld [vmem:[%s355 + $0x528] sm:$0xff]
        %v1388 = vld [vmem:[%s355 + $0x530] sm:$0xff]
        %v1389 = vld [vmem:[%s355 + $0x538] sm:$0xff]
        %v1390 = vld [vmem:[%s355 + $0x540] sm:$0xff]
        %v1391 = vld [vmem:[%s355 + $0x548] sm:$0xff]
        %v1392 = vld [vmem:[%s355 + $0x550] sm:$0xff]
        %v1393 = vld [vmem:[%s355 + $0x558] sm:$0xff]
        %v1394 = vld [vmem:[%s355 + $0x560] sm:$0xff]
        %v1395 = vld [vmem:[%s355 + $0x568] sm:$0xff]
        %v1396 = vld [vmem:[%s355 + $0x570] sm:$0xff]
        %v1397 = vld [vmem:[%s355 + $0x578] sm:$0xff]
        %v1398 = vld [vmem:[%s355 + $0x580] sm:$0xff]
        %v1399 = vld [vmem:[%s355 + $0x588] sm:$0xff]
        %v1400 = vld [vmem:[%s355 + $0x590] sm:$0xff]
        %v1401 = vld [vmem:[%s355 + $0x598] sm:$0xff]
        %v1402 = vld [vmem:[%s355 + $0x5a0] sm:$0xff]
        %v1403 = vld [vmem:[%s355 + $0x5a8] sm:$0xff]
        %v1404 = vld [vmem:[%s355 + $0x5b0] sm:$0xff]
        %v1405 = vld [vmem:[%s355 + $0x5b8] sm:$0xff]
        %v1406 = vld [vmem:[%s355 + $0x5c0] sm:$0xff]
        %v1407 = vld [vmem:[%s355 + $0x5c8] sm:$0xff]
        %v1408 = vld [vmem:[%s355 + $0x5d0] sm:$0xff]
        %v1409 = vld [vmem:[%s355 + $0x5d8] sm:$0xff]
        %v1410 = vld [vmem:[%s355 + $0x5e0] sm:$0xff]
        %v1411 = vld [vmem:[%s355 + $0x5e8] sm:$0xff]
        %v1412 = vld [vmem:[%s355 + $0x5f0] sm:$0xff]
        %v1413 = vld [vmem:[%s355 + $0x5f8] sm:$0xff]
        %v1414 = vld [vmem:[%s355 + $0x600] sm:$0xff]
        %v1415 = vld [vmem:[%s355 + $0x608] sm:$0xff]
        %v1416 = vld [vmem:[%s355 + $0x610] sm:$0xff]
        %v1417 = vld [vmem:[%s355 + $0x618] sm:$0xff]
        %v1418 = vld [vmem:[%s355 + $0x620] sm:$0xff]
        %v1419 = vld [vmem:[%s355 + $0x628] sm:$0xff]
        %v1420 = vld [vmem:[%s355 + $0x630] sm:$0xff]
        %v1421 = vld [vmem:[%s355 + $0x638] sm:$0xff]
        %v1422 = vld [vmem:[%s355 + $0x640] sm:$0xff]
        %v1423 = vld [vmem:[%s355 + $0x648] sm:$0xff]
        %v1424 = vld [vmem:[%s355 + $0x650] sm:$0xff]
        %v1425 = vld [vmem:[%s355 + $0x658] sm:$0xff]
        %v1426 = vld [vmem:[%s355 + $0x660] sm:$0xff]
        %v1427 = vld [vmem:[%s355 + $0x668] sm:$0xff]
        %v1428 = vld [vmem:[%s355 + $0x670] sm:$0xff]
        %v1429 = vld [vmem:[%s355 + $0x678] sm:$0xff]
        %v1430 = vld [vmem:[%s355 + $0x680] sm:$0xff]
        %v1431 = vld [vmem:[%s355 + $0x688] sm:$0xff]
        %v1432 = vld [vmem:[%s355 + $0x690] sm:$0xff]
        %v1433 = vld [vmem:[%s355 + $0x698] sm:$0xff]
        %v1434 = vld [vmem:[%s355 + $0x6a0] sm:$0xff]
        %v1435 = vld [vmem:[%s355 + $0x6a8] sm:$0xff]
        %v1436 = vld [vmem:[%s355 + $0x6b0] sm:$0xff]
        %v1437 = vld [vmem:[%s355 + $0x6b8] sm:$0xff]
        %v1438 = vld [vmem:[%s355 + $0x6c0] sm:$0xff]
        %v1439 = vld [vmem:[%s355 + $0x6c8] sm:$0xff]
        %v1440 = vld [vmem:[%s355 + $0x6d0] sm:$0xff]
        %v1441 = vld [vmem:[%s355 + $0x6d8] sm:$0xff]
        %v1442 = vld [vmem:[%s355 + $0x6e0] sm:$0xff]
        %v1443 = vld [vmem:[%s355 + $0x6e8] sm:$0xff]
        %v1444 = vld [vmem:[%s355 + $0x6f0] sm:$0xff]
        %v1445 = vld [vmem:[%s355 + $0x6f8] sm:$0xff]
        %v1446 = vld [vmem:[%s355 + $0x700] sm:$0xff]
        %v1447 = vld [vmem:[%s355 + $0x708] sm:$0xff]
        %v1448 = vld [vmem:[%s355 + $0x710] sm:$0xff]
        %v1449 = vld [vmem:[%s355 + $0x718] sm:$0xff]
        %v1450 = vld [vmem:[%s355 + $0x720] sm:$0xff]
        %v1451 = vld [vmem:[%s355 + $0x728] sm:$0xff]
        %v1452 = vld [vmem:[%s355 + $0x730] sm:$0xff]
        %v1453 = vld [vmem:[%s355 + $0x738] sm:$0xff]
        %v1454 = vld [vmem:[%s355 + $0x740] sm:$0xff]
        %v1455 = vld [vmem:[%s355 + $0x748] sm:$0xff]
        %v1456 = vld [vmem:[%s355 + $0x750] sm:$0xff]
        %v1457 = vld [vmem:[%s355 + $0x758] sm:$0xff]
        %v1458 = vld [vmem:[%s355 + $0x760] sm:$0xff]
        %v1459 = vld [vmem:[%s355 + $0x768] sm:$0xff]
        %v1460 = vld [vmem:[%s355 + $0x770] sm:$0xff]
        %v1461 = vld [vmem:[%s355 + $0x778] sm:$0xff]
        %v1462 = vld [vmem:[%s355 + $0x780] sm:$0xff]
        %v1463 = vld [vmem:[%s355 + $0x788] sm:$0xff]
        %v1464 = vld [vmem:[%s355 + $0x790] sm:$0xff]
        %v1465 = vld [vmem:[%s355 + $0x798] sm:$0xff]
        %v1466 = vld [vmem:[%s355 + $0x7a0] sm:$0xff]
        %v1467 = vld [vmem:[%s355 + $0x7a8] sm:$0xff]
        %v1468 = vld [vmem:[%s355 + $0x7b0] sm:$0xff]
        %v1469 = vld [vmem:[%s355 + $0x7b8] sm:$0xff]
        %v1470 = vld [vmem:[%s355 + $0x7c0] sm:$0xff]
        %v1471 = vld [vmem:[%s355 + $0x7c8] sm:$0xff]
        %v1472 = vld [vmem:[%s355 + $0x7d0] sm:$0xff]
        %v1473 = vld [vmem:[%s355 + $0x7d8] sm:$0xff]
        %v1474 = vld [vmem:[%s355 + $0x7e0] sm:$0xff]
        %v1475 = vld [vmem:[%s355 + $0x7e8] sm:$0xff]
        %v1476 = vld [vmem:[%s355 + $0x7f0] sm:$0xff]
        %v1477 = vld [vmem:[%s355 + $0x7f8] sm:$0xff]
        %v1478 = vld [vmem:[%s355 + $0x800] sm:$0xff]
        %v1479 = vld [vmem:[%s355 + $0x808] sm:$0xff]
        %v1480 = vld [vmem:[%s355 + $0x810] sm:$0xff]
        %v1481 = vld [vmem:[%s355 + $0x818] sm:$0xff]
        %v1482 = vld [vmem:[%s355 + $0x820] sm:$0xff]
        %v1483 = vld [vmem:[%s355 + $0x828] sm:$0xff]
        %v1484 = vld [vmem:[%s355 + $0x830] sm:$0xff]
        %v1485 = vld [vmem:[%s355 + $0x838] sm:$0xff]
        %v1486 = vld [vmem:[%s355 + $0x840] sm:$0xff]
        %v1487 = vld [vmem:[%s355 + $0x848] sm:$0xff]
        %v1488 = vld [vmem:[%s355 + $0x850] sm:$0xff]
        %v1489 = vld [vmem:[%s355 + $0x858] sm:$0xff]
        %v1490 = vld [vmem:[%s355 + $0x860] sm:$0xff]
        %v1491 = vld [vmem:[%s355 + $0x868] sm:$0xff]
        %v1492 = vld [vmem:[%s355 + $0x870] sm:$0xff]
        %v1493 = vld [vmem:[%s355 + $0x878] sm:$0xff]
        %v1494 = vld [vmem:[%s355 + $0x880] sm:$0xff]
        %v1495 = vld [vmem:[%s355 + $0x888] sm:$0xff]
        %v1496 = vld [vmem:[%s355 + $0x890] sm:$0xff]
        %v1497 = vld [vmem:[%s355 + $0x898] sm:$0xff]
        %v1498 = vld [vmem:[%s355 + $0x8a0] sm:$0xff]
        %v1499 = vld [vmem:[%s355 + $0x8a8] sm:$0xff]
        %v1500 = vld [vmem:[%s355 + $0x8b0] sm:$0xff]
        %v1501 = vld [vmem:[%s355 + $0x8b8] sm:$0xff]
        %v1502 = vld [vmem:[%s355 + $0x8c0] sm:$0xff]
        %v1503 = vld [vmem:[%s355 + $0x8c8] sm:$0xff]
        %v1504 = vld [vmem:[%s355 + $0x8d0] sm:$0xff]
        %v1505 = vld [vmem:[%s355 + $0x8d8] sm:$0xff]
        %v1506 = vld [vmem:[%s355 + $0x8e0] sm:$0xff]
        %v1507 = vld [vmem:[%s355 + $0x8e8] sm:$0xff]
        %v1508 = vld [vmem:[%s355 + $0x8f0] sm:$0xff]
        %v1509 = vld [vmem:[%s355 + $0x8f8] sm:$0xff]
        %v1510 = vld [vmem:[%s355 + $0x900] sm:$0xff]
        %v1511 = vld [vmem:[%s355 + $0x908] sm:$0xff]
        %v1512 = vld [vmem:[%s355 + $0x910] sm:$0xff]
        %v1513 = vld [vmem:[%s355 + $0x918] sm:$0xff]
        %v1514 = vld [vmem:[%s355 + $0x920] sm:$0xff]
        %v1515 = vld [vmem:[%s355 + $0x928] sm:$0xff]
        %v1516 = vld [vmem:[%s355 + $0x930] sm:$0xff]
        %v1517 = vld [vmem:[%s355 + $0x938] sm:$0xff]
        %v1518 = vld [vmem:[%s355 + $0x940] sm:$0xff]
        %v1519 = vld [vmem:[%s355 + $0x948] sm:$0xff]
        %v1520 = vld [vmem:[%s355 + $0x950] sm:$0xff]
        %v1521 = vld [vmem:[%s355 + $0x958] sm:$0xff]
        %v1522 = vld [vmem:[%s355 + $0x960] sm:$0xff]
        %v1523 = vld [vmem:[%s355 + $0x968] sm:$0xff]
        %v1524 = vld [vmem:[%s355 + $0x970] sm:$0xff]
        %v1525 = vld [vmem:[%s355 + $0x978] sm:$0xff]
        %v1526 = vld [vmem:[%s355 + $0x980] sm:$0xff]
        %v1527 = vld [vmem:[%s355 + $0x988] sm:$0xff]
        %v1528 = vld [vmem:[%s355 + $0x990] sm:$0xff]
        %v1529 = vld [vmem:[%s355 + $0x998] sm:$0xff]
        %v1530 = vld [vmem:[%s355 + $0x9a0] sm:$0xff]
        %v1531 = vld [vmem:[%s355 + $0x9a8] sm:$0xff]
        %v1532 = vld [vmem:[%s355 + $0x9b0] sm:$0xff]
        %v1533 = vld [vmem:[%s355 + $0x9b8] sm:$0xff]
        %v1534 = vld [vmem:[%s355 + $0x9c0] sm:$0xff]
        %v1535 = vld [vmem:[%s355 + $0x9c8] sm:$0xff]
        %v1536 = vld [vmem:[%s355 + $0x9d0] sm:$0xff]
        %v1537 = vld [vmem:[%s355 + $0x9d8] sm:$0xff]
        %v1538 = vld [vmem:[%s355 + $0x9e0] sm:$0xff]
        %v1539 = vld [vmem:[%s355 + $0x9e8] sm:$0xff]
        %v1540 = vld [vmem:[%s355 + $0x9f0] sm:$0xff]
        %v1541 = vld [vmem:[%s355 + $0x9f8] sm:$0xff]
        %v1542 = vld [vmem:[%s355 + $0xa00] sm:$0xff]
        %v1543 = vld [vmem:[%s355 + $0xa08] sm:$0xff]
        %v1544 = vld [vmem:[%s355 + $0xa10] sm:$0xff]
        %v1545 = vld [vmem:[%s355 + $0xa18] sm:$0xff]
        %v1546 = vld [vmem:[%s355 + $0xa20] sm:$0xff]
        %v1547 = vld [vmem:[%s355 + $0xa28] sm:$0xff]
        %v1548 = vld [vmem:[%s355 + $0xa30] sm:$0xff]
        %v1549 = vld [vmem:[%s355 + $0xa38] sm:$0xff]
        %v1550 = vld [vmem:[%s355 + $0xa40] sm:$0xff]
        %v1551 = vld [vmem:[%s355 + $0xa48] sm:$0xff]
        %v1552 = vld [vmem:[%s355 + $0xa50] sm:$0xff]
        %v1553 = vld [vmem:[%s355 + $0xa58] sm:$0xff]
        %v1554 = vld [vmem:[%s355 + $0xa60] sm:$0xff]
        %v1555 = vld [vmem:[%s355 + $0xa68] sm:$0xff]
        %v1556 = vld [vmem:[%s355 + $0xa70] sm:$0xff]
        %v1557 = vld [vmem:[%s355 + $0xa78] sm:$0xff]
        %v1558 = vld [vmem:[%s355 + $0xa80] sm:$0xff]
        %v1559 = vld [vmem:[%s355 + $0xa88] sm:$0xff]
        %v1560 = vld [vmem:[%s355 + $0xa90] sm:$0xff]
        %v1561 = vld [vmem:[%s355 + $0xa98] sm:$0xff]
        %v1562 = vld [vmem:[%s355 + $0xaa0] sm:$0xff]
        %v1563 = vld [vmem:[%s355 + $0xaa8] sm:$0xff]
        %v1564 = vld [vmem:[%s355 + $0xab0] sm:$0xff]
        %v1565 = vld [vmem:[%s355 + $0xab8] sm:$0xff]
        %v1566 = vld [vmem:[%s355 + $0xac0] sm:$0xff]
        %v1567 = vld [vmem:[%s355 + $0xac8] sm:$0xff]
        %v1568 = vld [vmem:[%s355 + $0xad0] sm:$0xff]
        %v1569 = vld [vmem:[%s355 + $0xad8] sm:$0xff]
        %v1570 = vld [vmem:[%s355 + $0xae0] sm:$0xff]
        %v1571 = vld [vmem:[%s355 + $0xae8] sm:$0xff]
        %v1572 = vld [vmem:[%s355 + $0xaf0] sm:$0xff]
        %v1573 = vld [vmem:[%s355 + $0xaf8] sm:$0xff]
        %v1574 = vld [vmem:[%s355 + $0xb00] sm:$0xff]
        %v1575 = vld [vmem:[%s355 + $0xb08] sm:$0xff]
        %v1576 = vld [vmem:[%s355 + $0xb10] sm:$0xff]
        %v1577 = vld [vmem:[%s355 + $0xb18] sm:$0xff]
        %v1578 = vld [vmem:[%s355 + $0xb20] sm:$0xff]
        %v1579 = vld [vmem:[%s355 + $0xb28] sm:$0xff]
        %v1580 = vld [vmem:[%s355 + $0xb30] sm:$0xff]
        %v1581 = vld [vmem:[%s355 + $0xb38] sm:$0xff]
        %v1582 = vld [vmem:[%s355 + $0xb40] sm:$0xff]
        %v1583 = vld [vmem:[%s355 + $0xb48] sm:$0xff]
        %v1584 = vld [vmem:[%s355 + $0xb50] sm:$0xff]
        %v1585 = vld [vmem:[%s355 + $0xb58] sm:$0xff]
        %v1586 = vld [vmem:[%s355 + $0xb60] sm:$0xff]
        %v1587 = vld [vmem:[%s355 + $0xb68] sm:$0xff]
        %v1588 = vld [vmem:[%s355 + $0xb70] sm:$0xff]
        %v1589 = vld [vmem:[%s355 + $0xb78] sm:$0xff]
        %v1590 = vld [vmem:[%s355 + $0xb80] sm:$0xff]
        %v1591 = vld [vmem:[%s355 + $0xb88] sm:$0xff]
        %v1592 = vld [vmem:[%s355 + $0xb90] sm:$0xff]
        %v1593 = vld [vmem:[%s355 + $0xb98] sm:$0xff]
        %v1594 = vld [vmem:[%s355 + $0xba0] sm:$0xff]
        %v1595 = vld [vmem:[%s355 + $0xba8] sm:$0xff]
        %v1596 = vld [vmem:[%s355 + $0xbb0] sm:$0xff]
        %v1597 = vld [vmem:[%s355 + $0xbb8] sm:$0xff]
        %v1598 = vld [vmem:[%s355 + $0xbc0] sm:$0xff]
        %v1599 = vld [vmem:[%s355 + $0xbc8] sm:$0xff]
        %v1600 = vld [vmem:[%s355 + $0xbd0] sm:$0xff]
        %v1601 = vld [vmem:[%s355 + $0xbd8] sm:$0xff]
        %v1602 = vld [vmem:[%s355 + $0xbe0] sm:$0xff]
        %v1603 = vld [vmem:[%s355 + $0xbe8] sm:$0xff]
        %v1604 = vld [vmem:[%s355 + $0xbf0] sm:$0xff]
        %v1605 = vld [vmem:[%s355 + $0xbf8] sm:$0xff]
        %v1606 = vld [vmem:[%s355 + $0xc00] sm:$0xff]
        %v1607 = vld [vmem:[%s355 + $0xc08] sm:$0xff]
        %v1608 = vld [vmem:[%s355 + $0xc10] sm:$0xff]
        %v1609 = vld [vmem:[%s355 + $0xc18] sm:$0xff]
        %v1610 = vld [vmem:[%s355 + $0xc20] sm:$0xff]
        %v1611 = vld [vmem:[%s355 + $0xc28] sm:$0xff]
        %v1612 = vld [vmem:[%s355 + $0xc30] sm:$0xff]
        %v1613 = vld [vmem:[%s355 + $0xc38] sm:$0xff]
        %v1614 = vld [vmem:[%s355 + $0xc40] sm:$0xff]
        %v1615 = vld [vmem:[%s355 + $0xc48] sm:$0xff]
        %v1616 = vld [vmem:[%s355 + $0xc50] sm:$0xff]
        %v1617 = vld [vmem:[%s355 + $0xc58] sm:$0xff]
        %v1618 = vld [vmem:[%s355 + $0xc60] sm:$0xff]
        %v1619 = vld [vmem:[%s355 + $0xc68] sm:$0xff]
        %v1620 = vld [vmem:[%s355 + $0xc70] sm:$0xff]
        %v1621 = vld [vmem:[%s355 + $0xc78] sm:$0xff]
        %v1622 = vld [vmem:[%s355 + $0xc80] sm:$0xff]
        %v1623 = vld [vmem:[%s355 + $0xc88] sm:$0xff]
        %v1624 = vld [vmem:[%s355 + $0xc90] sm:$0xff]
        %v1625 = vld [vmem:[%s355 + $0xc98] sm:$0xff]
        %v1626 = vld [vmem:[%s355 + $0xca0] sm:$0xff]
        %v1627 = vld [vmem:[%s355 + $0xca8] sm:$0xff]
        %v1628 = vld [vmem:[%s355 + $0xcb0] sm:$0xff]
        %v1629 = vld [vmem:[%s355 + $0xcb8] sm:$0xff]
        %v1630 = vld [vmem:[%s355 + $0xcc0] sm:$0xff]
        %v1631 = vld [vmem:[%s355 + $0xcc8] sm:$0xff]
        %v1632 = vld [vmem:[%s355 + $0xcd0] sm:$0xff]
        %v1633 = vld [vmem:[%s355 + $0xcd8] sm:$0xff]
        %v1634 = vld [vmem:[%s355 + $0xce0] sm:$0xff]
        %v1635 = vld [vmem:[%s355 + $0xce8] sm:$0xff]
        %v1636 = vld [vmem:[%s355 + $0xcf0] sm:$0xff]
        %v1637 = vld [vmem:[%s355 + $0xcf8] sm:$0xff]
        %v1638 = vld [vmem:[%s355 + $0xd00] sm:$0xff]
        %v1639 = vld [vmem:[%s355 + $0xd08] sm:$0xff]
        %v1640 = vld [vmem:[%s355 + $0xd10] sm:$0xff]
        %v1641 = vld [vmem:[%s355 + $0xd18] sm:$0xff]
        %v1642 = vld [vmem:[%s355 + $0xd20] sm:$0xff]
        %v1643 = vld [vmem:[%s355 + $0xd28] sm:$0xff]
        %v1644 = vld [vmem:[%s355 + $0xd30] sm:$0xff]
        %v1645 = vld [vmem:[%s355 + $0xd38] sm:$0xff]
        %v1646 = vld [vmem:[%s355 + $0xd40] sm:$0xff]
        %v1647 = vld [vmem:[%s355 + $0xd48] sm:$0xff]
        %v1648 = vld [vmem:[%s355 + $0xd50] sm:$0xff]
        %v1649 = vld [vmem:[%s355 + $0xd58] sm:$0xff]
        %v1650 = vld [vmem:[%s355 + $0xd60] sm:$0xff]
        %v1651 = vld [vmem:[%s355 + $0xd68] sm:$0xff]
        %v1652 = vld [vmem:[%s355 + $0xd70] sm:$0xff]
        %v1653 = vld [vmem:[%s355 + $0xd78] sm:$0xff]
        %v1654 = vld [vmem:[%s355 + $0xd80] sm:$0xff]
        %v1655 = vld [vmem:[%s355 + $0xd88] sm:$0xff]
        %v1656 = vld [vmem:[%s355 + $0xd90] sm:$0xff]
        %v1657 = vld [vmem:[%s355 + $0xd98] sm:$0xff]
        %v1658 = vld [vmem:[%s355 + $0xda0] sm:$0xff]
        %v1659 = vld [vmem:[%s355 + $0xda8] sm:$0xff]
        %v1660 = vld [vmem:[%s355 + $0xdb0] sm:$0xff]
        %v1661 = vld [vmem:[%s355 + $0xdb8] sm:$0xff]
        %v1662 = vld [vmem:[%s355 + $0xdc0] sm:$0xff]
        %v1663 = vld [vmem:[%s355 + $0xdc8] sm:$0xff]
        %v1664 = vld [vmem:[%s355 + $0xdd0] sm:$0xff]
        %v1665 = vld [vmem:[%s355 + $0xdd8] sm:$0xff]
        %v1666 = vld [vmem:[%s355 + $0xde0] sm:$0xff]
        %v1667 = vld [vmem:[%s355 + $0xde8] sm:$0xff]
        %v1668 = vld [vmem:[%s355 + $0xdf0] sm:$0xff]
        %v1669 = vld [vmem:[%s355 + $0xdf8] sm:$0xff]
        %v1670 = vld [vmem:[%s355 + $0xe00] sm:$0xff]
        %v1671 = vld [vmem:[%s355 + $0xe08] sm:$0xff]
        %v1672 = vld [vmem:[%s355 + $0xe10] sm:$0xff]
        %v1673 = vld [vmem:[%s355 + $0xe18] sm:$0xff]
        %v1674 = vld [vmem:[%s355 + $0xe20] sm:$0xff]
        %v1675 = vld [vmem:[%s355 + $0xe28] sm:$0xff]
        %v1676 = vld [vmem:[%s355 + $0xe30] sm:$0xff]
        %v1677 = vld [vmem:[%s355 + $0xe38] sm:$0xff]
        %v1678 = vld [vmem:[%s355 + $0xe40] sm:$0xff]
        %v1679 = vld [vmem:[%s355 + $0xe48] sm:$0xff]
        %v1680 = vld [vmem:[%s355 + $0xe50] sm:$0xff]
        %v1681 = vld [vmem:[%s355 + $0xe58] sm:$0xff]
        %v1682 = vld [vmem:[%s355 + $0xe60] sm:$0xff]
        %v1683 = vld [vmem:[%s355 + $0xe68] sm:$0xff]
        %v1684 = vld [vmem:[%s355 + $0xe70] sm:$0xff]
        %v1685 = vld [vmem:[%s355 + $0xe78] sm:$0xff]
        %v1686 = vld [vmem:[%s355 + $0xe80] sm:$0xff]
        %v1687 = vld [vmem:[%s355 + $0xe88] sm:$0xff]
        %v1688 = vld [vmem:[%s355 + $0xe90] sm:$0xff]
        %v1689 = vld [vmem:[%s355 + $0xe98] sm:$0xff]
        %v1690 = vld [vmem:[%s355 + $0xea0] sm:$0xff]
        %v1691 = vld [vmem:[%s355 + $0xea8] sm:$0xff]
        %v1692 = vld [vmem:[%s355 + $0xeb0] sm:$0xff]
        %v1693 = vld [vmem:[%s355 + $0xeb8] sm:$0xff]
        %v1694 = vld [vmem:[%s355 + $0xec0] sm:$0xff]
        %v1695 = vld [vmem:[%s355 + $0xec8] sm:$0xff]
        %v1696 = vld [vmem:[%s355 + $0xed0] sm:$0xff]
        %v1697 = vld [vmem:[%s355 + $0xed8] sm:$0xff]
        %v1698 = vld [vmem:[%s355 + $0xee0] sm:$0xff]
        %v1699 = vld [vmem:[%s355 + $0xee8] sm:$0xff]
        %v1700 = vld [vmem:[%s355 + $0xef0] sm:$0xff]
        %v1701 = vld [vmem:[%s355 + $0xef8] sm:$0xff]
        %v1702 = vld [vmem:[%s355 + $0xf00] sm:$0xff]
        %v1703 = vld [vmem:[%s355 + $0xf08] sm:$0xff]
        %v1704 = vld [vmem:[%s355 + $0xf10] sm:$0xff]
        %v1705 = vld [vmem:[%s355 + $0xf18] sm:$0xff]
        %v1706 = vld [vmem:[%s355 + $0xf20] sm:$0xff]
        %v1707 = vld [vmem:[%s355 + $0xf28] sm:$0xff]
        %v1708 = vld [vmem:[%s355 + $0xf30] sm:$0xff]
        %v1709 = vld [vmem:[%s355 + $0xf38] sm:$0xff]
        %v1710 = vld [vmem:[%s355 + $0xf40] sm:$0xff]
        %v1711 = vld [vmem:[%s355 + $0xf48] sm:$0xff]
        %v1712 = vld [vmem:[%s355 + $0xf50] sm:$0xff]
        %v1713 = vld [vmem:[%s355 + $0xf58] sm:$0xff]
        %v1714 = vld [vmem:[%s355 + $0xf60] sm:$0xff]
        %v1715 = vld [vmem:[%s355 + $0xf68] sm:$0xff]
        %v1716 = vld [vmem:[%s355 + $0xf70] sm:$0xff]
        %v1717 = vld [vmem:[%s355 + $0xf78] sm:$0xff]
        %v1718 = vld [vmem:[%s355 + $0xf80] sm:$0xff]
        %v1719 = vld [vmem:[%s355 + $0xf88] sm:$0xff]
        %v1720 = vld [vmem:[%s355 + $0xf90] sm:$0xff]
        %v1721 = vld [vmem:[%s355 + $0xf98] sm:$0xff]
        %v1722 = vld [vmem:[%s355 + $0xfa0] sm:$0xff]
        %v1723 = vld [vmem:[%s355 + $0xfa8] sm:$0xff]
        %v1724 = vld [vmem:[%s355 + $0xfb0] sm:$0xff]
        %v1725 = vld [vmem:[%s355 + $0xfb8] sm:$0xff]
        %v1726 = vld [vmem:[%s355 + $0xfc0] sm:$0xff]
        %v1727 = vld [vmem:[%s355 + $0xfc8] sm:$0xff]
        %v1728 = vld [vmem:[%s355 + $0xfd0] sm:$0xff]
        %v1729 = vld [vmem:[%s355 + $0xfd8] sm:$0xff]
        %v1730 = vld [vmem:[%s355 + $0xfe0] sm:$0xff]
        %v1731 = vld [vmem:[%s355 + $0xfe8] sm:$0xff]
        %v1732 = vld [vmem:[%s355 + $0xff0] sm:$0xff]
        %v1733 = vld [vmem:[%s355 + $0xff8] sm:$0xff]
        %v1734 = vld [vmem:[%s355 + $0x1000] sm:$0xff]
        %v1735 = vld [vmem:[%s355 + $0x1008] sm:$0xff]
        %v1736 = vld [vmem:[%s355 + $0x1010] sm:$0xff]
        %v1737 = vld [vmem:[%s355 + $0x1018] sm:$0xff]
        %v1738 = vld [vmem:[%s355 + $0x1020] sm:$0xff]
        %v1739 = vld [vmem:[%s355 + $0x1028] sm:$0xff]
        %v1740 = vld [vmem:[%s355 + $0x1030] sm:$0xff]
        %v1741 = vld [vmem:[%s355 + $0x1038] sm:$0xff]
        %v1742 = vld [vmem:[%s355 + $0x1040] sm:$0xff]
        %v1743 = vld [vmem:[%s355 + $0x1048] sm:$0xff]
        %v1744 = vld [vmem:[%s355 + $0x1050] sm:$0xff]
        %v1745 = vld [vmem:[%s355 + $0x1058] sm:$0xff]
        %v1746 = vld [vmem:[%s355 + $0x1060] sm:$0xff]
        %v1747 = vld [vmem:[%s355 + $0x1068] sm:$0xff]
        %v1748 = vld [vmem:[%s355 + $0x1070] sm:$0xff]
        %v1749 = vld [vmem:[%s355 + $0x1078] sm:$0xff]
        %v1750 = vld [vmem:[%s355 + $0x1080] sm:$0xff]
        %v1751 = vld [vmem:[%s355 + $0x1088] sm:$0xff]
        %v1752 = vld [vmem:[%s355 + $0x1090] sm:$0xff]
        %v1753 = vld [vmem:[%s355 + $0x1098] sm:$0xff]
        %v1754 = vld [vmem:[%s355 + $0x10a0] sm:$0xff]
        %v1755 = vld [vmem:[%s355 + $0x10a8] sm:$0xff]
        %v1756 = vld [vmem:[%s355 + $0x10b0] sm:$0xff]
        %v1757 = vld [vmem:[%s355 + $0x10b8] sm:$0xff]
        %v1758 = vld [vmem:[%s355 + $0x10c0] sm:$0xff]
        %v1759 = vld [vmem:[%s355 + $0x10c8] sm:$0xff]
        %v1760 = vld [vmem:[%s355 + $0x10d0] sm:$0xff]
        %v1761 = vld [vmem:[%s355 + $0x10d8] sm:$0xff]
        %v1762 = vld [vmem:[%s355 + $0x10e0] sm:$0xff]
        %v1763 = vld [vmem:[%s355 + $0x10e8] sm:$0xff]
        %v1764 = vld [vmem:[%s355 + $0x10f0] sm:$0xff]
        %v1765 = vld [vmem:[%s355 + $0x10f8] sm:$0xff]
        %v1766 = vld [vmem:[%s355 + $0x1100] sm:$0xff]
        %v1767 = vld [vmem:[%s355 + $0x1108] sm:$0xff]
        %v1768 = vld [vmem:[%s355 + $0x1110] sm:$0xff]
        %v1769 = vld [vmem:[%s355 + $0x1118] sm:$0xff]
        %v1770 = vld [vmem:[%s355 + $0x1120] sm:$0xff]
        %v1771 = vld [vmem:[%s355 + $0x1128] sm:$0xff]
        %v1772 = vld [vmem:[%s355 + $0x1130] sm:$0xff]
        %v1773 = vld [vmem:[%s355 + $0x1138] sm:$0xff]
        %v1774 = vld [vmem:[%s355 + $0x1140] sm:$0xff]
        %v1775 = vld [vmem:[%s355 + $0x1148] sm:$0xff]
        %v1776 = vld [vmem:[%s355 + $0x1150] sm:$0xff]
        %v1777 = vld [vmem:[%s355 + $0x1158] sm:$0xff]
        %v1778 = vld [vmem:[%s355 + $0x1160] sm:$0xff]
        %v1779 = vld [vmem:[%s355 + $0x1168] sm:$0xff]
        %v1780 = vld [vmem:[%s355 + $0x1170] sm:$0xff]
        %v1781 = vld [vmem:[%s355 + $0x1178] sm:$0xff]
        %v1782 = vld [vmem:[%s355 + $0x1180] sm:$0xff]
        %v1783 = vld [vmem:[%s355 + $0x1188] sm:$0xff]
        %v1784 = vld [vmem:[%s355 + $0x1190] sm:$0xff]
        %v1785 = vld [vmem:[%s355 + $0x1198] sm:$0xff]
        %v1786 = vld [vmem:[%s355 + $0x11a0] sm:$0xff]
        %v1787 = vld [vmem:[%s355 + $0x11a8] sm:$0xff]
        %v1788 = vld [vmem:[%s355 + $0x11b0] sm:$0xff]
        %v1789 = vld [vmem:[%s355 + $0x11b8] sm:$0xff]
        %v1790 = vld [vmem:[%s355 + $0x11c0] sm:$0xff]
        %v1791 = vld [vmem:[%s355 + $0x11c8] sm:$0xff]
        %v1792 = vld [vmem:[%s355 + $0x11d0] sm:$0xff]
        %v1793 = vld [vmem:[%s355 + $0x11d8] sm:$0xff]
        %v1794 = vld [vmem:[%s355 + $0x11e0] sm:$0xff]
        %v1795 = vld [vmem:[%s355 + $0x11e8] sm:$0xff]
        %v1796 = vld [vmem:[%s355 + $0x11f0] sm:$0xff]
        %v1797 = vld [vmem:[%s355 + $0x11f8] sm:$0xff]
        %v1798 = vld [vmem:[%s355 + $0x1200] sm:$0xff]
        %v1799 = vld [vmem:[%s355 + $0x1208] sm:$0xff]
        %v1800 = vld [vmem:[%s355 + $0x1210] sm:$0xff]
        %v1801 = vld [vmem:[%s355 + $0x1218] sm:$0xff]
        %v1802 = vld [vmem:[%s355 + $0x1220] sm:$0xff]
        %v1803 = vld [vmem:[%s355 + $0x1228] sm:$0xff]
        %v1804 = vld [vmem:[%s355 + $0x1230] sm:$0xff]
        %v1805 = vld [vmem:[%s355 + $0x1238] sm:$0xff]
        %v1806 = vld [vmem:[%s355 + $0x1240] sm:$0xff]
        %v1807 = vld [vmem:[%s355 + $0x1248] sm:$0xff]
        %v1808 = vld [vmem:[%s355 + $0x1250] sm:$0xff]
        %v1809 = vld [vmem:[%s355 + $0x1258] sm:$0xff]
        %v1810 = vld [vmem:[%s355 + $0x1260] sm:$0xff]
        %v1811 = vld [vmem:[%s355 + $0x1268] sm:$0xff]
        %v1812 = vld [vmem:[%s355 + $0x1270] sm:$0xff]
        %v1813 = vld [vmem:[%s355 + $0x1278] sm:$0xff]
        %v1814 = vld [vmem:[%s355 + $0x1280] sm:$0xff]
        %v1815 = vld [vmem:[%s355 + $0x1288] sm:$0xff]
        %v1816 = vld [vmem:[%s355 + $0x1290] sm:$0xff]
        %v1817 = vld [vmem:[%s355 + $0x1298] sm:$0xff]
        %v1818 = vld [vmem:[%s355 + $0x12a0] sm:$0xff]
        %v1819 = vld [vmem:[%s355 + $0x12a8] sm:$0xff]
        %v1820 = vld [vmem:[%s355 + $0x12b0] sm:$0xff]
        %v1821 = vld [vmem:[%s355 + $0x12b8] sm:$0xff]
        %v1822 = vld [vmem:[%s355 + $0x12c0] sm:$0xff]
        %v1823 = vld [vmem:[%s355 + $0x12c8] sm:$0xff]
        %v1824 = vld [vmem:[%s355 + $0x12d0] sm:$0xff]
        %v1825 = vld [vmem:[%s355 + $0x12d8] sm:$0xff]
        %v1826 = vld [vmem:[%s355 + $0x12e0] sm:$0xff]
        %v1827 = vld [vmem:[%s355 + $0x12e8] sm:$0xff]
        %v1828 = vld [vmem:[%s355 + $0x12f0] sm:$0xff]
        %v1829 = vld [vmem:[%s355 + $0x12f8] sm:$0xff]
        %v1830 = vld [vmem:[%s355 + $0x1300] sm:$0xff]
        %v1831 = vld [vmem:[%s355 + $0x1308] sm:$0xff]
        %v1832 = vld [vmem:[%s355 + $0x1310] sm:$0xff]
        %v1833 = vld [vmem:[%s355 + $0x1318] sm:$0xff]
        %v1834 = vld [vmem:[%s355 + $0x1320] sm:$0xff]
        %v1835 = vld [vmem:[%s355 + $0x1328] sm:$0xff]
        %v1836 = vld [vmem:[%s355 + $0x1330] sm:$0xff]
        %v1837 = vld [vmem:[%s355 + $0x1338] sm:$0xff]
        %v1838 = vld [vmem:[%s355 + $0x1340] sm:$0xff]
        %v1839 = vld [vmem:[%s355 + $0x1348] sm:$0xff]
        %v1840 = vld [vmem:[%s355 + $0x1350] sm:$0xff]
        %v1841 = vld [vmem:[%s355 + $0x1358] sm:$0xff]
        %v1842 = vld [vmem:[%s355 + $0x1360] sm:$0xff]
        %v1843 = vld [vmem:[%s355 + $0x1368] sm:$0xff]
        %v1844 = vld [vmem:[%s355 + $0x1370] sm:$0xff]
        %v1845 = vld [vmem:[%s355 + $0x1378] sm:$0xff]
        %v1846 = vld [vmem:[%s355 + $0x1380] sm:$0xff]
        %v1847 = vld [vmem:[%s355 + $0x1388] sm:$0xff]
        %v1848 = vld [vmem:[%s355 + $0x1390] sm:$0xff]
        %v1849 = vld [vmem:[%s355 + $0x1398] sm:$0xff]
        %v1850 = vld [vmem:[%s355 + $0x13a0] sm:$0xff]
        %v1851 = vld [vmem:[%s355 + $0x13a8] sm:$0xff]
        %v1852 = vld [vmem:[%s355 + $0x13b0] sm:$0xff]
        %v1853 = vld [vmem:[%s355 + $0x13b8] sm:$0xff]
        %v1854 = vld [vmem:[%s355 + $0x13c0] sm:$0xff]
        %v1855 = vld [vmem:[%s355 + $0x13c8] sm:$0xff]
        %v1856 = vld [vmem:[%s355 + $0x13d0] sm:$0xff]
        %v1857 = vld [vmem:[%s355 + $0x13d8] sm:$0xff]
        %v1858 = vld [vmem:[%s355 + $0x13e0] sm:$0xff]
        %v1859 = vld [vmem:[%s355 + $0x13e8] sm:$0xff]
        %v1860 = vld [vmem:[%s355 + $0x13f0] sm:$0xff]
        %v1861 = vld [vmem:[%s355 + $0x13f8] sm:$0xff]
        %v1862 = vld [vmem:[%s355 + $0x1400] sm:$0xff]
        %v1863 = vld [vmem:[%s355 + $0x1408] sm:$0xff]
        %v1864 = vld [vmem:[%s355 + $0x1410] sm:$0xff]
        %v1865 = vld [vmem:[%s355 + $0x1418] sm:$0xff]
        %v1866 = vld [vmem:[%s355 + $0x1420] sm:$0xff]
        %v1867 = vld [vmem:[%s355 + $0x1428] sm:$0xff]
        %v1868 = vld [vmem:[%s355 + $0x1430] sm:$0xff]
        %v1869 = vld [vmem:[%s355 + $0x1438] sm:$0xff]
        %v1870 = vld [vmem:[%s355 + $0x1440] sm:$0xff]
        %v1871 = vld [vmem:[%s355 + $0x1448] sm:$0xff]
        %v1872 = vld [vmem:[%s355 + $0x1450] sm:$0xff]
        %v1873 = vld [vmem:[%s355 + $0x1458] sm:$0xff]
        %v1874 = vld [vmem:[%s355 + $0x1460] sm:$0xff]
        %v1875 = vld [vmem:[%s355 + $0x1468] sm:$0xff]
        %v1876 = vld [vmem:[%s355 + $0x1470] sm:$0xff]
        %v1877 = vld [vmem:[%s355 + $0x1478] sm:$0xff]
        %v1878 = vld [vmem:[%s355 + $0x1480] sm:$0xff]
        %v1879 = vld [vmem:[%s355 + $0x1488] sm:$0xff]
        %v1880 = vld [vmem:[%s355 + $0x1490] sm:$0xff]
        %v1881 = vld [vmem:[%s355 + $0x1498] sm:$0xff]
        %v1882 = vld [vmem:[%s355 + $0x14a0] sm:$0xff]
        %v1883 = vld [vmem:[%s355 + $0x14a8] sm:$0xff]
        %v1884 = vld [vmem:[%s355 + $0x14b0] sm:$0xff]
        %v1885 = vld [vmem:[%s355 + $0x14b8] sm:$0xff]
        %v1886 = vld [vmem:[%s355 + $0x14c0] sm:$0xff]
        %v1887 = vld [vmem:[%s355 + $0x14c8] sm:$0xff]
        %v1888 = vld [vmem:[%s355 + $0x14d0] sm:$0xff]
        %v1889 = vld [vmem:[%s355 + $0x14d8] sm:$0xff]
        %v1890 = vld [vmem:[%s355 + $0x14e0] sm:$0xff]
        %v1891 = vld [vmem:[%s355 + $0x14e8] sm:$0xff]
        %v1892 = vld [vmem:[%s355 + $0x14f0] sm:$0xff]
        %v1893 = vld [vmem:[%s355 + $0x14f8] sm:$0xff]
        %v1894 = vld [vmem:[%s355 + $0x1500] sm:$0xff]
        %v1895 = vld [vmem:[%s355 + $0x1508] sm:$0xff]
        %v1896 = vld [vmem:[%s355 + $0x1510] sm:$0xff]
        %v1897 = vld [vmem:[%s355 + $0x1518] sm:$0xff]
        %v1898 = vld [vmem:[%s355 + $0x1520] sm:$0xff]
        %v1899 = vld [vmem:[%s355 + $0x1528] sm:$0xff]
        %v1900 = vld [vmem:[%s355 + $0x1530] sm:$0xff]
        %v1901 = vld [vmem:[%s355 + $0x1538] sm:$0xff]
        %v1902 = vld [vmem:[%s355 + $0x1540] sm:$0xff]
        %v1903 = vld [vmem:[%s355 + $0x1548] sm:$0xff]
        %v1904 = vld [vmem:[%s355 + $0x1550] sm:$0xff]
        %v1905 = vld [vmem:[%s355 + $0x1558] sm:$0xff]
        %v1906 = vld [vmem:[%s355 + $0x1560] sm:$0xff]
        %v1907 = vld [vmem:[%s355 + $0x1568] sm:$0xff]
        %v1908 = vld [vmem:[%s355 + $0x1570] sm:$0xff]
        %v1909 = vld [vmem:[%s355 + $0x1578] sm:$0xff]
        %v1910 = vld [vmem:[%s355 + $0x1580] sm:$0xff]
        %v1911 = vld [vmem:[%s355 + $0x1588] sm:$0xff]
        %v1912 = vld [vmem:[%s355 + $0x1590] sm:$0xff]
        %v1913 = vld [vmem:[%s355 + $0x1598] sm:$0xff]
        %v1914 = vld [vmem:[%s355 + $0x15a0] sm:$0xff]
        %v1915 = vld [vmem:[%s355 + $0x15a8] sm:$0xff]
        %v1916 = vld [vmem:[%s355 + $0x15b0] sm:$0xff]
        %v1917 = vld [vmem:[%s355 + $0x15b8] sm:$0xff]
        %v1918 = vld [vmem:[%s355 + $0x15c0] sm:$0xff]
        %v1919 = vld [vmem:[%s355 + $0x15c8] sm:$0xff]
        %v1920 = vld [vmem:[%s355 + $0x15d0] sm:$0xff]
        %v1921 = vld [vmem:[%s355 + $0x15d8] sm:$0xff]
        %v1922 = vld [vmem:[%s355 + $0x15e0] sm:$0xff]
        %v1923 = vld [vmem:[%s355 + $0x15e8] sm:$0xff]
        %v1924 = vld [vmem:[%s355 + $0x15f0] sm:$0xff]
        %v1925 = vld [vmem:[%s355 + $0x15f8] sm:$0xff]
        %v1926 = vld [vmem:[%s355 + $0x1600] sm:$0xff]
        %v1927 = vld [vmem:[%s355 + $0x1608] sm:$0xff]
        %v1928 = vld [vmem:[%s355 + $0x1610] sm:$0xff]
        %v1929 = vld [vmem:[%s355 + $0x1618] sm:$0xff]
        %v1930 = vld [vmem:[%s355 + $0x1620] sm:$0xff]
        %v1931 = vld [vmem:[%s355 + $0x1628] sm:$0xff]
        %v1932 = vld [vmem:[%s355 + $0x1630] sm:$0xff]
        %v1933 = vld [vmem:[%s355 + $0x1638] sm:$0xff]
        %v1934 = vld [vmem:[%s355 + $0x1640] sm:$0xff]
        %v1935 = vld [vmem:[%s355 + $0x1648] sm:$0xff]
        %v1936 = vld [vmem:[%s355 + $0x1650] sm:$0xff]
        %v1937 = vld [vmem:[%s355 + $0x1658] sm:$0xff]
        %v1938 = vld [vmem:[%s355 + $0x1660] sm:$0xff]
        %v1939 = vld [vmem:[%s355 + $0x1668] sm:$0xff]
        %v1940 = vld [vmem:[%s355 + $0x1670] sm:$0xff]
        %v1941 = vld [vmem:[%s355 + $0x1678] sm:$0xff]
        %v1942 = vld [vmem:[%s355 + $0x1680] sm:$0xff]
        %v1943 = vld [vmem:[%s355 + $0x1688] sm:$0xff]
        %v1944 = vld [vmem:[%s355 + $0x1690] sm:$0xff]
        %v1945 = vld [vmem:[%s355 + $0x1698] sm:$0xff]
        %v1946 = vld [vmem:[%s355 + $0x16a0] sm:$0xff]
        %v1947 = vld [vmem:[%s355 + $0x16a8] sm:$0xff]
        %v1948 = vld [vmem:[%s355 + $0x16b0] sm:$0xff]
        %v1949 = vld [vmem:[%s355 + $0x16b8] sm:$0xff]
        %v1950 = vld [vmem:[%s355 + $0x16c0] sm:$0xff]
        %v1951 = vld [vmem:[%s355 + $0x16c8] sm:$0xff]
        %v1952 = vld [vmem:[%s355 + $0x16d0] sm:$0xff]
        %v1953 = vld [vmem:[%s355 + $0x16d8] sm:$0xff]
        %v1954 = vld [vmem:[%s355 + $0x16e0] sm:$0xff]
        %v1955 = vld [vmem:[%s355 + $0x16e8] sm:$0xff]
        %v1956 = vld [vmem:[%s355 + $0x16f0] sm:$0xff]
        %v1957 = vld [vmem:[%s355 + $0x16f8] sm:$0xff]
        %v1958 = vld [vmem:[%s355 + $0x1700] sm:$0xff]
        %v1959 = vld [vmem:[%s355 + $0x1708] sm:$0xff]
        %v1960 = vld [vmem:[%s355 + $0x1710] sm:$0xff]
        %v1961 = vld [vmem:[%s355 + $0x1718] sm:$0xff]
        %v1962 = vld [vmem:[%s355 + $0x1720] sm:$0xff]
        %v1963 = vld [vmem:[%s355 + $0x1728] sm:$0xff]
        %v1964 = vld [vmem:[%s355 + $0x1730] sm:$0xff]
        %v1965 = vld [vmem:[%s355 + $0x1738] sm:$0xff]
        %v1966 = vld [vmem:[%s355 + $0x1740] sm:$0xff]
        %v1967 = vld [vmem:[%s355 + $0x1748] sm:$0xff]
        %v1968 = vld [vmem:[%s355 + $0x1750] sm:$0xff]
        %v1969 = vld [vmem:[%s355 + $0x1758] sm:$0xff]
        %v1970 = vld [vmem:[%s355 + $0x1760] sm:$0xff]
        %v1971 = vld [vmem:[%s355 + $0x1768] sm:$0xff]
        %v1972 = vld [vmem:[%s355 + $0x1770] sm:$0xff]
        %v1973 = vld [vmem:[%s355 + $0x1778] sm:$0xff]
        %v1974 = vld [vmem:[%s355 + $0x1780] sm:$0xff]
        %v1975 = vld [vmem:[%s355 + $0x1788] sm:$0xff]
        %v1976 = vld [vmem:[%s355 + $0x1790] sm:$0xff]
        %v1977 = vld [vmem:[%s355 + $0x1798] sm:$0xff]
        %v1978 = vld [vmem:[%s355 + $0x17a0] sm:$0xff]
        %v1979 = vld [vmem:[%s355 + $0x17a8] sm:$0xff]
        %v1980 = vld [vmem:[%s355 + $0x17b0] sm:$0xff]
        %v1981 = vld [vmem:[%s355 + $0x17b8] sm:$0xff]
        %v1982 = vld [vmem:[%s355 + $0x17c0] sm:$0xff]
        %v1983 = vld [vmem:[%s355 + $0x17c8] sm:$0xff]
        %v1984 = vld [vmem:[%s355 + $0x17d0] sm:$0xff]
        %v1985 = vld [vmem:[%s355 + $0x17d8] sm:$0xff]
        %v1986 = vld [vmem:[%s355 + $0x17e0] sm:$0xff]
        %v1987 = vld [vmem:[%s355 + $0x17e8] sm:$0xff]
        %v1988 = vld [vmem:[%s355 + $0x17f0] sm:$0xff]
        %v1989 = vld [vmem:[%s355 + $0x17f8] sm:$0xff]
        %v1990 = vld [vmem:[%s355 + $0x1800] sm:$0xff]
        %v1991 = vld [vmem:[%s355 + $0x1808] sm:$0xff]
        %v1992 = vld [vmem:[%s355 + $0x1810] sm:$0xff]
        %v1993 = vld [vmem:[%s355 + $0x1818] sm:$0xff]
        %v1994 = vld [vmem:[%s355 + $0x1820] sm:$0xff]
        %v1995 = vld [vmem:[%s355 + $0x1828] sm:$0xff]
        %v1996 = vld [vmem:[%s355 + $0x1830] sm:$0xff]
        %v1997 = vld [vmem:[%s355 + $0x1838] sm:$0xff]
        %v1998 = vld [vmem:[%s355 + $0x1840] sm:$0xff]
        %v1999 = vld [vmem:[%s355 + $0x1848] sm:$0xff]
        %v2000 = vld [vmem:[%s355 + $0x1850] sm:$0xff]
        %v2001 = vld [vmem:[%s355 + $0x1858] sm:$0xff]
        %v2002 = vld [vmem:[%s355 + $0x1860] sm:$0xff]
        %v2003 = vld [vmem:[%s355 + $0x1868] sm:$0xff]
        %v2004 = vld [vmem:[%s355 + $0x1870] sm:$0xff]
        %v2005 = vld [vmem:[%s355 + $0x1878] sm:$0xff]
        %v2006 = vld [vmem:[%s355 + $0x1880] sm:$0xff]
        %v2007 = vld [vmem:[%s355 + $0x1888] sm:$0xff]
        %v2008 = vld [vmem:[%s355 + $0x1890] sm:$0xff]
        %v2009 = vld [vmem:[%s355 + $0x1898] sm:$0xff]
        %v2010 = vld [vmem:[%s355 + $0x18a0] sm:$0xff]
        %v2011 = vld [vmem:[%s355 + $0x18a8] sm:$0xff]
        %v2012 = vld [vmem:[%s355 + $0x18b0] sm:$0xff]
        %v2013 = vld [vmem:[%s355 + $0x18b8] sm:$0xff]
        %v2014 = vld [vmem:[%s355 + $0x18c0] sm:$0xff]
        %v2015 = vld [vmem:[%s355 + $0x18c8] sm:$0xff]
        %v2016 = vld [vmem:[%s355 + $0x18d0] sm:$0xff]
        %v2017 = vld [vmem:[%s355 + $0x18d8] sm:$0xff]
        %v2018 = vld [vmem:[%s355 + $0x18e0] sm:$0xff]
        %v2019 = vld [vmem:[%s355 + $0x18e8] sm:$0xff]
        %v2020 = vld [vmem:[%s355 + $0x18f0] sm:$0xff]
        %v2021 = vld [vmem:[%s355 + $0x18f8] sm:$0xff]
        %v2022 = vld [vmem:[%s355 + $0x1900] sm:$0xff]
        %v2023 = vld [vmem:[%s355 + $0x1908] sm:$0xff]
        %v2024 = vld [vmem:[%s355 + $0x1910] sm:$0xff]
        %v2025 = vld [vmem:[%s355 + $0x1918] sm:$0xff]
        %v2026 = vld [vmem:[%s355 + $0x1920] sm:$0xff]
        %v2027 = vld [vmem:[%s355 + $0x1928] sm:$0xff]
        %v2028 = vld [vmem:[%s355 + $0x1930] sm:$0xff]
        %v2029 = vld [vmem:[%s355 + $0x1938] sm:$0xff]
        %v2030 = vld [vmem:[%s355 + $0x1940] sm:$0xff]
        %v2031 = vld [vmem:[%s355 + $0x1948] sm:$0xff]
        %v2032 = vld [vmem:[%s355 + $0x1950] sm:$0xff]
        %v2033 = vld [vmem:[%s355 + $0x1958] sm:$0xff]
        %v2034 = vld [vmem:[%s355 + $0x1960] sm:$0xff]
        %v2035 = vld [vmem:[%s355 + $0x1968] sm:$0xff]
        %v2036 = vld [vmem:[%s355 + $0x1970] sm:$0xff]
        %v2037 = vld [vmem:[%s355 + $0x1978] sm:$0xff]
        %v2038 = vld [vmem:[%s355 + $0x1980] sm:$0xff]
        %v2039 = vld [vmem:[%s355 + $0x1988] sm:$0xff]
        %v2040 = vld [vmem:[%s355 + $0x1990] sm:$0xff]
        %v2041 = vld [vmem:[%s355 + $0x1998] sm:$0xff]
        %v2042 = vld [vmem:[%s355 + $0x19a0] sm:$0xff]
        %v2043 = vld [vmem:[%s355 + $0x19a8] sm:$0xff]
        %v2044 = vld [vmem:[%s355 + $0x19b0] sm:$0xff]
        %v2045 = vld [vmem:[%s355 + $0x19b8] sm:$0xff]
        %v2046 = vld [vmem:[%s355 + $0x19c0] sm:$0xff]
        %v2047 = vld [vmem:[%s355 + $0x19c8] sm:$0xff]
        %v2048 = vld [vmem:[%s355 + $0x19d0] sm:$0xff]
        %v2049 = vld [vmem:[%s355 + $0x19d8] sm:$0xff]
        %v2050 = vld [vmem:[%s355 + $0x19e0] sm:$0xff]
        %v2051 = vld [vmem:[%s355 + $0x19e8] sm:$0xff]
        %v2052 = vld [vmem:[%s355 + $0x19f0] sm:$0xff]
        %v2053 = vld [vmem:[%s355 + $0x19f8] sm:$0xff]
        %v2054 = vld [vmem:[%s355 + $0x1a00] sm:$0xff]
        %v2055 = vld [vmem:[%s355 + $0x1a08] sm:$0xff]
        %v2056 = vld [vmem:[%s355 + $0x1a10] sm:$0xff]
        %v2057 = vld [vmem:[%s355 + $0x1a18] sm:$0xff]
        %v2058 = vld [vmem:[%s355 + $0x1a20] sm:$0xff]
        %v2059 = vld [vmem:[%s355 + $0x1a28] sm:$0xff]
        %v2060 = vld [vmem:[%s355 + $0x1a30] sm:$0xff]
        %v2061 = vld [vmem:[%s355 + $0x1a38] sm:$0xff]
        %v2062 = vld [vmem:[%s355 + $0x1a40] sm:$0xff]
        %v2063 = vld [vmem:[%s355 + $0x1a48] sm:$0xff]
        %v2064 = vld [vmem:[%s355 + $0x1a50] sm:$0xff]
        %v2065 = vld [vmem:[%s355 + $0x1a58] sm:$0xff]
        %v2066 = vld [vmem:[%s355 + $0x1a60] sm:$0xff]
        %v2067 = vld [vmem:[%s355 + $0x1a68] sm:$0xff]
        %v2068 = vld [vmem:[%s355 + $0x1a70] sm:$0xff]
        %v2069 = vld [vmem:[%s355 + $0x1a78] sm:$0xff]
        %v2070 = vld [vmem:[%s355 + $0x1a80] sm:$0xff]
        %v2071 = vld [vmem:[%s355 + $0x1a88] sm:$0xff]
        %v2072 = vld [vmem:[%s355 + $0x1a90] sm:$0xff]
        %v2073 = vld [vmem:[%s355 + $0x1a98] sm:$0xff]
        %v2074 = vld [vmem:[%s355 + $0x1aa0] sm:$0xff]
        %v2075 = vld [vmem:[%s355 + $0x1aa8] sm:$0xff]
        %v2076 = vld [vmem:[%s355 + $0x1ab0] sm:$0xff]
        %v2077 = vld [vmem:[%s355 + $0x1ab8] sm:$0xff]
        %v2078 = vld [vmem:[%s355 + $0x1ac0] sm:$0xff]
        %v2079 = vld [vmem:[%s355 + $0x1ac8] sm:$0xff]
        %v2080 = vld [vmem:[%s355 + $0x1ad0] sm:$0xff]
        %v2081 = vld [vmem:[%s355 + $0x1ad8] sm:$0xff]
        %v2082 = vld [vmem:[%s355 + $0x1ae0] sm:$0xff]
        %v2083 = vld [vmem:[%s355 + $0x1ae8] sm:$0xff]
        %v2084 = vld [vmem:[%s355 + $0x1af0] sm:$0xff]
        %v2085 = vld [vmem:[%s355 + $0x1af8] sm:$0xff]
        %v2086 = vld [vmem:[%s355 + $0x1b00] sm:$0xff]
        %v2087 = vld [vmem:[%s355 + $0x1b08] sm:$0xff]
        %v2088 = vld [vmem:[%s355 + $0x1b10] sm:$0xff]
        %v2089 = vld [vmem:[%s355 + $0x1b18] sm:$0xff]
        %v2090 = vld [vmem:[%s355 + $0x1b20] sm:$0xff]
        %v2091 = vld [vmem:[%s355 + $0x1b28] sm:$0xff]
        %v2092 = vld [vmem:[%s355 + $0x1b30] sm:$0xff]
        %v2093 = vld [vmem:[%s355 + $0x1b38] sm:$0xff]
        %v2094 = vld [vmem:[%s355 + $0x1b40] sm:$0xff]
        %v2095 = vld [vmem:[%s355 + $0x1b48] sm:$0xff]
        %v2096 = vld [vmem:[%s355 + $0x1b50] sm:$0xff]
        %v2097 = vld [vmem:[%s355 + $0x1b58] sm:$0xff]
        %v2098 = vld [vmem:[%s355 + $0x1b60] sm:$0xff]
        %v2099 = vld [vmem:[%s355 + $0x1b68] sm:$0xff]
        %v2100 = vld [vmem:[%s355 + $0x1b70] sm:$0xff]
        %v2101 = vld [vmem:[%s355 + $0x1b78] sm:$0xff]
        %v2102 = vld [vmem:[%s355 + $0x1b80] sm:$0xff]
        %v2103 = vld [vmem:[%s355 + $0x1b88] sm:$0xff]
        %v2104 = vld [vmem:[%s355 + $0x1b90] sm:$0xff]
        %v2105 = vld [vmem:[%s355 + $0x1b98] sm:$0xff]
        %v2106 = vld [vmem:[%s355 + $0x1ba0] sm:$0xff]
        %v2107 = vld [vmem:[%s355 + $0x1ba8] sm:$0xff]
        %v2108 = vld [vmem:[%s355 + $0x1bb0] sm:$0xff]
        %v2109 = vld [vmem:[%s355 + $0x1bb8] sm:$0xff]
        %v2110 = vld [vmem:[%s355 + $0x1bc0] sm:$0xff]
        %v2111 = vld [vmem:[%s355 + $0x1bc8] sm:$0xff]
        %v2112 = vld [vmem:[%s355 + $0x1bd0] sm:$0xff]
        %v2113 = vld [vmem:[%s355 + $0x1bd8] sm:$0xff]
        %v2114 = vld [vmem:[%s355 + $0x1be0] sm:$0xff]
        %v2115 = vld [vmem:[%s355 + $0x1be8] sm:$0xff]
        %v2116 = vld [vmem:[%s355 + $0x1bf0] sm:$0xff]
        %v2117 = vld [vmem:[%s355 + $0x1bf8] sm:$0xff]
        %v2118 = vld [vmem:[%s355 + $0x1c00] sm:$0xff]
        %v2119 = vld [vmem:[%s355 + $0x1c08] sm:$0xff]
        %v2120 = vld [vmem:[%s355 + $0x1c10] sm:$0xff]
        %v2121 = vld [vmem:[%s355 + $0x1c18] sm:$0xff]
        %v2122 = vld [vmem:[%s355 + $0x1c20] sm:$0xff]
        %v2123 = vld [vmem:[%s355 + $0x1c28] sm:$0xff]
        %v2124 = vld [vmem:[%s355 + $0x1c30] sm:$0xff]
        %v2125 = vld [vmem:[%s355 + $0x1c38] sm:$0xff]
        %v2126 = vld [vmem:[%s355 + $0x1c40] sm:$0xff]
        %v2127 = vld [vmem:[%s355 + $0x1c48] sm:$0xff]
        %v2128 = vld [vmem:[%s355 + $0x1c50] sm:$0xff]
        %v2129 = vld [vmem:[%s355 + $0x1c58] sm:$0xff]
        %v2130 = vld [vmem:[%s355 + $0x1c60] sm:$0xff]
        %v2131 = vld [vmem:[%s355 + $0x1c68] sm:$0xff]
        %v2132 = vld [vmem:[%s355 + $0x1c70] sm:$0xff]
        %v2133 = vld [vmem:[%s355 + $0x1c78] sm:$0xff]
        %v2134 = vld [vmem:[%s355 + $0x1c80] sm:$0xff]
        %v2135 = vld [vmem:[%s355 + $0x1c88] sm:$0xff]
        %v2136 = vld [vmem:[%s355 + $0x1c90] sm:$0xff]
        %v2137 = vld [vmem:[%s355 + $0x1c98] sm:$0xff]
        %v2138 = vld [vmem:[%s355 + $0x1ca0] sm:$0xff]
        %v2139 = vld [vmem:[%s355 + $0x1ca8] sm:$0xff]
        %v2140 = vld [vmem:[%s355 + $0x1cb0] sm:$0xff]
        %v2141 = vld [vmem:[%s355 + $0x1cb8] sm:$0xff]
        %v2142 = vld [vmem:[%s355 + $0x1cc0] sm:$0xff]
        %v2143 = vld [vmem:[%s355 + $0x1cc8] sm:$0xff]
        %v2144 = vld [vmem:[%s355 + $0x1cd0] sm:$0xff]
        %v2145 = vld [vmem:[%s355 + $0x1cd8] sm:$0xff]
        %v2146 = vld [vmem:[%s355 + $0x1ce0] sm:$0xff]
        %v2147 = vld [vmem:[%s355 + $0x1ce8] sm:$0xff]
        %v2148 = vld [vmem:[%s355 + $0x1cf0] sm:$0xff]
        %v2149 = vld [vmem:[%s355 + $0x1cf8] sm:$0xff]
        %v2150 = vld [vmem:[%s355 + $0x1d00] sm:$0xff]
        %v2151 = vld [vmem:[%s355 + $0x1d08] sm:$0xff]
        %v2152 = vld [vmem:[%s355 + $0x1d10] sm:$0xff]
        %v2153 = vld [vmem:[%s355 + $0x1d18] sm:$0xff]
        %v2154 = vld [vmem:[%s355 + $0x1d20] sm:$0xff]
        %v2155 = vld [vmem:[%s355 + $0x1d28] sm:$0xff]
        %v2156 = vld [vmem:[%s355 + $0x1d30] sm:$0xff]
        %v2157 = vld [vmem:[%s355 + $0x1d38] sm:$0xff]
        %v2158 = vld [vmem:[%s355 + $0x1d40] sm:$0xff]
        %v2159 = vld [vmem:[%s355 + $0x1d48] sm:$0xff]
        %v2160 = vld [vmem:[%s355 + $0x1d50] sm:$0xff]
        %v2161 = vld [vmem:[%s355 + $0x1d58] sm:$0xff]
        %v2162 = vld [vmem:[%s355 + $0x1d60] sm:$0xff]
        %v2163 = vld [vmem:[%s355 + $0x1d68] sm:$0xff]
        %v2164 = vld [vmem:[%s355 + $0x1d70] sm:$0xff]
        %v2165 = vld [vmem:[%s355 + $0x1d78] sm:$0xff]
        %v2166 = vld [vmem:[%s355 + $0x1d80] sm:$0xff]
        %v2167 = vld [vmem:[%s355 + $0x1d88] sm:$0xff]
        %v2168 = vld [vmem:[%s355 + $0x1d90] sm:$0xff]
        %v2169 = vld [vmem:[%s355 + $0x1d98] sm:$0xff]
        %v2170 = vld [vmem:[%s355 + $0x1da0] sm:$0xff]
        %v2171 = vld [vmem:[%s355 + $0x1da8] sm:$0xff]
        %v2172 = vld [vmem:[%s355 + $0x1db0] sm:$0xff]
        %v2173 = vld [vmem:[%s355 + $0x1db8] sm:$0xff]
        %v2174 = vld [vmem:[%s355 + $0x1dc0] sm:$0xff]
        %v2175 = vld [vmem:[%s355 + $0x1dc8] sm:$0xff]
        %v2176 = vld [vmem:[%s355 + $0x1dd0] sm:$0xff]
        %v2177 = vld [vmem:[%s355 + $0x1dd8] sm:$0xff]
        %v2178 = vld [vmem:[%s355 + $0x1de0] sm:$0xff]
        %v2179 = vld [vmem:[%s355 + $0x1de8] sm:$0xff]
        %v2180 = vld [vmem:[%s355 + $0x1df0] sm:$0xff]
        %v2181 = vld [vmem:[%s355 + $0x1df8] sm:$0xff]
        %v2182 = vld [vmem:[%s355 + $0x1e00] sm:$0xff]
        %v2183 = vld [vmem:[%s355 + $0x1e08] sm:$0xff]
        %v2184 = vld [vmem:[%s355 + $0x1e10] sm:$0xff]
        %v2185 = vld [vmem:[%s355 + $0x1e18] sm:$0xff]
        %v2186 = vld [vmem:[%s355 + $0x1e20] sm:$0xff]
        %v2187 = vld [vmem:[%s355 + $0x1e28] sm:$0xff]
        %v2188 = vld [vmem:[%s355 + $0x1e30] sm:$0xff]
        %v2189 = vld [vmem:[%s355 + $0x1e38] sm:$0xff]
        %v2190 = vld [vmem:[%s355 + $0x1e40] sm:$0xff]
        %v2191 = vld [vmem:[%s355 + $0x1e48] sm:$0xff]
        %v2192 = vld [vmem:[%s355 + $0x1e50] sm:$0xff]
        %v2193 = vld [vmem:[%s355 + $0x1e58] sm:$0xff]
        %v2194 = vld [vmem:[%s355 + $0x1e60] sm:$0xff]
        %v2195 = vld [vmem:[%s355 + $0x1e68] sm:$0xff]
        %v2196 = vld [vmem:[%s355 + $0x1e70] sm:$0xff]
        %v2197 = vld [vmem:[%s355 + $0x1e78] sm:$0xff]
        %v2198 = vld [vmem:[%s355 + $0x1e80] sm:$0xff]
        %v2199 = vld [vmem:[%s355 + $0x1e88] sm:$0xff]
        %v2200 = vld [vmem:[%s355 + $0x1e90] sm:$0xff]
        %v2201 = vld [vmem:[%s355 + $0x1e98] sm:$0xff]
        %v2202 = vld [vmem:[%s355 + $0x1ea0] sm:$0xff]
        %v2203 = vld [vmem:[%s355 + $0x1ea8] sm:$0xff]
        %v2204 = vld [vmem:[%s355 + $0x1eb0] sm:$0xff]
        %v2205 = vld [vmem:[%s355 + $0x1eb8] sm:$0xff]
        %v2206 = vld [vmem:[%s355 + $0x1ec0] sm:$0xff]
        %v2207 = vld [vmem:[%s355 + $0x1ec8] sm:$0xff]
        %v2208 = vld [vmem:[%s355 + $0x1ed0] sm:$0xff]
        %v2209 = vld [vmem:[%s355 + $0x1ed8] sm:$0xff]
        %v2210 = vld [vmem:[%s355 + $0x1ee0] sm:$0xff]
        %v2211 = vld [vmem:[%s355 + $0x1ee8] sm:$0xff]
        %v2212 = vld [vmem:[%s355 + $0x1ef0] sm:$0xff]
        %v2213 = vld [vmem:[%s355 + $0x1ef8] sm:$0xff]
        %v2214 = vld [vmem:[%s355 + $0x1f00] sm:$0xff]
        %v2215 = vld [vmem:[%s355 + $0x1f08] sm:$0xff]
        %v2216 = vld [vmem:[%s355 + $0x1f10] sm:$0xff]
        %v2217 = vld [vmem:[%s355 + $0x1f18] sm:$0xff]
        %v2218 = vld [vmem:[%s355 + $0x1f20] sm:$0xff]
        %v2219 = vld [vmem:[%s355 + $0x1f28] sm:$0xff]
        %v2220 = vld [vmem:[%s355 + $0x1f30] sm:$0xff]
        %v2221 = vld [vmem:[%s355 + $0x1f38] sm:$0xff]
        %v2222 = vld [vmem:[%s355 + $0x1f40] sm:$0xff]
        %v2223 = vld [vmem:[%s355 + $0x1f48] sm:$0xff]
        %v2224 = vld [vmem:[%s355 + $0x1f50] sm:$0xff]
        %v2225 = vld [vmem:[%s355 + $0x1f58] sm:$0xff]
        %v2226 = vld [vmem:[%s355 + $0x1f60] sm:$0xff]
        %v2227 = vld [vmem:[%s355 + $0x1f68] sm:$0xff]
        %v2228 = vld [vmem:[%s355 + $0x1f70] sm:$0xff]
        %v2229 = vld [vmem:[%s355 + $0x1f78] sm:$0xff]
        %v2230 = vld [vmem:[%s355 + $0x1f80] sm:$0xff]
        %v2231 = vld [vmem:[%s355 + $0x1f88] sm:$0xff]
        %v2232 = vld [vmem:[%s355 + $0x1f90] sm:$0xff]
        %v2233 = vld [vmem:[%s355 + $0x1f98] sm:$0xff]
        %v2234 = vld [vmem:[%s355 + $0x1fa0] sm:$0xff]
        %v2235 = vld [vmem:[%s355 + $0x1fa8] sm:$0xff]
        %v2236 = vld [vmem:[%s355 + $0x1fb0] sm:$0xff]
        %v2237 = vld [vmem:[%s355 + $0x1fb8] sm:$0xff]
        %v2238 = vld [vmem:[%s355 + $0x1fc0] sm:$0xff]
        %v2239 = vld [vmem:[%s355 + $0x1fc8] sm:$0xff]
        %v2240 = vld [vmem:[%s355 + $0x1fd0] sm:$0xff]
        %v2241 = vld [vmem:[%s355 + $0x1fd8] sm:$0xff]
        %v2242 = vld [vmem:[%s355 + $0x1fe0] sm:$0xff]
        %v2243 = vld [vmem:[%s355 + $0x1fe8] sm:$0xff]
        %v2244 = vld [vmem:[%s355 + $0x1ff0] sm:$0xff]
        %v2245 = vld [vmem:[%s355 + $0x1ff8] sm:$0xff]
        %v2246 = vld [vmem:[%s355 + $0x2000] sm:$0xff]
        %v2247 = vld [vmem:[%s355 + $0x2008] sm:$0xff]
        %v2248 = vld [vmem:[%s355 + $0x2010] sm:$0xff]
        %v2249 = vld [vmem:[%s355 + $0x2018] sm:$0xff]
        %v2250 = vld [vmem:[%s355 + $0x2020] sm:$0xff]
        %v2251 = vld [vmem:[%s355 + $0x2028] sm:$0xff]
        %v2252 = vld [vmem:[%s355 + $0x2030] sm:$0xff]
        %v2253 = vld [vmem:[%s355 + $0x2038] sm:$0xff]
        %v2254 = vld [vmem:[%s355 + $0x2040] sm:$0xff]
        %v2255 = vld [vmem:[%s355 + $0x2048] sm:$0xff]
        %v2256 = vld [vmem:[%s355 + $0x2050] sm:$0xff]
        %v2257 = vld [vmem:[%s355 + $0x2058] sm:$0xff]
        %v2258 = vld [vmem:[%s355 + $0x2060] sm:$0xff]
        %v2259 = vld [vmem:[%s355 + $0x2068] sm:$0xff]
        %v2260 = vld [vmem:[%s355 + $0x2070] sm:$0xff]
        %v2261 = vld [vmem:[%s355 + $0x2078] sm:$0xff]
        %v2262 = vld [vmem:[%s355 + $0x2080] sm:$0xff]
        %v2263 = vld [vmem:[%s355 + $0x2088] sm:$0xff]
        %v2264 = vld [vmem:[%s355 + $0x2090] sm:$0xff]
        %v2265 = vld [vmem:[%s355 + $0x2098] sm:$0xff]
        %v2266 = vld [vmem:[%s355 + $0x20a0] sm:$0xff]
        %v2267 = vld [vmem:[%s355 + $0x20a8] sm:$0xff]
        %v2268 = vld [vmem:[%s355 + $0x20b0] sm:$0xff]
        %v2269 = vld [vmem:[%s355 + $0x20b8] sm:$0xff]
        %v2270 = vld [vmem:[%s355 + $0x20c0] sm:$0xff]
        %v2271 = vld [vmem:[%s355 + $0x20c8] sm:$0xff]
        %v2272 = vld [vmem:[%s355 + $0x20d0] sm:$0xff]
        %v2273 = vld [vmem:[%s355 + $0x20d8] sm:$0xff]
        %v2274 = vld [vmem:[%s355 + $0x20e0] sm:$0xff]
        %v2275 = vld [vmem:[%s355 + $0x20e8] sm:$0xff]
        %v2276 = vld [vmem:[%s355 + $0x20f0] sm:$0xff]
        %v2277 = vld [vmem:[%s355 + $0x20f8] sm:$0xff]
        %v2278 = vld [vmem:[%s355 + $0x2100] sm:$0xff]
        %v2279 = vld [vmem:[%s355 + $0x2108] sm:$0xff]
        %v2280 = vld [vmem:[%s355 + $0x2110] sm:$0xff]
        %v2281 = vld [vmem:[%s355 + $0x2118] sm:$0xff]
        %v2282 = vld [vmem:[%s355 + $0x2120] sm:$0xff]
        %v2283 = vld [vmem:[%s355 + $0x2128] sm:$0xff]
        %v2284 = vld [vmem:[%s355 + $0x2130] sm:$0xff]
        %v2285 = vld [vmem:[%s355 + $0x2138] sm:$0xff]
        %v2286 = vld [vmem:[%s355 + $0x2140] sm:$0xff]
        %v2287 = vld [vmem:[%s355 + $0x2148] sm:$0xff]
        %v2288 = vld [vmem:[%s355 + $0x2150] sm:$0xff]
        %v2289 = vld [vmem:[%s355 + $0x2158] sm:$0xff]
        %v2290 = vld [vmem:[%s355 + $0x2160] sm:$0xff]
        %v2291 = vld [vmem:[%s355 + $0x2168] sm:$0xff]
        %v2292 = vld [vmem:[%s355 + $0x2170] sm:$0xff]
        %v2293 = vld [vmem:[%s355 + $0x2178] sm:$0xff]
        %v2294 = vld [vmem:[%s355 + $0x2180] sm:$0xff]
        %v2295 = vld [vmem:[%s355 + $0x2188] sm:$0xff]
        %v2296 = vld [vmem:[%s355 + $0x2190] sm:$0xff]
        %v2297 = vld [vmem:[%s355 + $0x2198] sm:$0xff]
        %v2298 = vld [vmem:[%s355 + $0x21a0] sm:$0xff]
        %v2299 = vld [vmem:[%s355 + $0x21a8] sm:$0xff]
        %v2300 = vld [vmem:[%s355 + $0x21b0] sm:$0xff]
        %v2301 = vld [vmem:[%s355 + $0x21b8] sm:$0xff]
        %v2302 = vld [vmem:[%s355 + $0x21c0] sm:$0xff]
        %v2303 = vld [vmem:[%s355 + $0x21c8] sm:$0xff]
        %v2304 = vld [vmem:[%s355 + $0x21d0] sm:$0xff]
        %v2305 = vld [vmem:[%s355 + $0x21d8] sm:$0xff]
        %v2306 = vld [vmem:[%s355 + $0x21e0] sm:$0xff]
        %v2307 = vld [vmem:[%s355 + $0x21e8] sm:$0xff]
        %v2308 = vld [vmem:[%s355 + $0x21f0] sm:$0xff]
        %v2309 = vld [vmem:[%s355 + $0x21f8] sm:$0xff]
        %v2310 = vld [vmem:[%s355 + $0x2200] sm:$0xff]
        %v2311 = vld [vmem:[%s355 + $0x2208] sm:$0xff]
        %v2312 = vld [vmem:[%s355 + $0x2210] sm:$0xff]
        %v2313 = vld [vmem:[%s355 + $0x2218] sm:$0xff]
        %v2314 = vld [vmem:[%s355 + $0x2220] sm:$0xff]
        %v2315 = vld [vmem:[%s355 + $0x2228] sm:$0xff]
        %v2316 = vld [vmem:[%s355 + $0x2230] sm:$0xff]
        %v2317 = vld [vmem:[%s355 + $0x2238] sm:$0xff]
        %v2318 = vld [vmem:[%s355 + $0x2240] sm:$0xff]
        %v2319 = vld [vmem:[%s355 + $0x2248] sm:$0xff]
        %v2320 = vld [vmem:[%s355 + $0x2250] sm:$0xff]
        %v2321 = vld [vmem:[%s355 + $0x2258] sm:$0xff]
        %v2322 = vld [vmem:[%s355 + $0x2260] sm:$0xff]
        %v2323 = vld [vmem:[%s355 + $0x2268] sm:$0xff]
        %v2324 = vld [vmem:[%s355 + $0x2270] sm:$0xff]
        %v2325 = vld [vmem:[%s355 + $0x2278] sm:$0xff]
        %v2326 = vld [vmem:[%s355 + $0x2280] sm:$0xff]
        %v2327 = vld [vmem:[%s355 + $0x2288] sm:$0xff]
        %v2328 = vld [vmem:[%s355 + $0x2290] sm:$0xff]
        %v2329 = vld [vmem:[%s355 + $0x2298] sm:$0xff]
        %v2330 = vld [vmem:[%s355 + $0x22a0] sm:$0xff]
        %v2331 = vld [vmem:[%s355 + $0x22a8] sm:$0xff]
        %v2332 = vld [vmem:[%s355 + $0x22b0] sm:$0xff]
        %v2333 = vld [vmem:[%s355 + $0x22b8] sm:$0xff]
        %v2334 = vld [vmem:[%s355 + $0x22c0] sm:$0xff]
        %v2335 = vld [vmem:[%s355 + $0x22c8] sm:$0xff]
        %v2336 = vld [vmem:[%s355 + $0x22d0] sm:$0xff]
        %v2337 = vld [vmem:[%s355 + $0x22d8] sm:$0xff]
        %v2338 = vld [vmem:[%s355 + $0x22e0] sm:$0xff]
        %v2339 = vld [vmem:[%s355 + $0x22e8] sm:$0xff]
        %v2340 = vld [vmem:[%s355 + $0x22f0] sm:$0xff]
        %v2341 = vld [vmem:[%s355 + $0x22f8] sm:$0xff]
        %v2342 = vld [vmem:[%s355 + $0x2300] sm:$0xff]
        %v2343 = vld [vmem:[%s355 + $0x2308] sm:$0xff]
        %v2344 = vld [vmem:[%s355 + $0x2310] sm:$0xff]
        %v2345 = vld [vmem:[%s355 + $0x2318] sm:$0xff]
        %v2346 = vld [vmem:[%s355 + $0x2320] sm:$0xff]
        %v2347 = vld [vmem:[%s355 + $0x2328] sm:$0xff]
        %v2348 = vld [vmem:[%s355 + $0x2330] sm:$0xff]
        %v2349 = vld [vmem:[%s355 + $0x2338] sm:$0xff]
        %v2350 = vld [vmem:[%s355 + $0x2340] sm:$0xff]
        %v2351 = vld [vmem:[%s355 + $0x2348] sm:$0xff]
        %v2352 = vld [vmem:[%s355 + $0x2350] sm:$0xff]
        %v2353 = vld [vmem:[%s355 + $0x2358] sm:$0xff]
        %v2354 = vld [vmem:[%s355 + $0x2360] sm:$0xff]
        %v2355 = vld [vmem:[%s355 + $0x2368] sm:$0xff]
        %v2356 = vld [vmem:[%s355 + $0x2370] sm:$0xff]
        %v2357 = vld [vmem:[%s355 + $0x2378] sm:$0xff]
        %v2358 = vld [vmem:[%s355 + $0x2380] sm:$0xff]
        %v2359 = vld [vmem:[%s355 + $0x2388] sm:$0xff]
        %v2360 = vld [vmem:[%s355 + $0x2390] sm:$0xff]
        %v2361 = vld [vmem:[%s355 + $0x2398] sm:$0xff]
        %v2362 = vld [vmem:[%s355 + $0x23a0] sm:$0xff]
        %v2363 = vld [vmem:[%s355 + $0x23a8] sm:$0xff]
        %v2364 = vld [vmem:[%s355 + $0x23b0] sm:$0xff]
        %v2365 = vld [vmem:[%s355 + $0x23b8] sm:$0xff]
        %v2366 = vld [vmem:[%s355 + $0x23c0] sm:$0xff]
        %v2367 = vld [vmem:[%s355 + $0x23c8] sm:$0xff]
        %v2368 = vld [vmem:[%s355 + $0x23d0] sm:$0xff]
        %v2369 = vld [vmem:[%s355 + $0x23d8] sm:$0xff]
        %v2370 = vld [vmem:[%s355 + $0x23e0] sm:$0xff]
        %v2371 = vld [vmem:[%s355 + $0x23e8] sm:$0xff]
        %v2372 = vld [vmem:[%s355 + $0x23f0] sm:$0xff]
        %v2373 = vld [vmem:[%s355 + $0x23f8] sm:$0xff]
        %v2374 = vld [vmem:[%s355 + $0x2400] sm:$0xff]
        %v2375 = vld [vmem:[%s355 + $0x2408] sm:$0xff]
        %v2376 = vld [vmem:[%s355 + $0x2410] sm:$0xff]
        %v2377 = vld [vmem:[%s355 + $0x2418] sm:$0xff]
        %v2378 = vld [vmem:[%s355 + $0x2420] sm:$0xff]
        %v2379 = vld [vmem:[%s355 + $0x2428] sm:$0xff]
        %v2380 = vld [vmem:[%s355 + $0x2430] sm:$0xff]
        %v2381 = vld [vmem:[%s355 + $0x2438] sm:$0xff]
        %v2382 = vld [vmem:[%s355 + $0x2440] sm:$0xff]
        %v2383 = vld [vmem:[%s355 + $0x2448] sm:$0xff]
        %v2384 = vld [vmem:[%s355 + $0x2450] sm:$0xff]
        %v2385 = vld [vmem:[%s355 + $0x2458] sm:$0xff]
        %v2386 = vld [vmem:[%s355 + $0x2460] sm:$0xff]
        %v2387 = vld [vmem:[%s355 + $0x2468] sm:$0xff]
        %v2388 = vld [vmem:[%s355 + $0x2470] sm:$0xff]
        %v2389 = vld [vmem:[%s355 + $0x2478] sm:$0xff]
        %v2390 = vld [vmem:[%s355 + $0x2480] sm:$0xff]
        %v2391 = vld [vmem:[%s355 + $0x2488] sm:$0xff]
        %v2392 = vld [vmem:[%s355 + $0x2490] sm:$0xff]
        %v2393 = vld [vmem:[%s355 + $0x2498] sm:$0xff]
        %v2394 = vld [vmem:[%s355 + $0x24a0] sm:$0xff]
        %v2395 = vld [vmem:[%s355 + $0x24a8] sm:$0xff]
        %v2396 = vld [vmem:[%s355 + $0x24b0] sm:$0xff]
        %v2397 = vld [vmem:[%s355 + $0x24b8] sm:$0xff]
        %v2398 = vld [vmem:[%s355 + $0x24c0] sm:$0xff]
        %v2399 = vld [vmem:[%s355 + $0x24c8] sm:$0xff]
        %v2400 = vld [vmem:[%s355 + $0x24d0] sm:$0xff]
        %v2401 = vld [vmem:[%s355 + $0x24d8] sm:$0xff]
        %v2402 = vld [vmem:[%s355 + $0x24e0] sm:$0xff]
        %v2403 = vld [vmem:[%s355 + $0x24e8] sm:$0xff]
        %v2404 = vld [vmem:[%s355 + $0x24f0] sm:$0xff]
        %v2405 = vld [vmem:[%s355 + $0x24f8] sm:$0xff]
        %v2406 = vld [vmem:[%s355 + $0x2500] sm:$0xff]
        %v2407 = vld [vmem:[%s355 + $0x2508] sm:$0xff]
        %v2408 = vld [vmem:[%s355 + $0x2510] sm:$0xff]
        %v2409 = vld [vmem:[%s355 + $0x2518] sm:$0xff]
        %v2410 = vld [vmem:[%s355 + $0x2520] sm:$0xff]
        %v2411 = vld [vmem:[%s355 + $0x2528] sm:$0xff]
        %v2412 = vld [vmem:[%s355 + $0x2530] sm:$0xff]
        %v2413 = vld [vmem:[%s355 + $0x2538] sm:$0xff]
        %v2414 = vld [vmem:[%s355 + $0x2540] sm:$0xff]
        %v2415 = vld [vmem:[%s355 + $0x2548] sm:$0xff]
        %v2416 = vld [vmem:[%s355 + $0x2550] sm:$0xff]
        %v2417 = vld [vmem:[%s355 + $0x2558] sm:$0xff]
        %v2418 = vld [vmem:[%s355 + $0x2560] sm:$0xff]
        %v2419 = vld [vmem:[%s355 + $0x2568] sm:$0xff]
        %v2420 = vld [vmem:[%s355 + $0x2570] sm:$0xff]
        %v2421 = vld [vmem:[%s355 + $0x2578] sm:$0xff]
        %v2422 = vld [vmem:[%s355 + $0x2580] sm:$0xff]
        %v2423 = vld [vmem:[%s355 + $0x2588] sm:$0xff]
        %v2424 = vld [vmem:[%s355 + $0x2590] sm:$0xff]
        %v2425 = vld [vmem:[%s355 + $0x2598] sm:$0xff]
        %v2426 = vld [vmem:[%s355 + $0x25a0] sm:$0xff]
        %v2427 = vld [vmem:[%s355 + $0x25a8] sm:$0xff]
        %v2428 = vld [vmem:[%s355 + $0x25b0] sm:$0xff]
        %v2429 = vld [vmem:[%s355 + $0x25b8] sm:$0xff]
        %v2430 = vld [vmem:[%s355 + $0x25c0] sm:$0xff]
        %v2431 = vld [vmem:[%s355 + $0x25c8] sm:$0xff]
        %v2432 = vld [vmem:[%s355 + $0x25d0] sm:$0xff]
        %v2433 = vld [vmem:[%s355 + $0x25d8] sm:$0xff]
        %v2434 = vld [vmem:[%s355 + $0x25e0] sm:$0xff]
        %v2435 = vld [vmem:[%s355 + $0x25e8] sm:$0xff]
        %v2436 = vld [vmem:[%s355 + $0x25f0] sm:$0xff]
        %v2437 = vld [vmem:[%s355 + $0x25f8] sm:$0xff]
        %v2438 = vld [vmem:[%s355 + $0x2600] sm:$0xff]
        %v2439 = vld [vmem:[%s355 + $0x2608] sm:$0xff]
        %v2440 = vld [vmem:[%s355 + $0x2610] sm:$0xff]
        %v2441 = vld [vmem:[%s355 + $0x2618] sm:$0xff]
        %v2442 = vld [vmem:[%s355 + $0x2620] sm:$0xff]
        %v2443 = vld [vmem:[%s355 + $0x2628] sm:$0xff]
        %v2444 = vld [vmem:[%s355 + $0x2630] sm:$0xff]
        %v2445 = vld [vmem:[%s355 + $0x2638] sm:$0xff]
        %v2446 = vld [vmem:[%s355 + $0x2640] sm:$0xff]
        %v2447 = vld [vmem:[%s355 + $0x2648] sm:$0xff]
        %v2448 = vld [vmem:[%s355 + $0x2650] sm:$0xff]
        %v2449 = vld [vmem:[%s355 + $0x2658] sm:$0xff]
        %v2450 = vld [vmem:[%s355 + $0x2660] sm:$0xff]
        %v2451 = vld [vmem:[%s355 + $0x2668] sm:$0xff]
        %v2452 = vld [vmem:[%s355 + $0x2670] sm:$0xff]
        %v2453 = vld [vmem:[%s355 + $0x2678] sm:$0xff]
        %v2454 = vld [vmem:[%s355 + $0x2680] sm:$0xff]
        %v2455 = vld [vmem:[%s355 + $0x2688] sm:$0xff]
        %v2456 = vld [vmem:[%s355 + $0x2690] sm:$0xff]
        %v2457 = vld [vmem:[%s355 + $0x2698] sm:$0xff]
        %v2458 = vld [vmem:[%s355 + $0x26a0] sm:$0xff]
        %v2459 = vld [vmem:[%s355 + $0x26a8] sm:$0xff]
        %v2460 = vld [vmem:[%s355 + $0x26b0] sm:$0xff]
        %v2461 = vld [vmem:[%s355 + $0x26b8] sm:$0xff]
        %v2462 = vld [vmem:[%s355 + $0x26c0] sm:$0xff]
        %v2463 = vld [vmem:[%s355 + $0x26c8] sm:$0xff]
        %v2464 = vld [vmem:[%s355 + $0x26d0] sm:$0xff]
        %v2465 = vld [vmem:[%s355 + $0x26d8] sm:$0xff]
        %v2466 = vld [vmem:[%s355 + $0x26e0] sm:$0xff]
        %v2467 = vld [vmem:[%s355 + $0x26e8] sm:$0xff]
        %v2468 = vld [vmem:[%s355 + $0x26f0] sm:$0xff]
        %v2469 = vld [vmem:[%s355 + $0x26f8] sm:$0xff]
        %v2470 = vld [vmem:[%s355 + $0x2700] sm:$0xff]
        %v2471 = vld [vmem:[%s355 + $0x2708] sm:$0xff]
        %v2472 = vld [vmem:[%s355 + $0x2710] sm:$0xff]
        %v2473 = vld [vmem:[%s355 + $0x2718] sm:$0xff]
        %v2474 = vld [vmem:[%s355 + $0x2720] sm:$0xff]
        %v2475 = vld [vmem:[%s355 + $0x2728] sm:$0xff]
        %v2476 = vld [vmem:[%s355 + $0x2730] sm:$0xff]
        %v2477 = vld [vmem:[%s355 + $0x2738] sm:$0xff]
        %v2478 = vld [vmem:[%s355 + $0x2740] sm:$0xff]
        %v2479 = vld [vmem:[%s355 + $0x2748] sm:$0xff]
        %v2480 = vld [vmem:[%s355 + $0x2750] sm:$0xff]
        %v2481 = vld [vmem:[%s355 + $0x2758] sm:$0xff]
        %v2482 = vld [vmem:[%s355 + $0x2760] sm:$0xff]
        %v2483 = vld [vmem:[%s355 + $0x2768] sm:$0xff]
        %v2484 = vld [vmem:[%s355 + $0x2770] sm:$0xff]
        %v2485 = vld [vmem:[%s355 + $0x2778] sm:$0xff]
        %v2486 = vld [vmem:[%s355 + $0x2780] sm:$0xff]
        %v2487 = vld [vmem:[%s355 + $0x2788] sm:$0xff]
        %v2488 = vld [vmem:[%s355 + $0x2790] sm:$0xff]
        %v2489 = vld [vmem:[%s355 + $0x2798] sm:$0xff]
        %v2490 = vld [vmem:[%s355 + $0x27a0] sm:$0xff]
        %v2491 = vld [vmem:[%s355 + $0x27a8] sm:$0xff]
        %v2492 = vld [vmem:[%s355 + $0x27b0] sm:$0xff]
        %v2493 = vld [vmem:[%s355 + $0x27b8] sm:$0xff]
        %v2494 = vld [vmem:[%s355 + $0x27c0] sm:$0xff]
        %v2495 = vld [vmem:[%s355 + $0x27c8] sm:$0xff]
        %v2496 = vld [vmem:[%s355 + $0x27d0] sm:$0xff]
        %v2497 = vld [vmem:[%s355 + $0x27d8] sm:$0xff]
        %v2498 = vld [vmem:[%s355 + $0x27e0] sm:$0xff]
        %v2499 = vld [vmem:[%s355 + $0x27e8] sm:$0xff]
        %v2500 = vld [vmem:[%s355 + $0x27f0] sm:$0xff]
        %v2501 = vld [vmem:[%s355 + $0x27f8] sm:$0xff]
        %v2502 = vld [vmem:[%s355 + $0x2800] sm:$0xff]
        %v2503 = vld [vmem:[%s355 + $0x2808] sm:$0xff]
        %v2504 = vld [vmem:[%s355 + $0x2810] sm:$0xff]
        %v2505 = vld [vmem:[%s355 + $0x2818] sm:$0xff]
        %v2506 = vld [vmem:[%s355 + $0x2820] sm:$0xff]
        %v2507 = vld [vmem:[%s355 + $0x2828] sm:$0xff]
        %v2508 = vld [vmem:[%s355 + $0x2830] sm:$0xff]
        %v2509 = vld [vmem:[%s355 + $0x2838] sm:$0xff]
        %v2510 = vld [vmem:[%s355 + $0x2840] sm:$0xff]
        %v2511 = vld [vmem:[%s355 + $0x2848] sm:$0xff]
        %v2512 = vld [vmem:[%s355 + $0x2850] sm:$0xff]
        %v2513 = vld [vmem:[%s355 + $0x2858] sm:$0xff]
        %v2514 = vld [vmem:[%s355 + $0x2860] sm:$0xff]
        %v2515 = vld [vmem:[%s355 + $0x2868] sm:$0xff]
        %v2516 = vld [vmem:[%s355 + $0x2870] sm:$0xff]
        %v2517 = vld [vmem:[%s355 + $0x2878] sm:$0xff]
        %v2518 = vld [vmem:[%s355 + $0x2880] sm:$0xff]
        %v2519 = vld [vmem:[%s355 + $0x2888] sm:$0xff]
        %v2520 = vld [vmem:[%s355 + $0x2890] sm:$0xff]
        %v2521 = vld [vmem:[%s355 + $0x2898] sm:$0xff]
        %v2522 = vld [vmem:[%s355 + $0x28a0] sm:$0xff]
        %v2523 = vld [vmem:[%s355 + $0x28a8] sm:$0xff]
        %v2524 = vld [vmem:[%s355 + $0x28b0] sm:$0xff]
        %v2525 = vld [vmem:[%s355 + $0x28b8] sm:$0xff]
        %v2526 = vld [vmem:[%s355 + $0x28c0] sm:$0xff]
        %v2527 = vld [vmem:[%s355 + $0x28c8] sm:$0xff]
        %v2528 = vld [vmem:[%s355 + $0x28d0] sm:$0xff]
        %v2529 = vld [vmem:[%s355 + $0x28d8] sm:$0xff]
        %v2530 = vld [vmem:[%s355 + $0x28e0] sm:$0xff]
        %v2531 = vld [vmem:[%s355 + $0x28e8] sm:$0xff]
        %v2532 = vld [vmem:[%s355 + $0x28f0] sm:$0xff]
        %v2533 = vld [vmem:[%s355 + $0x28f8] sm:$0xff]
        %v2534 = vld [vmem:[%s355 + $0x2900] sm:$0xff]
        %v2535 = vld [vmem:[%s355 + $0x2908] sm:$0xff]
        %v2536 = vld [vmem:[%s355 + $0x2910] sm:$0xff]
        %v2537 = vld [vmem:[%s355 + $0x2918] sm:$0xff]
        %v2538 = vld [vmem:[%s355 + $0x2920] sm:$0xff]
        %v2539 = vld [vmem:[%s355 + $0x2928] sm:$0xff]
        %v2540 = vld [vmem:[%s355 + $0x2930] sm:$0xff]
        %v2541 = vld [vmem:[%s355 + $0x2938] sm:$0xff]
        %v2542 = vld [vmem:[%s355 + $0x2940] sm:$0xff]
        %v2543 = vld [vmem:[%s355 + $0x2948] sm:$0xff]
        %v2544 = vld [vmem:[%s355 + $0x2950] sm:$0xff]
        %v2545 = vld [vmem:[%s355 + $0x2958] sm:$0xff]
        %v2546 = vld [vmem:[%s355 + $0x2960] sm:$0xff]
        %v2547 = vld [vmem:[%s355 + $0x2968] sm:$0xff]
        %v2548 = vld [vmem:[%s355 + $0x2970] sm:$0xff]
        %v2549 = vld [vmem:[%s355 + $0x2978] sm:$0xff]
        %v2550 = vld [vmem:[%s355 + $0x2980] sm:$0xff]
        %v2551 = vld [vmem:[%s355 + $0x2988] sm:$0xff]
        %v2552 = vld [vmem:[%s355 + $0x2990] sm:$0xff]
        %v2553 = vld [vmem:[%s355 + $0x2998] sm:$0xff]
        %v2554 = vld [vmem:[%s355 + $0x29a0] sm:$0xff]
        %v2555 = vld [vmem:[%s355 + $0x29a8] sm:$0xff]
        %v2556 = vld [vmem:[%s355 + $0x29b0] sm:$0xff]
        %v2557 = vld [vmem:[%s355 + $0x29b8] sm:$0xff]
        %v2558 = vld [vmem:[%s355 + $0x29c0] sm:$0xff]
        %v2559 = vld [vmem:[%s355 + $0x29c8] sm:$0xff]
        %v2560 = vld [vmem:[%s355 + $0x29d0] sm:$0xff]
        %v2561 = vld [vmem:[%s355 + $0x29d8] sm:$0xff]
        %v2562 = vld [vmem:[%s355 + $0x29e0] sm:$0xff]
        %v2563 = vld [vmem:[%s355 + $0x29e8] sm:$0xff]
        %v2564 = vld [vmem:[%s355 + $0x29f0] sm:$0xff]
        %v2565 = vld [vmem:[%s355 + $0x29f8] sm:$0xff]
        %v2566 = vld [vmem:[%s355 + $0x2a00] sm:$0xff]
        %v2567 = vld [vmem:[%s355 + $0x2a08] sm:$0xff]
        %v2568 = vld [vmem:[%s355 + $0x2a10] sm:$0xff]
        %v2569 = vld [vmem:[%s355 + $0x2a18] sm:$0xff]
        %v2570 = vld [vmem:[%s355 + $0x2a20] sm:$0xff]
        %v2571 = vld [vmem:[%s355 + $0x2a28] sm:$0xff]
        %v2572 = vld [vmem:[%s355 + $0x2a30] sm:$0xff]
        %v2573 = vld [vmem:[%s355 + $0x2a38] sm:$0xff]
        %v2574 = vld [vmem:[%s355 + $0x2a40] sm:$0xff]
        %v2575 = vld [vmem:[%s355 + $0x2a48] sm:$0xff]
        %v2576 = vld [vmem:[%s355 + $0x2a50] sm:$0xff]
        %v2577 = vld [vmem:[%s355 + $0x2a58] sm:$0xff]
        %v2578 = vld [vmem:[%s355 + $0x2a60] sm:$0xff]
        %v2579 = vld [vmem:[%s355 + $0x2a68] sm:$0xff]
        %v2580 = vld [vmem:[%s355 + $0x2a70] sm:$0xff]
        %v2581 = vld [vmem:[%s355 + $0x2a78] sm:$0xff]
        %v2582 = vld [vmem:[%s355 + $0x2a80] sm:$0xff]
        %v2583 = vld [vmem:[%s355 + $0x2a88] sm:$0xff]
        %v2584 = vld [vmem:[%s355 + $0x2a90] sm:$0xff]
        %v2585 = vld [vmem:[%s355 + $0x2a98] sm:$0xff]
        %v2586 = vld [vmem:[%s355 + $0x2aa0] sm:$0xff]
        %v2587 = vld [vmem:[%s355 + $0x2aa8] sm:$0xff]
        %v2588 = vld [vmem:[%s355 + $0x2ab0] sm:$0xff]
        %v2589 = vld [vmem:[%s355 + $0x2ab8] sm:$0xff]
        %v2590 = vld [vmem:[%s355 + $0x2ac0] sm:$0xff]
        %v2591 = vld [vmem:[%s355 + $0x2ac8] sm:$0xff]
        %v2592 = vld [vmem:[%s355 + $0x2ad0] sm:$0xff]
        %v2593 = vld [vmem:[%s355 + $0x2ad8] sm:$0xff]
        %v2594 = vld [vmem:[%s355 + $0x2ae0] sm:$0xff]
        %v2595 = vld [vmem:[%s355 + $0x2ae8] sm:$0xff]
        %v2596 = vld [vmem:[%s355 + $0x2af0] sm:$0xff]
        %v2597 = vld [vmem:[%s355 + $0x2af8] sm:$0xff]
        %v2598 = vld [vmem:[%s355 + $0x2b00] sm:$0xff]
        %v2599 = vld [vmem:[%s355 + $0x2b08] sm:$0xff]
        %v2600 = vld [vmem:[%s355 + $0x2b10] sm:$0xff]
        %v2601 = vld [vmem:[%s355 + $0x2b18] sm:$0xff]
        %v2602 = vld [vmem:[%s355 + $0x2b20] sm:$0xff]
        %v2603 = vld [vmem:[%s355 + $0x2b28] sm:$0xff]
        %v2604 = vld [vmem:[%s355 + $0x2b30] sm:$0xff]
        %v2605 = vld [vmem:[%s355 + $0x2b38] sm:$0xff]
        %v2606 = vld [vmem:[%s355 + $0x2b40] sm:$0xff]
        %v2607 = vld [vmem:[%s355 + $0x2b48] sm:$0xff]
        %v2608 = vld [vmem:[%s355 + $0x2b50] sm:$0xff]
        %v2609 = vld [vmem:[%s355 + $0x2b58] sm:$0xff]
        %v2610 = vld [vmem:[%s355 + $0x2b60] sm:$0xff]
        %v2611 = vld [vmem:[%s355 + $0x2b68] sm:$0xff]
        %v2612 = vld [vmem:[%s355 + $0x2b70] sm:$0xff]
        %v2613 = vld [vmem:[%s355 + $0x2b78] sm:$0xff]
        %v2614 = vld [vmem:[%s355 + $0x2b80] sm:$0xff]
        %v2615 = vld [vmem:[%s355 + $0x2b88] sm:$0xff]
        %v2616 = vld [vmem:[%s355 + $0x2b90] sm:$0xff]
        %v2617 = vld [vmem:[%s355 + $0x2b98] sm:$0xff]
        %v2618 = vld [vmem:[%s355 + $0x2ba0] sm:$0xff]
        %v2619 = vld [vmem:[%s355 + $0x2ba8] sm:$0xff]
        %v2620 = vld [vmem:[%s355 + $0x2bb0] sm:$0xff]
        %v2621 = vld [vmem:[%s355 + $0x2bb8] sm:$0xff]
        %v2622 = vld [vmem:[%s355 + $0x2bc0] sm:$0xff]
        %v2623 = vld [vmem:[%s355 + $0x2bc8] sm:$0xff]
        %v2624 = vld [vmem:[%s355 + $0x2bd0] sm:$0xff]
        %v2625 = vld [vmem:[%s355 + $0x2bd8] sm:$0xff]
        %v2626 = vld [vmem:[%s355 + $0x2be0] sm:$0xff]
        %v2627 = vld [vmem:[%s355 + $0x2be8] sm:$0xff]
        %v2628 = vld [vmem:[%s355 + $0x2bf0] sm:$0xff]
        %v2629 = vld [vmem:[%s355 + $0x2bf8] sm:$0xff]
        %v2630 = vld [vmem:[%s355 + $0x2c00] sm:$0xff]
        %v2631 = vld [vmem:[%s355 + $0x2c08] sm:$0xff]
        %v2632 = vld [vmem:[%s355 + $0x2c10] sm:$0xff]
        %v2633 = vld [vmem:[%s355 + $0x2c18] sm:$0xff]
        %v2634 = vld [vmem:[%s355 + $0x2c20] sm:$0xff]
        %v2635 = vld [vmem:[%s355 + $0x2c28] sm:$0xff]
        %v2636 = vld [vmem:[%s355 + $0x2c30] sm:$0xff]
        %v2637 = vld [vmem:[%s355 + $0x2c38] sm:$0xff]
        %v2638 = vld [vmem:[%s355 + $0x2c40] sm:$0xff]
        %v2639 = vld [vmem:[%s355 + $0x2c48] sm:$0xff]
        %v2640 = vld [vmem:[%s355 + $0x2c50] sm:$0xff]
        %v2641 = vld [vmem:[%s355 + $0x2c58] sm:$0xff]
        %v2642 = vld [vmem:[%s355 + $0x2c60] sm:$0xff]
        %v2643 = vld [vmem:[%s355 + $0x2c68] sm:$0xff]
        %v2644 = vld [vmem:[%s355 + $0x2c70] sm:$0xff]
        %v2645 = vld [vmem:[%s355 + $0x2c78] sm:$0xff]
        %v2646 = vld [vmem:[%s355 + $0x2c80] sm:$0xff]
        %v2647 = vld [vmem:[%s355 + $0x2c88] sm:$0xff]
        %v2648 = vld [vmem:[%s355 + $0x2c90] sm:$0xff]
        %v2649 = vld [vmem:[%s355 + $0x2c98] sm:$0xff]
        %v2650 = vld [vmem:[%s355 + $0x2ca0] sm:$0xff]
        %v2651 = vld [vmem:[%s355 + $0x2ca8] sm:$0xff]
        %v2652 = vld [vmem:[%s355 + $0x2cb0] sm:$0xff]
        %v2653 = vld [vmem:[%s355 + $0x2cb8] sm:$0xff]
        %v2654 = vld [vmem:[%s355 + $0x2cc0] sm:$0xff]
        %v2655 = vld [vmem:[%s355 + $0x2cc8] sm:$0xff]
        %v2656 = vld [vmem:[%s355 + $0x2cd0] sm:$0xff]
        %v2657 = vld [vmem:[%s355 + $0x2cd8] sm:$0xff]
        %v2658 = vld [vmem:[%s355 + $0x2ce0] sm:$0xff]
        %v2659 = vld [vmem:[%s355 + $0x2ce8] sm:$0xff]
        %v2660 = vld [vmem:[%s355 + $0x2cf0] sm:$0xff]
        %v2661 = vld [vmem:[%s355 + $0x2cf8] sm:$0xff]
        %v2662 = vld [vmem:[%s355 + $0x2d00] sm:$0xff]
        %v2663 = vld [vmem:[%s355 + $0x2d08] sm:$0xff]
        %v2664 = vld [vmem:[%s355 + $0x2d10] sm:$0xff]
        %v2665 = vld [vmem:[%s355 + $0x2d18] sm:$0xff]
        %v2666 = vld [vmem:[%s355 + $0x2d20] sm:$0xff]
        %v2667 = vld [vmem:[%s355 + $0x2d28] sm:$0xff]
        %v2668 = vld [vmem:[%s355 + $0x2d30] sm:$0xff]
        %v2669 = vld [vmem:[%s355 + $0x2d38] sm:$0xff]
        %v2670 = vld [vmem:[%s355 + $0x2d40] sm:$0xff]
        %v2671 = vld [vmem:[%s355 + $0x2d48] sm:$0xff]
        %v2672 = vld [vmem:[%s355 + $0x2d50] sm:$0xff]
        %v2673 = vld [vmem:[%s355 + $0x2d58] sm:$0xff]
        %v2674 = vld [vmem:[%s355 + $0x2d60] sm:$0xff]
        %v2675 = vld [vmem:[%s355 + $0x2d68] sm:$0xff]
        %v2676 = vld [vmem:[%s355 + $0x2d70] sm:$0xff]
        %v2677 = vld [vmem:[%s355 + $0x2d78] sm:$0xff]
        %v2678 = vld [vmem:[%s355 + $0x2d80] sm:$0xff]
        %v2679 = vld [vmem:[%s355 + $0x2d88] sm:$0xff]
        %v2680 = vld [vmem:[%s355 + $0x2d90] sm:$0xff]
        %v2681 = vld [vmem:[%s355 + $0x2d98] sm:$0xff]
        %v2682 = vld [vmem:[%s355 + $0x2da0] sm:$0xff]
        %v2683 = vld [vmem:[%s355 + $0x2da8] sm:$0xff]
        %v2684 = vld [vmem:[%s355 + $0x2db0] sm:$0xff]
        %v2685 = vld [vmem:[%s355 + $0x2db8] sm:$0xff]
        %v2686 = vld [vmem:[%s355 + $0x2dc0] sm:$0xff]
        %v2687 = vld [vmem:[%s355 + $0x2dc8] sm:$0xff]
        %v2688 = vld [vmem:[%s355 + $0x2dd0] sm:$0xff]
        %v2689 = vld [vmem:[%s355 + $0x2dd8] sm:$0xff]
        %v2690 = vld [vmem:[%s355 + $0x2de0] sm:$0xff]
        %v2691 = vld [vmem:[%s355 + $0x2de8] sm:$0xff]
        %v2692 = vld [vmem:[%s355 + $0x2df0] sm:$0xff]
        %v2693 = vld [vmem:[%s355 + $0x2df8] sm:$0xff]
        %v2694 = vld [vmem:[%s355 + $0x2e00] sm:$0xff]
        %v2695 = vld [vmem:[%s355 + $0x2e08] sm:$0xff]
        %v2696 = vld [vmem:[%s355 + $0x2e10] sm:$0xff]
        %v2697 = vld [vmem:[%s355 + $0x2e18] sm:$0xff]
        %v2698 = vld [vmem:[%s355 + $0x2e20] sm:$0xff]
        %v2699 = vld [vmem:[%s355 + $0x2e28] sm:$0xff]
        %v2700 = vld [vmem:[%s355 + $0x2e30] sm:$0xff]
        %v2701 = vld [vmem:[%s355 + $0x2e38] sm:$0xff]
        %v2702 = vld [vmem:[%s355 + $0x2e40] sm:$0xff]
        %v2703 = vld [vmem:[%s355 + $0x2e48] sm:$0xff]
        %v2704 = vld [vmem:[%s355 + $0x2e50] sm:$0xff]
        %v2705 = vld [vmem:[%s355 + $0x2e58] sm:$0xff]
        %v2706 = vld [vmem:[%s355 + $0x2e60] sm:$0xff]
        %v2707 = vld [vmem:[%s355 + $0x2e68] sm:$0xff]
        %v2708 = vld [vmem:[%s355 + $0x2e70] sm:$0xff]
        %v2709 = vld [vmem:[%s355 + $0x2e78] sm:$0xff]
        %v2710 = vld [vmem:[%s355 + $0x2e80] sm:$0xff]
        %v2711 = vld [vmem:[%s355 + $0x2e88] sm:$0xff]
        %v2712 = vld [vmem:[%s355 + $0x2e90] sm:$0xff]
        %v2713 = vld [vmem:[%s355 + $0x2e98] sm:$0xff]
        %v2714 = vld [vmem:[%s355 + $0x2ea0] sm:$0xff]
        %v2715 = vld [vmem:[%s355 + $0x2ea8] sm:$0xff]
        %v2716 = vld [vmem:[%s355 + $0x2eb0] sm:$0xff]
        %v2717 = vld [vmem:[%s355 + $0x2eb8] sm:$0xff]
        %v2718 = vld [vmem:[%s355 + $0x2ec0] sm:$0xff]
        %v2719 = vld [vmem:[%s355 + $0x2ec8] sm:$0xff]
        %v2720 = vld [vmem:[%s355 + $0x2ed0] sm:$0xff]
        %v2721 = vld [vmem:[%s355 + $0x2ed8] sm:$0xff]
        %v2722 = vld [vmem:[%s355 + $0x2ee0] sm:$0xff]
        %v2723 = vld [vmem:[%s355 + $0x2ee8] sm:$0xff]
        %v2724 = vld [vmem:[%s355 + $0x2ef0] sm:$0xff]
        %v2725 = vld [vmem:[%s355 + $0x2ef8] sm:$0xff]
        %v2726 = vld [vmem:[%s355 + $0x2f00] sm:$0xff]
        %v2727 = vld [vmem:[%s355 + $0x2f08] sm:$0xff]
        %v2728 = vld [vmem:[%s355 + $0x2f10] sm:$0xff]
        %v2729 = vld [vmem:[%s355 + $0x2f18] sm:$0xff]
        %v2730 = vld [vmem:[%s355 + $0x2f20] sm:$0xff]
        %v2731 = vld [vmem:[%s355 + $0x2f28] sm:$0xff]
        %v2732 = vld [vmem:[%s355 + $0x2f30] sm:$0xff]
        %v2733 = vld [vmem:[%s355 + $0x2f38] sm:$0xff]
        %v2734 = vld [vmem:[%s355 + $0x2f40] sm:$0xff]
        %v2735 = vld [vmem:[%s355 + $0x2f48] sm:$0xff]
        %v2736 = vld [vmem:[%s355 + $0x2f50] sm:$0xff]
        %v2737 = vld [vmem:[%s355 + $0x2f58] sm:$0xff]
        %v2738 = vld [vmem:[%s355 + $0x2f60] sm:$0xff]
        %v2739 = vld [vmem:[%s355 + $0x2f68] sm:$0xff]
        %v2740 = vld [vmem:[%s355 + $0x2f70] sm:$0xff]
        %v2741 = vld [vmem:[%s355 + $0x2f78] sm:$0xff]
        %v2742 = vld [vmem:[%s355 + $0x2f80] sm:$0xff]
        %v2743 = vld [vmem:[%s355 + $0x2f88] sm:$0xff]
        %v2744 = vld [vmem:[%s355 + $0x2f90] sm:$0xff]
        %v2745 = vld [vmem:[%s355 + $0x2f98] sm:$0xff]
        %v2746 = vld [vmem:[%s355 + $0x2fa0] sm:$0xff]
        %v2747 = vld [vmem:[%s355 + $0x2fa8] sm:$0xff]
        %v2748 = vld [vmem:[%s355 + $0x2fb0] sm:$0xff]
        %v2749 = vld [vmem:[%s355 + $0x2fb8] sm:$0xff]
        %v2750 = vld [vmem:[%s355 + $0x2fc0] sm:$0xff]
        %v2751 = vld [vmem:[%s355 + $0x2fc8] sm:$0xff]
        %v2752 = vld [vmem:[%s355 + $0x2fd0] sm:$0xff]
        %v2753 = vld [vmem:[%s355 + $0x2fd8] sm:$0xff]
        %v2754 = vld [vmem:[%s355 + $0x2fe0] sm:$0xff]
        %v2755 = vld [vmem:[%s355 + $0x2fe8] sm:$0xff]
        %v2756 = vld [vmem:[%s355 + $0x2ff0] sm:$0xff]
        %v2757 = vld [vmem:[%s355 + $0x2ff8] sm:$0xff]
        %v2758 = vld [vmem:[%s355 + $0x3000] sm:$0xff]
        %v2759 = vld [vmem:[%s355 + $0x3008] sm:$0xff]
        %v2760 = vld [vmem:[%s355 + $0x3010] sm:$0xff]
        %v2761 = vld [vmem:[%s355 + $0x3018] sm:$0xff]
        %v2762 = vld [vmem:[%s355 + $0x3020] sm:$0xff]
        %v2763 = vld [vmem:[%s355 + $0x3028] sm:$0xff]
        %v2764 = vld [vmem:[%s355 + $0x3030] sm:$0xff]
        %v2765 = vld [vmem:[%s355 + $0x3038] sm:$0xff]
        %v2766 = vld [vmem:[%s355 + $0x3040] sm:$0xff]
        %v2767 = vld [vmem:[%s355 + $0x3048] sm:$0xff]
        %v2768 = vld [vmem:[%s355 + $0x3050] sm:$0xff]
        %v2769 = vld [vmem:[%s355 + $0x3058] sm:$0xff]
        %v2770 = vld [vmem:[%s355 + $0x3060] sm:$0xff]
        %v2771 = vld [vmem:[%s355 + $0x3068] sm:$0xff]
        %v2772 = vld [vmem:[%s355 + $0x3070] sm:$0xff]
        %v2773 = vld [vmem:[%s355 + $0x3078] sm:$0xff]
        %v2774 = vld [vmem:[%s355 + $0x3080] sm:$0xff]
        %v2775 = vld [vmem:[%s355 + $0x3088] sm:$0xff]
        %v2776 = vld [vmem:[%s355 + $0x3090] sm:$0xff]
        %v2777 = vld [vmem:[%s355 + $0x3098] sm:$0xff]
        %v2778 = vld [vmem:[%s355 + $0x30a0] sm:$0xff]
        %v2779 = vld [vmem:[%s355 + $0x30a8] sm:$0xff]
        %v2780 = vld [vmem:[%s355 + $0x30b0] sm:$0xff]
        %v2781 = vld [vmem:[%s355 + $0x30b8] sm:$0xff]
        %v2782 = vld [vmem:[%s355 + $0x30c0] sm:$0xff]
        %v2783 = vld [vmem:[%s355 + $0x30c8] sm:$0xff]
        %v2784 = vld [vmem:[%s355 + $0x30d0] sm:$0xff]
        %v2785 = vld [vmem:[%s355 + $0x30d8] sm:$0xff]
        %v2786 = vld [vmem:[%s355 + $0x30e0] sm:$0xff]
        %v2787 = vld [vmem:[%s355 + $0x30e8] sm:$0xff]
        %v2788 = vld [vmem:[%s355 + $0x30f0] sm:$0xff]
        %v2789 = vld [vmem:[%s355 + $0x30f8] sm:$0xff]
        %v2790 = vld [vmem:[%s355 + $0x3100] sm:$0xff]
        %v2791 = vld [vmem:[%s355 + $0x3108] sm:$0xff]
        %v2792 = vld [vmem:[%s355 + $0x3110] sm:$0xff]
        %v2793 = vld [vmem:[%s355 + $0x3118] sm:$0xff]
        %v2794 = vld [vmem:[%s355 + $0x3120] sm:$0xff]
        %v2795 = vld [vmem:[%s355 + $0x3128] sm:$0xff]
        %v2796 = vld [vmem:[%s355 + $0x3130] sm:$0xff]
        %v2797 = vld [vmem:[%s355 + $0x3138] sm:$0xff]
        %v2798 = vld [vmem:[%s355 + $0x3140] sm:$0xff]
        %v2799 = vld [vmem:[%s355 + $0x3148] sm:$0xff]
        %v2800 = vld [vmem:[%s355 + $0x3150] sm:$0xff]
        %v2801 = vld [vmem:[%s355 + $0x3158] sm:$0xff]
        %v2802 = vld [vmem:[%s355 + $0x3160] sm:$0xff]
        %v2803 = vld [vmem:[%s355 + $0x3168] sm:$0xff]
        %v2804 = vld [vmem:[%s355 + $0x3170] sm:$0xff]
        %v2805 = vld [vmem:[%s355 + $0x3178] sm:$0xff]
        %v2806 = vld [vmem:[%s355 + $0x3180] sm:$0xff]
        %v2807 = vld [vmem:[%s355 + $0x3188] sm:$0xff]
        %v2808 = vld [vmem:[%s355 + $0x3190] sm:$0xff]
        %v2809 = vld [vmem:[%s355 + $0x3198] sm:$0xff]
        %v2810 = vld [vmem:[%s355 + $0x31a0] sm:$0xff]
        %v2811 = vld [vmem:[%s355 + $0x31a8] sm:$0xff]
        %v2812 = vld [vmem:[%s355 + $0x31b0] sm:$0xff]
        %v2813 = vld [vmem:[%s355 + $0x31b8] sm:$0xff]
        %v2814 = vld [vmem:[%s355 + $0x31c0] sm:$0xff]
        %v2815 = vld [vmem:[%s355 + $0x31c8] sm:$0xff]
        %v2816 = vld [vmem:[%s355 + $0x31d0] sm:$0xff]
        %v2817 = vld [vmem:[%s355 + $0x31d8] sm:$0xff]
        %v2818 = vld [vmem:[%s355 + $0x31e0] sm:$0xff]
        %v2819 = vld [vmem:[%s355 + $0x31e8] sm:$0xff]
        %v2820 = vld [vmem:[%s355 + $0x31f0] sm:$0xff]
        %v2821 = vld [vmem:[%s355 + $0x31f8] sm:$0xff]
        %v2822 = vld [vmem:[%s355 + $0x3200] sm:$0xff]
        %v2823 = vld [vmem:[%s355 + $0x3208] sm:$0xff]
        %v2824 = vld [vmem:[%s355 + $0x3210] sm:$0xff]
        %v2825 = vld [vmem:[%s355 + $0x3218] sm:$0xff]
        %v2826 = vld [vmem:[%s355 + $0x3220] sm:$0xff]
        %v2827 = vld [vmem:[%s355 + $0x3228] sm:$0xff]
        %v2828 = vld [vmem:[%s355 + $0x3230] sm:$0xff]
        %v2829 = vld [vmem:[%s355 + $0x3238] sm:$0xff]
        %v2830 = vld [vmem:[%s355 + $0x3240] sm:$0xff]
        %v2831 = vld [vmem:[%s355 + $0x3248] sm:$0xff]
        %v2832 = vld [vmem:[%s355 + $0x3250] sm:$0xff]
        %v2833 = vld [vmem:[%s355 + $0x3258] sm:$0xff]
        %v2834 = vld [vmem:[%s355 + $0x3260] sm:$0xff]
        %v2835 = vld [vmem:[%s355 + $0x3268] sm:$0xff]
        %v2836 = vld [vmem:[%s355 + $0x3270] sm:$0xff]
        %v2837 = vld [vmem:[%s355 + $0x3278] sm:$0xff]
        %v2838 = vld [vmem:[%s355 + $0x3280] sm:$0xff]
        %v2839 = vld [vmem:[%s355 + $0x3288] sm:$0xff]
        %v2840 = vld [vmem:[%s355 + $0x3290] sm:$0xff]
        %v2841 = vld [vmem:[%s355 + $0x3298] sm:$0xff]
        %v2842 = vld [vmem:[%s355 + $0x32a0] sm:$0xff]
        %v2843 = vld [vmem:[%s355 + $0x32a8] sm:$0xff]
        %v2844 = vld [vmem:[%s355 + $0x32b0] sm:$0xff]
        %v2845 = vld [vmem:[%s355 + $0x32b8] sm:$0xff]
        %v2846 = vld [vmem:[%s355 + $0x32c0] sm:$0xff]
        %v2847 = vld [vmem:[%s355 + $0x32c8] sm:$0xff]
        %v2848 = vld [vmem:[%s355 + $0x32d0] sm:$0xff]
        %v2849 = vld [vmem:[%s355 + $0x32d8] sm:$0xff]
        %v2850 = vld [vmem:[%s355 + $0x32e0] sm:$0xff]
        %v2851 = vld [vmem:[%s355 + $0x32e8] sm:$0xff]
        %v2852 = vld [vmem:[%s355 + $0x32f0] sm:$0xff]
        %v2853 = vld [vmem:[%s355 + $0x32f8] sm:$0xff]
        %v2854 = vld [vmem:[%s355 + $0x3300] sm:$0xff]
        %v2855 = vld [vmem:[%s355 + $0x3308] sm:$0xff]
        %v2856 = vld [vmem:[%s355 + $0x3310] sm:$0xff]
        %v2857 = vld [vmem:[%s355 + $0x3318] sm:$0xff]
        %v2858 = vld [vmem:[%s355 + $0x3320] sm:$0xff]
        %v2859 = vld [vmem:[%s355 + $0x3328] sm:$0xff]
        %v2860 = vld [vmem:[%s355 + $0x3330] sm:$0xff]
        %v2861 = vld [vmem:[%s355 + $0x3338] sm:$0xff]
        %v2862 = vld [vmem:[%s355 + $0x3340] sm:$0xff]
        %v2863 = vld [vmem:[%s355 + $0x3348] sm:$0xff]
        %v2864 = vld [vmem:[%s355 + $0x3350] sm:$0xff]
        %v2865 = vld [vmem:[%s355 + $0x3358] sm:$0xff]
        %v2866 = vld [vmem:[%s355 + $0x3360] sm:$0xff]
        %v2867 = vld [vmem:[%s355 + $0x3368] sm:$0xff]
        %v2868 = vld [vmem:[%s355 + $0x3370] sm:$0xff]
        %v2869 = vld [vmem:[%s355 + $0x3378] sm:$0xff]
        %v2870 = vld [vmem:[%s355 + $0x3380] sm:$0xff]
        %v2871 = vld [vmem:[%s355 + $0x3388] sm:$0xff]
        %v2872 = vld [vmem:[%s355 + $0x3390] sm:$0xff]
        %v2873 = vld [vmem:[%s355 + $0x3398] sm:$0xff]
        %v2874 = vld [vmem:[%s355 + $0x33a0] sm:$0xff]
        %v2875 = vld [vmem:[%s355 + $0x33a8] sm:$0xff]
        %v2876 = vld [vmem:[%s355 + $0x33b0] sm:$0xff]
        %v2877 = vld [vmem:[%s355 + $0x33b8] sm:$0xff]
        %v2878 = vld [vmem:[%s355 + $0x33c0] sm:$0xff]
        %v2879 = vld [vmem:[%s355 + $0x33c8] sm:$0xff]
        %v2880 = vld [vmem:[%s355 + $0x33d0] sm:$0xff]
        %v2881 = vld [vmem:[%s355 + $0x33d8] sm:$0xff]
        %v2882 = vld [vmem:[%s355 + $0x33e0] sm:$0xff]
        %v2883 = vld [vmem:[%s355 + $0x33e8] sm:$0xff]
        %v2884 = vld [vmem:[%s355 + $0x33f0] sm:$0xff]
        %v2885 = vld [vmem:[%s355 + $0x33f8] sm:$0xff]
        %v2886 = vld [vmem:[%s355 + $0x3400] sm:$0xff]
        %v2887 = vld [vmem:[%s355 + $0x3408] sm:$0xff]
        %v2888 = vld [vmem:[%s355 + $0x3410] sm:$0xff]
        %v2889 = vld [vmem:[%s355 + $0x3418] sm:$0xff]
        %v2890 = vld [vmem:[%s355 + $0x3420] sm:$0xff]
        %v2891 = vld [vmem:[%s355 + $0x3428] sm:$0xff]
        %v2892 = vld [vmem:[%s355 + $0x3430] sm:$0xff]
        %v2893 = vld [vmem:[%s355 + $0x3438] sm:$0xff]
        %v2894 = vld [vmem:[%s355 + $0x3440] sm:$0xff]
        %v2895 = vld [vmem:[%s355 + $0x3448] sm:$0xff]
        %v2896 = vld [vmem:[%s355 + $0x3450] sm:$0xff]
        %v2897 = vld [vmem:[%s355 + $0x3458] sm:$0xff]
        %v2898 = vld [vmem:[%s355 + $0x3460] sm:$0xff]
        %v2899 = vld [vmem:[%s355 + $0x3468] sm:$0xff]
        %v2900 = vld [vmem:[%s355 + $0x3470] sm:$0xff]
        %v2901 = vld [vmem:[%s355 + $0x3478] sm:$0xff]
        %v2902 = vld [vmem:[%s355 + $0x3480] sm:$0xff]
        %v2903 = vld [vmem:[%s355 + $0x3488] sm:$0xff]
        %v2904 = vld [vmem:[%s355 + $0x3490] sm:$0xff]
        %v2905 = vld [vmem:[%s355 + $0x3498] sm:$0xff]
        %v2906 = vld [vmem:[%s355 + $0x34a0] sm:$0xff]
        %v2907 = vld [vmem:[%s355 + $0x34a8] sm:$0xff]
        %v2908 = vld [vmem:[%s355 + $0x34b0] sm:$0xff]
        %v2909 = vld [vmem:[%s355 + $0x34b8] sm:$0xff]
        %v2910 = vld [vmem:[%s355 + $0x34c0] sm:$0xff]
        %v2911 = vld [vmem:[%s355 + $0x34c8] sm:$0xff]
        %v2912 = vld [vmem:[%s355 + $0x34d0] sm:$0xff]
        %v2913 = vld [vmem:[%s355 + $0x34d8] sm:$0xff]
        %v2914 = vld [vmem:[%s355 + $0x34e0] sm:$0xff]
        %v2915 = vld [vmem:[%s355 + $0x34e8] sm:$0xff]
        %v2916 = vld [vmem:[%s355 + $0x34f0] sm:$0xff]
        %v2917 = vld [vmem:[%s355 + $0x34f8] sm:$0xff]
        %v2918 = vld [vmem:[%s355 + $0x3500] sm:$0xff]
        %v2919 = vld [vmem:[%s355 + $0x3508] sm:$0xff]
        %v2920 = vld [vmem:[%s355 + $0x3510] sm:$0xff]
        %v2921 = vld [vmem:[%s355 + $0x3518] sm:$0xff]
        %v2922 = vld [vmem:[%s355 + $0x3520] sm:$0xff]
        %v2923 = vld [vmem:[%s355 + $0x3528] sm:$0xff]
        %v2924 = vld [vmem:[%s355 + $0x3530] sm:$0xff]
        %v2925 = vld [vmem:[%s355 + $0x3538] sm:$0xff]
        %v2926 = vld [vmem:[%s355 + $0x3540] sm:$0xff]
        %v2927 = vld [vmem:[%s355 + $0x3548] sm:$0xff]
        %v2928 = vld [vmem:[%s355 + $0x3550] sm:$0xff]
        %v2929 = vld [vmem:[%s355 + $0x3558] sm:$0xff]
        %v2930 = vld [vmem:[%s355 + $0x3560] sm:$0xff]
        %v2931 = vld [vmem:[%s355 + $0x3568] sm:$0xff]
        %v2932 = vld [vmem:[%s355 + $0x3570] sm:$0xff]
        %v2933 = vld [vmem:[%s355 + $0x3578] sm:$0xff]
        %v2934 = vld [vmem:[%s355 + $0x3580] sm:$0xff]
        %v2935 = vld [vmem:[%s355 + $0x3588] sm:$0xff]
        %v2936 = vld [vmem:[%s355 + $0x3590] sm:$0xff]
        %v2937 = vld [vmem:[%s355 + $0x3598] sm:$0xff]
        %v2938 = vld [vmem:[%s355 + $0x35a0] sm:$0xff]
        %v2939 = vld [vmem:[%s355 + $0x35a8] sm:$0xff]
        %v2940 = vld [vmem:[%s355 + $0x35b0] sm:$0xff]
        %v2941 = vld [vmem:[%s355 + $0x35b8] sm:$0xff]
        %v2942 = vld [vmem:[%s355 + $0x35c0] sm:$0xff]
        %v2943 = vld [vmem:[%s355 + $0x35c8] sm:$0xff]
        %v2944 = vld [vmem:[%s355 + $0x35d0] sm:$0xff]
        %v2945 = vld [vmem:[%s355 + $0x35d8] sm:$0xff]
        %v2946 = vld [vmem:[%s355 + $0x35e0] sm:$0xff]
        %v2947 = vld [vmem:[%s355 + $0x35e8] sm:$0xff]
        %v2948 = vld [vmem:[%s355 + $0x35f0] sm:$0xff]
        %v2949 = vld [vmem:[%s355 + $0x35f8] sm:$0xff]
        %v2950 = vld [vmem:[%s355 + $0x3600] sm:$0xff]
        %v2951 = vld [vmem:[%s355 + $0x3608] sm:$0xff]
        %v2952 = vld [vmem:[%s355 + $0x3610] sm:$0xff]
        %v2953 = vld [vmem:[%s355 + $0x3618] sm:$0xff]
        %v2954 = vld [vmem:[%s355 + $0x3620] sm:$0xff]
        %v2955 = vld [vmem:[%s355 + $0x3628] sm:$0xff]
        %v2956 = vld [vmem:[%s355 + $0x3630] sm:$0xff]
        %v2957 = vld [vmem:[%s355 + $0x3638] sm:$0xff]
        %v2958 = vld [vmem:[%s355 + $0x3640] sm:$0xff]
        %v2959 = vld [vmem:[%s355 + $0x3648] sm:$0xff]
        %v2960 = vld [vmem:[%s355 + $0x3650] sm:$0xff]
        %v2961 = vld [vmem:[%s355 + $0x3658] sm:$0xff]
        %v2962 = vld [vmem:[%s355 + $0x3660] sm:$0xff]
        %v2963 = vld [vmem:[%s355 + $0x3668] sm:$0xff]
        %v2964 = vld [vmem:[%s355 + $0x3670] sm:$0xff]
        %v2965 = vld [vmem:[%s355 + $0x3678] sm:$0xff]
        %v2966 = vld [vmem:[%s355 + $0x3680] sm:$0xff]
        %v2967 = vld [vmem:[%s355 + $0x3688] sm:$0xff]
        %v2968 = vld [vmem:[%s355 + $0x3690] sm:$0xff]
        %v2969 = vld [vmem:[%s355 + $0x3698] sm:$0xff]
        %v2970 = vld [vmem:[%s355 + $0x36a0] sm:$0xff]
        %v2971 = vld [vmem:[%s355 + $0x36a8] sm:$0xff]
        %v2972 = vld [vmem:[%s355 + $0x36b0] sm:$0xff]
        %v2973 = vld [vmem:[%s355 + $0x36b8] sm:$0xff]
        %v2974 = vld [vmem:[%s355 + $0x36c0] sm:$0xff]
        %v2975 = vld [vmem:[%s355 + $0x36c8] sm:$0xff]
        %v2976 = vld [vmem:[%s355 + $0x36d0] sm:$0xff]
        %v2977 = vld [vmem:[%s355 + $0x36d8] sm:$0xff]
        %v2978 = vld [vmem:[%s355 + $0x36e0] sm:$0xff]
        %v2979 = vld [vmem:[%s355 + $0x36e8] sm:$0xff]
        %v2980 = vld [vmem:[%s355 + $0x36f0] sm:$0xff]
        %v2981 = vld [vmem:[%s355 + $0x36f8] sm:$0xff]
        %v2982 = vld [vmem:[%s355 + $0x3700] sm:$0xff]
        %v2983 = vld [vmem:[%s355 + $0x3708] sm:$0xff]
        %v2984 = vld [vmem:[%s355 + $0x3710] sm:$0xff]
        %v2985 = vld [vmem:[%s355 + $0x3718] sm:$0xff]
        %v2986 = vld [vmem:[%s355 + $0x3720] sm:$0xff]
        %v2987 = vld [vmem:[%s355 + $0x3728] sm:$0xff]
        %v2988 = vld [vmem:[%s355 + $0x3730] sm:$0xff]
        %v2989 = vld [vmem:[%s355 + $0x3738] sm:$0xff]
        %v2990 = vld [vmem:[%s355 + $0x3740] sm:$0xff]
        %v2991 = vld [vmem:[%s355 + $0x3748] sm:$0xff]
        %v2992 = vld [vmem:[%s355 + $0x3750] sm:$0xff]
        %v2993 = vld [vmem:[%s355 + $0x3758] sm:$0xff]
        %v2994 = vld [vmem:[%s355 + $0x3760] sm:$0xff]
        %v2995 = vld [vmem:[%s355 + $0x3768] sm:$0xff]
        %v2996 = vld [vmem:[%s355 + $0x3770] sm:$0xff]
        %v2997 = vld [vmem:[%s355 + $0x3778] sm:$0xff]
        %v2998 = vld [vmem:[%s355 + $0x3780] sm:$0xff]
        %v2999 = vld [vmem:[%s355 + $0x3788] sm:$0xff]
        %v3000 = vld [vmem:[%s355 + $0x3790] sm:$0xff]
        %v3001 = vld [vmem:[%s355 + $0x3798] sm:$0xff]
        %v3002 = vld [vmem:[%s355 + $0x37a0] sm:$0xff]
        %v3003 = vld [vmem:[%s355 + $0x37a8] sm:$0xff]
        %v3004 = vld [vmem:[%s355 + $0x37b0] sm:$0xff]
        %v3005 = vld [vmem:[%s355 + $0x37b8] sm:$0xff]
        %v3006 = vld [vmem:[%s355 + $0x37c0] sm:$0xff]
        %v3007 = vld [vmem:[%s355 + $0x37c8] sm:$0xff]
        %v3008 = vld [vmem:[%s355 + $0x37d0] sm:$0xff]
        %v3009 = vld [vmem:[%s355 + $0x37d8] sm:$0xff]
        %v3010 = vld [vmem:[%s355 + $0x37e0] sm:$0xff]
        %v3011 = vld [vmem:[%s355 + $0x37e8] sm:$0xff]
        %v3012 = vld [vmem:[%s355 + $0x37f0] sm:$0xff]
        %v3013 = vld [vmem:[%s355 + $0x37f8] sm:$0xff]
        %v3014 = vld [vmem:[%s355 + $0x3800] sm:$0xff]
        %v3015 = vld [vmem:[%s355 + $0x3808] sm:$0xff]
        %v3016 = vld [vmem:[%s355 + $0x3810] sm:$0xff]
        %v3017 = vld [vmem:[%s355 + $0x3818] sm:$0xff]
        %v3018 = vld [vmem:[%s355 + $0x3820] sm:$0xff]
        %v3019 = vld [vmem:[%s355 + $0x3828] sm:$0xff]
        %v3020 = vld [vmem:[%s355 + $0x3830] sm:$0xff]
        %v3021 = vld [vmem:[%s355 + $0x3838] sm:$0xff]
        %v3022 = vld [vmem:[%s355 + $0x3840] sm:$0xff]
        %v3023 = vld [vmem:[%s355 + $0x3848] sm:$0xff]
        %v3024 = vld [vmem:[%s355 + $0x3850] sm:$0xff]
        %v3025 = vld [vmem:[%s355 + $0x3858] sm:$0xff]
        %v3026 = vld [vmem:[%s355 + $0x3860] sm:$0xff]
        %v3027 = vld [vmem:[%s355 + $0x3868] sm:$0xff]
        %v3028 = vld [vmem:[%s355 + $0x3870] sm:$0xff]
        %v3029 = vld [vmem:[%s355 + $0x3878] sm:$0xff]
        %v3030 = vld [vmem:[%s355 + $0x3880] sm:$0xff]
        %v3031 = vld [vmem:[%s355 + $0x3888] sm:$0xff]
        %v3032 = vld [vmem:[%s355 + $0x3890] sm:$0xff]
        %v3033 = vld [vmem:[%s355 + $0x3898] sm:$0xff]
        %v3034 = vld [vmem:[%s355 + $0x38a0] sm:$0xff]
        %v3035 = vld [vmem:[%s355 + $0x38a8] sm:$0xff]
        %v3036 = vld [vmem:[%s355 + $0x38b0] sm:$0xff]
        %v3037 = vld [vmem:[%s355 + $0x38b8] sm:$0xff]
        %v3038 = vld [vmem:[%s355 + $0x38c0] sm:$0xff]
        %v3039 = vld [vmem:[%s355 + $0x38c8] sm:$0xff]
        %v3040 = vld [vmem:[%s355 + $0x38d0] sm:$0xff]
        %v3041 = vld [vmem:[%s355 + $0x38d8] sm:$0xff]
        %v3042 = vld [vmem:[%s355 + $0x38e0] sm:$0xff]
        %v3043 = vld [vmem:[%s355 + $0x38e8] sm:$0xff]
        %v3044 = vld [vmem:[%s355 + $0x38f0] sm:$0xff]
        %v3045 = vld [vmem:[%s355 + $0x38f8] sm:$0xff]
        %v3046 = vld [vmem:[%s355 + $0x3900] sm:$0xff]
        %v3047 = vld [vmem:[%s355 + $0x3908] sm:$0xff]
        %v3048 = vld [vmem:[%s355 + $0x3910] sm:$0xff]
        %v3049 = vld [vmem:[%s355 + $0x3918] sm:$0xff]
        %v3050 = vld [vmem:[%s355 + $0x3920] sm:$0xff]
        %v3051 = vld [vmem:[%s355 + $0x3928] sm:$0xff]
        %v3052 = vld [vmem:[%s355 + $0x3930] sm:$0xff]
        %v3053 = vld [vmem:[%s355 + $0x3938] sm:$0xff]
        %v3054 = vld [vmem:[%s355 + $0x3940] sm:$0xff]
        %v3055 = vld [vmem:[%s355 + $0x3948] sm:$0xff]
        %v3056 = vld [vmem:[%s355 + $0x3950] sm:$0xff]
        %v3057 = vld [vmem:[%s355 + $0x3958] sm:$0xff]
        %v3058 = vld [vmem:[%s355 + $0x3960] sm:$0xff]
        %v3059 = vld [vmem:[%s355 + $0x3968] sm:$0xff]
        %v3060 = vld [vmem:[%s355 + $0x3970] sm:$0xff]
        %v3061 = vld [vmem:[%s355 + $0x3978] sm:$0xff]
        %v3062 = vld [vmem:[%s355 + $0x3980] sm:$0xff]
        %v3063 = vld [vmem:[%s355 + $0x3988] sm:$0xff]
        %v3064 = vld [vmem:[%s355 + $0x3990] sm:$0xff]
        %v3065 = vld [vmem:[%s355 + $0x3998] sm:$0xff]
        %v3066 = vld [vmem:[%s355 + $0x39a0] sm:$0xff]
        %v3067 = vld [vmem:[%s355 + $0x39a8] sm:$0xff]
        %v3068 = vld [vmem:[%s355 + $0x39b0] sm:$0xff]
        %v3069 = vld [vmem:[%s355 + $0x39b8] sm:$0xff]
        %v3070 = vld [vmem:[%s355 + $0x39c0] sm:$0xff]
        %v3071 = vld [vmem:[%s355 + $0x39c8] sm:$0xff]
        %v3072 = vld [vmem:[%s355 + $0x39d0] sm:$0xff]
        %v3073 = vld [vmem:[%s355 + $0x39d8] sm:$0xff]
        %v3074 = vld [vmem:[%s355 + $0x39e0] sm:$0xff]
        %v3075 = vld [vmem:[%s355 + $0x39e8] sm:$0xff]
        %v3076 = vld [vmem:[%s355 + $0x39f0] sm:$0xff]
        %v3077 = vld [vmem:[%s355 + $0x39f8] sm:$0xff]
        %v3078 = vld [vmem:[%s355 + $0x3a00] sm:$0xff]
        %v3079 = vld [vmem:[%s355 + $0x3a08] sm:$0xff]
        %v3080 = vld [vmem:[%s355 + $0x3a10] sm:$0xff]
        %v3081 = vld [vmem:[%s355 + $0x3a18] sm:$0xff]
        %v3082 = vld [vmem:[%s355 + $0x3a20] sm:$0xff]
        %v3083 = vld [vmem:[%s355 + $0x3a28] sm:$0xff]
        %v3084 = vld [vmem:[%s355 + $0x3a30] sm:$0xff]
        %v3085 = vld [vmem:[%s355 + $0x3a38] sm:$0xff]
        %v3086 = vld [vmem:[%s355 + $0x3a40] sm:$0xff]
        %v3087 = vld [vmem:[%s355 + $0x3a48] sm:$0xff]
        %v3088 = vld [vmem:[%s355 + $0x3a50] sm:$0xff]
        %v3089 = vld [vmem:[%s355 + $0x3a58] sm:$0xff]
        %v3090 = vld [vmem:[%s355 + $0x3a60] sm:$0xff]
        %v3091 = vld [vmem:[%s355 + $0x3a68] sm:$0xff]
        %v3092 = vld [vmem:[%s355 + $0x3a70] sm:$0xff]
        %v3093 = vld [vmem:[%s355 + $0x3a78] sm:$0xff]
        %v3094 = vld [vmem:[%s355 + $0x3a80] sm:$0xff]
        %v3095 = vld [vmem:[%s355 + $0x3a88] sm:$0xff]
        %v3096 = vld [vmem:[%s355 + $0x3a90] sm:$0xff]
        %v3097 = vld [vmem:[%s355 + $0x3a98] sm:$0xff]
        %v3098 = vld [vmem:[%s355 + $0x3aa0] sm:$0xff]
        %v3099 = vld [vmem:[%s355 + $0x3aa8] sm:$0xff]
        %v3100 = vld [vmem:[%s355 + $0x3ab0] sm:$0xff]
        %v3101 = vld [vmem:[%s355 + $0x3ab8] sm:$0xff]
        %v3102 = vld [vmem:[%s355 + $0x3ac0] sm:$0xff]
        %v3103 = vld [vmem:[%s355 + $0x3ac8] sm:$0xff]
        %v3104 = vld [vmem:[%s355 + $0x3ad0] sm:$0xff]
        %v3105 = vld [vmem:[%s355 + $0x3ad8] sm:$0xff]
        %v3106 = vld [vmem:[%s355 + $0x3ae0] sm:$0xff]
        %v3107 = vld [vmem:[%s355 + $0x3ae8] sm:$0xff]
        %v3108 = vld [vmem:[%s355 + $0x3af0] sm:$0xff]
        %v3109 = vld [vmem:[%s355 + $0x3af8] sm:$0xff]
        %v3110 = vld [vmem:[%s355 + $0x3b00] sm:$0xff]
        %v3111 = vld [vmem:[%s355 + $0x3b08] sm:$0xff]
        %v3112 = vld [vmem:[%s355 + $0x3b10] sm:$0xff]
        %v3113 = vld [vmem:[%s355 + $0x3b18] sm:$0xff]
        %v3114 = vld [vmem:[%s355 + $0x3b20] sm:$0xff]
        %v3115 = vld [vmem:[%s355 + $0x3b28] sm:$0xff]
        %v3116 = vld [vmem:[%s355 + $0x3b30] sm:$0xff]
        %v3117 = vld [vmem:[%s355 + $0x3b38] sm:$0xff]
        %v3118 = vld [vmem:[%s355 + $0x3b40] sm:$0xff]
        %v3119 = vld [vmem:[%s355 + $0x3b48] sm:$0xff]
        %v3120 = vld [vmem:[%s355 + $0x3b50] sm:$0xff]
        %v3121 = vld [vmem:[%s355 + $0x3b58] sm:$0xff]
        %v3122 = vld [vmem:[%s355 + $0x3b60] sm:$0xff]
        %v3123 = vld [vmem:[%s355 + $0x3b68] sm:$0xff]
        %v3124 = vld [vmem:[%s355 + $0x3b70] sm:$0xff]
        %v3125 = vld [vmem:[%s355 + $0x3b78] sm:$0xff]
        %v3126 = vld [vmem:[%s355 + $0x3b80] sm:$0xff]
        %v3127 = vld [vmem:[%s355 + $0x3b88] sm:$0xff]
        %v3128 = vld [vmem:[%s355 + $0x3b90] sm:$0xff]
        %v3129 = vld [vmem:[%s355 + $0x3b98] sm:$0xff]
        %v3130 = vld [vmem:[%s355 + $0x3ba0] sm:$0xff]
        %v3131 = vld [vmem:[%s355 + $0x3ba8] sm:$0xff]
        %v3132 = vld [vmem:[%s355 + $0x3bb0] sm:$0xff]
        %v3133 = vld [vmem:[%s355 + $0x3bb8] sm:$0xff]
        %v3134 = vld [vmem:[%s355 + $0x3bc0] sm:$0xff]
        %v3135 = vld [vmem:[%s355 + $0x3bc8] sm:$0xff]
        %v3136 = vld [vmem:[%s355 + $0x3bd0] sm:$0xff]
        %v3137 = vld [vmem:[%s355 + $0x3bd8] sm:$0xff]
        %v3138 = vld [vmem:[%s355 + $0x3be0] sm:$0xff]
        %v3139 = vld [vmem:[%s355 + $0x3be8] sm:$0xff]
        %v3140 = vld [vmem:[%s355 + $0x3bf0] sm:$0xff]
        %v3141 = vld [vmem:[%s355 + $0x3bf8] sm:$0xff]
        %v3142 = vld [vmem:[%s355 + $0x3c00] sm:$0xff]
        %v3143 = vld [vmem:[%s355 + $0x3c08] sm:$0xff]
        %v3144 = vld [vmem:[%s355 + $0x3c10] sm:$0xff]
        %v3145 = vld [vmem:[%s355 + $0x3c18] sm:$0xff]
        %v3146 = vld [vmem:[%s355 + $0x3c20] sm:$0xff]
        %v3147 = vld [vmem:[%s355 + $0x3c28] sm:$0xff]
        %v3148 = vld [vmem:[%s355 + $0x3c30] sm:$0xff]
        %v3149 = vld [vmem:[%s355 + $0x3c38] sm:$0xff]
        %v3150 = vld [vmem:[%s355 + $0x3c40] sm:$0xff]
        %v3151 = vld [vmem:[%s355 + $0x3c48] sm:$0xff]
        %v3152 = vld [vmem:[%s355 + $0x3c50] sm:$0xff]
        %v3153 = vld [vmem:[%s355 + $0x3c58] sm:$0xff]
        %v3154 = vld [vmem:[%s355 + $0x3c60] sm:$0xff]
        %v3155 = vld [vmem:[%s355 + $0x3c68] sm:$0xff]
        %v3156 = vld [vmem:[%s355 + $0x3c70] sm:$0xff]
        %v3157 = vld [vmem:[%s355 + $0x3c78] sm:$0xff]
        %v3158 = vld [vmem:[%s355 + $0x3c80] sm:$0xff]
        %v3159 = vld [vmem:[%s355 + $0x3c88] sm:$0xff]
        %v3160 = vld [vmem:[%s355 + $0x3c90] sm:$0xff]
        %v3161 = vld [vmem:[%s355 + $0x3c98] sm:$0xff]
        %v3162 = vld [vmem:[%s355 + $0x3ca0] sm:$0xff]
        %v3163 = vld [vmem:[%s355 + $0x3ca8] sm:$0xff]
        %v3164 = vld [vmem:[%s355 + $0x3cb0] sm:$0xff]
        %v3165 = vld [vmem:[%s355 + $0x3cb8] sm:$0xff]
        %v3166 = vld [vmem:[%s355 + $0x3cc0] sm:$0xff]
        %v3167 = vld [vmem:[%s355 + $0x3cc8] sm:$0xff]
        %v3168 = vld [vmem:[%s355 + $0x3cd0] sm:$0xff]
        %v3169 = vld [vmem:[%s355 + $0x3cd8] sm:$0xff]
        %v3170 = vld [vmem:[%s355 + $0x3ce0] sm:$0xff]
        %v3171 = vld [vmem:[%s355 + $0x3ce8] sm:$0xff]
        %v3172 = vld [vmem:[%s355 + $0x3cf0] sm:$0xff]
        %v3173 = vld [vmem:[%s355 + $0x3cf8] sm:$0xff]
        %v3174 = vld [vmem:[%s355 + $0x3d00] sm:$0xff]
        %v3175 = vld [vmem:[%s355 + $0x3d08] sm:$0xff]
        %v3176 = vld [vmem:[%s355 + $0x3d10] sm:$0xff]
        %v3177 = vld [vmem:[%s355 + $0x3d18] sm:$0xff]
        %v3178 = vld [vmem:[%s355 + $0x3d20] sm:$0xff]
        %v3179 = vld [vmem:[%s355 + $0x3d28] sm:$0xff]
        %v3180 = vld [vmem:[%s355 + $0x3d30] sm:$0xff]
        %v3181 = vld [vmem:[%s355 + $0x3d38] sm:$0xff]
        %v3182 = vld [vmem:[%s355 + $0x3d40] sm:$0xff]
        %v3183 = vld [vmem:[%s355 + $0x3d48] sm:$0xff]
        %v3184 = vld [vmem:[%s355 + $0x3d50] sm:$0xff]
        %v3185 = vld [vmem:[%s355 + $0x3d58] sm:$0xff]
        %v3186 = vld [vmem:[%s355 + $0x3d60] sm:$0xff]
        %v3187 = vld [vmem:[%s355 + $0x3d68] sm:$0xff]
        %v3188 = vld [vmem:[%s355 + $0x3d70] sm:$0xff]
        %v3189 = vld [vmem:[%s355 + $0x3d78] sm:$0xff]
        %v3190 = vld [vmem:[%s355 + $0x3d80] sm:$0xff]
        %v3191 = vld [vmem:[%s355 + $0x3d88] sm:$0xff]
        %v3192 = vld [vmem:[%s355 + $0x3d90] sm:$0xff]
        %v3193 = vld [vmem:[%s355 + $0x3d98] sm:$0xff]
        %v3194 = vld [vmem:[%s355 + $0x3da0] sm:$0xff]
        %v3195 = vld [vmem:[%s355 + $0x3da8] sm:$0xff]
        %v3196 = vld [vmem:[%s355 + $0x3db0] sm:$0xff]
        %v3197 = vld [vmem:[%s355 + $0x3db8] sm:$0xff]
        %v3198 = vld [vmem:[%s355 + $0x3dc0] sm:$0xff]
        %v3199 = vld [vmem:[%s355 + $0x3dc8] sm:$0xff]
        %v3200 = vld [vmem:[%s355 + $0x3dd0] sm:$0xff]
        %v3201 = vld [vmem:[%s355 + $0x3dd8] sm:$0xff]
        %v3202 = vld [vmem:[%s355 + $0x3de0] sm:$0xff]
        %v3203 = vld [vmem:[%s355 + $0x3de8] sm:$0xff]
        %v3204 = vld [vmem:[%s355 + $0x3df0] sm:$0xff]
        %v3205 = vld [vmem:[%s355 + $0x3df8] sm:$0xff]
        %v3206 = vld [vmem:[%s355 + $0x3e00] sm:$0xff]
        %v3207 = vld [vmem:[%s355 + $0x3e08] sm:$0xff]
        %v3208 = vld [vmem:[%s355 + $0x3e10] sm:$0xff]
        %v3209 = vld [vmem:[%s355 + $0x3e18] sm:$0xff]
        %v3210 = vld [vmem:[%s355 + $0x3e20] sm:$0xff]
        %v3211 = vld [vmem:[%s355 + $0x3e28] sm:$0xff]
        %v3212 = vld [vmem:[%s355 + $0x3e30] sm:$0xff]
        %v3213 = vld [vmem:[%s355 + $0x3e38] sm:$0xff]
        %v3214 = vld [vmem:[%s355 + $0x3e40] sm:$0xff]
        %v3215 = vld [vmem:[%s355 + $0x3e48] sm:$0xff]
        %v3216 = vld [vmem:[%s355 + $0x3e50] sm:$0xff]
        %v3217 = vld [vmem:[%s355 + $0x3e58] sm:$0xff]
        %v3218 = vld [vmem:[%s355 + $0x3e60] sm:$0xff]
        %v3219 = vld [vmem:[%s355 + $0x3e68] sm:$0xff]
        %v3220 = vld [vmem:[%s355 + $0x3e70] sm:$0xff]
        %v3221 = vld [vmem:[%s355 + $0x3e78] sm:$0xff]
        %v3222 = vld [vmem:[%s355 + $0x3e80] sm:$0xff]
        %v3223 = vld [vmem:[%s355 + $0x3e88] sm:$0xff]
        %v3224 = vld [vmem:[%s355 + $0x3e90] sm:$0xff]
        %v3225 = vld [vmem:[%s355 + $0x3e98] sm:$0xff]
        %v3226 = vld [vmem:[%s355 + $0x3ea0] sm:$0xff]
        %v3227 = vld [vmem:[%s355 + $0x3ea8] sm:$0xff]
        %v3228 = vld [vmem:[%s355 + $0x3eb0] sm:$0xff]
        %v3229 = vld [vmem:[%s355 + $0x3eb8] sm:$0xff]
        %v3230 = vld [vmem:[%s355 + $0x3ec0] sm:$0xff]
        %v3231 = vld [vmem:[%s355 + $0x3ec8] sm:$0xff]
        %v3232 = vld [vmem:[%s355 + $0x3ed0] sm:$0xff]
        %v3233 = vld [vmem:[%s355 + $0x3ed8] sm:$0xff]
        %v3234 = vld [vmem:[%s355 + $0x3ee0] sm:$0xff]
        %v3235 = vld [vmem:[%s355 + $0x3ee8] sm:$0xff]
        %v3236 = vld [vmem:[%s355 + $0x3ef0] sm:$0xff]
        %v3237 = vld [vmem:[%s355 + $0x3ef8] sm:$0xff]
        %v3238 = vld [vmem:[%s355 + $0x3f00] sm:$0xff]
        %v3239 = vld [vmem:[%s355 + $0x3f08] sm:$0xff]
        %v3240 = vld [vmem:[%s355 + $0x3f10] sm:$0xff]
        %v3241 = vld [vmem:[%s355 + $0x3f18] sm:$0xff]
        %v3242 = vld [vmem:[%s355 + $0x3f20] sm:$0xff]
        %v3243 = vld [vmem:[%s355 + $0x3f28] sm:$0xff]
        %v3244 = vld [vmem:[%s355 + $0x3f30] sm:$0xff]
        %v3245 = vld [vmem:[%s355 + $0x3f38] sm:$0xff]
        %v3246 = vld [vmem:[%s355 + $0x3f40] sm:$0xff]
        %v3247 = vld [vmem:[%s355 + $0x3f48] sm:$0xff]
        %v3248 = vld [vmem:[%s355 + $0x3f50] sm:$0xff]
        %v3249 = vld [vmem:[%s355 + $0x3f58] sm:$0xff]
        %v3250 = vld [vmem:[%s355 + $0x3f60] sm:$0xff]
        %v3251 = vld [vmem:[%s355 + $0x3f68] sm:$0xff]
        %v3252 = vld [vmem:[%s355 + $0x3f70] sm:$0xff]
        %v3253 = vld [vmem:[%s355 + $0x3f78] sm:$0xff]
        %v3254 = vld [vmem:[%s355 + $0x3f80] sm:$0xff]
        %v3255 = vld [vmem:[%s355 + $0x3f88] sm:$0xff]
        %v3256 = vld [vmem:[%s355 + $0x3f90] sm:$0xff]
        %v3257 = vld [vmem:[%s355 + $0x3f98] sm:$0xff]
        %v3258 = vld [vmem:[%s355 + $0x3fa0] sm:$0xff]
        %v3259 = vld [vmem:[%s355 + $0x3fa8] sm:$0xff]
        %v3260 = vld [vmem:[%s355 + $0x3fb0] sm:$0xff]
        %v3261 = vld [vmem:[%s355 + $0x3fb8] sm:$0xff]
        %v3262 = vld [vmem:[%s355 + $0x3fc0] sm:$0xff]
        %v3263 = vld [vmem:[%s355 + $0x3fc8] sm:$0xff]
        %v3264 = vld [vmem:[%s355 + $0x3fd0] sm:$0xff]
        %v3265 = vld [vmem:[%s355 + $0x3fd8] sm:$0xff]
        %v3266 = vld [vmem:[%s355 + $0x3fe0] sm:$0xff]
        %v3267 = vld [vmem:[%s355 + $0x3fe8] sm:$0xff]
        %v3268 = vld [vmem:[%s355 + $0x3ff0] sm:$0xff]
        %v3269 = vld [vmem:[%s355 + $0x3ff8] sm:$0xff]
        %v3270 = vld [vmem:[%s364] sm:$0xff]
        %v3272 = vlaneseq
        %v3273 = vshrl.u32 %v3272, 7
        %v3274 = vsub.s32 0, %v3273
        %v3275 = vrot.slane %v3270, %v3274
        %v3276 = vlaneseq
        %v3277 = vshrl.u32 %v3276, 7
        %v3278 = vsub.s32 1, %v3277
        %v3279 = vrot.slane %v3270, %v3278
        %v3280 = vlaneseq
        %v3281 = vshrl.u32 %v3280, 7
        %v3282 = vsub.s32 2, %v3281
        %v3283 = vrot.slane %v3270, %v3282
        %v3284 = vlaneseq
        %v3285 = vshrl.u32 %v3284, 7
        %v3286 = vsub.s32 3, %v3285
        %v3287 = vrot.slane %v3270, %v3286
        %v3288 = vlaneseq
        %v3289 = vshrl.u32 %v3288, 7
        %v3290 = vsub.s32 4, %v3289
        %v3291 = vrot.slane %v3270, %v3290
        %v3292 = vlaneseq
        %v3293 = vshrl.u32 %v3292, 7
        %v3294 = vsub.s32 5, %v3293
        %v3295 = vrot.slane %v3270, %v3294
        %v3296 = vlaneseq
        %v3297 = vshrl.u32 %v3296, 7
        %v3298 = vsub.s32 6, %v3297
        %v3299 = vrot.slane %v3270, %v3298
        %v3300 = vlaneseq
        %v3301 = vshrl.u32 %v3300, 7
        %v3302 = vsub.s32 7, %v3301
        %v3303 = vrot.slane %v3270, %v3302
        %3312 = vmatprep.subr.mxu0 %v1223
        %3313 = vmatpush1.msra.mxu0 %v1222
        %3314 = vmatprep.subr.mxu0 %v1231
        %3315 = vmatpush1.msra.mxu0 %v1230
        %3316 = vmatprep.subr.mxu0 %v1239
        %3317 = vmatpush1.msra.mxu0 %v1238
        %3318 = vmatprep.subr.mxu0 %v1247
        %3319 = vmatpush1.msra.mxu0 %v1246
        %3320 = vmatprep.subr.mxu0 %v1255
        %3321 = vmatpush1.msra.mxu0 %v1254
        %3322 = vmatprep.subr.mxu0 %v1263
        %3323 = vmatpush1.msra.mxu0 %v1262
        %3324 = vmatprep.subr.mxu0 %v1271
        %3325 = vmatpush1.msra.mxu0 %v1270
        %3326 = vmatprep.subr.mxu0 %v1279
        %3327 = vmatpush1.msra.mxu0 %v1278
        %3328 = vmatprep.subr.mxu0 %v1287
        %3329 = vmatpush1.msra.mxu0 %v1286
        %3330 = vmatprep.subr.mxu0 %v1295
        %3331 = vmatpush1.msra.mxu0 %v1294
        %3332 = vmatprep.subr.mxu0 %v1303
        %3333 = vmatpush1.msra.mxu0 %v1302
        %3334 = vmatprep.subr.mxu0 %v1311
        %3335 = vmatpush1.msra.mxu0 %v1310
        %3336 = vmatprep.subr.mxu0 %v1319
        %3337 = vmatpush1.msra.mxu0 %v1318
        %3338 = vmatprep.subr.mxu0 %v1327
        %3339 = vmatpush1.msra.mxu0 %v1326
        %3340 = vmatprep.subr.mxu0 %v1335
        %3341 = vmatpush1.msra.mxu0 %v1334
        %3342 = vmatprep.subr.mxu0 %v1343
        %3343 = vmatpush1.msra.mxu0 %v1342
        %3344 = vmatprep.subr.mxu0 %v1351
        %3345 = vmatpush1.msra.mxu0 %v1350
        %3346 = vmatprep.subr.mxu0 %v1359
        %3347 = vmatpush1.msra.mxu0 %v1358
        %3348 = vmatprep.subr.mxu0 %v1367
        %3349 = vmatpush1.msra.mxu0 %v1366
        %3350 = vmatprep.subr.mxu0 %v1375
        %3351 = vmatpush1.msra.mxu0 %v1374
        %3352 = vmatprep.subr.mxu0 %v1383
        %3353 = vmatpush1.msra.mxu0 %v1382
        %3354 = vmatprep.subr.mxu0 %v1391
        %3355 = vmatpush1.msra.mxu0 %v1390
        %3356 = vmatprep.subr.mxu0 %v1399
        %3357 = vmatpush1.msra.mxu0 %v1398
        %3358 = vmatprep.subr.mxu0 %v1407
        %3359 = vmatpush1.msra.mxu0 %v1406
        %3360 = vmatprep.subr.mxu0 %v1415
        %3361 = vmatpush1.msra.mxu0 %v1414
        %3362 = vmatprep.subr.mxu0 %v1423
        %3363 = vmatpush1.msra.mxu0 %v1422
        %3364 = vmatprep.subr.mxu0 %v1431
        %3365 = vmatpush1.msra.mxu0 %v1430
        %3366 = vmatprep.subr.mxu0 %v1439
        %3367 = vmatpush1.msra.mxu0 %v1438
        %3368 = vmatprep.subr.mxu0 %v1447
        %3369 = vmatpush1.msra.mxu0 %v1446
        %3370 = vmatprep.subr.mxu0 %v1455
        %3371 = vmatpush1.msra.mxu0 %v1454
        %3372 = vmatprep.subr.mxu0 %v1463
        %3373 = vmatpush1.msra.mxu0 %v1462
        %3374 = vmatprep.subr.mxu0 %v1471
        %3375 = vmatpush1.msra.mxu0 %v1470
        %3376 = vmatprep.mubr.f32.mxu0 %v1207
        %3377 = vmatmul.mubr.f32.gmra.mrb[0].mxu0 %v1206
        %v3378 = vpop.f32.mrb[0].mxu0
        %v3379 = vadd.f32 %v3275, %v3378
        %v3380 = vpop.f32.mrb[0].mxu0
        %v3381 = vadd.f32 %v3279, %v3380
        %3382 = vdwg.mxu0
        %3383 = vmatprep.subr.mxu0 %v1479
        %3384 = vmatpush1.msra.mxu0 %v1478
        %3385 = vmatprep.subr.mxu0 %v1487
        %3386 = vmatpush1.msra.mxu0 %v1486
        %3387 = vmatprep.subr.mxu0 %v1495
        %3388 = vmatpush1.msra.mxu0 %v1494
        %3389 = vmatprep.subr.mxu0 %v1503
        %3390 = vmatpush1.msra.mxu0 %v1502
        %3391 = vmatprep.subr.mxu0 %v1511
        %3392 = vmatpush1.msra.mxu0 %v1510
        %3393 = vmatprep.subr.mxu0 %v1519
        %3394 = vmatpush1.msra.mxu0 %v1518
        %3395 = vmatprep.subr.mxu0 %v1527
        %3396 = vmatpush1.msra.mxu0 %v1526
        %3397 = vmatprep.subr.mxu0 %v1535
        %3398 = vmatpush1.msra.mxu0 %v1534
        %3399 = vmatprep.subr.mxu0 %v1543
        %3400 = vmatpush1.msra.mxu0 %v1542
        %3401 = vmatprep.subr.mxu0 %v1551
        %3402 = vmatpush1.msra.mxu0 %v1550
        %3403 = vmatprep.subr.mxu0 %v1559
        %3404 = vmatpush1.msra.mxu0 %v1558
        %3405 = vmatprep.subr.mxu0 %v1567
        %3406 = vmatpush1.msra.mxu0 %v1566
        %3407 = vmatprep.subr.mxu0 %v1575
        %3408 = vmatpush1.msra.mxu0 %v1574
        %3409 = vmatprep.subr.mxu0 %v1583
        %3410 = vmatpush1.msra.mxu0 %v1582
        %3411 = vmatprep.subr.mxu0 %v1591
        %3412 = vmatpush1.msra.mxu0 %v1590
        %3413 = vmatprep.subr.mxu0 %v1599
        %3414 = vmatpush1.msra.mxu0 %v1598
        %3415 = vmatprep.subr.mxu0 %v1607
        %3416 = vmatpush1.msra.mxu0 %v1606
        %3417 = vmatprep.subr.mxu0 %v1615
        %3418 = vmatpush1.msra.mxu0 %v1614
        %3419 = vmatprep.subr.mxu0 %v1623
        %3420 = vmatpush1.msra.mxu0 %v1622
        %3421 = vmatprep.subr.mxu0 %v1631
        %3422 = vmatpush1.msra.mxu0 %v1630
        %3423 = vmatprep.subr.mxu0 %v1639
        %3424 = vmatpush1.msra.mxu0 %v1638
        %3425 = vmatprep.subr.mxu0 %v1647
        %3426 = vmatpush1.msra.mxu0 %v1646
        %3427 = vmatprep.subr.mxu0 %v1655
        %3428 = vmatpush1.msra.mxu0 %v1654
        %3429 = vmatprep.subr.mxu0 %v1663
        %3430 = vmatpush1.msra.mxu0 %v1662
        %3431 = vmatprep.subr.mxu0 %v1671
        %3432 = vmatpush1.msra.mxu0 %v1670
        %3433 = vmatprep.subr.mxu0 %v1679
        %3434 = vmatpush1.msra.mxu0 %v1678
        %3435 = vmatprep.subr.mxu0 %v1687
        %3436 = vmatpush1.msra.mxu0 %v1686
        %3437 = vmatprep.subr.mxu0 %v1695
        %3438 = vmatpush1.msra.mxu0 %v1694
        %3439 = vmatprep.subr.mxu0 %v1703
        %3440 = vmatpush1.msra.mxu0 %v1702
        %3441 = vmatprep.subr.mxu0 %v1711
        %3442 = vmatpush1.msra.mxu0 %v1710
        %3443 = vmatprep.subr.mxu0 %v1719
        %3444 = vmatpush1.msra.mxu0 %v1718
        %3445 = vmatprep.subr.mxu0 %v1727
        %3446 = vmatpush1.msra.mxu0 %v1726
        %3447 = vmatprep.mubr.f32.mxu0 %v1209
        %3448 = vmatmul.mubr.f32.gmra.mrb[0].mxu0 %v1208
        %v3449 = vpop.f32.mrb[0].mxu0
        %v3450 = vadd.f32 %v3379, %v3449
        %v3451 = vpop.f32.mrb[0].mxu0
        %v3452 = vadd.f32 %v3381, %v3451
        %3453 = vdwg.mxu0
        %3454 = vmatprep.subr.mxu0 %v1735
        %3455 = vmatpush1.msra.mxu0 %v1734
        %3456 = vmatprep.subr.mxu0 %v1743
        %3457 = vmatpush1.msra.mxu0 %v1742
        %3458 = vmatprep.subr.mxu0 %v1751
        %3459 = vmatpush1.msra.mxu0 %v1750
        %3460 = vmatprep.subr.mxu0 %v1759
        %3461 = vmatpush1.msra.mxu0 %v1758
        %3462 = vmatprep.subr.mxu0 %v1767
        %3463 = vmatpush1.msra.mxu0 %v1766
        %3464 = vmatprep.subr.mxu0 %v1775
        %3465 = vmatpush1.msra.mxu0 %v1774
        %3466 = vmatprep.subr.mxu0 %v1783
        %3467 = vmatpush1.msra.mxu0 %v1782
        %3468 = vmatprep.subr.mxu0 %v1791
        %3469 = vmatpush1.msra.mxu0 %v1790
        %3470 = vmatprep.subr.mxu0 %v1799
        %3471 = vmatpush1.msra.mxu0 %v1798
        %3472 = vmatprep.subr.mxu0 %v1807
        %3473 = vmatpush1.msra.mxu0 %v1806
        %3474 = vmatprep.subr.mxu0 %v1815
        %3475 = vmatpush1.msra.mxu0 %v1814
        %3476 = vmatprep.subr.mxu0 %v1823
        %3477 = vmatpush1.msra.mxu0 %v1822
        %3478 = vmatprep.subr.mxu0 %v1831
        %3479 = vmatpush1.msra.mxu0 %v1830
        %3480 = vmatprep.subr.mxu0 %v1839
        %3481 = vmatpush1.msra.mxu0 %v1838
        %3482 = vmatprep.subr.mxu0 %v1847
        %3483 = vmatpush1.msra.mxu0 %v1846
        %3484 = vmatprep.subr.mxu0 %v1855
        %3485 = vmatpush1.msra.mxu0 %v1854
        %3486 = vmatprep.subr.mxu0 %v1863
        %3487 = vmatpush1.msra.mxu0 %v1862
        %3488 = vmatprep.subr.mxu0 %v1871
        %3489 = vmatpush1.msra.mxu0 %v1870
        %3490 = vmatprep.subr.mxu0 %v1879
        %3491 = vmatpush1.msra.mxu0 %v1878
        %3492 = vmatprep.subr.mxu0 %v1887
        %3493 = vmatpush1.msra.mxu0 %v1886
        %3494 = vmatprep.subr.mxu0 %v1895
        %3495 = vmatpush1.msra.mxu0 %v1894
        %3496 = vmatprep.subr.mxu0 %v1903
        %3497 = vmatpush1.msra.mxu0 %v1902
        %3498 = vmatprep.subr.mxu0 %v1911
        %3499 = vmatpush1.msra.mxu0 %v1910
        %3500 = vmatprep.subr.mxu0 %v1919
        %3501 = vmatpush1.msra.mxu0 %v1918
        %3502 = vmatprep.subr.mxu0 %v1927
        %3503 = vmatpush1.msra.mxu0 %v1926
        %3504 = vmatprep.subr.mxu0 %v1935
        %3505 = vmatpush1.msra.mxu0 %v1934
        %3506 = vmatprep.subr.mxu0 %v1943
        %3507 = vmatpush1.msra.mxu0 %v1942
        %3508 = vmatprep.subr.mxu0 %v1951
        %3509 = vmatpush1.msra.mxu0 %v1950
        %3510 = vmatprep.subr.mxu0 %v1959
        %3511 = vmatpush1.msra.mxu0 %v1958
        %3512 = vmatprep.subr.mxu0 %v1967
        %3513 = vmatpush1.msra.mxu0 %v1966
        %3514 = vmatprep.subr.mxu0 %v1975
        %3515 = vmatpush1.msra.mxu0 %v1974
        %3516 = vmatprep.subr.mxu0 %v1983
        %3517 = vmatpush1.msra.mxu0 %v1982
        %3518 = vmatprep.mubr.f32.mxu0 %v1211
        %3519 = vmatmul.mubr.f32.gmra.mrb[0].mxu0 %v1210
        %v3520 = vpop.f32.mrb[0].mxu0
        %v3521 = vadd.f32 %v3450, %v3520
        %v3522 = vpop.f32.mrb[0].mxu0
        %v3523 = vadd.f32 %v3452, %v3522
        %3524 = vdwg.mxu0
        %3525 = vmatprep.subr.mxu0 %v1991
        %3526 = vmatpush1.msra.mxu0 %v1990
        %3527 = vmatprep.subr.mxu0 %v1999
        %3528 = vmatpush1.msra.mxu0 %v1998
        %3529 = vmatprep.subr.mxu0 %v2007
        %3530 = vmatpush1.msra.mxu0 %v2006
        %3531 = vmatprep.subr.mxu0 %v2015
        %3532 = vmatpush1.msra.mxu0 %v2014
        %3533 = vmatprep.subr.mxu0 %v2023
        %3534 = vmatpush1.msra.mxu0 %v2022
        %3535 = vmatprep.subr.mxu0 %v2031
        %3536 = vmatpush1.msra.mxu0 %v2030
        %3537 = vmatprep.subr.mxu0 %v2039
        %3538 = vmatpush1.msra.mxu0 %v2038
        %3539 = vmatprep.subr.mxu0 %v2047
        %3540 = vmatpush1.msra.mxu0 %v2046
        %3541 = vmatprep.subr.mxu0 %v2055
        %3542 = vmatpush1.msra.mxu0 %v2054
        %3543 = vmatprep.subr.mxu0 %v2063
        %3544 = vmatpush1.msra.mxu0 %v2062
        %3545 = vmatprep.subr.mxu0 %v2071
        %3546 = vmatpush1.msra.mxu0 %v2070
        %3547 = vmatprep.subr.mxu0 %v2079
        %3548 = vmatpush1.msra.mxu0 %v2078
        %3549 = vmatprep.subr.mxu0 %v2087
        %3550 = vmatpush1.msra.mxu0 %v2086
        %3551 = vmatprep.subr.mxu0 %v2095
        %3552 = vmatpush1.msra.mxu0 %v2094
        %3553 = vmatprep.subr.mxu0 %v2103
        %3554 = vmatpush1.msra.mxu0 %v2102
        %3555 = vmatprep.subr.mxu0 %v2111
        %3556 = vmatpush1.msra.mxu0 %v2110
        %3557 = vmatprep.subr.mxu0 %v2119
        %3558 = vmatpush1.msra.mxu0 %v2118
        %3559 = vmatprep.subr.mxu0 %v2127
        %3560 = vmatpush1.msra.mxu0 %v2126
        %3561 = vmatprep.subr.mxu0 %v2135
        %3562 = vmatpush1.msra.mxu0 %v2134
        %3563 = vmatprep.subr.mxu0 %v2143
        %3564 = vmatpush1.msra.mxu0 %v2142
        %3565 = vmatprep.subr.mxu0 %v2151
        %3566 = vmatpush1.msra.mxu0 %v2150
        %3567 = vmatprep.subr.mxu0 %v2159
        %3568 = vmatpush1.msra.mxu0 %v2158
        %3569 = vmatprep.subr.mxu0 %v2167
        %3570 = vmatpush1.msra.mxu0 %v2166
        %3571 = vmatprep.subr.mxu0 %v2175
        %3572 = vmatpush1.msra.mxu0 %v2174
        %3573 = vmatprep.subr.mxu0 %v2183
        %3574 = vmatpush1.msra.mxu0 %v2182
        %3575 = vmatprep.subr.mxu0 %v2191
        %3576 = vmatpush1.msra.mxu0 %v2190
        %3577 = vmatprep.subr.mxu0 %v2199
        %3578 = vmatpush1.msra.mxu0 %v2198
        %3579 = vmatprep.subr.mxu0 %v2207
        %3580 = vmatpush1.msra.mxu0 %v2206
        %3581 = vmatprep.subr.mxu0 %v2215
        %3582 = vmatpush1.msra.mxu0 %v2214
        %3583 = vmatprep.subr.mxu0 %v2223
        %3584 = vmatpush1.msra.mxu0 %v2222
        %3585 = vmatprep.subr.mxu0 %v2231
        %3586 = vmatpush1.msra.mxu0 %v2230
        %3587 = vmatprep.subr.mxu0 %v2239
        %3588 = vmatpush1.msra.mxu0 %v2238
        %3589 = vmatprep.mubr.f32.mxu0 %v1213
        %3590 = vmatmul.mubr.f32.gmra.mrb[0].mxu0 %v1212
        %v3591 = vpop.f32.mrb[0].mxu0
        %v3592 = vadd.f32 %v3521, %v3591
        %v3593 = vpop.f32.mrb[0].mxu0
        %v3594 = vadd.f32 %v3523, %v3593
        %3595 = vdwg.mxu0
        %3596 = vmatprep.subr.mxu0 %v2247
        %3597 = vmatpush1.msra.mxu0 %v2246
        %3598 = vmatprep.subr.mxu0 %v2255
        %3599 = vmatpush1.msra.mxu0 %v2254
        %3600 = vmatprep.subr.mxu0 %v2263
        %3601 = vmatpush1.msra.mxu0 %v2262
        %3602 = vmatprep.subr.mxu0 %v2271
        %3603 = vmatpush1.msra.mxu0 %v2270
        %3604 = vmatprep.subr.mxu0 %v2279
        %3605 = vmatpush1.msra.mxu0 %v2278
        %3606 = vmatprep.subr.mxu0 %v2287
        %3607 = vmatpush1.msra.mxu0 %v2286
        %3608 = vmatprep.subr.mxu0 %v2295
        %3609 = vmatpush1.msra.mxu0 %v2294
        %3610 = vmatprep.subr.mxu0 %v2303
        %3611 = vmatpush1.msra.mxu0 %v2302
        %3612 = vmatprep.subr.mxu0 %v2311
        %3613 = vmatpush1.msra.mxu0 %v2310
        %3614 = vmatprep.subr.mxu0 %v2319
        %3615 = vmatpush1.msra.mxu0 %v2318
        %3616 = vmatprep.subr.mxu0 %v2327
        %3617 = vmatpush1.msra.mxu0 %v2326
        %3618 = vmatprep.subr.mxu0 %v2335
        %3619 = vmatpush1.msra.mxu0 %v2334
        %3620 = vmatprep.subr.mxu0 %v2343
        %3621 = vmatpush1.msra.mxu0 %v2342
        %3622 = vmatprep.subr.mxu0 %v2351
        %3623 = vmatpush1.msra.mxu0 %v2350
        %3624 = vmatprep.subr.mxu0 %v2359
        %3625 = vmatpush1.msra.mxu0 %v2358
        %3626 = vmatprep.subr.mxu0 %v2367
        %3627 = vmatpush1.msra.mxu0 %v2366
        %3628 = vmatprep.subr.mxu0 %v2375
        %3629 = vmatpush1.msra.mxu0 %v2374
        %3630 = vmatprep.subr.mxu0 %v2383
        %3631 = vmatpush1.msra.mxu0 %v2382
        %3632 = vmatprep.subr.mxu0 %v2391
        %3633 = vmatpush1.msra.mxu0 %v2390
        %3634 = vmatprep.subr.mxu0 %v2399
        %3635 = vmatpush1.msra.mxu0 %v2398
        %3636 = vmatprep.subr.mxu0 %v2407
        %3637 = vmatpush1.msra.mxu0 %v2406
        %3638 = vmatprep.subr.mxu0 %v2415
        %3639 = vmatpush1.msra.mxu0 %v2414
        %3640 = vmatprep.subr.mxu0 %v2423
        %3641 = vmatpush1.msra.mxu0 %v2422
        %3642 = vmatprep.subr.mxu0 %v2431
        %3643 = vmatpush1.msra.mxu0 %v2430
        %3644 = vmatprep.subr.mxu0 %v2439
        %3645 = vmatpush1.msra.mxu0 %v2438
        %3646 = vmatprep.subr.mxu0 %v2447
        %3647 = vmatpush1.msra.mxu0 %v2446
        %3648 = vmatprep.subr.mxu0 %v2455
        %3649 = vmatpush1.msra.mxu0 %v2454
        %3650 = vmatprep.subr.mxu0 %v2463
        %3651 = vmatpush1.msra.mxu0 %v2462
        %3652 = vmatprep.subr.mxu0 %v2471
        %3653 = vmatpush1.msra.mxu0 %v2470
        %3654 = vmatprep.subr.mxu0 %v2479
        %3655 = vmatpush1.msra.mxu0 %v2478
        %3656 = vmatprep.subr.mxu0 %v2487
        %3657 = vmatpush1.msra.mxu0 %v2486
        %3658 = vmatprep.subr.mxu0 %v2495
        %3659 = vmatpush1.msra.mxu0 %v2494
        %3660 = vmatprep.mubr.f32.mxu0 %v1215
        %3661 = vmatmul.mubr.f32.gmra.mrb[0].mxu0 %v1214
        %v3662 = vpop.f32.mrb[0].mxu0
        %v3663 = vadd.f32 %v3592, %v3662
        %v3664 = vpop.f32.mrb[0].mxu0
        %v3665 = vadd.f32 %v3594, %v3664
        %3666 = vdwg.mxu0
        %3667 = vmatprep.subr.mxu0 %v2503
        %3668 = vmatpush1.msra.mxu0 %v2502
        %3669 = vmatprep.subr.mxu0 %v2511
        %3670 = vmatpush1.msra.mxu0 %v2510
        %3671 = vmatprep.subr.mxu0 %v2519
        %3672 = vmatpush1.msra.mxu0 %v2518
        %3673 = vmatprep.subr.mxu0 %v2527
        %3674 = vmatpush1.msra.mxu0 %v2526
        %3675 = vmatprep.subr.mxu0 %v2535
        %3676 = vmatpush1.msra.mxu0 %v2534
        %3677 = vmatprep.subr.mxu0 %v2543
        %3678 = vmatpush1.msra.mxu0 %v2542
        %3679 = vmatprep.subr.mxu0 %v2551
        %3680 = vmatpush1.msra.mxu0 %v2550
        %3681 = vmatprep.subr.mxu0 %v2559
        %3682 = vmatpush1.msra.mxu0 %v2558
        %3683 = vmatprep.subr.mxu0 %v2567
        %3684 = vmatpush1.msra.mxu0 %v2566
        %3685 = vmatprep.subr.mxu0 %v2575
        %3686 = vmatpush1.msra.mxu0 %v2574
        %3687 = vmatprep.subr.mxu0 %v2583
        %3688 = vmatpush1.msra.mxu0 %v2582
        %3689 = vmatprep.subr.mxu0 %v2591
        %3690 = vmatpush1.msra.mxu0 %v2590
        %3691 = vmatprep.subr.mxu0 %v2599
        %3692 = vmatpush1.msra.mxu0 %v2598
        %3693 = vmatprep.subr.mxu0 %v2607
        %3694 = vmatpush1.msra.mxu0 %v2606
        %3695 = vmatprep.subr.mxu0 %v2615
        %3696 = vmatpush1.msra.mxu0 %v2614
        %3697 = vmatprep.subr.mxu0 %v2623
        %3698 = vmatpush1.msra.mxu0 %v2622
        %3699 = vmatprep.subr.mxu0 %v2631
        %3700 = vmatpush1.msra.mxu0 %v2630
        %3701 = vmatprep.subr.mxu0 %v2639
        %3702 = vmatpush1.msra.mxu0 %v2638
        %3703 = vmatprep.subr.mxu0 %v2647
        %3704 = vmatpush1.msra.mxu0 %v2646
        %3705 = vmatprep.subr.mxu0 %v2655
        %3706 = vmatpush1.msra.mxu0 %v2654
        %3707 = vmatprep.subr.mxu0 %v2663
        %3708 = vmatpush1.msra.mxu0 %v2662
        %3709 = vmatprep.subr.mxu0 %v2671
        %3710 = vmatpush1.msra.mxu0 %v2670
        %3711 = vmatprep.subr.mxu0 %v2679
        %3712 = vmatpush1.msra.mxu0 %v2678
        %3713 = vmatprep.subr.mxu0 %v2687
        %3714 = vmatpush1.msra.mxu0 %v2686
        %3715 = vmatprep.subr.mxu0 %v2695
        %3716 = vmatpush1.msra.mxu0 %v2694
        %3717 = vmatprep.subr.mxu0 %v2703
        %3718 = vmatpush1.msra.mxu0 %v2702
        %3719 = vmatprep.subr.mxu0 %v2711
        %3720 = vmatpush1.msra.mxu0 %v2710
        %3721 = vmatprep.subr.mxu0 %v2719
        %3722 = vmatpush1.msra.mxu0 %v2718
        %3723 = vmatprep.subr.mxu0 %v2727
        %3724 = vmatpush1.msra.mxu0 %v2726
        %3725 = vmatprep.subr.mxu0 %v2735
        %3726 = vmatpush1.msra.mxu0 %v2734
        %3727 = vmatprep.subr.mxu0 %v2743
        %3728 = vmatpush1.msra.mxu0 %v2742
        %3729 = vmatprep.subr.mxu0 %v2751
        %3730 = vmatpush1.msra.mxu0 %v2750
        %3731 = vmatprep.mubr.f32.mxu0 %v1217
        %3732 = vmatmul.mubr.f32.gmra.mrb[0].mxu0 %v1216
        %v3733 = vpop.f32.mrb[0].mxu0
        %v3734 = vadd.f32 %v3663, %v3733
        %v3735 = vpop.f32.mrb[0].mxu0
        %v3736 = vadd.f32 %v3665, %v3735
        %3737 = vdwg.mxu0
        %3738 = vmatprep.subr.mxu0 %v2759
        %3739 = vmatpush1.msra.mxu0 %v2758
        %3740 = vmatprep.subr.mxu0 %v2767
        %3741 = vmatpush1.msra.mxu0 %v2766
        %3742 = vmatprep.subr.mxu0 %v2775
        %3743 = vmatpush1.msra.mxu0 %v2774
        %3744 = vmatprep.subr.mxu0 %v2783
        %3745 = vmatpush1.msra.mxu0 %v2782
        %3746 = vmatprep.subr.mxu0 %v2791
        %3747 = vmatpush1.msra.mxu0 %v2790
        %3748 = vmatprep.subr.mxu0 %v2799
        %3749 = vmatpush1.msra.mxu0 %v2798
        %3750 = vmatprep.subr.mxu0 %v2807
        %3751 = vmatpush1.msra.mxu0 %v2806
        %3752 = vmatprep.subr.mxu0 %v2815
        %3753 = vmatpush1.msra.mxu0 %v2814
        %3754 = vmatprep.subr.mxu0 %v2823
        %3755 = vmatpush1.msra.mxu0 %v2822
        %3756 = vmatprep.subr.mxu0 %v2831
        %3757 = vmatpush1.msra.mxu0 %v2830
        %3758 = vmatprep.subr.mxu0 %v2839
        %3759 = vmatpush1.msra.mxu0 %v2838
        %3760 = vmatprep.subr.mxu0 %v2847
        %3761 = vmatpush1.msra.mxu0 %v2846
        %3762 = vmatprep.subr.mxu0 %v2855
        %3763 = vmatpush1.msra.mxu0 %v2854
        %3764 = vmatprep.subr.mxu0 %v2863
        %3765 = vmatpush1.msra.mxu0 %v2862
        %3766 = vmatprep.subr.mxu0 %v2871
        %3767 = vmatpush1.msra.mxu0 %v2870
        %3768 = vmatprep.subr.mxu0 %v2879
        %3769 = vmatpush1.msra.mxu0 %v2878
        %3770 = vmatprep.subr.mxu0 %v2887
        %3771 = vmatpush1.msra.mxu0 %v2886
        %3772 = vmatprep.subr.mxu0 %v2895
        %3773 = vmatpush1.msra.mxu0 %v2894
        %3774 = vmatprep.subr.mxu0 %v2903
        %3775 = vmatpush1.msra.mxu0 %v2902
        %3776 = vmatprep.subr.mxu0 %v2911
        %3777 = vmatpush1.msra.mxu0 %v2910
        %3778 = vmatprep.subr.mxu0 %v2919
        %3779 = vmatpush1.msra.mxu0 %v2918
        %3780 = vmatprep.subr.mxu0 %v2927
        %3781 = vmatpush1.msra.mxu0 %v2926
        %3782 = vmatprep.subr.mxu0 %v2935
        %3783 = vmatpush1.msra.mxu0 %v2934
        %3784 = vmatprep.subr.mxu0 %v2943
        %3785 = vmatpush1.msra.mxu0 %v2942
        %3786 = vmatprep.subr.mxu0 %v2951
        %3787 = vmatpush1.msra.mxu0 %v2950
        %3788 = vmatprep.subr.mxu0 %v2959
        %3789 = vmatpush1.msra.mxu0 %v2958
        %3790 = vmatprep.subr.mxu0 %v2967
        %3791 = vmatpush1.msra.mxu0 %v2966
        %3792 = vmatprep.subr.mxu0 %v2975
        %3793 = vmatpush1.msra.mxu0 %v2974
        %3794 = vmatprep.subr.mxu0 %v2983
        %3795 = vmatpush1.msra.mxu0 %v2982
        %3796 = vmatprep.subr.mxu0 %v2991
        %3797 = vmatpush1.msra.mxu0 %v2990
        %3798 = vmatprep.subr.mxu0 %v2999
        %3799 = vmatpush1.msra.mxu0 %v2998
        %3800 = vmatprep.subr.mxu0 %v3007
        %3801 = vmatpush1.msra.mxu0 %v3006
        %3802 = vmatprep.mubr.f32.mxu0 %v1219
        %3803 = vmatmul.mubr.f32.gmra.mrb[0].mxu0 %v1218
        %v3804 = vpop.f32.mrb[0].mxu0
        %v3805 = vadd.f32 %v3734, %v3804
        %v3806 = vpop.f32.mrb[0].mxu0
        %v3807 = vadd.f32 %v3736, %v3806
        %3808 = vdwg.mxu0
        %3809 = vmatprep.subr.mxu0 %v3015
        %3810 = vmatpush1.msra.mxu0 %v3014
        %3811 = vmatprep.subr.mxu0 %v3023
        %3812 = vmatpush1.msra.mxu0 %v3022
        %3813 = vmatprep.subr.mxu0 %v3031
        %3814 = vmatpush1.msra.mxu0 %v3030
        %3815 = vmatprep.subr.mxu0 %v3039
        %3816 = vmatpush1.msra.mxu0 %v3038
        %3817 = vmatprep.subr.mxu0 %v3047
        %3818 = vmatpush1.msra.mxu0 %v3046
        %3819 = vmatprep.subr.mxu0 %v3055
        %3820 = vmatpush1.msra.mxu0 %v3054
        %3821 = vmatprep.subr.mxu0 %v3063
        %3822 = vmatpush1.msra.mxu0 %v3062
        %3823 = vmatprep.subr.mxu0 %v3071
        %3824 = vmatpush1.msra.mxu0 %v3070
        %3825 = vmatprep.subr.mxu0 %v3079
        %3826 = vmatpush1.msra.mxu0 %v3078
        %3827 = vmatprep.subr.mxu0 %v3087
        %3828 = vmatpush1.msra.mxu0 %v3086
        %3829 = vmatprep.subr.mxu0 %v3095
        %3830 = vmatpush1.msra.mxu0 %v3094
        %3831 = vmatprep.subr.mxu0 %v3103
        %3832 = vmatpush1.msra.mxu0 %v3102
        %3833 = vmatprep.subr.mxu0 %v3111
        %3834 = vmatpush1.msra.mxu0 %v3110
        %3835 = vmatprep.subr.mxu0 %v3119
        %3836 = vmatpush1.msra.mxu0 %v3118
        %3837 = vmatprep.subr.mxu0 %v3127
        %3838 = vmatpush1.msra.mxu0 %v3126
        %3839 = vmatprep.subr.mxu0 %v3135
        %3840 = vmatpush1.msra.mxu0 %v3134
        %3841 = vmatprep.subr.mxu0 %v3143
        %3842 = vmatpush1.msra.mxu0 %v3142
        %3843 = vmatprep.subr.mxu0 %v3151
        %3844 = vmatpush1.msra.mxu0 %v3150
        %3845 = vmatprep.subr.mxu0 %v3159
        %3846 = vmatpush1.msra.mxu0 %v3158
        %3847 = vmatprep.subr.mxu0 %v3167
        %3848 = vmatpush1.msra.mxu0 %v3166
        %3849 = vmatprep.subr.mxu0 %v3175
        %3850 = vmatpush1.msra.mxu0 %v3174
        %3851 = vmatprep.subr.mxu0 %v3183
        %3852 = vmatpush1.msra.mxu0 %v3182
        %3853 = vmatprep.subr.mxu0 %v3191
        %3854 = vmatpush1.msra.mxu0 %v3190
        %3855 = vmatprep.subr.mxu0 %v3199
        %3856 = vmatpush1.msra.mxu0 %v3198
        %3857 = vmatprep.subr.mxu0 %v3207
        %3858 = vmatpush1.msra.mxu0 %v3206
        %3859 = vmatprep.subr.mxu0 %v3215
        %3860 = vmatpush1.msra.mxu0 %v3214
        %3861 = vmatprep.subr.mxu0 %v3223
        %3862 = vmatpush1.msra.mxu0 %v3222
        %3863 = vmatprep.subr.mxu0 %v3231
        %3864 = vmatpush1.msra.mxu0 %v3230
        %3865 = vmatprep.subr.mxu0 %v3239
        %3866 = vmatpush1.msra.mxu0 %v3238
        %3867 = vmatprep.subr.mxu0 %v3247
        %3868 = vmatpush1.msra.mxu0 %v3246
        %3869 = vmatprep.subr.mxu0 %v3255
        %3870 = vmatpush1.msra.mxu0 %v3254
        %3871 = vmatprep.subr.mxu0 %v3263
        %3872 = vmatpush1.msra.mxu0 %v3262
        %3873 = vmatprep.mubr.f32.mxu0 %v1221
        %3874 = vmatmul.mubr.f32.gmra.mrb[0].mxu0 %v1220
        %v3875 = vpop.f32.mrb[0].mxu0
        %v3876 = vadd.f32 %v3805, %v3875
        %v3877 = vpop.f32.mrb[0].mxu0
        %v3878 = vadd.f32 %v3807, %v3877
        %3879 = vdwg.mxu0
        %3880 = vmatprep.subr.mxu0 %v1225
        %3881 = vmatpush1.msra.mxu0 %v1224
        %3882 = vmatprep.subr.mxu0 %v1233
        %3883 = vmatpush1.msra.mxu0 %v1232
        %3884 = vmatprep.subr.mxu0 %v1241
        %3885 = vmatpush1.msra.mxu0 %v1240
        %3886 = vmatprep.subr.mxu0 %v1249
        %3887 = vmatpush1.msra.mxu0 %v1248
        %3888 = vmatprep.subr.mxu0 %v1257
        %3889 = vmatpush1.msra.mxu0 %v1256
        %3890 = vmatprep.subr.mxu0 %v1265
        %3891 = vmatpush1.msra.mxu0 %v1264
        %3892 = vmatprep.subr.mxu0 %v1273
        %3893 = vmatpush1.msra.mxu0 %v1272
        %3894 = vmatprep.subr.mxu0 %v1281
        %3895 = vmatpush1.msra.mxu0 %v1280
        %3896 = vmatprep.subr.mxu0 %v1289
        %3897 = vmatpush1.msra.mxu0 %v1288
        %3898 = vmatprep.subr.mxu0 %v1297
        %3899 = vmatpush1.msra.mxu0 %v1296
        %3900 = vmatprep.subr.mxu0 %v1305
        %3901 = vmatpush1.msra.mxu0 %v1304
        %3902 = vmatprep.subr.mxu0 %v1313
        %3903 = vmatpush1.msra.mxu0 %v1312
        %3904 = vmatprep.subr.mxu0 %v1321
        %3905 = vmatpush1.msra.mxu0 %v1320
        %3906 = vmatprep.subr.mxu0 %v1329
        %3907 = vmatpush1.msra.mxu0 %v1328
        %3908 = vmatprep.subr.mxu0 %v1337
        %3909 = vmatpush1.msra.mxu0 %v1336
        %3910 = vmatprep.subr.mxu0 %v1345
        %3911 = vmatpush1.msra.mxu0 %v1344
        %3912 = vmatprep.subr.mxu0 %v1353
        %3913 = vmatpush1.msra.mxu0 %v1352
        %3914 = vmatprep.subr.mxu0 %v1361
        %3915 = vmatpush1.msra.mxu0 %v1360
        %3916 = vmatprep.subr.mxu0 %v1369
        %3917 = vmatpush1.msra.mxu0 %v1368
        %3918 = vmatprep.subr.mxu0 %v1377
        %3919 = vmatpush1.msra.mxu0 %v1376
        %3920 = vmatprep.subr.mxu0 %v1385
        %3921 = vmatpush1.msra.mxu0 %v1384
        %3922 = vmatprep.subr.mxu0 %v1393
        %3923 = vmatpush1.msra.mxu0 %v1392
        %3924 = vmatprep.subr.mxu0 %v1401
        %3925 = vmatpush1.msra.mxu0 %v1400
        %3926 = vmatprep.subr.mxu0 %v1409
        %3927 = vmatpush1.msra.mxu0 %v1408
        %3928 = vmatprep.subr.mxu0 %v1417
        %3929 = vmatpush1.msra.mxu0 %v1416
        %3930 = vmatprep.subr.mxu0 %v1425
        %3931 = vmatpush1.msra.mxu0 %v1424
        %3932 = vmatprep.subr.mxu0 %v1433
        %3933 = vmatpush1.msra.mxu0 %v1432
        %3934 = vmatprep.subr.mxu0 %v1441
        %3935 = vmatpush1.msra.mxu0 %v1440
        %3936 = vmatprep.subr.mxu0 %v1449
        %3937 = vmatpush1.msra.mxu0 %v1448
        %3938 = vmatprep.subr.mxu0 %v1457
        %3939 = vmatpush1.msra.mxu0 %v1456
        %3940 = vmatprep.subr.mxu0 %v1465
        %3941 = vmatpush1.msra.mxu0 %v1464
        %3942 = vmatprep.subr.mxu0 %v1473
        %3943 = vmatpush1.msra.mxu0 %v1472
        %3944 = vmatprep.mubr.f32.mxu0 %v1207
        %3945 = vmatmul.mubr.f32.gmra.mrb[0].mxu0 %v1206
        %v3946 = vpop.f32.mrb[0].mxu0
        %v3947 = vadd.f32 %v3283, %v3946
        %v3948 = vpop.f32.mrb[0].mxu0
        %v3949 = vadd.f32 %v3287, %v3948
        %3950 = vdwg.mxu0
        %3951 = vmatprep.subr.mxu0 %v1481
        %3952 = vmatpush1.msra.mxu0 %v1480
        %3953 = vmatprep.subr.mxu0 %v1489
        %3954 = vmatpush1.msra.mxu0 %v1488
        %3955 = vmatprep.subr.mxu0 %v1497
        %3956 = vmatpush1.msra.mxu0 %v1496
        %3957 = vmatprep.subr.mxu0 %v1505
        %3958 = vmatpush1.msra.mxu0 %v1504
        %3959 = vmatprep.subr.mxu0 %v1513
        %3960 = vmatpush1.msra.mxu0 %v1512
        %3961 = vmatprep.subr.mxu0 %v1521
        %3962 = vmatpush1.msra.mxu0 %v1520
        %3963 = vmatprep.subr.mxu0 %v1529
        %3964 = vmatpush1.msra.mxu0 %v1528
        %3965 = vmatprep.subr.mxu0 %v1537
        %3966 = vmatpush1.msra.mxu0 %v1536
        %3967 = vmatprep.subr.mxu0 %v1545
        %3968 = vmatpush1.msra.mxu0 %v1544
        %3969 = vmatprep.subr.mxu0 %v1553
        %3970 = vmatpush1.msra.mxu0 %v1552
        %3971 = vmatprep.subr.mxu0 %v1561
        %3972 = vmatpush1.msra.mxu0 %v1560
        %3973 = vmatprep.subr.mxu0 %v1569
        %3974 = vmatpush1.msra.mxu0 %v1568
        %3975 = vmatprep.subr.mxu0 %v1577
        %3976 = vmatpush1.msra.mxu0 %v1576
        %3977 = vmatprep.subr.mxu0 %v1585
        %3978 = vmatpush1.msra.mxu0 %v1584
        %3979 = vmatprep.subr.mxu0 %v1593
        %3980 = vmatpush1.msra.mxu0 %v1592
        %3981 = vmatprep.subr.mxu0 %v1601
        %3982 = vmatpush1.msra.mxu0 %v1600
        %3983 = vmatprep.subr.mxu0 %v1609
        %3984 = vmatpush1.msra.mxu0 %v1608
        %3985 = vmatprep.subr.mxu0 %v1617
        %3986 = vmatpush1.msra.mxu0 %v1616
        %3987 = vmatprep.subr.mxu0 %v1625
        %3988 = vmatpush1.msra.mxu0 %v1624
        %3989 = vmatprep.subr.mxu0 %v1633
        %3990 = vmatpush1.msra.mxu0 %v1632
        %3991 = vmatprep.subr.mxu0 %v1641
        %3992 = vmatpush1.msra.mxu0 %v1640
        %3993 = vmatprep.subr.mxu0 %v1649
        %3994 = vmatpush1.msra.mxu0 %v1648
        %3995 = vmatprep.subr.mxu0 %v1657
        %3996 = vmatpush1.msra.mxu0 %v1656
        %3997 = vmatprep.subr.mxu0 %v1665
        %3998 = vmatpush1.msra.mxu0 %v1664
        %3999 = vmatprep.subr.mxu0 %v1673
        %4000 = vmatpush1.msra.mxu0 %v1672
        %4001 = vmatprep.subr.mxu0 %v1681
        %4002 = vmatpush1.msra.mxu0 %v1680
        %4003 = vmatprep.subr.mxu0 %v1689
        %4004 = vmatpush1.msra.mxu0 %v1688
        %4005 = vmatprep.subr.mxu0 %v1697
        %4006 = vmatpush1.msra.mxu0 %v1696
        %4007 = vmatprep.subr.mxu0 %v1705
        %4008 = vmatpush1.msra.mxu0 %v1704
        %4009 = vmatprep.subr.mxu0 %v1713
        %4010 = vmatpush1.msra.mxu0 %v1712
        %4011 = vmatprep.subr.mxu0 %v1721
        %4012 = vmatpush1.msra.mxu0 %v1720
        %4013 = vmatprep.subr.mxu0 %v1729
        %4014 = vmatpush1.msra.mxu0 %v1728
        %4015 = vmatprep.mubr.f32.mxu0 %v1209
        %4016 = vmatmul.mubr.f32.gmra.mrb[0].mxu0 %v1208
        %v4017 = vpop.f32.mrb[0].mxu0
        %v4018 = vadd.f32 %v3947, %v4017
        %v4019 = vpop.f32.mrb[0].mxu0
        %v4020 = vadd.f32 %v3949, %v4019
        %4021 = vdwg.mxu0
        %4022 = vmatprep.subr.mxu0 %v1737
        %4023 = vmatpush1.msra.mxu0 %v1736
        %4024 = vmatprep.subr.mxu0 %v1745
        %4025 = vmatpush1.msra.mxu0 %v1744
        %4026 = vmatprep.subr.mxu0 %v1753
        %4027 = vmatpush1.msra.mxu0 %v1752
        %4028 = vmatprep.subr.mxu0 %v1761
        %4029 = vmatpush1.msra.mxu0 %v1760
        %4030 = vmatprep.subr.mxu0 %v1769
        %4031 = vmatpush1.msra.mxu0 %v1768
        %4032 = vmatprep.subr.mxu0 %v1777
        %4033 = vmatpush1.msra.mxu0 %v1776
        %4034 = vmatprep.subr.mxu0 %v1785
        %4035 = vmatpush1.msra.mxu0 %v1784
        %4036 = vmatprep.subr.mxu0 %v1793
        %4037 = vmatpush1.msra.mxu0 %v1792
        %4038 = vmatprep.subr.mxu0 %v1801
        %4039 = vmatpush1.msra.mxu0 %v1800
        %4040 = vmatprep.subr.mxu0 %v1809
        %4041 = vmatpush1.msra.mxu0 %v1808
        %4042 = vmatprep.subr.mxu0 %v1817
        %4043 = vmatpush1.msra.mxu0 %v1816
        %4044 = vmatprep.subr.mxu0 %v1825
        %4045 = vmatpush1.msra.mxu0 %v1824
        %4046 = vmatprep.subr.mxu0 %v1833
        %4047 = vmatpush1.msra.mxu0 %v1832
        %4048 = vmatprep.subr.mxu0 %v1841
        %4049 = vmatpush1.msra.mxu0 %v1840
        %4050 = vmatprep.subr.mxu0 %v1849
        %4051 = vmatpush1.msra.mxu0 %v1848
        %4052 = vmatprep.subr.mxu0 %v1857
        %4053 = vmatpush1.msra.mxu0 %v1856
        %4054 = vmatprep.subr.mxu0 %v1865
        %4055 = vmatpush1.msra.mxu0 %v1864
        %4056 = vmatprep.subr.mxu0 %v1873
        %4057 = vmatpush1.msra.mxu0 %v1872
        %4058 = vmatprep.subr.mxu0 %v1881
        %4059 = vmatpush1.msra.mxu0 %v1880
        %4060 = vmatprep.subr.mxu0 %v1889
        %4061 = vmatpush1.msra.mxu0 %v1888
        %4062 = vmatprep.subr.mxu0 %v1897
        %4063 = vmatpush1.msra.mxu0 %v1896
        %4064 = vmatprep.subr.mxu0 %v1905
        %4065 = vmatpush1.msra.mxu0 %v1904
        %4066 = vmatprep.subr.mxu0 %v1913
        %4067 = vmatpush1.msra.mxu0 %v1912
        %4068 = vmatprep.subr.mxu0 %v1921
        %4069 = vmatpush1.msra.mxu0 %v1920
        %4070 = vmatprep.subr.mxu0 %v1929
        %4071 = vmatpush1.msra.mxu0 %v1928
        %4072 = vmatprep.subr.mxu0 %v1937
        %4073 = vmatpush1.msra.mxu0 %v1936
        %4074 = vmatprep.subr.mxu0 %v1945
        %4075 = vmatpush1.msra.mxu0 %v1944
        %4076 = vmatprep.subr.mxu0 %v1953
        %4077 = vmatpush1.msra.mxu0 %v1952
        %4078 = vmatprep.subr.mxu0 %v1961
        %4079 = vmatpush1.msra.mxu0 %v1960
        %4080 = vmatprep.subr.mxu0 %v1969
        %4081 = vmatpush1.msra.mxu0 %v1968
        %4082 = vmatprep.subr.mxu0 %v1977
        %4083 = vmatpush1.msra.mxu0 %v1976
        %4084 = vmatprep.subr.mxu0 %v1985
        %4085 = vmatpush1.msra.mxu0 %v1984
        %4086 = vmatprep.mubr.f32.mxu0 %v1211
        %4087 = vmatmul.mubr.f32.gmra.mrb[0].mxu0 %v1210
        %v4088 = vpop.f32.mrb[0].mxu0
        %v4089 = vadd.f32 %v4018, %v4088
        %v4090 = vpop.f32.mrb[0].mxu0
        %v4091 = vadd.f32 %v4020, %v4090
        %4092 = vdwg.mxu0
        %4093 = vmatprep.subr.mxu0 %v1993
        %4094 = vmatpush1.msra.mxu0 %v1992
        %4095 = vmatprep.subr.mxu0 %v2001
        %4096 = vmatpush1.msra.mxu0 %v2000
        %4097 = vmatprep.subr.mxu0 %v2009
        %4098 = vmatpush1.msra.mxu0 %v2008
        %4099 = vmatprep.subr.mxu0 %v2017
        %4100 = vmatpush1.msra.mxu0 %v2016
        %4101 = vmatprep.subr.mxu0 %v2025
        %4102 = vmatpush1.msra.mxu0 %v2024
        %4103 = vmatprep.subr.mxu0 %v2033
        %4104 = vmatpush1.msra.mxu0 %v2032
        %4105 = vmatprep.subr.mxu0 %v2041
        %4106 = vmatpush1.msra.mxu0 %v2040
        %4107 = vmatprep.subr.mxu0 %v2049
        %4108 = vmatpush1.msra.mxu0 %v2048
        %4109 = vmatprep.subr.mxu0 %v2057
        %4110 = vmatpush1.msra.mxu0 %v2056
        %4111 = vmatprep.subr.mxu0 %v2065
        %4112 = vmatpush1.msra.mxu0 %v2064
        %4113 = vmatprep.subr.mxu0 %v2073
        %4114 = vmatpush1.msra.mxu0 %v2072
        %4115 = vmatprep.subr.mxu0 %v2081
        %4116 = vmatpush1.msra.mxu0 %v2080
        %4117 = vmatprep.subr.mxu0 %v2089
        %4118 = vmatpush1.msra.mxu0 %v2088
        %4119 = vmatprep.subr.mxu0 %v2097
        %4120 = vmatpush1.msra.mxu0 %v2096
        %4121 = vmatprep.subr.mxu0 %v2105
        %4122 = vmatpush1.msra.mxu0 %v2104
        %4123 = vmatprep.subr.mxu0 %v2113
        %4124 = vmatpush1.msra.mxu0 %v2112
        %4125 = vmatprep.subr.mxu0 %v2121
        %4126 = vmatpush1.msra.mxu0 %v2120
        %4127 = vmatprep.subr.mxu0 %v2129
        %4128 = vmatpush1.msra.mxu0 %v2128
        %4129 = vmatprep.subr.mxu0 %v2137
        %4130 = vmatpush1.msra.mxu0 %v2136
        %4131 = vmatprep.subr.mxu0 %v2145
        %4132 = vmatpush1.msra.mxu0 %v2144
        %4133 = vmatprep.subr.mxu0 %v2153
        %4134 = vmatpush1.msra.mxu0 %v2152
        %4135 = vmatprep.subr.mxu0 %v2161
        %4136 = vmatpush1.msra.mxu0 %v2160
        %4137 = vmatprep.subr.mxu0 %v2169
        %4138 = vmatpush1.msra.mxu0 %v2168
        %4139 = vmatprep.subr.mxu0 %v2177
        %4140 = vmatpush1.msra.mxu0 %v2176
        %4141 = vmatprep.subr.mxu0 %v2185
        %4142 = vmatpush1.msra.mxu0 %v2184
        %4143 = vmatprep.subr.mxu0 %v2193
        %4144 = vmatpush1.msra.mxu0 %v2192
        %4145 = vmatprep.subr.mxu0 %v2201
        %4146 = vmatpush1.msra.mxu0 %v2200
        %4147 = vmatprep.subr.mxu0 %v2209
        %4148 = vmatpush1.msra.mxu0 %v2208
        %4149 = vmatprep.subr.mxu0 %v2217
        %4150 = vmatpush1.msra.mxu0 %v2216
        %4151 = vmatprep.subr.mxu0 %v2225
        %4152 = vmatpush1.msra.mxu0 %v2224
        %4153 = vmatprep.subr.mxu0 %v2233
        %4154 = vmatpush1.msra.mxu0 %v2232
        %4155 = vmatprep.subr.mxu0 %v2241
        %4156 = vmatpush1.msra.mxu0 %v2240
        %4157 = vmatprep.mubr.f32.mxu0 %v1213
        %4158 = vmatmul.mubr.f32.gmra.mrb[0].mxu0 %v1212
        %v4159 = vpop.f32.mrb[0].mxu0
        %v4160 = vadd.f32 %v4089, %v4159
        %v4161 = vpop.f32.mrb[0].mxu0
        %v4162 = vadd.f32 %v4091, %v4161
        %4163 = vdwg.mxu0
        %4164 = vmatprep.subr.mxu0 %v2249
        %4165 = vmatpush1.msra.mxu0 %v2248
        %4166 = vmatprep.subr.mxu0 %v2257
        %4167 = vmatpush1.msra.mxu0 %v2256
        %4168 = vmatprep.subr.mxu0 %v2265
        %4169 = vmatpush1.msra.mxu0 %v2264
        %4170 = vmatprep.subr.mxu0 %v2273
        %4171 = vmatpush1.msra.mxu0 %v2272
        %4172 = vmatprep.subr.mxu0 %v2281
        %4173 = vmatpush1.msra.mxu0 %v2280
        %4174 = vmatprep.subr.mxu0 %v2289
        %4175 = vmatpush1.msra.mxu0 %v2288
        %4176 = vmatprep.subr.mxu0 %v2297
        %4177 = vmatpush1.msra.mxu0 %v2296
        %4178 = vmatprep.subr.mxu0 %v2305
        %4179 = vmatpush1.msra.mxu0 %v2304
        %4180 = vmatprep.subr.mxu0 %v2313
        %4181 = vmatpush1.msra.mxu0 %v2312
        %4182 = vmatprep.subr.mxu0 %v2321
        %4183 = vmatpush1.msra.mxu0 %v2320
        %4184 = vmatprep.subr.mxu0 %v2329
        %4185 = vmatpush1.msra.mxu0 %v2328
        %4186 = vmatprep.subr.mxu0 %v2337
        %4187 = vmatpush1.msra.mxu0 %v2336
        %4188 = vmatprep.subr.mxu0 %v2345
        %4189 = vmatpush1.msra.mxu0 %v2344
        %4190 = vmatprep.subr.mxu0 %v2353
        %4191 = vmatpush1.msra.mxu0 %v2352
        %4192 = vmatprep.subr.mxu0 %v2361
        %4193 = vmatpush1.msra.mxu0 %v2360
        %4194 = vmatprep.subr.mxu0 %v2369
        %4195 = vmatpush1.msra.mxu0 %v2368
        %4196 = vmatprep.subr.mxu0 %v2377
        %4197 = vmatpush1.msra.mxu0 %v2376
        %4198 = vmatprep.subr.mxu0 %v2385
        %4199 = vmatpush1.msra.mxu0 %v2384
        %4200 = vmatprep.subr.mxu0 %v2393
        %4201 = vmatpush1.msra.mxu0 %v2392
        %4202 = vmatprep.subr.mxu0 %v2401
        %4203 = vmatpush1.msra.mxu0 %v2400
        %4204 = vmatprep.subr.mxu0 %v2409
        %4205 = vmatpush1.msra.mxu0 %v2408
        %4206 = vmatprep.subr.mxu0 %v2417
        %4207 = vmatpush1.msra.mxu0 %v2416
        %4208 = vmatprep.subr.mxu0 %v2425
        %4209 = vmatpush1.msra.mxu0 %v2424
        %4210 = vmatprep.subr.mxu0 %v2433
        %4211 = vmatpush1.msra.mxu0 %v2432
        %4212 = vmatprep.subr.mxu0 %v2441
        %4213 = vmatpush1.msra.mxu0 %v2440
        %4214 = vmatprep.subr.mxu0 %v2449
        %4215 = vmatpush1.msra.mxu0 %v2448
        %4216 = vmatprep.subr.mxu0 %v2457
        %4217 = vmatpush1.msra.mxu0 %v2456
        %4218 = vmatprep.subr.mxu0 %v2465
        %4219 = vmatpush1.msra.mxu0 %v2464
        %4220 = vmatprep.subr.mxu0 %v2473
        %4221 = vmatpush1.msra.mxu0 %v2472
        %4222 = vmatprep.subr.mxu0 %v2481
        %4223 = vmatpush1.msra.mxu0 %v2480
        %4224 = vmatprep.subr.mxu0 %v2489
        %4225 = vmatpush1.msra.mxu0 %v2488
        %4226 = vmatprep.subr.mxu0 %v2497
        %4227 = vmatpush1.msra.mxu0 %v2496
        %4228 = vmatprep.mubr.f32.mxu0 %v1215
        %4229 = vmatmul.mubr.f32.gmra.mrb[0].mxu0 %v1214
        %v4230 = vpop.f32.mrb[0].mxu0
        %v4231 = vadd.f32 %v4160, %v4230
        %v4232 = vpop.f32.mrb[0].mxu0
        %v4233 = vadd.f32 %v4162, %v4232
        %4234 = vdwg.mxu0
        %4235 = vmatprep.subr.mxu0 %v2505
        %4236 = vmatpush1.msra.mxu0 %v2504
        %4237 = vmatprep.subr.mxu0 %v2513
        %4238 = vmatpush1.msra.mxu0 %v2512
        %4239 = vmatprep.subr.mxu0 %v2521
        %4240 = vmatpush1.msra.mxu0 %v2520
        %4241 = vmatprep.subr.mxu0 %v2529
        %4242 = vmatpush1.msra.mxu0 %v2528
        %4243 = vmatprep.subr.mxu0 %v2537
        %4244 = vmatpush1.msra.mxu0 %v2536
        %4245 = vmatprep.subr.mxu0 %v2545
        %4246 = vmatpush1.msra.mxu0 %v2544
        %4247 = vmatprep.subr.mxu0 %v2553
        %4248 = vmatpush1.msra.mxu0 %v2552
        %4249 = vmatprep.subr.mxu0 %v2561
        %4250 = vmatpush1.msra.mxu0 %v2560
        %4251 = vmatprep.subr.mxu0 %v2569
        %4252 = vmatpush1.msra.mxu0 %v2568
        %4253 = vmatprep.subr.mxu0 %v2577
        %4254 = vmatpush1.msra.mxu0 %v2576
        %4255 = vmatprep.subr.mxu0 %v2585
        %4256 = vmatpush1.msra.mxu0 %v2584
        %4257 = vmatprep.subr.mxu0 %v2593
        %4258 = vmatpush1.msra.mxu0 %v2592
        %4259 = vmatprep.subr.mxu0 %v2601
        %4260 = vmatpush1.msra.mxu0 %v2600
        %4261 = vmatprep.subr.mxu0 %v2609
        %4262 = vmatpush1.msra.mxu0 %v2608
        %4263 = vmatprep.subr.mxu0 %v2617
        %4264 = vmatpush1.msra.mxu0 %v2616
        %4265 = vmatprep.subr.mxu0 %v2625
        %4266 = vmatpush1.msra.mxu0 %v2624
        %4267 = vmatprep.subr.mxu0 %v2633
        %4268 = vmatpush1.msra.mxu0 %v2632
        %4269 = vmatprep.subr.mxu0 %v2641
        %4270 = vmatpush1.msra.mxu0 %v2640
        %4271 = vmatprep.subr.mxu0 %v2649
        %4272 = vmatpush1.msra.mxu0 %v2648
        %4273 = vmatprep.subr.mxu0 %v2657
        %4274 = vmatpush1.msra.mxu0 %v2656
        %4275 = vmatprep.subr.mxu0 %v2665
        %4276 = vmatpush1.msra.mxu0 %v2664
        %4277 = vmatprep.subr.mxu0 %v2673
        %4278 = vmatpush1.msra.mxu0 %v2672
        %4279 = vmatprep.subr.mxu0 %v2681
        %4280 = vmatpush1.msra.mxu0 %v2680
        %4281 = vmatprep.subr.mxu0 %v2689
        %4282 = vmatpush1.msra.mxu0 %v2688
        %4283 = vmatprep.subr.mxu0 %v2697
        %4284 = vmatpush1.msra.mxu0 %v2696
        %4285 = vmatprep.subr.mxu0 %v2705
        %4286 = vmatpush1.msra.mxu0 %v2704
        %4287 = vmatprep.subr.mxu0 %v2713
        %4288 = vmatpush1.msra.mxu0 %v2712
        %4289 = vmatprep.subr.mxu0 %v2721
        %4290 = vmatpush1.msra.mxu0 %v2720
        %4291 = vmatprep.subr.mxu0 %v2729
        %4292 = vmatpush1.msra.mxu0 %v2728
        %4293 = vmatprep.subr.mxu0 %v2737
        %4294 = vmatpush1.msra.mxu0 %v2736
        %4295 = vmatprep.subr.mxu0 %v2745
        %4296 = vmatpush1.msra.mxu0 %v2744
        %4297 = vmatprep.subr.mxu0 %v2753
        %4298 = vmatpush1.msra.mxu0 %v2752
        %4299 = vmatprep.mubr.f32.mxu0 %v1217
        %4300 = vmatmul.mubr.f32.gmra.mrb[0].mxu0 %v1216
        %v4301 = vpop.f32.mrb[0].mxu0
        %v4302 = vadd.f32 %v4231, %v4301
        %v4303 = vpop.f32.mrb[0].mxu0
        %v4304 = vadd.f32 %v4233, %v4303
        %4305 = vdwg.mxu0
        %4306 = vmatprep.subr.mxu0 %v2761
        %4307 = vmatpush1.msra.mxu0 %v2760
        %4308 = vmatprep.subr.mxu0 %v2769
        %4309 = vmatpush1.msra.mxu0 %v2768
        %4310 = vmatprep.subr.mxu0 %v2777
        %4311 = vmatpush1.msra.mxu0 %v2776
        %4312 = vmatprep.subr.mxu0 %v2785
        %4313 = vmatpush1.msra.mxu0 %v2784
        %4314 = vmatprep.subr.mxu0 %v2793
        %4315 = vmatpush1.msra.mxu0 %v2792
        %4316 = vmatprep.subr.mxu0 %v2801
        %4317 = vmatpush1.msra.mxu0 %v2800
        %4318 = vmatprep.subr.mxu0 %v2809
        %4319 = vmatpush1.msra.mxu0 %v2808
        %4320 = vmatprep.subr.mxu0 %v2817
        %4321 = vmatpush1.msra.mxu0 %v2816
        %4322 = vmatprep.subr.mxu0 %v2825
        %4323 = vmatpush1.msra.mxu0 %v2824
        %4324 = vmatprep.subr.mxu0 %v2833
        %4325 = vmatpush1.msra.mxu0 %v2832
        %4326 = vmatprep.subr.mxu0 %v2841
        %4327 = vmatpush1.msra.mxu0 %v2840
        %4328 = vmatprep.subr.mxu0 %v2849
        %4329 = vmatpush1.msra.mxu0 %v2848
        %4330 = vmatprep.subr.mxu0 %v2857
        %4331 = vmatpush1.msra.mxu0 %v2856
        %4332 = vmatprep.subr.mxu0 %v2865
        %4333 = vmatpush1.msra.mxu0 %v2864
        %4334 = vmatprep.subr.mxu0 %v2873
        %4335 = vmatpush1.msra.mxu0 %v2872
        %4336 = vmatprep.subr.mxu0 %v2881
        %4337 = vmatpush1.msra.mxu0 %v2880
        %4338 = vmatprep.subr.mxu0 %v2889
        %4339 = vmatpush1.msra.mxu0 %v2888
        %4340 = vmatprep.subr.mxu0 %v2897
        %4341 = vmatpush1.msra.mxu0 %v2896
        %4342 = vmatprep.subr.mxu0 %v2905
        %4343 = vmatpush1.msra.mxu0 %v2904
        %4344 = vmatprep.subr.mxu0 %v2913
        %4345 = vmatpush1.msra.mxu0 %v2912
        %4346 = vmatprep.subr.mxu0 %v2921
        %4347 = vmatpush1.msra.mxu0 %v2920
        %4348 = vmatprep.subr.mxu0 %v2929
        %4349 = vmatpush1.msra.mxu0 %v2928
        %4350 = vmatprep.subr.mxu0 %v2937
        %4351 = vmatpush1.msra.mxu0 %v2936
        %4352 = vmatprep.subr.mxu0 %v2945
        %4353 = vmatpush1.msra.mxu0 %v2944
        %4354 = vmatprep.subr.mxu0 %v2953
        %4355 = vmatpush1.msra.mxu0 %v2952
        %4356 = vmatprep.subr.mxu0 %v2961
        %4357 = vmatpush1.msra.mxu0 %v2960
        %4358 = vmatprep.subr.mxu0 %v2969
        %4359 = vmatpush1.msra.mxu0 %v2968
        %4360 = vmatprep.subr.mxu0 %v2977
        %4361 = vmatpush1.msra.mxu0 %v2976
        %4362 = vmatprep.subr.mxu0 %v2985
        %4363 = vmatpush1.msra.mxu0 %v2984
        %4364 = vmatprep.subr.mxu0 %v2993
        %4365 = vmatpush1.msra.mxu0 %v2992
        %4366 = vmatprep.subr.mxu0 %v3001
        %4367 = vmatpush1.msra.mxu0 %v3000
        %4368 = vmatprep.subr.mxu0 %v3009
        %4369 = vmatpush1.msra.mxu0 %v3008
        %4370 = vmatprep.mubr.f32.mxu0 %v1219
        %4371 = vmatmul.mubr.f32.gmra.mrb[0].mxu0 %v1218
        %v4372 = vpop.f32.mrb[0].mxu0
        %v4373 = vadd.f32 %v4302, %v4372
        %v4374 = vpop.f32.mrb[0].mxu0
        %v4375 = vadd.f32 %v4304, %v4374
        %4376 = vdwg.mxu0
        %4377 = vmatprep.subr.mxu0 %v3017
        %4378 = vmatpush1.msra.mxu0 %v3016
        %4379 = vmatprep.subr.mxu0 %v3025
        %4380 = vmatpush1.msra.mxu0 %v3024
        %4381 = vmatprep.subr.mxu0 %v3033
        %4382 = vmatpush1.msra.mxu0 %v3032
        %4383 = vmatprep.subr.mxu0 %v3041
        %4384 = vmatpush1.msra.mxu0 %v3040
        %4385 = vmatprep.subr.mxu0 %v3049
        %4386 = vmatpush1.msra.mxu0 %v3048
        %4387 = vmatprep.subr.mxu0 %v3057
        %4388 = vmatpush1.msra.mxu0 %v3056
        %4389 = vmatprep.subr.mxu0 %v3065
        %4390 = vmatpush1.msra.mxu0 %v3064
        %4391 = vmatprep.subr.mxu0 %v3073
        %4392 = vmatpush1.msra.mxu0 %v3072
        %4393 = vmatprep.subr.mxu0 %v3081
        %4394 = vmatpush1.msra.mxu0 %v3080
        %4395 = vmatprep.subr.mxu0 %v3089
        %4396 = vmatpush1.msra.mxu0 %v3088
        %4397 = vmatprep.subr.mxu0 %v3097
        %4398 = vmatpush1.msra.mxu0 %v3096
        %4399 = vmatprep.subr.mxu0 %v3105
        %4400 = vmatpush1.msra.mxu0 %v3104
        %4401 = vmatprep.subr.mxu0 %v3113
        %4402 = vmatpush1.msra.mxu0 %v3112
        %4403 = vmatprep.subr.mxu0 %v3121
        %4404 = vmatpush1.msra.mxu0 %v3120
        %4405 = vmatprep.subr.mxu0 %v3129
        %4406 = vmatpush1.msra.mxu0 %v3128
        %4407 = vmatprep.subr.mxu0 %v3137
        %4408 = vmatpush1.msra.mxu0 %v3136
        %4409 = vmatprep.subr.mxu0 %v3145
        %4410 = vmatpush1.msra.mxu0 %v3144
        %4411 = vmatprep.subr.mxu0 %v3153
        %4412 = vmatpush1.msra.mxu0 %v3152
        %4413 = vmatprep.subr.mxu0 %v3161
        %4414 = vmatpush1.msra.mxu0 %v3160
        %4415 = vmatprep.subr.mxu0 %v3169
        %4416 = vmatpush1.msra.mxu0 %v3168
        %4417 = vmatprep.subr.mxu0 %v3177
        %4418 = vmatpush1.msra.mxu0 %v3176
        %4419 = vmatprep.subr.mxu0 %v3185
        %4420 = vmatpush1.msra.mxu0 %v3184
        %4421 = vmatprep.subr.mxu0 %v3193
        %4422 = vmatpush1.msra.mxu0 %v3192
        %4423 = vmatprep.subr.mxu0 %v3201
        %4424 = vmatpush1.msra.mxu0 %v3200
        %4425 = vmatprep.subr.mxu0 %v3209
        %4426 = vmatpush1.msra.mxu0 %v3208
        %4427 = vmatprep.subr.mxu0 %v3217
        %4428 = vmatpush1.msra.mxu0 %v3216
        %4429 = vmatprep.subr.mxu0 %v3225
        %4430 = vmatpush1.msra.mxu0 %v3224
        %4431 = vmatprep.subr.mxu0 %v3233
        %4432 = vmatpush1.msra.mxu0 %v3232
        %4433 = vmatprep.subr.mxu0 %v3241
        %4434 = vmatpush1.msra.mxu0 %v3240
        %4435 = vmatprep.subr.mxu0 %v3249
        %4436 = vmatpush1.msra.mxu0 %v3248
        %4437 = vmatprep.subr.mxu0 %v3257
        %4438 = vmatpush1.msra.mxu0 %v3256
        %4439 = vmatprep.subr.mxu0 %v3265
        %4440 = vmatpush1.msra.mxu0 %v3264
        %4441 = vmatprep.mubr.f32.mxu0 %v1221
        %4442 = vmatmul.mubr.f32.gmra.mrb[0].mxu0 %v1220
        %v4443 = vpop.f32.mrb[0].mxu0
        %v4444 = vadd.f32 %v4373, %v4443
        %v4445 = vpop.f32.mrb[0].mxu0
        %v4446 = vadd.f32 %v4375, %v4445
        %4447 = vdwg.mxu0
        %4448 = vmatprep.subr.mxu0 %v1227
        %4449 = vmatpush1.msra.mxu0 %v1226
        %4450 = vmatprep.subr.mxu0 %v1235
        %4451 = vmatpush1.msra.mxu0 %v1234
        %4452 = vmatprep.subr.mxu0 %v1243
        %4453 = vmatpush1.msra.mxu0 %v1242
        %4454 = vmatprep.subr.mxu0 %v1251
        %4455 = vmatpush1.msra.mxu0 %v1250
        %4456 = vmatprep.subr.mxu0 %v1259
        %4457 = vmatpush1.msra.mxu0 %v1258
        %4458 = vmatprep.subr.mxu0 %v1267
        %4459 = vmatpush1.msra.mxu0 %v1266
        %4460 = vmatprep.subr.mxu0 %v1275
        %4461 = vmatpush1.msra.mxu0 %v1274
        %4462 = vmatprep.subr.mxu0 %v1283
        %4463 = vmatpush1.msra.mxu0 %v1282
        %4464 = vmatprep.subr.mxu0 %v1291
        %4465 = vmatpush1.msra.mxu0 %v1290
        %4466 = vmatprep.subr.mxu0 %v1299
        %4467 = vmatpush1.msra.mxu0 %v1298
        %4468 = vmatprep.subr.mxu0 %v1307
        %4469 = vmatpush1.msra.mxu0 %v1306
        %4470 = vmatprep.subr.mxu0 %v1315
        %4471 = vmatpush1.msra.mxu0 %v1314
        %4472 = vmatprep.subr.mxu0 %v1323
        %4473 = vmatpush1.msra.mxu0 %v1322
        %4474 = vmatprep.subr.mxu0 %v1331
        %4475 = vmatpush1.msra.mxu0 %v1330
        %4476 = vmatprep.subr.mxu0 %v1339
        %4477 = vmatpush1.msra.mxu0 %v1338
        %4478 = vmatprep.subr.mxu0 %v1347
        %4479 = vmatpush1.msra.mxu0 %v1346
        %4480 = vmatprep.subr.mxu0 %v1355
        %4481 = vmatpush1.msra.mxu0 %v1354
        %4482 = vmatprep.subr.mxu0 %v1363
        %4483 = vmatpush1.msra.mxu0 %v1362
        %4484 = vmatprep.subr.mxu0 %v1371
        %4485 = vmatpush1.msra.mxu0 %v1370
        %4486 = vmatprep.subr.mxu0 %v1379
        %4487 = vmatpush1.msra.mxu0 %v1378
        %4488 = vmatprep.subr.mxu0 %v1387
        %4489 = vmatpush1.msra.mxu0 %v1386
        %4490 = vmatprep.subr.mxu0 %v1395
        %4491 = vmatpush1.msra.mxu0 %v1394
        %4492 = vmatprep.subr.mxu0 %v1403
        %4493 = vmatpush1.msra.mxu0 %v1402
        %4494 = vmatprep.subr.mxu0 %v1411
        %4495 = vmatpush1.msra.mxu0 %v1410
        %4496 = vmatprep.subr.mxu0 %v1419
        %4497 = vmatpush1.msra.mxu0 %v1418
        %4498 = vmatprep.subr.mxu0 %v1427
        %4499 = vmatpush1.msra.mxu0 %v1426
        %4500 = vmatprep.subr.mxu0 %v1435
        %4501 = vmatpush1.msra.mxu0 %v1434
        %4502 = vmatprep.subr.mxu0 %v1443
        %4503 = vmatpush1.msra.mxu0 %v1442
        %4504 = vmatprep.subr.mxu0 %v1451
        %4505 = vmatpush1.msra.mxu0 %v1450
        %4506 = vmatprep.subr.mxu0 %v1459
        %4507 = vmatpush1.msra.mxu0 %v1458
        %4508 = vmatprep.subr.mxu0 %v1467
        %4509 = vmatpush1.msra.mxu0 %v1466
        %4510 = vmatprep.subr.mxu0 %v1475
        %4511 = vmatpush1.msra.mxu0 %v1474
        %4512 = vmatprep.mubr.f32.mxu0 %v1207
        %4513 = vmatmul.mubr.f32.gmra.mrb[0].mxu0 %v1206
        %v4514 = vpop.f32.mrb[0].mxu0
        %v4515 = vadd.f32 %v3291, %v4514
        %v4516 = vpop.f32.mrb[0].mxu0
        %v4517 = vadd.f32 %v3295, %v4516
        %4518 = vdwg.mxu0
        %4519 = vmatprep.subr.mxu0 %v1483
        %4520 = vmatpush1.msra.mxu0 %v1482
        %4521 = vmatprep.subr.mxu0 %v1491
        %4522 = vmatpush1.msra.mxu0 %v1490
        %4523 = vmatprep.subr.mxu0 %v1499
        %4524 = vmatpush1.msra.mxu0 %v1498
        %4525 = vmatprep.subr.mxu0 %v1507
        %4526 = vmatpush1.msra.mxu0 %v1506
        %4527 = vmatprep.subr.mxu0 %v1515
        %4528 = vmatpush1.msra.mxu0 %v1514
        %4529 = vmatprep.subr.mxu0 %v1523
        %4530 = vmatpush1.msra.mxu0 %v1522
        %4531 = vmatprep.subr.mxu0 %v1531
        %4532 = vmatpush1.msra.mxu0 %v1530
        %4533 = vmatprep.subr.mxu0 %v1539
        %4534 = vmatpush1.msra.mxu0 %v1538
        %4535 = vmatprep.subr.mxu0 %v1547
        %4536 = vmatpush1.msra.mxu0 %v1546
        %4537 = vmatprep.subr.mxu0 %v1555
        %4538 = vmatpush1.msra.mxu0 %v1554
        %4539 = vmatprep.subr.mxu0 %v1563
        %4540 = vmatpush1.msra.mxu0 %v1562
        %4541 = vmatprep.subr.mxu0 %v1571
        %4542 = vmatpush1.msra.mxu0 %v1570
        %4543 = vmatprep.subr.mxu0 %v1579
        %4544 = vmatpush1.msra.mxu0 %v1578
        %4545 = vmatprep.subr.mxu0 %v1587
        %4546 = vmatpush1.msra.mxu0 %v1586
        %4547 = vmatprep.subr.mxu0 %v1595
        %4548 = vmatpush1.msra.mxu0 %v1594
        %4549 = vmatprep.subr.mxu0 %v1603
        %4550 = vmatpush1.msra.mxu0 %v1602
        %4551 = vmatprep.subr.mxu0 %v1611
        %4552 = vmatpush1.msra.mxu0 %v1610
        %4553 = vmatprep.subr.mxu0 %v1619
        %4554 = vmatpush1.msra.mxu0 %v1618
        %4555 = vmatprep.subr.mxu0 %v1627
        %4556 = vmatpush1.msra.mxu0 %v1626
        %4557 = vmatprep.subr.mxu0 %v1635
        %4558 = vmatpush1.msra.mxu0 %v1634
        %4559 = vmatprep.subr.mxu0 %v1643
        %4560 = vmatpush1.msra.mxu0 %v1642
        %4561 = vmatprep.subr.mxu0 %v1651
        %4562 = vmatpush1.msra.mxu0 %v1650
        %4563 = vmatprep.subr.mxu0 %v1659
        %4564 = vmatpush1.msra.mxu0 %v1658
        %4565 = vmatprep.subr.mxu0 %v1667
        %4566 = vmatpush1.msra.mxu0 %v1666
        %4567 = vmatprep.subr.mxu0 %v1675
        %4568 = vmatpush1.msra.mxu0 %v1674
        %4569 = vmatprep.subr.mxu0 %v1683
        %4570 = vmatpush1.msra.mxu0 %v1682
        %4571 = vmatprep.subr.mxu0 %v1691
        %4572 = vmatpush1.msra.mxu0 %v1690
        %4573 = vmatprep.subr.mxu0 %v1699
        %4574 = vmatpush1.msra.mxu0 %v1698
        %4575 = vmatprep.subr.mxu0 %v1707
        %4576 = vmatpush1.msra.mxu0 %v1706
        %4577 = vmatprep.subr.mxu0 %v1715
        %4578 = vmatpush1.msra.mxu0 %v1714
        %4579 = vmatprep.subr.mxu0 %v1723
        %4580 = vmatpush1.msra.mxu0 %v1722
        %4581 = vmatprep.subr.mxu0 %v1731
        %4582 = vmatpush1.msra.mxu0 %v1730
        %4583 = vmatprep.mubr.f32.mxu0 %v1209
        %4584 = vmatmul.mubr.f32.gmra.mrb[0].mxu0 %v1208
        %v4585 = vpop.f32.mrb[0].mxu0
        %v4586 = vadd.f32 %v4515, %v4585
        %v4587 = vpop.f32.mrb[0].mxu0
        %v4588 = vadd.f32 %v4517, %v4587
        %4589 = vdwg.mxu0
        %4590 = vmatprep.subr.mxu0 %v1739
        %4591 = vmatpush1.msra.mxu0 %v1738
        %4592 = vmatprep.subr.mxu0 %v1747
        %4593 = vmatpush1.msra.mxu0 %v1746
        %4594 = vmatprep.subr.mxu0 %v1755
        %4595 = vmatpush1.msra.mxu0 %v1754
        %4596 = vmatprep.subr.mxu0 %v1763
        %4597 = vmatpush1.msra.mxu0 %v1762
        %4598 = vmatprep.subr.mxu0 %v1771
        %4599 = vmatpush1.msra.mxu0 %v1770
        %4600 = vmatprep.subr.mxu0 %v1779
        %4601 = vmatpush1.msra.mxu0 %v1778
        %4602 = vmatprep.subr.mxu0 %v1787
        %4603 = vmatpush1.msra.mxu0 %v1786
        %4604 = vmatprep.subr.mxu0 %v1795
        %4605 = vmatpush1.msra.mxu0 %v1794
        %4606 = vmatprep.subr.mxu0 %v1803
        %4607 = vmatpush1.msra.mxu0 %v1802
        %4608 = vmatprep.subr.mxu0 %v1811
        %4609 = vmatpush1.msra.mxu0 %v1810
        %4610 = vmatprep.subr.mxu0 %v1819
        %4611 = vmatpush1.msra.mxu0 %v1818
        %4612 = vmatprep.subr.mxu0 %v1827
        %4613 = vmatpush1.msra.mxu0 %v1826
        %4614 = vmatprep.subr.mxu0 %v1835
        %4615 = vmatpush1.msra.mxu0 %v1834
        %4616 = vmatprep.subr.mxu0 %v1843
        %4617 = vmatpush1.msra.mxu0 %v1842
        %4618 = vmatprep.subr.mxu0 %v1851
        %4619 = vmatpush1.msra.mxu0 %v1850
        %4620 = vmatprep.subr.mxu0 %v1859
        %4621 = vmatpush1.msra.mxu0 %v1858
        %4622 = vmatprep.subr.mxu0 %v1867
        %4623 = vmatpush1.msra.mxu0 %v1866
        %4624 = vmatprep.subr.mxu0 %v1875
        %4625 = vmatpush1.msra.mxu0 %v1874
        %4626 = vmatprep.subr.mxu0 %v1883
        %4627 = vmatpush1.msra.mxu0 %v1882
        %4628 = vmatprep.subr.mxu0 %v1891
        %4629 = vmatpush1.msra.mxu0 %v1890
        %4630 = vmatprep.subr.mxu0 %v1899
        %4631 = vmatpush1.msra.mxu0 %v1898
        %4632 = vmatprep.subr.mxu0 %v1907
        %4633 = vmatpush1.msra.mxu0 %v1906
        %4634 = vmatprep.subr.mxu0 %v1915
        %4635 = vmatpush1.msra.mxu0 %v1914
        %4636 = vmatprep.subr.mxu0 %v1923
        %4637 = vmatpush1.msra.mxu0 %v1922
        %4638 = vmatprep.subr.mxu0 %v1931
        %4639 = vmatpush1.msra.mxu0 %v1930
        %4640 = vmatprep.subr.mxu0 %v1939
        %4641 = vmatpush1.msra.mxu0 %v1938
        %4642 = vmatprep.subr.mxu0 %v1947
        %4643 = vmatpush1.msra.mxu0 %v1946
        %4644 = vmatprep.subr.mxu0 %v1955
        %4645 = vmatpush1.msra.mxu0 %v1954
        %4646 = vmatprep.subr.mxu0 %v1963
        %4647 = vmatpush1.msra.mxu0 %v1962
        %4648 = vmatprep.subr.mxu0 %v1971
        %4649 = vmatpush1.msra.mxu0 %v1970
        %4650 = vmatprep.subr.mxu0 %v1979
        %4651 = vmatpush1.msra.mxu0 %v1978
        %4652 = vmatprep.subr.mxu0 %v1987
        %4653 = vmatpush1.msra.mxu0 %v1986
        %4654 = vmatprep.mubr.f32.mxu0 %v1211
        %4655 = vmatmul.mubr.f32.gmra.mrb[0].mxu0 %v1210
        %v4656 = vpop.f32.mrb[0].mxu0
        %v4657 = vadd.f32 %v4586, %v4656
        %v4658 = vpop.f32.mrb[0].mxu0
        %v4659 = vadd.f32 %v4588, %v4658
        %4660 = vdwg.mxu0
        %4661 = vmatprep.subr.mxu0 %v1995
        %4662 = vmatpush1.msra.mxu0 %v1994
        %4663 = vmatprep.subr.mxu0 %v2003
        %4664 = vmatpush1.msra.mxu0 %v2002
        %4665 = vmatprep.subr.mxu0 %v2011
        %4666 = vmatpush1.msra.mxu0 %v2010
        %4667 = vmatprep.subr.mxu0 %v2019
        %4668 = vmatpush1.msra.mxu0 %v2018
        %4669 = vmatprep.subr.mxu0 %v2027
        %4670 = vmatpush1.msra.mxu0 %v2026
        %4671 = vmatprep.subr.mxu0 %v2035
        %4672 = vmatpush1.msra.mxu0 %v2034
        %4673 = vmatprep.subr.mxu0 %v2043
        %4674 = vmatpush1.msra.mxu0 %v2042
        %4675 = vmatprep.subr.mxu0 %v2051
        %4676 = vmatpush1.msra.mxu0 %v2050
        %4677 = vmatprep.subr.mxu0 %v2059
        %4678 = vmatpush1.msra.mxu0 %v2058
        %4679 = vmatprep.subr.mxu0 %v2067
        %4680 = vmatpush1.msra.mxu0 %v2066
        %4681 = vmatprep.subr.mxu0 %v2075
        %4682 = vmatpush1.msra.mxu0 %v2074
        %4683 = vmatprep.subr.mxu0 %v2083
        %4684 = vmatpush1.msra.mxu0 %v2082
        %4685 = vmatprep.subr.mxu0 %v2091
        %4686 = vmatpush1.msra.mxu0 %v2090
        %4687 = vmatprep.subr.mxu0 %v2099
        %4688 = vmatpush1.msra.mxu0 %v2098
        %4689 = vmatprep.subr.mxu0 %v2107
        %4690 = vmatpush1.msra.mxu0 %v2106
        %4691 = vmatprep.subr.mxu0 %v2115
        %4692 = vmatpush1.msra.mxu0 %v2114
        %4693 = vmatprep.subr.mxu0 %v2123
        %4694 = vmatpush1.msra.mxu0 %v2122
        %4695 = vmatprep.subr.mxu0 %v2131
        %4696 = vmatpush1.msra.mxu0 %v2130
        %4697 = vmatprep.subr.mxu0 %v2139
        %4698 = vmatpush1.msra.mxu0 %v2138
        %4699 = vmatprep.subr.mxu0 %v2147
        %4700 = vmatpush1.msra.mxu0 %v2146
        %4701 = vmatprep.subr.mxu0 %v2155
        %4702 = vmatpush1.msra.mxu0 %v2154
        %4703 = vmatprep.subr.mxu0 %v2163
        %4704 = vmatpush1.msra.mxu0 %v2162
        %4705 = vmatprep.subr.mxu0 %v2171
        %4706 = vmatpush1.msra.mxu0 %v2170
        %4707 = vmatprep.subr.mxu0 %v2179
        %4708 = vmatpush1.msra.mxu0 %v2178
        %4709 = vmatprep.subr.mxu0 %v2187
        %4710 = vmatpush1.msra.mxu0 %v2186
        %4711 = vmatprep.subr.mxu0 %v2195
        %4712 = vmatpush1.msra.mxu0 %v2194
        %4713 = vmatprep.subr.mxu0 %v2203
        %4714 = vmatpush1.msra.mxu0 %v2202
        %4715 = vmatprep.subr.mxu0 %v2211
        %4716 = vmatpush1.msra.mxu0 %v2210
        %4717 = vmatprep.subr.mxu0 %v2219
        %4718 = vmatpush1.msra.mxu0 %v2218
        %4719 = vmatprep.subr.mxu0 %v2227
        %4720 = vmatpush1.msra.mxu0 %v2226
        %4721 = vmatprep.subr.mxu0 %v2235
        %4722 = vmatpush1.msra.mxu0 %v2234
        %4723 = vmatprep.subr.mxu0 %v2243
        %4724 = vmatpush1.msra.mxu0 %v2242
        %4725 = vmatprep.mubr.f32.mxu0 %v1213
        %4726 = vmatmul.mubr.f32.gmra.mrb[0].mxu0 %v1212
        %v4727 = vpop.f32.mrb[0].mxu0
        %v4728 = vadd.f32 %v4657, %v4727
        %v4729 = vpop.f32.mrb[0].mxu0
        %v4730 = vadd.f32 %v4659, %v4729
        %4731 = vdwg.mxu0
        %4732 = vmatprep.subr.mxu0 %v2251
        %4733 = vmatpush1.msra.mxu0 %v2250
        %4734 = vmatprep.subr.mxu0 %v2259
        %4735 = vmatpush1.msra.mxu0 %v2258
        %4736 = vmatprep.subr.mxu0 %v2267
        %4737 = vmatpush1.msra.mxu0 %v2266
        %4738 = vmatprep.subr.mxu0 %v2275
        %4739 = vmatpush1.msra.mxu0 %v2274
        %4740 = vmatprep.subr.mxu0 %v2283
        %4741 = vmatpush1.msra.mxu0 %v2282
        %4742 = vmatprep.subr.mxu0 %v2291
        %4743 = vmatpush1.msra.mxu0 %v2290
        %4744 = vmatprep.subr.mxu0 %v2299
        %4745 = vmatpush1.msra.mxu0 %v2298
        %4746 = vmatprep.subr.mxu0 %v2307
        %4747 = vmatpush1.msra.mxu0 %v2306
        %4748 = vmatprep.subr.mxu0 %v2315
        %4749 = vmatpush1.msra.mxu0 %v2314
        %4750 = vmatprep.subr.mxu0 %v2323
        %4751 = vmatpush1.msra.mxu0 %v2322
        %4752 = vmatprep.subr.mxu0 %v2331
        %4753 = vmatpush1.msra.mxu0 %v2330
        %4754 = vmatprep.subr.mxu0 %v2339
        %4755 = vmatpush1.msra.mxu0 %v2338
        %4756 = vmatprep.subr.mxu0 %v2347
        %4757 = vmatpush1.msra.mxu0 %v2346
        %4758 = vmatprep.subr.mxu0 %v2355
        %4759 = vmatpush1.msra.mxu0 %v2354
        %4760 = vmatprep.subr.mxu0 %v2363
        %4761 = vmatpush1.msra.mxu0 %v2362
        %4762 = vmatprep.subr.mxu0 %v2371
        %4763 = vmatpush1.msra.mxu0 %v2370
        %4764 = vmatprep.subr.mxu0 %v2379
        %4765 = vmatpush1.msra.mxu0 %v2378
        %4766 = vmatprep.subr.mxu0 %v2387
        %4767 = vmatpush1.msra.mxu0 %v2386
        %4768 = vmatprep.subr.mxu0 %v2395
        %4769 = vmatpush1.msra.mxu0 %v2394
        %4770 = vmatprep.subr.mxu0 %v2403
        %4771 = vmatpush1.msra.mxu0 %v2402
        %4772 = vmatprep.subr.mxu0 %v2411
        %4773 = vmatpush1.msra.mxu0 %v2410
        %4774 = vmatprep.subr.mxu0 %v2419
        %4775 = vmatpush1.msra.mxu0 %v2418
        %4776 = vmatprep.subr.mxu0 %v2427
        %4777 = vmatpush1.msra.mxu0 %v2426
        %4778 = vmatprep.subr.mxu0 %v2435
        %4779 = vmatpush1.msra.mxu0 %v2434
        %4780 = vmatprep.subr.mxu0 %v2443
        %4781 = vmatpush1.msra.mxu0 %v2442
        %4782 = vmatprep.subr.mxu0 %v2451
        %4783 = vmatpush1.msra.mxu0 %v2450
        %4784 = vmatprep.subr.mxu0 %v2459
        %4785 = vmatpush1.msra.mxu0 %v2458
        %4786 = vmatprep.subr.mxu0 %v2467
        %4787 = vmatpush1.msra.mxu0 %v2466
        %4788 = vmatprep.subr.mxu0 %v2475
        %4789 = vmatpush1.msra.mxu0 %v2474
        %4790 = vmatprep.subr.mxu0 %v2483
        %4791 = vmatpush1.msra.mxu0 %v2482
        %4792 = vmatprep.subr.mxu0 %v2491
        %4793 = vmatpush1.msra.mxu0 %v2490
        %4794 = vmatprep.subr.mxu0 %v2499
        %4795 = vmatpush1.msra.mxu0 %v2498
        %4796 = vmatprep.mubr.f32.mxu0 %v1215
        %4797 = vmatmul.mubr.f32.gmra.mrb[0].mxu0 %v1214
        %v4798 = vpop.f32.mrb[0].mxu0
        %v4799 = vadd.f32 %v4728, %v4798
        %v4800 = vpop.f32.mrb[0].mxu0
        %v4801 = vadd.f32 %v4730, %v4800
        %4802 = vdwg.mxu0
        %4803 = vmatprep.subr.mxu0 %v2507
        %4804 = vmatpush1.msra.mxu0 %v2506
        %4805 = vmatprep.subr.mxu0 %v2515
        %4806 = vmatpush1.msra.mxu0 %v2514
        %4807 = vmatprep.subr.mxu0 %v2523
        %4808 = vmatpush1.msra.mxu0 %v2522
        %4809 = vmatprep.subr.mxu0 %v2531
        %4810 = vmatpush1.msra.mxu0 %v2530
        %4811 = vmatprep.subr.mxu0 %v2539
        %4812 = vmatpush1.msra.mxu0 %v2538
        %4813 = vmatprep.subr.mxu0 %v2547
        %4814 = vmatpush1.msra.mxu0 %v2546
        %4815 = vmatprep.subr.mxu0 %v2555
        %4816 = vmatpush1.msra.mxu0 %v2554
        %4817 = vmatprep.subr.mxu0 %v2563
        %4818 = vmatpush1.msra.mxu0 %v2562
        %4819 = vmatprep.subr.mxu0 %v2571
        %4820 = vmatpush1.msra.mxu0 %v2570
        %4821 = vmatprep.subr.mxu0 %v2579
        %4822 = vmatpush1.msra.mxu0 %v2578
        %4823 = vmatprep.subr.mxu0 %v2587
        %4824 = vmatpush1.msra.mxu0 %v2586
        %4825 = vmatprep.subr.mxu0 %v2595
        %4826 = vmatpush1.msra.mxu0 %v2594
        %4827 = vmatprep.subr.mxu0 %v2603
        %4828 = vmatpush1.msra.mxu0 %v2602
        %4829 = vmatprep.subr.mxu0 %v2611
        %4830 = vmatpush1.msra.mxu0 %v2610
        %4831 = vmatprep.subr.mxu0 %v2619
        %4832 = vmatpush1.msra.mxu0 %v2618
        %4833 = vmatprep.subr.mxu0 %v2627
        %4834 = vmatpush1.msra.mxu0 %v2626
        %4835 = vmatprep.subr.mxu0 %v2635
        %4836 = vmatpush1.msra.mxu0 %v2634
        %4837 = vmatprep.subr.mxu0 %v2643
        %4838 = vmatpush1.msra.mxu0 %v2642
        %4839 = vmatprep.subr.mxu0 %v2651
        %4840 = vmatpush1.msra.mxu0 %v2650
        %4841 = vmatprep.subr.mxu0 %v2659
        %4842 = vmatpush1.msra.mxu0 %v2658
        %4843 = vmatprep.subr.mxu0 %v2667
        %4844 = vmatpush1.msra.mxu0 %v2666
        %4845 = vmatprep.subr.mxu0 %v2675
        %4846 = vmatpush1.msra.mxu0 %v2674
        %4847 = vmatprep.subr.mxu0 %v2683
        %4848 = vmatpush1.msra.mxu0 %v2682
        %4849 = vmatprep.subr.mxu0 %v2691
        %4850 = vmatpush1.msra.mxu0 %v2690
        %4851 = vmatprep.subr.mxu0 %v2699
        %4852 = vmatpush1.msra.mxu0 %v2698
        %4853 = vmatprep.subr.mxu0 %v2707
        %4854 = vmatpush1.msra.mxu0 %v2706
        %4855 = vmatprep.subr.mxu0 %v2715
        %4856 = vmatpush1.msra.mxu0 %v2714
        %4857 = vmatprep.subr.mxu0 %v2723
        %4858 = vmatpush1.msra.mxu0 %v2722
        %4859 = vmatprep.subr.mxu0 %v2731
        %4860 = vmatpush1.msra.mxu0 %v2730
        %4861 = vmatprep.subr.mxu0 %v2739
        %4862 = vmatpush1.msra.mxu0 %v2738
        %4863 = vmatprep.subr.mxu0 %v2747
        %4864 = vmatpush1.msra.mxu0 %v2746
        %4865 = vmatprep.subr.mxu0 %v2755
        %4866 = vmatpush1.msra.mxu0 %v2754
        %4867 = vmatprep.mubr.f32.mxu0 %v1217
        %4868 = vmatmul.mubr.f32.gmra.mrb[0].mxu0 %v1216
        %v4869 = vpop.f32.mrb[0].mxu0
        %v4870 = vadd.f32 %v4799, %v4869
        %v4871 = vpop.f32.mrb[0].mxu0
        %v4872 = vadd.f32 %v4801, %v4871
        %4873 = vdwg.mxu0
        %4874 = vmatprep.subr.mxu0 %v2763
        %4875 = vmatpush1.msra.mxu0 %v2762
        %4876 = vmatprep.subr.mxu0 %v2771
        %4877 = vmatpush1.msra.mxu0 %v2770
        %4878 = vmatprep.subr.mxu0 %v2779
        %4879 = vmatpush1.msra.mxu0 %v2778
        %4880 = vmatprep.subr.mxu0 %v2787
        %4881 = vmatpush1.msra.mxu0 %v2786
        %4882 = vmatprep.subr.mxu0 %v2795
        %4883 = vmatpush1.msra.mxu0 %v2794
        %4884 = vmatprep.subr.mxu0 %v2803
        %4885 = vmatpush1.msra.mxu0 %v2802
        %4886 = vmatprep.subr.mxu0 %v2811
        %4887 = vmatpush1.msra.mxu0 %v2810
        %4888 = vmatprep.subr.mxu0 %v2819
        %4889 = vmatpush1.msra.mxu0 %v2818
        %4890 = vmatprep.subr.mxu0 %v2827
        %4891 = vmatpush1.msra.mxu0 %v2826
        %4892 = vmatprep.subr.mxu0 %v2835
        %4893 = vmatpush1.msra.mxu0 %v2834
        %4894 = vmatprep.subr.mxu0 %v2843
        %4895 = vmatpush1.msra.mxu0 %v2842
        %4896 = vmatprep.subr.mxu0 %v2851
        %4897 = vmatpush1.msra.mxu0 %v2850
        %4898 = vmatprep.subr.mxu0 %v2859
        %4899 = vmatpush1.msra.mxu0 %v2858
        %4900 = vmatprep.subr.mxu0 %v2867
        %4901 = vmatpush1.msra.mxu0 %v2866
        %4902 = vmatprep.subr.mxu0 %v2875
        %4903 = vmatpush1.msra.mxu0 %v2874
        %4904 = vmatprep.subr.mxu0 %v2883
        %4905 = vmatpush1.msra.mxu0 %v2882
        %4906 = vmatprep.subr.mxu0 %v2891
        %4907 = vmatpush1.msra.mxu0 %v2890
        %4908 = vmatprep.subr.mxu0 %v2899
        %4909 = vmatpush1.msra.mxu0 %v2898
        %4910 = vmatprep.subr.mxu0 %v2907
        %4911 = vmatpush1.msra.mxu0 %v2906
        %4912 = vmatprep.subr.mxu0 %v2915
        %4913 = vmatpush1.msra.mxu0 %v2914
        %4914 = vmatprep.subr.mxu0 %v2923
        %4915 = vmatpush1.msra.mxu0 %v2922
        %4916 = vmatprep.subr.mxu0 %v2931
        %4917 = vmatpush1.msra.mxu0 %v2930
        %4918 = vmatprep.subr.mxu0 %v2939
        %4919 = vmatpush1.msra.mxu0 %v2938
        %4920 = vmatprep.subr.mxu0 %v2947
        %4921 = vmatpush1.msra.mxu0 %v2946
        %4922 = vmatprep.subr.mxu0 %v2955
        %4923 = vmatpush1.msra.mxu0 %v2954
        %4924 = vmatprep.subr.mxu0 %v2963
        %4925 = vmatpush1.msra.mxu0 %v2962
        %4926 = vmatprep.subr.mxu0 %v2971
        %4927 = vmatpush1.msra.mxu0 %v2970
        %4928 = vmatprep.subr.mxu0 %v2979
        %4929 = vmatpush1.msra.mxu0 %v2978
        %4930 = vmatprep.subr.mxu0 %v2987
        %4931 = vmatpush1.msra.mxu0 %v2986
        %4932 = vmatprep.subr.mxu0 %v2995
        %4933 = vmatpush1.msra.mxu0 %v2994
        %4934 = vmatprep.subr.mxu0 %v3003
        %4935 = vmatpush1.msra.mxu0 %v3002
        %4936 = vmatprep.subr.mxu0 %v3011
        %4937 = vmatpush1.msra.mxu0 %v3010
        %4938 = vmatprep.mubr.f32.mxu0 %v1219
        %4939 = vmatmul.mubr.f32.gmra.mrb[0].mxu0 %v1218
        %v4940 = vpop.f32.mrb[0].mxu0
        %v4941 = vadd.f32 %v4870, %v4940
        %v4942 = vpop.f32.mrb[0].mxu0
        %v4943 = vadd.f32 %v4872, %v4942
        %4944 = vdwg.mxu0
        %4945 = vmatprep.subr.mxu0 %v3019
        %4946 = vmatpush1.msra.mxu0 %v3018
        %4947 = vmatprep.subr.mxu0 %v3027
        %4948 = vmatpush1.msra.mxu0 %v3026
        %4949 = vmatprep.subr.mxu0 %v3035
        %4950 = vmatpush1.msra.mxu0 %v3034
        %4951 = vmatprep.subr.mxu0 %v3043
        %4952 = vmatpush1.msra.mxu0 %v3042
        %4953 = vmatprep.subr.mxu0 %v3051
        %4954 = vmatpush1.msra.mxu0 %v3050
        %4955 = vmatprep.subr.mxu0 %v3059
        %4956 = vmatpush1.msra.mxu0 %v3058
        %4957 = vmatprep.subr.mxu0 %v3067
        %4958 = vmatpush1.msra.mxu0 %v3066
        %4959 = vmatprep.subr.mxu0 %v3075
        %4960 = vmatpush1.msra.mxu0 %v3074
        %4961 = vmatprep.subr.mxu0 %v3083
        %4962 = vmatpush1.msra.mxu0 %v3082
        %4963 = vmatprep.subr.mxu0 %v3091
        %4964 = vmatpush1.msra.mxu0 %v3090
        %4965 = vmatprep.subr.mxu0 %v3099
        %4966 = vmatpush1.msra.mxu0 %v3098
        %4967 = vmatprep.subr.mxu0 %v3107
        %4968 = vmatpush1.msra.mxu0 %v3106
        %4969 = vmatprep.subr.mxu0 %v3115
        %4970 = vmatpush1.msra.mxu0 %v3114
        %4971 = vmatprep.subr.mxu0 %v3123
        %4972 = vmatpush1.msra.mxu0 %v3122
        %4973 = vmatprep.subr.mxu0 %v3131
        %4974 = vmatpush1.msra.mxu0 %v3130
        %4975 = vmatprep.subr.mxu0 %v3139
        %4976 = vmatpush1.msra.mxu0 %v3138
        %4977 = vmatprep.subr.mxu0 %v3147
        %4978 = vmatpush1.msra.mxu0 %v3146
        %4979 = vmatprep.subr.mxu0 %v3155
        %4980 = vmatpush1.msra.mxu0 %v3154
        %4981 = vmatprep.subr.mxu0 %v3163
        %4982 = vmatpush1.msra.mxu0 %v3162
        %4983 = vmatprep.subr.mxu0 %v3171
        %4984 = vmatpush1.msra.mxu0 %v3170
        %4985 = vmatprep.subr.mxu0 %v3179
        %4986 = vmatpush1.msra.mxu0 %v3178
        %4987 = vmatprep.subr.mxu0 %v3187
        %4988 = vmatpush1.msra.mxu0 %v3186
        %4989 = vmatprep.subr.mxu0 %v3195
        %4990 = vmatpush1.msra.mxu0 %v3194
        %4991 = vmatprep.subr.mxu0 %v3203
        %4992 = vmatpush1.msra.mxu0 %v3202
        %4993 = vmatprep.subr.mxu0 %v3211
        %4994 = vmatpush1.msra.mxu0 %v3210
        %4995 = vmatprep.subr.mxu0 %v3219
        %4996 = vmatpush1.msra.mxu0 %v3218
        %4997 = vmatprep.subr.mxu0 %v3227
        %4998 = vmatpush1.msra.mxu0 %v3226
        %4999 = vmatprep.subr.mxu0 %v3235
        %5000 = vmatpush1.msra.mxu0 %v3234
        %5001 = vmatprep.subr.mxu0 %v3243
        %5002 = vmatpush1.msra.mxu0 %v3242
        %5003 = vmatprep.subr.mxu0 %v3251
        %5004 = vmatpush1.msra.mxu0 %v3250
        %5005 = vmatprep.subr.mxu0 %v3259
        %5006 = vmatpush1.msra.mxu0 %v3258
        %5007 = vmatprep.subr.mxu0 %v3267
        %5008 = vmatpush1.msra.mxu0 %v3266
        %5009 = vmatprep.mubr.f32.mxu0 %v1221
        %5010 = vmatmul.mubr.f32.gmra.mrb[0].mxu0 %v1220
        %v5011 = vpop.f32.mrb[0].mxu0
        %v5012 = vadd.f32 %v4941, %v5011
        %v5013 = vpop.f32.mrb[0].mxu0
        %v5014 = vadd.f32 %v4943, %v5013
        %5015 = vdwg.mxu0
        %5016 = vmatprep.subr.mxu0 %v1229
        %5017 = vmatpush1.msra.mxu0 %v1228
        %5018 = vmatprep.subr.mxu0 %v1237
        %5019 = vmatpush1.msra.mxu0 %v1236
        %5020 = vmatprep.subr.mxu0 %v1245
        %5021 = vmatpush1.msra.mxu0 %v1244
        %5022 = vmatprep.subr.mxu0 %v1253
        %5023 = vmatpush1.msra.mxu0 %v1252
        %5024 = vmatprep.subr.mxu0 %v1261
        %5025 = vmatpush1.msra.mxu0 %v1260
        %5026 = vmatprep.subr.mxu0 %v1269
        %5027 = vmatpush1.msra.mxu0 %v1268
        %5028 = vmatprep.subr.mxu0 %v1277
        %5029 = vmatpush1.msra.mxu0 %v1276
        %5030 = vmatprep.subr.mxu0 %v1285
        %5031 = vmatpush1.msra.mxu0 %v1284
        %5032 = vmatprep.subr.mxu0 %v1293
        %5033 = vmatpush1.msra.mxu0 %v1292
        %5034 = vmatprep.subr.mxu0 %v1301
        %5035 = vmatpush1.msra.mxu0 %v1300
        %5036 = vmatprep.subr.mxu0 %v1309
        %5037 = vmatpush1.msra.mxu0 %v1308
        %5038 = vmatprep.subr.mxu0 %v1317
        %5039 = vmatpush1.msra.mxu0 %v1316
        %5040 = vmatprep.subr.mxu0 %v1325
        %5041 = vmatpush1.msra.mxu0 %v1324
        %5042 = vmatprep.subr.mxu0 %v1333
        %5043 = vmatpush1.msra.mxu0 %v1332
        %5044 = vmatprep.subr.mxu0 %v1341
        %5045 = vmatpush1.msra.mxu0 %v1340
        %5046 = vmatprep.subr.mxu0 %v1349
        %5047 = vmatpush1.msra.mxu0 %v1348
        %5048 = vmatprep.subr.mxu0 %v1357
        %5049 = vmatpush1.msra.mxu0 %v1356
        %5050 = vmatprep.subr.mxu0 %v1365
        %5051 = vmatpush1.msra.mxu0 %v1364
        %5052 = vmatprep.subr.mxu0 %v1373
        %5053 = vmatpush1.msra.mxu0 %v1372
        %5054 = vmatprep.subr.mxu0 %v1381
        %5055 = vmatpush1.msra.mxu0 %v1380
        %5056 = vmatprep.subr.mxu0 %v1389
        %5057 = vmatpush1.msra.mxu0 %v1388
        %5058 = vmatprep.subr.mxu0 %v1397
        %5059 = vmatpush1.msra.mxu0 %v1396
        %5060 = vmatprep.subr.mxu0 %v1405
        %5061 = vmatpush1.msra.mxu0 %v1404
        %5062 = vmatprep.subr.mxu0 %v1413
        %5063 = vmatpush1.msra.mxu0 %v1412
        %5064 = vmatprep.subr.mxu0 %v1421
        %5065 = vmatpush1.msra.mxu0 %v1420
        %5066 = vmatprep.subr.mxu0 %v1429
        %5067 = vmatpush1.msra.mxu0 %v1428
        %5068 = vmatprep.subr.mxu0 %v1437
        %5069 = vmatpush1.msra.mxu0 %v1436
        %5070 = vmatprep.subr.mxu0 %v1445
        %5071 = vmatpush1.msra.mxu0 %v1444
        %5072 = vmatprep.subr.mxu0 %v1453
        %5073 = vmatpush1.msra.mxu0 %v1452
        %5074 = vmatprep.subr.mxu0 %v1461
        %5075 = vmatpush1.msra.mxu0 %v1460
        %5076 = vmatprep.subr.mxu0 %v1469
        %5077 = vmatpush1.msra.mxu0 %v1468
        %5078 = vmatprep.subr.mxu0 %v1477
        %5079 = vmatpush1.msra.mxu0 %v1476
        %5080 = vmatprep.mubr.f32.mxu0 %v1207
        %5081 = vmatmul.mubr.f32.gmra.mrb[0].mxu0 %v1206
        %v5082 = vpop.f32.mrb[0].mxu0
        %v5083 = vadd.f32 %v3299, %v5082
        %v5084 = vpop.f32.mrb[0].mxu0
        %v5085 = vadd.f32 %v3303, %v5084
        %5086 = vdwg.mxu0
        %5087 = vmatprep.subr.mxu0 %v1485
        %5088 = vmatpush1.msra.mxu0 %v1484
        %5089 = vmatprep.subr.mxu0 %v1493
        %5090 = vmatpush1.msra.mxu0 %v1492
        %5091 = vmatprep.subr.mxu0 %v1501
        %5092 = vmatpush1.msra.mxu0 %v1500
        %5093 = vmatprep.subr.mxu0 %v1509
        %5094 = vmatpush1.msra.mxu0 %v1508
        %5095 = vmatprep.subr.mxu0 %v1517
        %5096 = vmatpush1.msra.mxu0 %v1516
        %5097 = vmatprep.subr.mxu0 %v1525
        %5098 = vmatpush1.msra.mxu0 %v1524
        %5099 = vmatprep.subr.mxu0 %v1533
        %5100 = vmatpush1.msra.mxu0 %v1532
        %5101 = vmatprep.subr.mxu0 %v1541
        %5102 = vmatpush1.msra.mxu0 %v1540
        %5103 = vmatprep.subr.mxu0 %v1549
        %5104 = vmatpush1.msra.mxu0 %v1548
        %5105 = vmatprep.subr.mxu0 %v1557
        %5106 = vmatpush1.msra.mxu0 %v1556
        %5107 = vmatprep.subr.mxu0 %v1565
        %5108 = vmatpush1.msra.mxu0 %v1564
        %5109 = vmatprep.subr.mxu0 %v1573
        %5110 = vmatpush1.msra.mxu0 %v1572
        %5111 = vmatprep.subr.mxu0 %v1581
        %5112 = vmatpush1.msra.mxu0 %v1580
        %5113 = vmatprep.subr.mxu0 %v1589
        %5114 = vmatpush1.msra.mxu0 %v1588
        %5115 = vmatprep.subr.mxu0 %v1597
        %5116 = vmatpush1.msra.mxu0 %v1596
        %5117 = vmatprep.subr.mxu0 %v1605
        %5118 = vmatpush1.msra.mxu0 %v1604
        %5119 = vmatprep.subr.mxu0 %v1613
        %5120 = vmatpush1.msra.mxu0 %v1612
        %5121 = vmatprep.subr.mxu0 %v1621
        %5122 = vmatpush1.msra.mxu0 %v1620
        %5123 = vmatprep.subr.mxu0 %v1629
        %5124 = vmatpush1.msra.mxu0 %v1628
        %5125 = vmatprep.subr.mxu0 %v1637
        %5126 = vmatpush1.msra.mxu0 %v1636
        %5127 = vmatprep.subr.mxu0 %v1645
        %5128 = vmatpush1.msra.mxu0 %v1644
        %5129 = vmatprep.subr.mxu0 %v1653
        %5130 = vmatpush1.msra.mxu0 %v1652
        %5131 = vmatprep.subr.mxu0 %v1661
        %5132 = vmatpush1.msra.mxu0 %v1660
        %5133 = vmatprep.subr.mxu0 %v1669
        %5134 = vmatpush1.msra.mxu0 %v1668
        %5135 = vmatprep.subr.mxu0 %v1677
        %5136 = vmatpush1.msra.mxu0 %v1676
        %5137 = vmatprep.subr.mxu0 %v1685
        %5138 = vmatpush1.msra.mxu0 %v1684
        %5139 = vmatprep.subr.mxu0 %v1693
        %5140 = vmatpush1.msra.mxu0 %v1692
        %5141 = vmatprep.subr.mxu0 %v1701
        %5142 = vmatpush1.msra.mxu0 %v1700
        %5143 = vmatprep.subr.mxu0 %v1709
        %5144 = vmatpush1.msra.mxu0 %v1708
        %5145 = vmatprep.subr.mxu0 %v1717
        %5146 = vmatpush1.msra.mxu0 %v1716
        %5147 = vmatprep.subr.mxu0 %v1725
        %5148 = vmatpush1.msra.mxu0 %v1724
        %5149 = vmatprep.subr.mxu0 %v1733
        %5150 = vmatpush1.msra.mxu0 %v1732
        %5151 = vmatprep.mubr.f32.mxu0 %v1209
        %5152 = vmatmul.mubr.f32.gmra.mrb[0].mxu0 %v1208
        %v5153 = vpop.f32.mrb[0].mxu0
        %v5154 = vadd.f32 %v5083, %v5153
        %v5155 = vpop.f32.mrb[0].mxu0
        %v5156 = vadd.f32 %v5085, %v5155
        %5157 = vdwg.mxu0
        %5158 = vmatprep.subr.mxu0 %v1741
        %5159 = vmatpush1.msra.mxu0 %v1740
        %5160 = vmatprep.subr.mxu0 %v1749
        %5161 = vmatpush1.msra.mxu0 %v1748
        %5162 = vmatprep.subr.mxu0 %v1757
        %5163 = vmatpush1.msra.mxu0 %v1756
        %5164 = vmatprep.subr.mxu0 %v1765
        %5165 = vmatpush1.msra.mxu0 %v1764
        %5166 = vmatprep.subr.mxu0 %v1773
        %5167 = vmatpush1.msra.mxu0 %v1772
        %5168 = vmatprep.subr.mxu0 %v1781
        %5169 = vmatpush1.msra.mxu0 %v1780
        %5170 = vmatprep.subr.mxu0 %v1789
        %5171 = vmatpush1.msra.mxu0 %v1788
        %5172 = vmatprep.subr.mxu0 %v1797
        %5173 = vmatpush1.msra.mxu0 %v1796
        %5174 = vmatprep.subr.mxu0 %v1805
        %5175 = vmatpush1.msra.mxu0 %v1804
        %5176 = vmatprep.subr.mxu0 %v1813
        %5177 = vmatpush1.msra.mxu0 %v1812
        %5178 = vmatprep.subr.mxu0 %v1821
        %5179 = vmatpush1.msra.mxu0 %v1820
        %5180 = vmatprep.subr.mxu0 %v1829
        %5181 = vmatpush1.msra.mxu0 %v1828
        %5182 = vmatprep.subr.mxu0 %v1837
        %5183 = vmatpush1.msra.mxu0 %v1836
        %5184 = vmatprep.subr.mxu0 %v1845
        %5185 = vmatpush1.msra.mxu0 %v1844
        %5186 = vmatprep.subr.mxu0 %v1853
        %5187 = vmatpush1.msra.mxu0 %v1852
        %5188 = vmatprep.subr.mxu0 %v1861
        %5189 = vmatpush1.msra.mxu0 %v1860
        %5190 = vmatprep.subr.mxu0 %v1869
        %5191 = vmatpush1.msra.mxu0 %v1868
        %5192 = vmatprep.subr.mxu0 %v1877
        %5193 = vmatpush1.msra.mxu0 %v1876
        %5194 = vmatprep.subr.mxu0 %v1885
        %5195 = vmatpush1.msra.mxu0 %v1884
        %5196 = vmatprep.subr.mxu0 %v1893
        %5197 = vmatpush1.msra.mxu0 %v1892
        %5198 = vmatprep.subr.mxu0 %v1901
        %5199 = vmatpush1.msra.mxu0 %v1900
        %5200 = vmatprep.subr.mxu0 %v1909
        %5201 = vmatpush1.msra.mxu0 %v1908
        %5202 = vmatprep.subr.mxu0 %v1917
        %5203 = vmatpush1.msra.mxu0 %v1916
        %5204 = vmatprep.subr.mxu0 %v1925
        %5205 = vmatpush1.msra.mxu0 %v1924
        %5206 = vmatprep.subr.mxu0 %v1933
        %5207 = vmatpush1.msra.mxu0 %v1932
        %5208 = vmatprep.subr.mxu0 %v1941
        %5209 = vmatpush1.msra.mxu0 %v1940
        %5210 = vmatprep.subr.mxu0 %v1949
        %5211 = vmatpush1.msra.mxu0 %v1948
        %5212 = vmatprep.subr.mxu0 %v1957
        %5213 = vmatpush1.msra.mxu0 %v1956
        %5214 = vmatprep.subr.mxu0 %v1965
        %5215 = vmatpush1.msra.mxu0 %v1964
        %5216 = vmatprep.subr.mxu0 %v1973
        %5217 = vmatpush1.msra.mxu0 %v1972
        %5218 = vmatprep.subr.mxu0 %v1981
        %5219 = vmatpush1.msra.mxu0 %v1980
        %5220 = vmatprep.subr.mxu0 %v1989
        %5221 = vmatpush1.msra.mxu0 %v1988
        %5222 = vmatprep.mubr.f32.mxu0 %v1211
        %5223 = vmatmul.mubr.f32.gmra.mrb[0].mxu0 %v1210
        %v5224 = vpop.f32.mrb[0].mxu0
        %v5225 = vadd.f32 %v5154, %v5224
        %v5226 = vpop.f32.mrb[0].mxu0
        %v5227 = vadd.f32 %v5156, %v5226
        %5228 = vdwg.mxu0
        %5229 = vmatprep.subr.mxu0 %v1997
        %5230 = vmatpush1.msra.mxu0 %v1996
        %5231 = vmatprep.subr.mxu0 %v2005
        %5232 = vmatpush1.msra.mxu0 %v2004
        %5233 = vmatprep.subr.mxu0 %v2013
        %5234 = vmatpush1.msra.mxu0 %v2012
        %5235 = vmatprep.subr.mxu0 %v2021
        %5236 = vmatpush1.msra.mxu0 %v2020
        %5237 = vmatprep.subr.mxu0 %v2029
        %5238 = vmatpush1.msra.mxu0 %v2028
        %5239 = vmatprep.subr.mxu0 %v2037
        %5240 = vmatpush1.msra.mxu0 %v2036
        %5241 = vmatprep.subr.mxu0 %v2045
        %5242 = vmatpush1.msra.mxu0 %v2044
        %5243 = vmatprep.subr.mxu0 %v2053
        %5244 = vmatpush1.msra.mxu0 %v2052
        %5245 = vmatprep.subr.mxu0 %v2061
        %5246 = vmatpush1.msra.mxu0 %v2060
        %5247 = vmatprep.subr.mxu0 %v2069
        %5248 = vmatpush1.msra.mxu0 %v2068
        %5249 = vmatprep.subr.mxu0 %v2077
        %5250 = vmatpush1.msra.mxu0 %v2076
        %5251 = vmatprep.subr.mxu0 %v2085
        %5252 = vmatpush1.msra.mxu0 %v2084
        %5253 = vmatprep.subr.mxu0 %v2093
        %5254 = vmatpush1.msra.mxu0 %v2092
        %5255 = vmatprep.subr.mxu0 %v2101
        %5256 = vmatpush1.msra.mxu0 %v2100
        %5257 = vmatprep.subr.mxu0 %v2109
        %5258 = vmatpush1.msra.mxu0 %v2108
        %5259 = vmatprep.subr.mxu0 %v2117
        %5260 = vmatpush1.msra.mxu0 %v2116
        %5261 = vmatprep.subr.mxu0 %v2125
        %5262 = vmatpush1.msra.mxu0 %v2124
        %5263 = vmatprep.subr.mxu0 %v2133
        %5264 = vmatpush1.msra.mxu0 %v2132
        %5265 = vmatprep.subr.mxu0 %v2141
        %5266 = vmatpush1.msra.mxu0 %v2140
        %5267 = vmatprep.subr.mxu0 %v2149
        %5268 = vmatpush1.msra.mxu0 %v2148
        %5269 = vmatprep.subr.mxu0 %v2157
        %5270 = vmatpush1.msra.mxu0 %v2156
        %5271 = vmatprep.subr.mxu0 %v2165
        %5272 = vmatpush1.msra.mxu0 %v2164
        %5273 = vmatprep.subr.mxu0 %v2173
        %5274 = vmatpush1.msra.mxu0 %v2172
        %5275 = vmatprep.subr.mxu0 %v2181
        %5276 = vmatpush1.msra.mxu0 %v2180
        %5277 = vmatprep.subr.mxu0 %v2189
        %5278 = vmatpush1.msra.mxu0 %v2188
        %5279 = vmatprep.subr.mxu0 %v2197
        %5280 = vmatpush1.msra.mxu0 %v2196
        %5281 = vmatprep.subr.mxu0 %v2205
        %5282 = vmatpush1.msra.mxu0 %v2204
        %5283 = vmatprep.subr.mxu0 %v2213
        %5284 = vmatpush1.msra.mxu0 %v2212
        %5285 = vmatprep.subr.mxu0 %v2221
        %5286 = vmatpush1.msra.mxu0 %v2220
        %5287 = vmatprep.subr.mxu0 %v2229
        %5288 = vmatpush1.msra.mxu0 %v2228
        %5289 = vmatprep.subr.mxu0 %v2237
        %5290 = vmatpush1.msra.mxu0 %v2236
        %5291 = vmatprep.subr.mxu0 %v2245
        %5292 = vmatpush1.msra.mxu0 %v2244
        %5293 = vmatprep.mubr.f32.mxu0 %v1213
        %5294 = vmatmul.mubr.f32.gmra.mrb[0].mxu0 %v1212
        %v5295 = vpop.f32.mrb[0].mxu0
        %v5296 = vadd.f32 %v5225, %v5295
        %v5297 = vpop.f32.mrb[0].mxu0
        %v5298 = vadd.f32 %v5227, %v5297
        %5299 = vdwg.mxu0
        %5300 = vmatprep.subr.mxu0 %v2253
        %5301 = vmatpush1.msra.mxu0 %v2252
        %5302 = vmatprep.subr.mxu0 %v2261
        %5303 = vmatpush1.msra.mxu0 %v2260
        %5304 = vmatprep.subr.mxu0 %v2269
        %5305 = vmatpush1.msra.mxu0 %v2268
        %5306 = vmatprep.subr.mxu0 %v2277
        %5307 = vmatpush1.msra.mxu0 %v2276
        %5308 = vmatprep.subr.mxu0 %v2285
        %5309 = vmatpush1.msra.mxu0 %v2284
        %5310 = vmatprep.subr.mxu0 %v2293
        %5311 = vmatpush1.msra.mxu0 %v2292
        %5312 = vmatprep.subr.mxu0 %v2301
        %5313 = vmatpush1.msra.mxu0 %v2300
        %5314 = vmatprep.subr.mxu0 %v2309
        %5315 = vmatpush1.msra.mxu0 %v2308
        %5316 = vmatprep.subr.mxu0 %v2317
        %5317 = vmatpush1.msra.mxu0 %v2316
        %5318 = vmatprep.subr.mxu0 %v2325
        %5319 = vmatpush1.msra.mxu0 %v2324
        %5320 = vmatprep.subr.mxu0 %v2333
        %5321 = vmatpush1.msra.mxu0 %v2332
        %5322 = vmatprep.subr.mxu0 %v2341
        %5323 = vmatpush1.msra.mxu0 %v2340
        %5324 = vmatprep.subr.mxu0 %v2349
        %5325 = vmatpush1.msra.mxu0 %v2348
        %5326 = vmatprep.subr.mxu0 %v2357
        %5327 = vmatpush1.msra.mxu0 %v2356
        %5328 = vmatprep.subr.mxu0 %v2365
        %5329 = vmatpush1.msra.mxu0 %v2364
        %5330 = vmatprep.subr.mxu0 %v2373
        %5331 = vmatpush1.msra.mxu0 %v2372
        %5332 = vmatprep.subr.mxu0 %v2381
        %5333 = vmatpush1.msra.mxu0 %v2380
        %5334 = vmatprep.subr.mxu0 %v2389
        %5335 = vmatpush1.msra.mxu0 %v2388
        %5336 = vmatprep.subr.mxu0 %v2397
        %5337 = vmatpush1.msra.mxu0 %v2396
        %5338 = vmatprep.subr.mxu0 %v2405
        %5339 = vmatpush1.msra.mxu0 %v2404
        %5340 = vmatprep.subr.mxu0 %v2413
        %5341 = vmatpush1.msra.mxu0 %v2412
        %5342 = vmatprep.subr.mxu0 %v2421
        %5343 = vmatpush1.msra.mxu0 %v2420
        %5344 = vmatprep.subr.mxu0 %v2429
        %5345 = vmatpush1.msra.mxu0 %v2428
        %5346 = vmatprep.subr.mxu0 %v2437
        %5347 = vmatpush1.msra.mxu0 %v2436
        %5348 = vmatprep.subr.mxu0 %v2445
        %5349 = vmatpush1.msra.mxu0 %v2444
        %5350 = vmatprep.subr.mxu0 %v2453
        %5351 = vmatpush1.msra.mxu0 %v2452
        %5352 = vmatprep.subr.mxu0 %v2461
        %5353 = vmatpush1.msra.mxu0 %v2460
        %5354 = vmatprep.subr.mxu0 %v2469
        %5355 = vmatpush1.msra.mxu0 %v2468
        %5356 = vmatprep.subr.mxu0 %v2477
        %5357 = vmatpush1.msra.mxu0 %v2476
        %5358 = vmatprep.subr.mxu0 %v2485
        %5359 = vmatpush1.msra.mxu0 %v2484
        %5360 = vmatprep.subr.mxu0 %v2493
        %5361 = vmatpush1.msra.mxu0 %v2492
        %5362 = vmatprep.subr.mxu0 %v2501
        %5363 = vmatpush1.msra.mxu0 %v2500
        %5364 = vmatprep.mubr.f32.mxu0 %v1215
        %5365 = vmatmul.mubr.f32.gmra.mrb[0].mxu0 %v1214
        %v5366 = vpop.f32.mrb[0].mxu0
        %v5367 = vadd.f32 %v5296, %v5366
        %v5368 = vpop.f32.mrb[0].mxu0
        %v5369 = vadd.f32 %v5298, %v5368
        %5370 = vdwg.mxu0
        %5371 = vmatprep.subr.mxu0 %v2509
        %5372 = vmatpush1.msra.mxu0 %v2508
        %5373 = vmatprep.subr.mxu0 %v2517
        %5374 = vmatpush1.msra.mxu0 %v2516
        %5375 = vmatprep.subr.mxu0 %v2525
        %5376 = vmatpush1.msra.mxu0 %v2524
        %5377 = vmatprep.subr.mxu0 %v2533
        %5378 = vmatpush1.msra.mxu0 %v2532
        %5379 = vmatprep.subr.mxu0 %v2541
        %5380 = vmatpush1.msra.mxu0 %v2540
        %5381 = vmatprep.subr.mxu0 %v2549
        %5382 = vmatpush1.msra.mxu0 %v2548
        %5383 = vmatprep.subr.mxu0 %v2557
        %5384 = vmatpush1.msra.mxu0 %v2556
        %5385 = vmatprep.subr.mxu0 %v2565
        %5386 = vmatpush1.msra.mxu0 %v2564
        %5387 = vmatprep.subr.mxu0 %v2573
        %5388 = vmatpush1.msra.mxu0 %v2572
        %5389 = vmatprep.subr.mxu0 %v2581
        %5390 = vmatpush1.msra.mxu0 %v2580
        %5391 = vmatprep.subr.mxu0 %v2589
        %5392 = vmatpush1.msra.mxu0 %v2588
        %5393 = vmatprep.subr.mxu0 %v2597
        %5394 = vmatpush1.msra.mxu0 %v2596
        %5395 = vmatprep.subr.mxu0 %v2605
        %5396 = vmatpush1.msra.mxu0 %v2604
        %5397 = vmatprep.subr.mxu0 %v2613
        %5398 = vmatpush1.msra.mxu0 %v2612
        %5399 = vmatprep.subr.mxu0 %v2621
        %5400 = vmatpush1.msra.mxu0 %v2620
        %5401 = vmatprep.subr.mxu0 %v2629
        %5402 = vmatpush1.msra.mxu0 %v2628
        %5403 = vmatprep.subr.mxu0 %v2637
        %5404 = vmatpush1.msra.mxu0 %v2636
        %5405 = vmatprep.subr.mxu0 %v2645
        %5406 = vmatpush1.msra.mxu0 %v2644
        %5407 = vmatprep.subr.mxu0 %v2653
        %5408 = vmatpush1.msra.mxu0 %v2652
        %5409 = vmatprep.subr.mxu0 %v2661
        %5410 = vmatpush1.msra.mxu0 %v2660
        %5411 = vmatprep.subr.mxu0 %v2669
        %5412 = vmatpush1.msra.mxu0 %v2668
        %5413 = vmatprep.subr.mxu0 %v2677
        %5414 = vmatpush1.msra.mxu0 %v2676
        %5415 = vmatprep.subr.mxu0 %v2685
        %5416 = vmatpush1.msra.mxu0 %v2684
        %5417 = vmatprep.subr.mxu0 %v2693
        %5418 = vmatpush1.msra.mxu0 %v2692
        %5419 = vmatprep.subr.mxu0 %v2701
        %5420 = vmatpush1.msra.mxu0 %v2700
        %5421 = vmatprep.subr.mxu0 %v2709
        %5422 = vmatpush1.msra.mxu0 %v2708
        %5423 = vmatprep.subr.mxu0 %v2717
        %5424 = vmatpush1.msra.mxu0 %v2716
        %5425 = vmatprep.subr.mxu0 %v2725
        %5426 = vmatpush1.msra.mxu0 %v2724
        %5427 = vmatprep.subr.mxu0 %v2733
        %5428 = vmatpush1.msra.mxu0 %v2732
        %5429 = vmatprep.subr.mxu0 %v2741
        %5430 = vmatpush1.msra.mxu0 %v2740
        %5431 = vmatprep.subr.mxu0 %v2749
        %5432 = vmatpush1.msra.mxu0 %v2748
        %5433 = vmatprep.subr.mxu0 %v2757
        %5434 = vmatpush1.msra.mxu0 %v2756
        %5435 = vmatprep.mubr.f32.mxu0 %v1217
        %5436 = vmatmul.mubr.f32.gmra.mrb[0].mxu0 %v1216
        %v5437 = vpop.f32.mrb[0].mxu0
        %v5438 = vadd.f32 %v5367, %v5437
        %v5439 = vpop.f32.mrb[0].mxu0
        %v5440 = vadd.f32 %v5369, %v5439
        %5441 = vdwg.mxu0
        %5442 = vmatprep.subr.mxu0 %v2765
        %5443 = vmatpush1.msra.mxu0 %v2764
        %5444 = vmatprep.subr.mxu0 %v2773
        %5445 = vmatpush1.msra.mxu0 %v2772
        %5446 = vmatprep.subr.mxu0 %v2781
        %5447 = vmatpush1.msra.mxu0 %v2780
        %5448 = vmatprep.subr.mxu0 %v2789
        %5449 = vmatpush1.msra.mxu0 %v2788
        %5450 = vmatprep.subr.mxu0 %v2797
        %5451 = vmatpush1.msra.mxu0 %v2796
        %5452 = vmatprep.subr.mxu0 %v2805
        %5453 = vmatpush1.msra.mxu0 %v2804
        %5454 = vmatprep.subr.mxu0 %v2813
        %5455 = vmatpush1.msra.mxu0 %v2812
        %5456 = vmatprep.subr.mxu0 %v2821
        %5457 = vmatpush1.msra.mxu0 %v2820
        %5458 = vmatprep.subr.mxu0 %v2829
        %5459 = vmatpush1.msra.mxu0 %v2828
        %5460 = vmatprep.subr.mxu0 %v2837
        %5461 = vmatpush1.msra.mxu0 %v2836
        %5462 = vmatprep.subr.mxu0 %v2845
        %5463 = vmatpush1.msra.mxu0 %v2844
        %5464 = vmatprep.subr.mxu0 %v2853
        %5465 = vmatpush1.msra.mxu0 %v2852
        %5466 = vmatprep.subr.mxu0 %v2861
        %5467 = vmatpush1.msra.mxu0 %v2860
        %5468 = vmatprep.subr.mxu0 %v2869
        %5469 = vmatpush1.msra.mxu0 %v2868
        %5470 = vmatprep.subr.mxu0 %v2877
        %5471 = vmatpush1.msra.mxu0 %v2876
        %5472 = vmatprep.subr.mxu0 %v2885
        %5473 = vmatpush1.msra.mxu0 %v2884
        %5474 = vmatprep.subr.mxu0 %v2893
        %5475 = vmatpush1.msra.mxu0 %v2892
        %5476 = vmatprep.subr.mxu0 %v2901
        %5477 = vmatpush1.msra.mxu0 %v2900
        %5478 = vmatprep.subr.mxu0 %v2909
        %5479 = vmatpush1.msra.mxu0 %v2908
        %5480 = vmatprep.subr.mxu0 %v2917
        %5481 = vmatpush1.msra.mxu0 %v2916
        %5482 = vmatprep.subr.mxu0 %v2925
        %5483 = vmatpush1.msra.mxu0 %v2924
        %5484 = vmatprep.subr.mxu0 %v2933
        %5485 = vmatpush1.msra.mxu0 %v2932
        %5486 = vmatprep.subr.mxu0 %v2941
        %5487 = vmatpush1.msra.mxu0 %v2940
        %5488 = vmatprep.subr.mxu0 %v2949
        %5489 = vmatpush1.msra.mxu0 %v2948
        %5490 = vmatprep.subr.mxu0 %v2957
        %5491 = vmatpush1.msra.mxu0 %v2956
        %5492 = vmatprep.subr.mxu0 %v2965
        %5493 = vmatpush1.msra.mxu0 %v2964
        %5494 = vmatprep.subr.mxu0 %v2973
        %5495 = vmatpush1.msra.mxu0 %v2972
        %5496 = vmatprep.subr.mxu0 %v2981
        %5497 = vmatpush1.msra.mxu0 %v2980
        %5498 = vmatprep.subr.mxu0 %v2989
        %5499 = vmatpush1.msra.mxu0 %v2988
        %5500 = vmatprep.subr.mxu0 %v2997
        %5501 = vmatpush1.msra.mxu0 %v2996
        %5502 = vmatprep.subr.mxu0 %v3005
        %5503 = vmatpush1.msra.mxu0 %v3004
        %5504 = vmatprep.subr.mxu0 %v3013
        %5505 = vmatpush1.msra.mxu0 %v3012
        %5506 = vmatprep.mubr.f32.mxu0 %v1219
        %5507 = vmatmul.mubr.f32.gmra.mrb[0].mxu0 %v1218
        %v5508 = vpop.f32.mrb[0].mxu0
        %v5509 = vadd.f32 %v5438, %v5508
        %v5510 = vpop.f32.mrb[0].mxu0
        %v5511 = vadd.f32 %v5440, %v5510
        %5512 = vdwg.mxu0
        %5513 = vmatprep.subr.mxu0 %v3021
        %5514 = vmatpush1.msra.mxu0 %v3020
        %5515 = vmatprep.subr.mxu0 %v3029
        %5516 = vmatpush1.msra.mxu0 %v3028
        %5517 = vmatprep.subr.mxu0 %v3037
        %5518 = vmatpush1.msra.mxu0 %v3036
        %5519 = vmatprep.subr.mxu0 %v3045
        %5520 = vmatpush1.msra.mxu0 %v3044
        %5521 = vmatprep.subr.mxu0 %v3053
        %5522 = vmatpush1.msra.mxu0 %v3052
        %5523 = vmatprep.subr.mxu0 %v3061
        %5524 = vmatpush1.msra.mxu0 %v3060
        %5525 = vmatprep.subr.mxu0 %v3069
        %5526 = vmatpush1.msra.mxu0 %v3068
        %5527 = vmatprep.subr.mxu0 %v3077
        %5528 = vmatpush1.msra.mxu0 %v3076
        %5529 = vmatprep.subr.mxu0 %v3085
        %5530 = vmatpush1.msra.mxu0 %v3084
        %5531 = vmatprep.subr.mxu0 %v3093
        %5532 = vmatpush1.msra.mxu0 %v3092
        %5533 = vmatprep.subr.mxu0 %v3101
        %5534 = vmatpush1.msra.mxu0 %v3100
        %5535 = vmatprep.subr.mxu0 %v3109
        %5536 = vmatpush1.msra.mxu0 %v3108
        %5537 = vmatprep.subr.mxu0 %v3117
        %5538 = vmatpush1.msra.mxu0 %v3116
        %5539 = vmatprep.subr.mxu0 %v3125
        %5540 = vmatpush1.msra.mxu0 %v3124
        %5541 = vmatprep.subr.mxu0 %v3133
        %5542 = vmatpush1.msra.mxu0 %v3132
        %5543 = vmatprep.subr.mxu0 %v3141
        %5544 = vmatpush1.msra.mxu0 %v3140
        %5545 = vmatprep.subr.mxu0 %v3149
        %5546 = vmatpush1.msra.mxu0 %v3148
        %5547 = vmatprep.subr.mxu0 %v3157
        %5548 = vmatpush1.msra.mxu0 %v3156
        %5549 = vmatprep.subr.mxu0 %v3165
        %5550 = vmatpush1.msra.mxu0 %v3164
        %5551 = vmatprep.subr.mxu0 %v3173
        %5552 = vmatpush1.msra.mxu0 %v3172
        %5553 = vmatprep.subr.mxu0 %v3181
        %5554 = vmatpush1.msra.mxu0 %v3180
        %5555 = vmatprep.subr.mxu0 %v3189
        %5556 = vmatpush1.msra.mxu0 %v3188
        %5557 = vmatprep.subr.mxu0 %v3197
        %5558 = vmatpush1.msra.mxu0 %v3196
        %5559 = vmatprep.subr.mxu0 %v3205
        %5560 = vmatpush1.msra.mxu0 %v3204
        %5561 = vmatprep.subr.mxu0 %v3213
        %5562 = vmatpush1.msra.mxu0 %v3212
        %5563 = vmatprep.subr.mxu0 %v3221
        %5564 = vmatpush1.msra.mxu0 %v3220
        %5565 = vmatprep.subr.mxu0 %v3229
        %5566 = vmatpush1.msra.mxu0 %v3228
        %5567 = vmatprep.subr.mxu0 %v3237
        %5568 = vmatpush1.msra.mxu0 %v3236
        %5569 = vmatprep.subr.mxu0 %v3245
        %5570 = vmatpush1.msra.mxu0 %v3244
        %5571 = vmatprep.subr.mxu0 %v3253
        %5572 = vmatpush1.msra.mxu0 %v3252
        %5573 = vmatprep.subr.mxu0 %v3261
        %5574 = vmatpush1.msra.mxu0 %v3260
        %5575 = vmatprep.subr.mxu0 %v3269
        %5576 = vmatpush1.msra.mxu0 %v3268
        %5577 = vmatprep.mubr.f32.mxu0 %v1221
        %5578 = vmatmul.mubr.f32.gmra.mrb[0].mxu0 %v1220
        %v5579 = vpop.f32.mrb[0].mxu0
        %v5580 = vadd.f32 %v5509, %v5579
        %v5581 = vpop.f32.mrb[0].mxu0
        %v5582 = vadd.f32 %v5511, %v5581
        %5583 = vdwg.mxu0
        %vm5584 = vcmp.ge.f32.partialorder %v3876, 0.0
        %vm5585 = vcmp.ge.f32.partialorder %v3878, 0.0
        %vm5586 = vcmp.ge.f32.partialorder %v4444, 0.0
        %vm5587 = vcmp.ge.f32.partialorder %v4446, 0.0
        %vm5588 = vcmp.ge.f32.partialorder %v5012, 0.0
        %vm5589 = vcmp.ge.f32.partialorder %v5014, 0.0
        %vm5590 = vcmp.ge.f32.partialorder %v5580, 0.0
        %vm5591 = vcmp.ge.f32.partialorder %v5582, 0.0
        %v5592 = vmul.f32 %v3876, 0.01
        %v5593 = vmul.f32 %v3878, 0.01
        %v5594 = vmul.f32 %v4444, 0.01
        %v5595 = vmul.f32 %v4446, 0.01
        %v5596 = vmul.f32 %v5012, 0.01
        %v5597 = vmul.f32 %v5014, 0.01
        %v5598 = vmul.f32 %v5580, 0.01
        %v5599 = vmul.f32 %v5582, 0.01
        %v5600 = vsel %vm5584, %v3876, %v5592
        %v5601 = vsel %vm5585, %v3878, %v5593
        %v5602 = vsel %vm5586, %v4444, %v5594
        %v5603 = vsel %vm5587, %v4446, %v5595
        %v5604 = vsel %vm5588, %v5012, %v5596
        %v5605 = vsel %vm5589, %v5014, %v5597
        %v5606 = vsel %vm5590, %v5580, %v5598
        %v5607 = vsel %vm5591, %v5582, %v5599
        %v5608 = vld [vmem:[#allocation12] sm:$0xff]
        %v5609 = vld [vmem:[%s406] sm:$0xff]
        %v5610 = vld [vmem:[%s406 + $0x8] sm:$0xff]
        %v5611 = vld [vmem:[%s406 + $0x10] sm:$0xff]
        %v5612 = vld [vmem:[%s406 + $0x18] sm:$0xff]
        %v5613 = vld [vmem:[%s406 + $0x20] sm:$0xff]
        %v5614 = vld [vmem:[%s406 + $0x28] sm:$0xff]
        %v5615 = vld [vmem:[%s406 + $0x30] sm:$0xff]
        %v5616 = vld [vmem:[%s406 + $0x38] sm:$0xff]
        %v5617 = vld [vmem:[%s406 + $0x40] sm:$0xff]
        %v5618 = vld [vmem:[%s406 + $0x48] sm:$0xff]
        %v5619 = vld [vmem:[%s406 + $0x50] sm:$0xff]
        %v5620 = vld [vmem:[%s406 + $0x58] sm:$0xff]
        %v5621 = vld [vmem:[%s406 + $0x60] sm:$0xff]
        %v5622 = vld [vmem:[%s406 + $0x68] sm:$0xff]
        %v5623 = vld [vmem:[%s406 + $0x70] sm:$0xff]
        %v5624 = vld [vmem:[%s406 + $0x78] sm:$0xff]
        %v5625 = vld [vmem:[%s406 + $0x80] sm:$0xff]
        %v5626 = vld [vmem:[%s406 + $0x88] sm:$0xff]
        %v5627 = vld [vmem:[%s406 + $0x90] sm:$0xff]
        %v5628 = vld [vmem:[%s406 + $0x98] sm:$0xff]
        %v5629 = vld [vmem:[%s406 + $0xa0] sm:$0xff]
        %v5630 = vld [vmem:[%s406 + $0xa8] sm:$0xff]
        %v5631 = vld [vmem:[%s406 + $0xb0] sm:$0xff]
        %v5632 = vld [vmem:[%s406 + $0xb8] sm:$0xff]
        %v5633 = vld [vmem:[%s406 + $0xc0] sm:$0xff]
        %v5634 = vld [vmem:[%s406 + $0xc8] sm:$0xff]
        %v5635 = vld [vmem:[%s406 + $0xd0] sm:$0xff]
        %v5636 = vld [vmem:[%s406 + $0xd8] sm:$0xff]
        %v5637 = vld [vmem:[%s406 + $0xe0] sm:$0xff]
        %v5638 = vld [vmem:[%s406 + $0xe8] sm:$0xff]
        %v5639 = vld [vmem:[%s406 + $0xf0] sm:$0xff]
        %v5640 = vld [vmem:[%s406 + $0xf8] sm:$0xff]
        %v5641 = vld [vmem:[%s406 + $0x100] sm:$0xff]
        %v5642 = vld [vmem:[%s406 + $0x108] sm:$0xff]
        %v5643 = vld [vmem:[%s406 + $0x110] sm:$0xff]
        %v5644 = vld [vmem:[%s406 + $0x118] sm:$0xff]
        %v5645 = vld [vmem:[%s406 + $0x120] sm:$0xff]
        %v5646 = vld [vmem:[%s406 + $0x128] sm:$0xff]
        %v5647 = vld [vmem:[%s406 + $0x130] sm:$0xff]
        %v5648 = vld [vmem:[%s406 + $0x138] sm:$0xff]
        %v5649 = vld [vmem:[%s406 + $0x140] sm:$0xff]
        %v5650 = vld [vmem:[%s406 + $0x148] sm:$0xff]
        %v5651 = vld [vmem:[%s406 + $0x150] sm:$0xff]
        %v5652 = vld [vmem:[%s406 + $0x158] sm:$0xff]
        %v5653 = vld [vmem:[%s406 + $0x160] sm:$0xff]
        %v5654 = vld [vmem:[%s406 + $0x168] sm:$0xff]
        %v5655 = vld [vmem:[%s406 + $0x170] sm:$0xff]
        %v5656 = vld [vmem:[%s406 + $0x178] sm:$0xff]
        %v5657 = vld [vmem:[%s406 + $0x180] sm:$0xff]
        %v5658 = vld [vmem:[%s406 + $0x188] sm:$0xff]
        %v5659 = vld [vmem:[%s406 + $0x190] sm:$0xff]
        %v5660 = vld [vmem:[%s406 + $0x198] sm:$0xff]
        %v5661 = vld [vmem:[%s406 + $0x1a0] sm:$0xff]
        %v5662 = vld [vmem:[%s406 + $0x1a8] sm:$0xff]
        %v5663 = vld [vmem:[%s406 + $0x1b0] sm:$0xff]
        %v5664 = vld [vmem:[%s406 + $0x1b8] sm:$0xff]
        %v5665 = vld [vmem:[%s406 + $0x1c0] sm:$0xff]
        %v5666 = vld [vmem:[%s406 + $0x1c8] sm:$0xff]
        %v5667 = vld [vmem:[%s406 + $0x1d0] sm:$0xff]
        %v5668 = vld [vmem:[%s406 + $0x1d8] sm:$0xff]
        %v5669 = vld [vmem:[%s406 + $0x1e0] sm:$0xff]
        %v5670 = vld [vmem:[%s406 + $0x1e8] sm:$0xff]
        %v5671 = vld [vmem:[%s406 + $0x1f0] sm:$0xff]
        %v5672 = vld [vmem:[%s406 + $0x1f8] sm:$0xff]
        %v5673 = vld [vmem:[%s406 + $0x200] sm:$0xff]
        %v5674 = vld [vmem:[%s406 + $0x208] sm:$0xff]
        %v5675 = vld [vmem:[%s406 + $0x210] sm:$0xff]
        %v5676 = vld [vmem:[%s406 + $0x218] sm:$0xff]
        %v5677 = vld [vmem:[%s406 + $0x220] sm:$0xff]
        %v5678 = vld [vmem:[%s406 + $0x228] sm:$0xff]
        %v5679 = vld [vmem:[%s406 + $0x230] sm:$0xff]
        %v5680 = vld [vmem:[%s406 + $0x238] sm:$0xff]
        %v5681 = vld [vmem:[%s406 + $0x240] sm:$0xff]
        %v5682 = vld [vmem:[%s406 + $0x248] sm:$0xff]
        %v5683 = vld [vmem:[%s406 + $0x250] sm:$0xff]
        %v5684 = vld [vmem:[%s406 + $0x258] sm:$0xff]
        %v5685 = vld [vmem:[%s406 + $0x260] sm:$0xff]
        %v5686 = vld [vmem:[%s406 + $0x268] sm:$0xff]
        %v5687 = vld [vmem:[%s406 + $0x270] sm:$0xff]
        %v5688 = vld [vmem:[%s406 + $0x278] sm:$0xff]
        %v5689 = vld [vmem:[%s406 + $0x280] sm:$0xff]
        %v5690 = vld [vmem:[%s406 + $0x288] sm:$0xff]
        %v5691 = vld [vmem:[%s406 + $0x290] sm:$0xff]
        %v5692 = vld [vmem:[%s406 + $0x298] sm:$0xff]
        %v5693 = vld [vmem:[%s406 + $0x2a0] sm:$0xff]
        %v5694 = vld [vmem:[%s406 + $0x2a8] sm:$0xff]
        %v5695 = vld [vmem:[%s406 + $0x2b0] sm:$0xff]
        %v5696 = vld [vmem:[%s406 + $0x2b8] sm:$0xff]
        %v5697 = vld [vmem:[%s406 + $0x2c0] sm:$0xff]
        %v5698 = vld [vmem:[%s406 + $0x2c8] sm:$0xff]
        %v5699 = vld [vmem:[%s406 + $0x2d0] sm:$0xff]
        %v5700 = vld [vmem:[%s406 + $0x2d8] sm:$0xff]
        %v5701 = vld [vmem:[%s406 + $0x2e0] sm:$0xff]
        %v5702 = vld [vmem:[%s406 + $0x2e8] sm:$0xff]
        %v5703 = vld [vmem:[%s406 + $0x2f0] sm:$0xff]
        %v5704 = vld [vmem:[%s406 + $0x2f8] sm:$0xff]
        %v5705 = vld [vmem:[%s406 + $0x300] sm:$0xff]
        %v5706 = vld [vmem:[%s406 + $0x308] sm:$0xff]
        %v5707 = vld [vmem:[%s406 + $0x310] sm:$0xff]
        %v5708 = vld [vmem:[%s406 + $0x318] sm:$0xff]
        %v5709 = vld [vmem:[%s406 + $0x320] sm:$0xff]
        %v5710 = vld [vmem:[%s406 + $0x328] sm:$0xff]
        %v5711 = vld [vmem:[%s406 + $0x330] sm:$0xff]
        %v5712 = vld [vmem:[%s406 + $0x338] sm:$0xff]
        %v5713 = vld [vmem:[%s406 + $0x340] sm:$0xff]
        %v5714 = vld [vmem:[%s406 + $0x348] sm:$0xff]
        %v5715 = vld [vmem:[%s406 + $0x350] sm:$0xff]
        %v5716 = vld [vmem:[%s406 + $0x358] sm:$0xff]
        %v5717 = vld [vmem:[%s406 + $0x360] sm:$0xff]
        %v5718 = vld [vmem:[%s406 + $0x368] sm:$0xff]
        %v5719 = vld [vmem:[%s406 + $0x370] sm:$0xff]
        %v5720 = vld [vmem:[%s406 + $0x378] sm:$0xff]
        %v5721 = vld [vmem:[%s406 + $0x380] sm:$0xff]
        %v5722 = vld [vmem:[%s406 + $0x388] sm:$0xff]
        %v5723 = vld [vmem:[%s406 + $0x390] sm:$0xff]
        %v5724 = vld [vmem:[%s406 + $0x398] sm:$0xff]
        %v5725 = vld [vmem:[%s406 + $0x3a0] sm:$0xff]
        %v5726 = vld [vmem:[%s406 + $0x3a8] sm:$0xff]
        %v5727 = vld [vmem:[%s406 + $0x3b0] sm:$0xff]
        %v5728 = vld [vmem:[%s406 + $0x3b8] sm:$0xff]
        %v5729 = vld [vmem:[%s406 + $0x3c0] sm:$0xff]
        %v5730 = vld [vmem:[%s406 + $0x3c8] sm:$0xff]
        %v5731 = vld [vmem:[%s406 + $0x3d0] sm:$0xff]
        %v5732 = vld [vmem:[%s406 + $0x3d8] sm:$0xff]
        %v5733 = vld [vmem:[%s406 + $0x3e0] sm:$0xff]
        %v5734 = vld [vmem:[%s406 + $0x3e8] sm:$0xff]
        %v5735 = vld [vmem:[%s406 + $0x3f0] sm:$0xff]
        %v5736 = vld [vmem:[%s406 + $0x3f8] sm:$0xff]
        %5737 = vmatprep.subr.mxu0 0.0
        %5738 = vmatpush1.msra.mxu0 %v5609
        %5739 = vmatprep.subr.mxu0 0.0
        %5740 = vmatpush1.msra.mxu0 %v5610
        %5741 = vmatprep.subr.mxu0 0.0
        %5742 = vmatpush1.msra.mxu0 %v5611
        %5743 = vmatprep.subr.mxu0 0.0
        %5744 = vmatpush1.msra.mxu0 %v5612
        %5745 = vmatprep.subr.mxu0 0.0
        %5746 = vmatpush1.msra.mxu0 %v5613
        %5747 = vmatprep.subr.mxu0 0.0
        %5748 = vmatpush1.msra.mxu0 %v5614
        %5749 = vmatprep.subr.mxu0 0.0
        %5750 = vmatpush1.msra.mxu0 %v5615
        %5751 = vmatprep.subr.mxu0 0.0
        %5752 = vmatpush1.msra.mxu0 %v5616
        %5753 = vmatprep.subr.mxu0 0.0
        %5754 = vmatpush1.msra.mxu0 %v5617
        %5755 = vmatprep.subr.mxu0 0.0
        %5756 = vmatpush1.msra.mxu0 %v5618
        %5757 = vmatprep.subr.mxu0 0.0
        %5758 = vmatpush1.msra.mxu0 %v5619
        %5759 = vmatprep.subr.mxu0 0.0
        %5760 = vmatpush1.msra.mxu0 %v5620
        %5761 = vmatprep.subr.mxu0 0.0
        %5762 = vmatpush1.msra.mxu0 %v5621
        %5763 = vmatprep.subr.mxu0 0.0
        %5764 = vmatpush1.msra.mxu0 %v5622
        %5765 = vmatprep.subr.mxu0 0.0
        %5766 = vmatpush1.msra.mxu0 %v5623
        %5767 = vmatprep.subr.mxu0 0.0
        %5768 = vmatpush1.msra.mxu0 %v5624
        %5769 = vmatprep.subr.mxu0 0.0
        %5770 = vmatpush1.msra.mxu0 %v5625
        %5771 = vmatprep.subr.mxu0 0.0
        %5772 = vmatpush1.msra.mxu0 %v5626
        %5773 = vmatprep.subr.mxu0 0.0
        %5774 = vmatpush1.msra.mxu0 %v5627
        %5775 = vmatprep.subr.mxu0 0.0
        %5776 = vmatpush1.msra.mxu0 %v5628
        %5777 = vmatprep.subr.mxu0 0.0
        %5778 = vmatpush1.msra.mxu0 %v5629
        %5779 = vmatprep.subr.mxu0 0.0
        %5780 = vmatpush1.msra.mxu0 %v5630
        %5781 = vmatprep.subr.mxu0 0.0
        %5782 = vmatpush1.msra.mxu0 %v5631
        %5783 = vmatprep.subr.mxu0 0.0
        %5784 = vmatpush1.msra.mxu0 %v5632
        %5785 = vmatprep.subr.mxu0 0.0
        %5786 = vmatpush1.msra.mxu0 %v5633
        %5787 = vmatprep.subr.mxu0 0.0
        %5788 = vmatpush1.msra.mxu0 %v5634
        %5789 = vmatprep.subr.mxu0 0.0
        %5790 = vmatpush1.msra.mxu0 %v5635
        %5791 = vmatprep.subr.mxu0 0.0
        %5792 = vmatpush1.msra.mxu0 %v5636
        %5793 = vmatprep.subr.mxu0 0.0
        %5794 = vmatpush1.msra.mxu0 %v5637
        %5795 = vmatprep.subr.mxu0 0.0
        %5796 = vmatpush1.msra.mxu0 %v5638
        %5797 = vmatprep.subr.mxu0 0.0
        %5798 = vmatpush1.msra.mxu0 %v5639
        %5799 = vmatprep.subr.mxu0 0.0
        %5800 = vmatpush1.msra.mxu0 %v5640
        %5801 = vmatprep.mubr.f32.mxu0 %v5601
        %5802 = vmatmul.mubr.f32.gmra.mrb[0].mxu0 %v5600
        %v5803 = vpop.f32.mrb[0].mxu0
        %v5804 = vadd.f32 0.0, %v5803
        %v5805 = vpop.f32.mrb[0].mxu0
        %5806 = vdwg.mxu0
        %5807 = vmatprep.subr.mxu0 0.0
        %5808 = vmatpush1.msra.mxu0 %v5641
        %5809 = vmatprep.subr.mxu0 0.0
        %5810 = vmatpush1.msra.mxu0 %v5642
        %5811 = vmatprep.subr.mxu0 0.0
        %5812 = vmatpush1.msra.mxu0 %v5643
        %5813 = vmatprep.subr.mxu0 0.0
        %5814 = vmatpush1.msra.mxu0 %v5644
        %5815 = vmatprep.subr.mxu0 0.0
        %5816 = vmatpush1.msra.mxu0 %v5645
        %5817 = vmatprep.subr.mxu0 0.0
        %5818 = vmatpush1.msra.mxu0 %v5646
        %5819 = vmatprep.subr.mxu0 0.0
        %5820 = vmatpush1.msra.mxu0 %v5647
        %5821 = vmatprep.subr.mxu0 0.0
        %5822 = vmatpush1.msra.mxu0 %v5648
        %5823 = vmatprep.subr.mxu0 0.0
        %5824 = vmatpush1.msra.mxu0 %v5649
        %5825 = vmatprep.subr.mxu0 0.0
        %5826 = vmatpush1.msra.mxu0 %v5650
        %5827 = vmatprep.subr.mxu0 0.0
        %5828 = vmatpush1.msra.mxu0 %v5651
        %5829 = vmatprep.subr.mxu0 0.0
        %5830 = vmatpush1.msra.mxu0 %v5652
        %5831 = vmatprep.subr.mxu0 0.0
        %5832 = vmatpush1.msra.mxu0 %v5653
        %5833 = vmatprep.subr.mxu0 0.0
        %5834 = vmatpush1.msra.mxu0 %v5654
        %5835 = vmatprep.subr.mxu0 0.0
        %5836 = vmatpush1.msra.mxu0 %v5655
        %5837 = vmatprep.subr.mxu0 0.0
        %5838 = vmatpush1.msra.mxu0 %v5656
        %5839 = vmatprep.subr.mxu0 0.0
        %5840 = vmatpush1.msra.mxu0 %v5657
        %5841 = vmatprep.subr.mxu0 0.0
        %5842 = vmatpush1.msra.mxu0 %v5658
        %5843 = vmatprep.subr.mxu0 0.0
        %5844 = vmatpush1.msra.mxu0 %v5659
        %5845 = vmatprep.subr.mxu0 0.0
        %5846 = vmatpush1.msra.mxu0 %v5660
        %5847 = vmatprep.subr.mxu0 0.0
        %5848 = vmatpush1.msra.mxu0 %v5661
        %5849 = vmatprep.subr.mxu0 0.0
        %5850 = vmatpush1.msra.mxu0 %v5662
        %5851 = vmatprep.subr.mxu0 0.0
        %5852 = vmatpush1.msra.mxu0 %v5663
        %5853 = vmatprep.subr.mxu0 0.0
        %5854 = vmatpush1.msra.mxu0 %v5664
        %5855 = vmatprep.subr.mxu0 0.0
        %5856 = vmatpush1.msra.mxu0 %v5665
        %5857 = vmatprep.subr.mxu0 0.0
        %5858 = vmatpush1.msra.mxu0 %v5666
        %5859 = vmatprep.subr.mxu0 0.0
        %5860 = vmatpush1.msra.mxu0 %v5667
        %5861 = vmatprep.subr.mxu0 0.0
        %5862 = vmatpush1.msra.mxu0 %v5668
        %5863 = vmatprep.subr.mxu0 0.0
        %5864 = vmatpush1.msra.mxu0 %v5669
        %5865 = vmatprep.subr.mxu0 0.0
        %5866 = vmatpush1.msra.mxu0 %v5670
        %5867 = vmatprep.subr.mxu0 0.0
        %5868 = vmatpush1.msra.mxu0 %v5671
        %5869 = vmatprep.subr.mxu0 0.0
        %5870 = vmatpush1.msra.mxu0 %v5672
        %5871 = vmatprep.mubr.f32.mxu0 %v5603
        %5872 = vmatmul.mubr.f32.gmra.mrb[0].mxu0 %v5602
        %v5873 = vpop.f32.mrb[0].mxu0
        %v5874 = vadd.f32 %v5804, %v5873
        %v5875 = vpop.f32.mrb[0].mxu0
        %5876 = vdwg.mxu0
        %5877 = vmatprep.subr.mxu0 0.0
        %5878 = vmatpush1.msra.mxu0 %v5673
        %5879 = vmatprep.subr.mxu0 0.0
        %5880 = vmatpush1.msra.mxu0 %v5674
        %5881 = vmatprep.subr.mxu0 0.0
        %5882 = vmatpush1.msra.mxu0 %v5675
        %5883 = vmatprep.subr.mxu0 0.0
        %5884 = vmatpush1.msra.mxu0 %v5676
        %5885 = vmatprep.subr.mxu0 0.0
        %5886 = vmatpush1.msra.mxu0 %v5677
        %5887 = vmatprep.subr.mxu0 0.0
        %5888 = vmatpush1.msra.mxu0 %v5678
        %5889 = vmatprep.subr.mxu0 0.0
        %5890 = vmatpush1.msra.mxu0 %v5679
        %5891 = vmatprep.subr.mxu0 0.0
        %5892 = vmatpush1.msra.mxu0 %v5680
        %5893 = vmatprep.subr.mxu0 0.0
        %5894 = vmatpush1.msra.mxu0 %v5681
        %5895 = vmatprep.subr.mxu0 0.0
        %5896 = vmatpush1.msra.mxu0 %v5682
        %5897 = vmatprep.subr.mxu0 0.0
        %5898 = vmatpush1.msra.mxu0 %v5683
        %5899 = vmatprep.subr.mxu0 0.0
        %5900 = vmatpush1.msra.mxu0 %v5684
        %5901 = vmatprep.subr.mxu0 0.0
        %5902 = vmatpush1.msra.mxu0 %v5685
        %5903 = vmatprep.subr.mxu0 0.0
        %5904 = vmatpush1.msra.mxu0 %v5686
        %5905 = vmatprep.subr.mxu0 0.0
        %5906 = vmatpush1.msra.mxu0 %v5687
        %5907 = vmatprep.subr.mxu0 0.0
        %5908 = vmatpush1.msra.mxu0 %v5688
        %5909 = vmatprep.subr.mxu0 0.0
        %5910 = vmatpush1.msra.mxu0 %v5689
        %5911 = vmatprep.subr.mxu0 0.0
        %5912 = vmatpush1.msra.mxu0 %v5690
        %5913 = vmatprep.subr.mxu0 0.0
        %5914 = vmatpush1.msra.mxu0 %v5691
        %5915 = vmatprep.subr.mxu0 0.0
        %5916 = vmatpush1.msra.mxu0 %v5692
        %5917 = vmatprep.subr.mxu0 0.0
        %5918 = vmatpush1.msra.mxu0 %v5693
        %5919 = vmatprep.subr.mxu0 0.0
        %5920 = vmatpush1.msra.mxu0 %v5694
        %5921 = vmatprep.subr.mxu0 0.0
        %5922 = vmatpush1.msra.mxu0 %v5695
        %5923 = vmatprep.subr.mxu0 0.0
        %5924 = vmatpush1.msra.mxu0 %v5696
        %5925 = vmatprep.subr.mxu0 0.0
        %5926 = vmatpush1.msra.mxu0 %v5697
        %5927 = vmatprep.subr.mxu0 0.0
        %5928 = vmatpush1.msra.mxu0 %v5698
        %5929 = vmatprep.subr.mxu0 0.0
        %5930 = vmatpush1.msra.mxu0 %v5699
        %5931 = vmatprep.subr.mxu0 0.0
        %5932 = vmatpush1.msra.mxu0 %v5700
        %5933 = vmatprep.subr.mxu0 0.0
        %5934 = vmatpush1.msra.mxu0 %v5701
        %5935 = vmatprep.subr.mxu0 0.0
        %5936 = vmatpush1.msra.mxu0 %v5702
        %5937 = vmatprep.subr.mxu0 0.0
        %5938 = vmatpush1.msra.mxu0 %v5703
        %5939 = vmatprep.subr.mxu0 0.0
        %5940 = vmatpush1.msra.mxu0 %v5704
        %5941 = vmatprep.mubr.f32.mxu0 %v5605
        %5942 = vmatmul.mubr.f32.gmra.mrb[0].mxu0 %v5604
        %v5943 = vpop.f32.mrb[0].mxu0
        %v5944 = vadd.f32 %v5874, %v5943
        %v5945 = vpop.f32.mrb[0].mxu0
        %5946 = vdwg.mxu0
        %5947 = vmatprep.subr.mxu0 0.0
        %5948 = vmatpush1.msra.mxu0 %v5705
        %5949 = vmatprep.subr.mxu0 0.0
        %5950 = vmatpush1.msra.mxu0 %v5706
        %5951 = vmatprep.subr.mxu0 0.0
        %5952 = vmatpush1.msra.mxu0 %v5707
        %5953 = vmatprep.subr.mxu0 0.0
        %5954 = vmatpush1.msra.mxu0 %v5708
        %5955 = vmatprep.subr.mxu0 0.0
        %5956 = vmatpush1.msra.mxu0 %v5709
        %5957 = vmatprep.subr.mxu0 0.0
        %5958 = vmatpush1.msra.mxu0 %v5710
        %5959 = vmatprep.subr.mxu0 0.0
        %5960 = vmatpush1.msra.mxu0 %v5711
        %5961 = vmatprep.subr.mxu0 0.0
        %5962 = vmatpush1.msra.mxu0 %v5712
        %5963 = vmatprep.subr.mxu0 0.0
        %5964 = vmatpush1.msra.mxu0 %v5713
        %5965 = vmatprep.subr.mxu0 0.0
        %5966 = vmatpush1.msra.mxu0 %v5714
        %5967 = vmatprep.subr.mxu0 0.0
        %5968 = vmatpush1.msra.mxu0 %v5715
        %5969 = vmatprep.subr.mxu0 0.0
        %5970 = vmatpush1.msra.mxu0 %v5716
        %5971 = vmatprep.subr.mxu0 0.0
        %5972 = vmatpush1.msra.mxu0 %v5717
        %5973 = vmatprep.subr.mxu0 0.0
        %5974 = vmatpush1.msra.mxu0 %v5718
        %5975 = vmatprep.subr.mxu0 0.0
        %5976 = vmatpush1.msra.mxu0 %v5719
        %5977 = vmatprep.subr.mxu0 0.0
        %5978 = vmatpush1.msra.mxu0 %v5720
        %5979 = vmatprep.subr.mxu0 0.0
        %5980 = vmatpush1.msra.mxu0 %v5721
        %5981 = vmatprep.subr.mxu0 0.0
        %5982 = vmatpush1.msra.mxu0 %v5722
        %5983 = vmatprep.subr.mxu0 0.0
        %5984 = vmatpush1.msra.mxu0 %v5723
        %5985 = vmatprep.subr.mxu0 0.0
        %5986 = vmatpush1.msra.mxu0 %v5724
        %5987 = vmatprep.subr.mxu0 0.0
        %5988 = vmatpush1.msra.mxu0 %v5725
        %5989 = vmatprep.subr.mxu0 0.0
        %5990 = vmatpush1.msra.mxu0 %v5726
        %5991 = vmatprep.subr.mxu0 0.0
        %5992 = vmatpush1.msra.mxu0 %v5727
        %5993 = vmatprep.subr.mxu0 0.0
        %5994 = vmatpush1.msra.mxu0 %v5728
        %5995 = vmatprep.subr.mxu0 0.0
        %5996 = vmatpush1.msra.mxu0 %v5729
        %5997 = vmatprep.subr.mxu0 0.0
        %5998 = vmatpush1.msra.mxu0 %v5730
        %5999 = vmatprep.subr.mxu0 0.0
        %6000 = vmatpush1.msra.mxu0 %v5731
        %6001 = vmatprep.subr.mxu0 0.0
        %6002 = vmatpush1.msra.mxu0 %v5732
        %6003 = vmatprep.subr.mxu0 0.0
        %6004 = vmatpush1.msra.mxu0 %v5733
        %6005 = vmatprep.subr.mxu0 0.0
        %6006 = vmatpush1.msra.mxu0 %v5734
        %6007 = vmatprep.subr.mxu0 0.0
        %6008 = vmatpush1.msra.mxu0 %v5735
        %6009 = vmatprep.subr.mxu0 0.0
        %6010 = vmatpush1.msra.mxu0 %v5736
        %6011 = vmatprep.mubr.f32.mxu0 %v5607
        %6012 = vmatmul.mubr.f32.gmra.mrb[0].mxu0 %v5606
        %v6013 = vpop.f32.mrb[0].mxu0
        %v6014 = vadd.f32 %v5944, %v6013
        %v6015 = vpop.f32.mrb[0].mxu0
        %6016 = vdwg.mxu0
        %v6017 = vadd.f32 %v5608, %v6014
        %6018 = vst [vmem:[#allocation12] sm:$0xff] %v6017
        // Predicated region
        $region73: #{larger_mlp_forward.1} parent=47 // pred_check
          %p6019 = pneg %p221
        $region74: #{larger_mlp_forward.1} parent=47 // pred_check_branch
          %6021 = sbr.rel (%p6019) target = $region76
        $region75: #{larger_mlp_forward.1} parent=47 // pred_region
          %s6023 = ssub.s32 128, 128
          %6024 = vsyncadd [#allocation5], %s6023
          %s6025 = smul.addr %s28, 128
          %s6026 = scalar_lea.hbm %s7, %s6025
          %s6028 = sshll.u32 [#allocation12], 4
          %s6029 = int_to_ptr.vmem [resolvable:$true] %s6028
          %6031 = dma.vmem_to_hbm [thread:$0]  %s6029, 128, %s6026, [#allocation5]
        $region76: #{larger_mlp_forward.1} parent=47 // pred_fallthru
          _
        // Predicated region
        $region77: #{larger_mlp_forward.1} parent=47 // pred_check
          %p6032 = pneg %p221
        $region78: #{larger_mlp_forward.1} parent=47 // pred_check_branch
          %6034 = sbr.rel (%p6032) target = $region80
        $region79: #{larger_mlp_forward.1} parent=47 // pred_region
          %6035 = dma.done [#allocation5], 128
        $region80: #{larger_mlp_forward.1} parent=47 // pred_fallthru
          _
      $region48: #{larger_mlp_forward.1} parent=5 // pred_fallthru
        _
      %p6036 = scmp.le.s32.totalorder 2, %s19
      // Predicated region
      $region81: #{larger_mlp_forward.1} parent=5 // pred_check
        %p6037 = pneg %p6036
      $region82: #{larger_mlp_forward.1} parent=5 // pred_check_branch
        %6039 = sbr.rel (%p6037) target = $region84
      $region83: #{larger_mlp_forward.1} parent=5 // pred_region
        %s6040 = ssub.s32 %s19, 2
      $region84: #{larger_mlp_forward.1} parent=5 // pred_fallthru
        _
    $region6: #{larger_mlp_forward.1} parent=1 // loop_footer
      %s23 = sadd.s32 1, %s19
    $region7: #{larger_mlp_forward.1} parent=1 // loop_footer_branch
      %18 = sbr.rel target = $region3
    $region8: #{larger_mlp_forward.1} parent=1 // loop_exit
      _
    %6041 = vsyncpa [#allocation4], 1
    %s6042 = scalar_lea.sflag [#allocation4], 1
    %6043 = vsyncpa %s6042, 1
    %6044 = vsyncpa [#allocation7], 1
    %6045 = vsyncpa [#allocation10], 1
    %s6046 = scalar_lea.sflag [#allocation10], 1
    %6047 = vsyncpa %s6046, 1
    %6048 = vsyncpa [#allocation5], 1
    %s6049 = scalar_lea.sflag [#allocation5], 1
    %6050 = vsyncpa %s6049, 1

</llo_original>
